<compile_context>
chip_gen: v5e
topology: v5e:2x2
jax: 0.10.0
libtpu: 0.0.40
codegen_flags: <defaults>
</compile_context>

<pallas_src>
import numpy as np
import jax
import jax.numpy as jnp
from jax.experimental import pallas as pl
from jax.experimental.pallas import tpu as pltpu

EPS = 1e-5                       # nn.BatchNorm2d default eps
KSIZE = 5
SPATIAL = 32                     # model_input_shape = (1, 32, 32)
CONV_CHANNELS = [(1, 4), (4, 5), (5, 6), (6, 8), (8, 12), (12, 16)]
FC_DIMS = [(16 * 8 * 8, 512), (512, 256), (256, 64), (64, 16)]
N_CONV = len(CONV_CHANNELS)
N_FC = len(FC_DIMS)


def _layer_dims():
    dims = []
    h = SPATIAL
    for cin, cout in CONV_CHANNELS:
        oh = h - KSIZE + 1
        dims.append((h, oh, h * cin, oh * cout))      # (h_in, h_out, l_in, l_out)
        h = oh
    return dims


LAYER_DIMS = _layer_dims()
MAX_L = max(max(l_in, l_out) for (_, _, l_in, l_out) in LAYER_DIMS)   # 144


# ------------------------------ fused forward kernel ------------------------------

def _fused_net_kernel(x_ref, m_ref, p_ref, gb_ref, w1_ref, w234_ref, fcb_ref, o_ref):
    n_rows = x_ref.shape[0]                      # N * 32
    n_batch = n_rows // SPATIAL

    # Row index within each image's 32-row window (masks garbage rows out of BN stats).
    row_in_img = jax.lax.broadcasted_iota(jnp.int32, (n_rows, 1), 0) % SPATIAL

    # Input preprocessing (x - 0.5) * 2 fused as 2*x - 1.
    act = x_ref[...] * 2.0 - 1.0                 # (N*32, 32) f32

    for li, (h_in, oh, l_in, l_out) in enumerate(LAYER_DIMS):
        ow = oh

        # Conv as block-Toeplitz matmuls: one weight-stationary bf16 dot per kernel
        # row for the WHOLE batch; the kh shift is a sublane rotate on the XLU.
        # (Conv bias omitted: it cancels exactly under training-mode BatchNorm.)
        acc = None
        for kh in range(KSIZE):
            src = act if kh == 0 else pltpu.roll(act, shift=n_rows - kh, axis=0)
            tap = jnp.dot(src.astype(jnp.bfloat16),
                          m_ref[li, kh, 0:l_in, 0:l_out],
                          preferred_element_type=jnp.float32)
            # Relying on Mosaic to fold the 5-tap sum into MXU accumulation (MRB on v7x).
            acc = tap if acc is None else acc + tap

        # Single-pass BatchNorm2d (training-mode biased batch stats over N,H,W) + ReLU.
        # Per-channel reduce/broadcast across the fused (W,C) lane axis is one small
        # (2, L) x (L, L) dot against the precomputed 0/1 channel-projection matrix P.
        valid = jnp.where(row_in_img < oh, 1.0, 0.0)              # (N*32, 1)
        cnt = float(n_batch * oh * ow)
        acc_m = acc * valid
        sums = jnp.concatenate(
            [jnp.sum(acc_m, axis=0, keepdims=True),               # sum(x)
             jnp.sum(acc_m * acc, axis=0, keepdims=True)],        # sum(x^2)
            axis=0)                                               # (2, l_out)
        stats = jnp.dot(sums, p_ref[li, 0:l_out, 0:l_out],
                        preferred_element_type=jnp.float32) * (1.0 / cnt)
        mean = stats[0:1, :]
        var = jnp.maximum(stats[1:2, :] - mean * mean, 0.0)
        scale = gb_ref[li, 0:1, 0:l_out] * jax.lax.rsqrt(var + EPS)
        shift = gb_ref[li, 1:2, 0:l_out] - mean * scale           # mean folded into beta
        act = jnp.maximum(acc * scale + shift, 0.0)

    h_last = LAYER_DIMS[-1][1]                                    # 8

    # Flatten: compact the 8 valid rows of each image (aligned 8-row slices, b*32 starts).
    blocks = [act[b * SPATIAL:b * SPATIAL + h_last, :] for b in range(n_batch)]
    compact = blocks[0] if n_batch == 1 else jnp.concatenate(blocks, axis=0)
    nrc = n_batch * h_last

    # fc1: 8 weight-stationary batch-stacked dots; fc1's weight is pre-permuted to
    # (8, 128, 512) so the conv output is consumed in natural (h, w, c) order
    # (matching torch's CHW x.view(-1, 16*8*8)).  Valid result of image b is row b*8.
    hacc = None
    for r in range(h_last):
        src = compact if r == 0 else pltpu.roll(compact, shift=nrc - r, axis=0)
        tap = jnp.dot(src.astype(jnp.bfloat16), w1_ref[r],
                      preferred_element_type=jnp.float32)
        hacc = tap if hacc is None else hacc + tap
    rows = [hacc[b * h_last:b * h_last + 1, :] for b in range(n_batch)]
    hcur = rows[0] if n_batch == 1 else jnp.concatenate(rows, axis=0)   # (N, 512)
    hcur = jnp.maximum(hcur + fcb_ref[0:1, 0:FC_DIMS[0][1]], 0.0)

    # fc2..fc4: one batch-stacked dot per layer (no ReLU after fc4).
    for fi in range(1, N_FC):
        din, dout = FC_DIMS[fi]
        hcur = jnp.dot(hcur.astype(jnp.bfloat16),
                       w234_ref[fi - 1, 0:din, 0:dout],
                       preferred_element_type=jnp.float32) + fcb_ref[fi:fi + 1, 0:dout]
        if fi < N_FC - 1:
            hcur = jnp.maximum(hcur, 0.0)

    o_ref[...] = hcur                                             # single store


@jax.jit
def net_forward(x_nchw, params):
    n = x_nchw.shape[0]
    # NCHW with Cin == 1  ->  one batch-stacked (N*H, W*Cin) lane-dense slab.
    x = jnp.reshape(x_nchw.astype(jnp.float32), (n * SPATIAL, SPATIAL))
    vmem = pl.BlockSpec(memory_space=pltpu.MemorySpace.VMEM)
    return pl.pallas_call(
        _fused_net_kernel,
        out_shape=jax.ShapeDtypeStruct((n, FC_DIMS[-1][1]), jnp.float32),
        in_specs=[vmem] * 7,
        out_specs=vmem,
        compiler_params=pltpu.CompilerParams(vmem_limit_bytes=32 * 1024 * 1024),
    )(x, params["m"], params["p"], params["gb"], params["w1"],
      params["w234"], params["fcb"])


# ------------------------------ parameter construction ------------------------------

def kaiming_uniform(key, shape, fan_in):
    # Matches nn.init.kaiming_uniform_ bound: sqrt(2) * sqrt(3 / fan_in)
    bound = float(np.sqrt(6.0 / fan_in))
    return jax.random.uniform(key, shape, jnp.float32, minval=-bound, maxval=bound)


def _toeplitz_conv_weights(wt, w_in, cin, cout):
    """Torch-layout conv weight (Cout, Cin, K, K) -> stacked (K, W*Cin, OW*Cout)."""
    ow = w_in - KSIZE + 1
    m = np.zeros((KSIZE, w_in * cin, ow * cout), np.float32)
    for kh in range(KSIZE):
        for kw in range(KSIZE):
            blk = np.asarray(wt[:, :, kh, kw]).T             # (Cin, Cout)
            for owi in range(ow):
                wpos = owi + kw
                m[kh, wpos * cin:(wpos + 1) * cin, owi * cout:(owi + 1) * cout] = blk
    return m


def _channel_projection(ow, cout):
    """(OW*C, OW*C) 0/1 matrix: sums lanes of the same channel, broadcasts back."""
    ch = np.arange(ow * cout) % cout
    return (ch[:, None] == ch[None, :]).astype(np.float32)


def init_params(key):
    # Packed conv slabs (one DMA each): Toeplitz weights, channel projections, gamma/beta.
    m_slab = np.zeros((N_CONV, KSIZE, MAX_L, MAX_L), np.float32)
    p_slab = np.zeros((N_CONV, MAX_L, MAX_L), np.float32)
    gb_slab = np.zeros((N_CONV, 2, MAX_L), np.float32)
    for li, ((cin, cout), (h_in, oh, l_in, l_out)) in enumerate(zip(CONV_CHANNELS, LAYER_DIMS)):
        key, sub = jax.random.split(key)
        wt = np.asarray(kaiming_uniform(sub, (cout, cin, KSIZE, KSIZE),
                                        cin * KSIZE * KSIZE))
        m_slab[li, :, :l_in, :l_out] = _toeplitz_conv_weights(wt, h_in, cin, cout)
        p_slab[li, :l_out, :l_out] = _channel_projection(oh, cout)
        gb_slab[li, 0, :l_out] = 1.0                         # BN weight init 1
        gb_slab[li, 1, :l_out] = 0.0                         # BN bias init 0

    # fc1: permute the input dim from torch's CHW flatten to the kernel's natural
    # (h, w, c) order, reshape to (8, 128, 512) so no activation transpose is needed.
    c_last = CONV_CHANNELS[-1][1]                            # 16
    h_last = LAYER_DIMS[-1][1]                               # 8
    din0, dout0 = FC_DIMS[0]                                 # 1024, 512
    key, sub = jax.random.split(key)
    w1_t = np.asarray(kaiming_uniform(sub, (dout0, din0), din0))
    w1_hwc = np.transpose(w1_t.reshape(dout0, c_last, h_last, h_last), (2, 3, 1, 0))
    w1_r = w1_hwc.reshape(h_last, h_last * c_last, dout0)    # (8, 128, 512)

    # fc2..fc4 packed into one padded slab; biases packed into one slab.
    w234 = np.zeros((N_FC - 1, FC_DIMS[1][0], FC_DIMS[1][1]), np.float32)   # (3,512,256)
    for i, (din, dout) in enumerate(FC_DIMS[1:]):
        key, sub = jax.random.split(key)
        wt = np.asarray(kaiming_uniform(sub, (dout, din), din))
        w234[i, :din, :dout] = wt.T
    fcb = np.zeros((N_FC, FC_DIMS[0][1]), np.float32)        # torch Linear bias init 0

    return {
        "m": jnp.asarray(m_slab, jnp.bfloat16),
        "p": jnp.asarray(p_slab, jnp.float32),               # f32: used for BN stats
        "gb": jnp.asarray(gb_slab, jnp.float32),
        "w1": jnp.asarray(w1_r, jnp.bfloat16),
        "w234": jnp.asarray(w234, jnp.bfloat16),
        "fcb": jnp.asarray(fcb, jnp.float32),
    }


if __name__ == "__main__":
    key = jax.random.PRNGKey(0)
    pkey, xkey = jax.random.split(key)
    params = init_params(pkey)
    # Spatial size must be 32x32 (the net hard-codes 16*8*8 after the 6 convs).
    x = jax.random.normal(xkey, (2, 1, SPATIAL, SPATIAL), dtype=jnp.float32)
    out = jax.block_until_ready(net_forward(x, params))
    assert out.shape == (2, FC_DIMS[-1][1]), out.shape
    assert bool(jnp.all(jnp.isfinite(out)))
    print("KERNEL_OK")
</pallas_src>

<mosaic_0001>
module attributes {stable_mosaic.version = 11 : i64} {
  func.func @_fused_net_kernel(%arg0: memref<64x32xf32, #tpu.memory_space<vmem>>, %arg1: memref<6x5x144x144xbf16, #tpu.memory_space<vmem>>, %arg2: memref<6x144x144xf32, #tpu.memory_space<vmem>>, %arg3: memref<6x2x144xf32, #tpu.memory_space<vmem>>, %arg4: memref<8x128x512xbf16, #tpu.memory_space<vmem>>, %arg5: memref<3x512x256xbf16, #tpu.memory_space<vmem>>, %arg6: memref<4x512xf32, #tpu.memory_space<vmem>>, %arg7: memref<2x16xf32, #tpu.memory_space<vmem>>) attributes {dimension_semantics = [], scalar_prefetch = 0 : i64, scratch_operands = 0 : i64, tpu.core_type = #tpu.core_type<tc>} {
    %0 = tpu.iota {dimensions = array<i32: 0>} : vector<64x1xi32>
    %c32_i32 = arith.constant 32 : i32
    %c0_i32 = arith.constant 0 : i32
    %1 = arith.cmpi eq, %c32_i32, %c0_i32 : i32
    %c1_i32 = arith.constant 1 : i32
    %2 = arith.select %1, %c1_i32, %c32_i32 : i32
    %3 = vector.broadcast %2 : i32 to vector<64x1xi32>
    %4 = arith.remsi %0, %3 : vector<64x1xi32>
    %c0_i32_0 = arith.constant 0 : i32
    %5 = vector.broadcast %c0_i32_0 : i32 to vector<64x1xi32>
    %6 = arith.cmpi ne, %4, %5 : vector<64x1xi32>
    %c0_i32_1 = arith.constant 0 : i32
    %7 = vector.broadcast %c0_i32_1 : i32 to vector<64x1xi32>
    %8 = arith.cmpi slt, %4, %7 : vector<64x1xi32>
    %c0_i32_2 = arith.constant 0 : i32
    %9 = arith.cmpi slt, %2, %c0_i32_2 : i32
    %10 = vector.broadcast %9 : i1 to vector<64x1xi1>
    %11 = vector.broadcast %10 : vector<64x1xi1> to vector<64x1xi1>
    %12 = arith.xori %8, %11 : vector<64x1xi1>
    %13 = arith.andi %12, %6 : vector<64x1xi1>
    %14 = vector.broadcast %2 : i32 to vector<64x1xi32>
    %15 = arith.addi %4, %14 : vector<64x1xi32>
    %16 = arith.select %13, %15, %4 : vector<64x1xi1>, vector<64x1xi32>
    %c0 = arith.constant 0 : index
    %c0_3 = arith.constant 0 : index
    %17 = vector.load %arg0[%c0, %c0_3] : memref<64x32xf32, #tpu.memory_space<vmem>>, vector<64x32xf32>
    %cst = arith.constant 2.000000e+00 : f32
    %18 = vector.broadcast %cst : f32 to vector<64x32xf32>
    %19 = arith.mulf %17, %18 : vector<64x32xf32>
    %cst_4 = arith.constant 1.000000e+00 : f32
    %20 = vector.broadcast %cst_4 : f32 to vector<64x32xf32>
    %21 = arith.subf %19, %20 : vector<64x32xf32>
    %22 = arith.truncf %21 : vector<64x32xf32> to vector<64x32xbf16>
    %c0_5 = arith.constant 0 : index
    %c0_6 = arith.constant 0 : index
    %c0_7 = arith.constant 0 : index
    %c0_8 = arith.constant 0 : index
    %23 = vector.load %arg1[%c0_5, %c0_6, %c0_7, %c0_8] : memref<6x5x144x144xbf16, #tpu.memory_space<vmem>>, vector<1x1x32x112xbf16>
    %24 = vector.shape_cast %23 : vector<1x1x32x112xbf16> to vector<32x112xbf16>
    %cst_9 = arith.constant dense<0.000000e+00> : vector<64x112xf32>
    %25 = tpu.matmul %22, %24, %cst_9 {dimension_numbers = #tpu.dot_dimension_numbers<[1], [0], [0], [1], [0, 0, 1, 1], [], []>} : vector<64x32xbf16>, vector<32x112xbf16>, vector<64x112xf32> -> vector<64x112xf32>
    %c63_i32 = arith.constant 63 : i32
    %26 = tpu.dynamic_rotate %21 by %c63_i32 dim 0 : vector<64x32xf32>, i32 -> vector<64x32xf32>
    %27 = arith.truncf %26 : vector<64x32xf32> to vector<64x32xbf16>
    %c0_10 = arith.constant 0 : index
    %c1 = arith.constant 1 : index
    %c0_11 = arith.constant 0 : index
    %c0_12 = arith.constant 0 : index
    %28 = vector.load %arg1[%c0_10, %c1, %c0_11, %c0_12] : memref<6x5x144x144xbf16, #tpu.memory_space<vmem>>, vector<1x1x32x112xbf16>
    %29 = vector.shape_cast %28 : vector<1x1x32x112xbf16> to vector<32x112xbf16>
    %cst_13 = arith.constant dense<0.000000e+00> : vector<64x112xf32>
    %30 = tpu.matmul %27, %29, %cst_13 {dimension_numbers = #tpu.dot_dimension_numbers<[1], [0], [0], [1], [0, 0, 1, 1], [], []>} : vector<64x32xbf16>, vector<32x112xbf16>, vector<64x112xf32> -> vector<64x112xf32>
    %31 = arith.addf %25, %30 : vector<64x112xf32>
    %c62_i32 = arith.constant 62 : i32
    %32 = tpu.dynamic_rotate %21 by %c62_i32 dim 0 : vector<64x32xf32>, i32 -> vector<64x32xf32>
    %33 = arith.truncf %32 : vector<64x32xf32> to vector<64x32xbf16>
    %c0_14 = arith.constant 0 : index
    %c2 = arith.constant 2 : index
    %c0_15 = arith.constant 0 : index
    %c0_16 = arith.constant 0 : index
    %34 = vector.load %arg1[%c0_14, %c2, %c0_15, %c0_16] : memref<6x5x144x144xbf16, #tpu.memory_space<vmem>>, vector<1x1x32x112xbf16>
    %35 = vector.shape_cast %34 : vector<1x1x32x112xbf16> to vector<32x112xbf16>
    %cst_17 = arith.constant dense<0.000000e+00> : vector<64x112xf32>
    %36 = tpu.matmul %33, %35, %cst_17 {dimension_numbers = #tpu.dot_dimension_numbers<[1], [0], [0], [1], [0, 0, 1, 1], [], []>} : vector<64x32xbf16>, vector<32x112xbf16>, vector<64x112xf32> -> vector<64x112xf32>
    %37 = arith.addf %31, %36 : vector<64x112xf32>
    %c61_i32 = arith.constant 61 : i32
    %38 = tpu.dynamic_rotate %21 by %c61_i32 dim 0 : vector<64x32xf32>, i32 -> vector<64x32xf32>
    %39 = arith.truncf %38 : vector<64x32xf32> to vector<64x32xbf16>
    %c0_18 = arith.constant 0 : index
    %c3 = arith.constant 3 : index
    %c0_19 = arith.constant 0 : index
    %c0_20 = arith.constant 0 : index
    %40 = vector.load %arg1[%c0_18, %c3, %c0_19, %c0_20] : memref<6x5x144x144xbf16, #tpu.memory_space<vmem>>, vector<1x1x32x112xbf16>
    %41 = vector.shape_cast %40 : vector<1x1x32x112xbf16> to vector<32x112xbf16>
    %cst_21 = arith.constant dense<0.000000e+00> : vector<64x112xf32>
    %42 = tpu.matmul %39, %41, %cst_21 {dimension_numbers = #tpu.dot_dimension_numbers<[1], [0], [0], [1], [0, 0, 1, 1], [], []>} : vector<64x32xbf16>, vector<32x112xbf16>, vector<64x112xf32> -> vector<64x112xf32>
    %43 = arith.addf %37, %42 : vector<64x112xf32>
    %c60_i32 = arith.constant 60 : i32
    %44 = tpu.dynamic_rotate %21 by %c60_i32 dim 0 : vector<64x32xf32>, i32 -> vector<64x32xf32>
    %45 = arith.truncf %44 : vector<64x32xf32> to vector<64x32xbf16>
    %c0_22 = arith.constant 0 : index
    %c4 = arith.constant 4 : index
    %c0_23 = arith.constant 0 : index
    %c0_24 = arith.constant 0 : index
    %46 = vector.load %arg1[%c0_22, %c4, %c0_23, %c0_24] : memref<6x5x144x144xbf16, #tpu.memory_space<vmem>>, vector<1x1x32x112xbf16>
    %47 = vector.shape_cast %46 : vector<1x1x32x112xbf16> to vector<32x112xbf16>
    %cst_25 = arith.constant dense<0.000000e+00> : vector<64x112xf32>
    %48 = tpu.matmul %45, %47, %cst_25 {dimension_numbers = #tpu.dot_dimension_numbers<[1], [0], [0], [1], [0, 0, 1, 1], [], []>} : vector<64x32xbf16>, vector<32x112xbf16>, vector<64x112xf32> -> vector<64x112xf32>
    %49 = arith.addf %43, %48 : vector<64x112xf32>
    %c28_i32 = arith.constant 28 : i32
    %50 = vector.broadcast %c28_i32 : i32 to vector<64x1xi32>
    %51 = arith.cmpi slt, %16, %50 : vector<64x1xi32>
    %cst_26 = arith.constant 1.000000e+00 : f32
    %cst_27 = arith.constant 0.000000e+00 : f32
    %52 = vector.broadcast %cst_26 : f32 to vector<64x1xf32>
    %53 = vector.broadcast %cst_27 : f32 to vector<64x1xf32>
    %54 = arith.select %51, %52, %53 : vector<64x1xi1>, vector<64x1xf32>
    %55 = vector.broadcast %54 : vector<64x1xf32> to vector<64x112xf32>
    %56 = arith.mulf %49, %55 : vector<64x112xf32>
    %cst_28 = arith.constant dense<0.000000e+00> : vector<112xf32>
    %57 = vector.multi_reduction <add>, %56, %cst_28 [0] : vector<64x112xf32> to vector<112xf32>
    %58 = vector.shape_cast %57 : vector<112xf32> to vector<1x112xf32>
    %59 = arith.mulf %56, %49 : vector<64x112xf32>
    %cst_29 = arith.constant dense<0.000000e+00> : vector<112xf32>
    %60 = vector.multi_reduction <add>, %59, %cst_29 [0] : vector<64x112xf32> to vector<112xf32>
    %61 = vector.shape_cast %60 : vector<112xf32> to vector<1x112xf32>
    %62 = tpu.concatenate %58, %61 in 0 : vector<1x112xf32>, vector<1x112xf32> -> vector<2x112xf32>
    %c0_30 = arith.constant 0 : index
    %c0_31 = arith.constant 0 : index
    %c0_32 = arith.constant 0 : index
    %63 = vector.load %arg2[%c0_30, %c0_31, %c0_32] : memref<6x144x144xf32, #tpu.memory_space<vmem>>, vector<1x112x112xf32>
    %64 = vector.shape_cast %63 : vector<1x112x112xf32> to vector<112x112xf32>
    %cst_33 = arith.constant dense<0.000000e+00> : vector<2x112xf32>
    %65 = tpu.matmul %62, %64, %cst_33 {dimension_numbers = #tpu.dot_dimension_numbers<[1], [0], [0], [1], [0, 0, 1, 1], [], []>} : vector<2x112xf32>, vector<112x112xf32>, vector<2x112xf32> -> vector<2x112xf32>
    %cst_34 = arith.constant 6.37755089E-4 : f32
    %66 = vector.broadcast %cst_34 : f32 to vector<2x112xf32>
    %67 = arith.mulf %65, %66 : vector<2x112xf32>
    %68 = vector.extract_strided_slice %67 {offsets = [0, 0], sizes = [1, 112], strides = [1, 1]} : vector<2x112xf32> to vector<1x112xf32>
    %69 = vector.extract_strided_slice %67 {offsets = [1, 0], sizes = [1, 112], strides = [1, 1]} : vector<2x112xf32> to vector<1x112xf32>
    %70 = arith.mulf %68, %68 : vector<1x112xf32>
    %71 = arith.subf %69, %70 : vector<1x112xf32>
    %cst_35 = arith.constant 0.000000e+00 : f32
    %72 = vector.broadcast %cst_35 : f32 to vector<1x112xf32>
    %73 = arith.maximumf %71, %72 : vector<1x112xf32>
    %c0_36 = arith.constant 0 : index
    %c0_37 = arith.constant 0 : index
    %c0_38 = arith.constant 0 : index
    %74 = vector.load %arg3[%c0_36, %c0_37, %c0_38] : memref<6x2x144xf32, #tpu.memory_space<vmem>>, vector<1x1x112xf32>
    %75 = vector.shape_cast %74 : vector<1x1x112xf32> to vector<1x112xf32>
    %cst_39 = arith.constant 9.99999974E-6 : f32
    %76 = vector.broadcast %cst_39 : f32 to vector<1x112xf32>
    %77 = arith.addf %73, %76 : vector<1x112xf32>
    %78 = math.rsqrt %77 : vector<1x112xf32>
    %79 = arith.mulf %75, %78 : vector<1x112xf32>
    %c0_40 = arith.constant 0 : index
    %c1_41 = arith.constant 1 : index
    %c0_42 = arith.constant 0 : index
    %80 = vector.load %arg3[%c0_40, %c1_41, %c0_42] : memref<6x2x144xf32, #tpu.memory_space<vmem>>, vector<1x1x112xf32>
    %81 = vector.shape_cast %80 : vector<1x1x112xf32> to vector<1x112xf32>
    %82 = arith.mulf %68, %79 : vector<1x112xf32>
    %83 = arith.subf %81, %82 : vector<1x112xf32>
    %84 = vector.broadcast %79 : vector<1x112xf32> to vector<64x112xf32>
    %85 = arith.mulf %49, %84 : vector<64x112xf32>
    %86 = vector.broadcast %83 : vector<1x112xf32> to vector<64x112xf32>
    %87 = arith.addf %85, %86 : vector<64x112xf32>
    %cst_43 = arith.constant 0.000000e+00 : f32
    %88 = vector.broadcast %cst_43 : f32 to vector<64x112xf32>
    %89 = arith.maximumf %87, %88 : vector<64x112xf32>
    %90 = arith.truncf %89 : vector<64x112xf32> to vector<64x112xbf16>
    %c1_44 = arith.constant 1 : index
    %c0_45 = arith.constant 0 : index
    %c0_46 = arith.constant 0 : index
    %c0_47 = arith.constant 0 : index
    %91 = vector.load %arg1[%c1_44, %c0_45, %c0_46, %c0_47] : memref<6x5x144x144xbf16, #tpu.memory_space<vmem>>, vector<1x1x112x120xbf16>
    %92 = vector.shape_cast %91 : vector<1x1x112x120xbf16> to vector<112x120xbf16>
    %cst_48 = arith.constant dense<0.000000e+00> : vector<64x120xf32>
    %93 = tpu.matmul %90, %92, %cst_48 {dimension_numbers = #tpu.dot_dimension_numbers<[1], [0], [0], [1], [0, 0, 1, 1], [], []>} : vector<64x112xbf16>, vector<112x120xbf16>, vector<64x120xf32> -> vector<64x120xf32>
    %c63_i32_49 = arith.constant 63 : i32
    %94 = tpu.dynamic_rotate %89 by %c63_i32_49 dim 0 : vector<64x112xf32>, i32 -> vector<64x112xf32>
    %95 = arith.truncf %94 : vector<64x112xf32> to vector<64x112xbf16>
    %c1_50 = arith.constant 1 : index
    %c1_51 = arith.constant 1 : index
    %c0_52 = arith.constant 0 : index
    %c0_53 = arith.constant 0 : index
    %96 = vector.load %arg1[%c1_50, %c1_51, %c0_52, %c0_53] : memref<6x5x144x144xbf16, #tpu.memory_space<vmem>>, vector<1x1x112x120xbf16>
    %97 = vector.shape_cast %96 : vector<1x1x112x120xbf16> to vector<112x120xbf16>
    %cst_54 = arith.constant dense<0.000000e+00> : vector<64x120xf32>
    %98 = tpu.matmul %95, %97, %cst_54 {dimension_numbers = #tpu.dot_dimension_numbers<[1], [0], [0], [1], [0, 0, 1, 1], [], []>} : vector<64x112xbf16>, vector<112x120xbf16>, vector<64x120xf32> -> vector<64x120xf32>
    %99 = arith.addf %93, %98 : vector<64x120xf32>
    %c62_i32_55 = arith.constant 62 : i32
    %100 = tpu.dynamic_rotate %89 by %c62_i32_55 dim 0 : vector<64x112xf32>, i32 -> vector<64x112xf32>
    %101 = arith.truncf %100 : vector<64x112xf32> to vector<64x112xbf16>
    %c1_56 = arith.constant 1 : index
    %c2_57 = arith.constant 2 : index
    %c0_58 = arith.constant 0 : index
    %c0_59 = arith.constant 0 : index
    %102 = vector.load %arg1[%c1_56, %c2_57, %c0_58, %c0_59] : memref<6x5x144x144xbf16, #tpu.memory_space<vmem>>, vector<1x1x112x120xbf16>
    %103 = vector.shape_cast %102 : vector<1x1x112x120xbf16> to vector<112x120xbf16>
    %cst_60 = arith.constant dense<0.000000e+00> : vector<64x120xf32>
    %104 = tpu.matmul %101, %103, %cst_60 {dimension_numbers = #tpu.dot_dimension_numbers<[1], [0], [0], [1], [0, 0, 1, 1], [], []>} : vector<64x112xbf16>, vector<112x120xbf16>, vector<64x120xf32> -> vector<64x120xf32>
    %105 = arith.addf %99, %104 : vector<64x120xf32>
    %c61_i32_61 = arith.constant 61 : i32
    %106 = tpu.dynamic_rotate %89 by %c61_i32_61 dim 0 : vector<64x112xf32>, i32 -> vector<64x112xf32>
    %107 = arith.truncf %106 : vector<64x112xf32> to vector<64x112xbf16>
    %c1_62 = arith.constant 1 : index
    %c3_63 = arith.constant 3 : index
    %c0_64 = arith.constant 0 : index
    %c0_65 = arith.constant 0 : index
    %108 = vector.load %arg1[%c1_62, %c3_63, %c0_64, %c0_65] : memref<6x5x144x144xbf16, #tpu.memory_space<vmem>>, vector<1x1x112x120xbf16>
    %109 = vector.shape_cast %108 : vector<1x1x112x120xbf16> to vector<112x120xbf16>
    %cst_66 = arith.constant dense<0.000000e+00> : vector<64x120xf32>
    %110 = tpu.matmul %107, %109, %cst_66 {dimension_numbers = #tpu.dot_dimension_numbers<[1], [0], [0], [1], [0, 0, 1, 1], [], []>} : vector<64x112xbf16>, vector<112x120xbf16>, vector<64x120xf32> -> vector<64x120xf32>
    %111 = arith.addf %105, %110 : vector<64x120xf32>
    %c60_i32_67 = arith.constant 60 : i32
    %112 = tpu.dynamic_rotate %89 by %c60_i32_67 dim 0 : vector<64x112xf32>, i32 -> vector<64x112xf32>
    %113 = arith.truncf %112 : vector<64x112xf32> to vector<64x112xbf16>
    %c1_68 = arith.constant 1 : index
    %c4_69 = arith.constant 4 : index
    %c0_70 = arith.constant 0 : index
    %c0_71 = arith.constant 0 : index
    %114 = vector.load %arg1[%c1_68, %c4_69, %c0_70, %c0_71] : memref<6x5x144x144xbf16, #tpu.memory_space<vmem>>, vector<1x1x112x120xbf16>
    %115 = vector.shape_cast %114 : vector<1x1x112x120xbf16> to vector<112x120xbf16>
    %cst_72 = arith.constant dense<0.000000e+00> : vector<64x120xf32>
    %116 = tpu.matmul %113, %115, %cst_72 {dimension_numbers = #tpu.dot_dimension_numbers<[1], [0], [0], [1], [0, 0, 1, 1], [], []>} : vector<64x112xbf16>, vector<112x120xbf16>, vector<64x120xf32> -> vector<64x120xf32>
    %117 = arith.addf %111, %116 : vector<64x120xf32>
    %c24_i32 = arith.constant 24 : i32
    %118 = vector.broadcast %c24_i32 : i32 to vector<64x1xi32>
    %119 = arith.cmpi slt, %16, %118 : vector<64x1xi32>
    %cst_73 = arith.constant 1.000000e+00 : f32
    %cst_74 = arith.constant 0.000000e+00 : f32
    %120 = vector.broadcast %cst_73 : f32 to vector<64x1xf32>
    %121 = vector.broadcast %cst_74 : f32 to vector<64x1xf32>
    %122 = arith.select %119, %120, %121 : vector<64x1xi1>, vector<64x1xf32>
    %123 = vector.broadcast %122 : vector<64x1xf32> to vector<64x120xf32>
    %124 = arith.mulf %117, %123 : vector<64x120xf32>
    %cst_75 = arith.constant dense<0.000000e+00> : vector<120xf32>
    %125 = vector.multi_reduction <add>, %124, %cst_75 [0] : vector<64x120xf32> to vector<120xf32>
    %126 = vector.shape_cast %125 : vector<120xf32> to vector<1x120xf32>
    %127 = arith.mulf %124, %117 : vector<64x120xf32>
    %cst_76 = arith.constant dense<0.000000e+00> : vector<120xf32>
    %128 = vector.multi_reduction <add>, %127, %cst_76 [0] : vector<64x120xf32> to vector<120xf32>
    %129 = vector.shape_cast %128 : vector<120xf32> to vector<1x120xf32>
    %130 = tpu.concatenate %126, %129 in 0 : vector<1x120xf32>, vector<1x120xf32> -> vector<2x120xf32>
    %c1_77 = arith.constant 1 : index
    %c0_78 = arith.constant 0 : index
    %c0_79 = arith.constant 0 : index
    %131 = vector.load %arg2[%c1_77, %c0_78, %c0_79] : memref<6x144x144xf32, #tpu.memory_space<vmem>>, vector<1x120x120xf32>
    %132 = vector.shape_cast %131 : vector<1x120x120xf32> to vector<120x120xf32>
    %cst_80 = arith.constant dense<0.000000e+00> : vector<2x120xf32>
    %133 = tpu.matmul %130, %132, %cst_80 {dimension_numbers = #tpu.dot_dimension_numbers<[1], [0], [0], [1], [0, 0, 1, 1], [], []>} : vector<2x120xf32>, vector<120x120xf32>, vector<2x120xf32> -> vector<2x120xf32>
    %cst_81 = arith.constant 8.68055562E-4 : f32
    %134 = vector.broadcast %cst_81 : f32 to vector<2x120xf32>
    %135 = arith.mulf %133, %134 : vector<2x120xf32>
    %136 = vector.extract_strided_slice %135 {offsets = [0, 0], sizes = [1, 120], strides = [1, 1]} : vector<2x120xf32> to vector<1x120xf32>
    %137 = vector.extract_strided_slice %135 {offsets = [1, 0], sizes = [1, 120], strides = [1, 1]} : vector<2x120xf32> to vector<1x120xf32>
    %138 = arith.mulf %136, %136 : vector<1x120xf32>
    %139 = arith.subf %137, %138 : vector<1x120xf32>
    %cst_82 = arith.constant 0.000000e+00 : f32
    %140 = vector.broadcast %cst_82 : f32 to vector<1x120xf32>
    %141 = arith.maximumf %139, %140 : vector<1x120xf32>
    %c1_83 = arith.constant 1 : index
    %c0_84 = arith.constant 0 : index
    %c0_85 = arith.constant 0 : index
    %142 = vector.load %arg3[%c1_83, %c0_84, %c0_85] : memref<6x2x144xf32, #tpu.memory_space<vmem>>, vector<1x1x120xf32>
    %143 = vector.shape_cast %142 : vector<1x1x120xf32> to vector<1x120xf32>
    %cst_86 = arith.constant 9.99999974E-6 : f32
    %144 = vector.broadcast %cst_86 : f32 to vector<1x120xf32>
    %145 = arith.addf %141, %144 : vector<1x120xf32>
    %146 = math.rsqrt %145 : vector<1x120xf32>
    %147 = arith.mulf %143, %146 : vector<1x120xf32>
    %c1_87 = arith.constant 1 : index
    %c1_88 = arith.constant 1 : index
    %c0_89 = arith.constant 0 : index
    %148 = vector.load %arg3[%c1_87, %c1_88, %c0_89] : memref<6x2x144xf32, #tpu.memory_space<vmem>>, vector<1x1x120xf32>
    %149 = vector.shape_cast %148 : vector<1x1x120xf32> to vector<1x120xf32>
    %150 = arith.mulf %136, %147 : vector<1x120xf32>
    %151 = arith.subf %149, %150 : vector<1x120xf32>
    %152 = vector.broadcast %147 : vector<1x120xf32> to vector<64x120xf32>
    %153 = arith.mulf %117, %152 : vector<64x120xf32>
    %154 = vector.broadcast %151 : vector<1x120xf32> to vector<64x120xf32>
    %155 = arith.addf %153, %154 : vector<64x120xf32>
    %cst_90 = arith.constant 0.000000e+00 : f32
    %156 = vector.broadcast %cst_90 : f32 to vector<64x120xf32>
    %157 = arith.maximumf %155, %156 : vector<64x120xf32>
    %158 = arith.truncf %157 : vector<64x120xf32> to vector<64x120xbf16>
    %c2_91 = arith.constant 2 : index
    %c0_92 = arith.constant 0 : index
    %c0_93 = arith.constant 0 : index
    %c0_94 = arith.constant 0 : index
    %159 = vector.load %arg1[%c2_91, %c0_92, %c0_93, %c0_94] : memref<6x5x144x144xbf16, #tpu.memory_space<vmem>>, vector<1x1x120x120xbf16>
    %160 = vector.shape_cast %159 : vector<1x1x120x120xbf16> to vector<120x120xbf16>
    %cst_95 = arith.constant dense<0.000000e+00> : vector<64x120xf32>
    %161 = tpu.matmul %158, %160, %cst_95 {dimension_numbers = #tpu.dot_dimension_numbers<[1], [0], [0], [1], [0, 0, 1, 1], [], []>} : vector<64x120xbf16>, vector<120x120xbf16>, vector<64x120xf32> -> vector<64x120xf32>
    %c63_i32_96 = arith.constant 63 : i32
    %162 = tpu.dynamic_rotate %157 by %c63_i32_96 dim 0 : vector<64x120xf32>, i32 -> vector<64x120xf32>
    %163 = arith.truncf %162 : vector<64x120xf32> to vector<64x120xbf16>
    %c2_97 = arith.constant 2 : index
    %c1_98 = arith.constant 1 : index
    %c0_99 = arith.constant 0 : index
    %c0_100 = arith.constant 0 : index
    %164 = vector.load %arg1[%c2_97, %c1_98, %c0_99, %c0_100] : memref<6x5x144x144xbf16, #tpu.memory_space<vmem>>, vector<1x1x120x120xbf16>
    %165 = vector.shape_cast %164 : vector<1x1x120x120xbf16> to vector<120x120xbf16>
    %cst_101 = arith.constant dense<0.000000e+00> : vector<64x120xf32>
    %166 = tpu.matmul %163, %165, %cst_101 {dimension_numbers = #tpu.dot_dimension_numbers<[1], [0], [0], [1], [0, 0, 1, 1], [], []>} : vector<64x120xbf16>, vector<120x120xbf16>, vector<64x120xf32> -> vector<64x120xf32>
    %167 = arith.addf %161, %166 : vector<64x120xf32>
    %c62_i32_102 = arith.constant 62 : i32
    %168 = tpu.dynamic_rotate %157 by %c62_i32_102 dim 0 : vector<64x120xf32>, i32 -> vector<64x120xf32>
    %169 = arith.truncf %168 : vector<64x120xf32> to vector<64x120xbf16>
    %c2_103 = arith.constant 2 : index
    %c2_104 = arith.constant 2 : index
    %c0_105 = arith.constant 0 : index
    %c0_106 = arith.constant 0 : index
    %170 = vector.load %arg1[%c2_103, %c2_104, %c0_105, %c0_106] : memref<6x5x144x144xbf16, #tpu.memory_space<vmem>>, vector<1x1x120x120xbf16>
    %171 = vector.shape_cast %170 : vector<1x1x120x120xbf16> to vector<120x120xbf16>
    %cst_107 = arith.constant dense<0.000000e+00> : vector<64x120xf32>
    %172 = tpu.matmul %169, %171, %cst_107 {dimension_numbers = #tpu.dot_dimension_numbers<[1], [0], [0], [1], [0, 0, 1, 1], [], []>} : vector<64x120xbf16>, vector<120x120xbf16>, vector<64x120xf32> -> vector<64x120xf32>
    %173 = arith.addf %167, %172 : vector<64x120xf32>
    %c61_i32_108 = arith.constant 61 : i32
    %174 = tpu.dynamic_rotate %157 by %c61_i32_108 dim 0 : vector<64x120xf32>, i32 -> vector<64x120xf32>
    %175 = arith.truncf %174 : vector<64x120xf32> to vector<64x120xbf16>
    %c2_109 = arith.constant 2 : index
    %c3_110 = arith.constant 3 : index
    %c0_111 = arith.constant 0 : index
    %c0_112 = arith.constant 0 : index
    %176 = vector.load %arg1[%c2_109, %c3_110, %c0_111, %c0_112] : memref<6x5x144x144xbf16, #tpu.memory_space<vmem>>, vector<1x1x120x120xbf16>
    %177 = vector.shape_cast %176 : vector<1x1x120x120xbf16> to vector<120x120xbf16>
    %cst_113 = arith.constant dense<0.000000e+00> : vector<64x120xf32>
    %178 = tpu.matmul %175, %177, %cst_113 {dimension_numbers = #tpu.dot_dimension_numbers<[1], [0], [0], [1], [0, 0, 1, 1], [], []>} : vector<64x120xbf16>, vector<120x120xbf16>, vector<64x120xf32> -> vector<64x120xf32>
    %179 = arith.addf %173, %178 : vector<64x120xf32>
    %c60_i32_114 = arith.constant 60 : i32
    %180 = tpu.dynamic_rotate %157 by %c60_i32_114 dim 0 : vector<64x120xf32>, i32 -> vector<64x120xf32>
    %181 = arith.truncf %180 : vector<64x120xf32> to vector<64x120xbf16>
    %c2_115 = arith.constant 2 : index
    %c4_116 = arith.constant 4 : index
    %c0_117 = arith.constant 0 : index
    %c0_118 = arith.constant 0 : index
    %182 = vector.load %arg1[%c2_115, %c4_116, %c0_117, %c0_118] : memref<6x5x144x144xbf16, #tpu.memory_space<vmem>>, vector<1x1x120x120xbf16>
    %183 = vector.shape_cast %182 : vector<1x1x120x120xbf16> to vector<120x120xbf16>
    %cst_119 = arith.constant dense<0.000000e+00> : vector<64x120xf32>
    %184 = tpu.matmul %181, %183, %cst_119 {dimension_numbers = #tpu.dot_dimension_numbers<[1], [0], [0], [1], [0, 0, 1, 1], [], []>} : vector<64x120xbf16>, vector<120x120xbf16>, vector<64x120xf32> -> vector<64x120xf32>
    %185 = arith.addf %179, %184 : vector<64x120xf32>
    %c20_i32 = arith.constant 20 : i32
    %186 = vector.broadcast %c20_i32 : i32 to vector<64x1xi32>
    %187 = arith.cmpi slt, %16, %186 : vector<64x1xi32>
    %cst_120 = arith.constant 1.000000e+00 : f32
    %cst_121 = arith.constant 0.000000e+00 : f32
    %188 = vector.broadcast %cst_120 : f32 to vector<64x1xf32>
    %189 = vector.broadcast %cst_121 : f32 to vector<64x1xf32>
    %190 = arith.select %187, %188, %189 : vector<64x1xi1>, vector<64x1xf32>
    %191 = vector.broadcast %190 : vector<64x1xf32> to vector<64x120xf32>
    %192 = arith.mulf %185, %191 : vector<64x120xf32>
    %cst_122 = arith.constant dense<0.000000e+00> : vector<120xf32>
    %193 = vector.multi_reduction <add>, %192, %cst_122 [0] : vector<64x120xf32> to vector<120xf32>
    %194 = vector.shape_cast %193 : vector<120xf32> to vector<1x120xf32>
    %195 = arith.mulf %192, %185 : vector<64x120xf32>
    %cst_123 = arith.constant dense<0.000000e+00> : vector<120xf32>
    %196 = vector.multi_reduction <add>, %195, %cst_123 [0] : vector<64x120xf32> to vector<120xf32>
    %197 = vector.shape_cast %196 : vector<120xf32> to vector<1x120xf32>
    %198 = tpu.concatenate %194, %197 in 0 : vector<1x120xf32>, vector<1x120xf32> -> vector<2x120xf32>
    %c2_124 = arith.constant 2 : index
    %c0_125 = arith.constant 0 : index
    %c0_126 = arith.constant 0 : index
    %199 = vector.load %arg2[%c2_124, %c0_125, %c0_126] : memref<6x144x144xf32, #tpu.memory_space<vmem>>, vector<1x120x120xf32>
    %200 = vector.shape_cast %199 : vector<1x120x120xf32> to vector<120x120xf32>
    %cst_127 = arith.constant dense<0.000000e+00> : vector<2x120xf32>
    %201 = tpu.matmul %198, %200, %cst_127 {dimension_numbers = #tpu.dot_dimension_numbers<[1], [0], [0], [1], [0, 0, 1, 1], [], []>} : vector<2x120xf32>, vector<120x120xf32>, vector<2x120xf32> -> vector<2x120xf32>
    %cst_128 = arith.constant 1.250000e-03 : f32
    %202 = vector.broadcast %cst_128 : f32 to vector<2x120xf32>
    %203 = arith.mulf %201, %202 : vector<2x120xf32>
    %204 = vector.extract_strided_slice %203 {offsets = [0, 0], sizes = [1, 120], strides = [1, 1]} : vector<2x120xf32> to vector<1x120xf32>
    %205 = vector.extract_strided_slice %203 {offsets = [1, 0], sizes = [1, 120], strides = [1, 1]} : vector<2x120xf32> to vector<1x120xf32>
    %206 = arith.mulf %204, %204 : vector<1x120xf32>
    %207 = arith.subf %205, %206 : vector<1x120xf32>
    %cst_129 = arith.constant 0.000000e+00 : f32
    %208 = vector.broadcast %cst_129 : f32 to vector<1x120xf32>
    %209 = arith.maximumf %207, %208 : vector<1x120xf32>
    %c2_130 = arith.constant 2 : index
    %c0_131 = arith.constant 0 : index
    %c0_132 = arith.constant 0 : index
    %210 = vector.load %arg3[%c2_130, %c0_131, %c0_132] : memref<6x2x144xf32, #tpu.memory_space<vmem>>, vector<1x1x120xf32>
    %211 = vector.shape_cast %210 : vector<1x1x120xf32> to vector<1x120xf32>
    %cst_133 = arith.constant 9.99999974E-6 : f32
    %212 = vector.broadcast %cst_133 : f32 to vector<1x120xf32>
    %213 = arith.addf %209, %212 : vector<1x120xf32>
    %214 = math.rsqrt %213 : vector<1x120xf32>
    %215 = arith.mulf %211, %214 : vector<1x120xf32>
    %c2_134 = arith.constant 2 : index
    %c1_135 = arith.constant 1 : index
    %c0_136 = arith.constant 0 : index
    %216 = vector.load %arg3[%c2_134, %c1_135, %c0_136] : memref<6x2x144xf32, #tpu.memory_space<vmem>>, vector<1x1x120xf32>
    %217 = vector.shape_cast %216 : vector<1x1x120xf32> to vector<1x120xf32>
    %218 = arith.mulf %204, %215 : vector<1x120xf32>
    %219 = arith.subf %217, %218 : vector<1x120xf32>
    %220 = vector.broadcast %215 : vector<1x120xf32> to vector<64x120xf32>
    %221 = arith.mulf %185, %220 : vector<64x120xf32>
    %222 = vector.broadcast %219 : vector<1x120xf32> to vector<64x120xf32>
    %223 = arith.addf %221, %222 : vector<64x120xf32>
    %cst_137 = arith.constant 0.000000e+00 : f32
    %224 = vector.broadcast %cst_137 : f32 to vector<64x120xf32>
    %225 = arith.maximumf %223, %224 : vector<64x120xf32>
    %226 = arith.truncf %225 : vector<64x120xf32> to vector<64x120xbf16>
    %c3_138 = arith.constant 3 : index
    %c0_139 = arith.constant 0 : index
    %c0_140 = arith.constant 0 : index
    %c0_141 = arith.constant 0 : index
    %227 = vector.load %arg1[%c3_138, %c0_139, %c0_140, %c0_141] : memref<6x5x144x144xbf16, #tpu.memory_space<vmem>>, vector<1x1x120x128xbf16>
    %228 = vector.shape_cast %227 : vector<1x1x120x128xbf16> to vector<120x128xbf16>
    %cst_142 = arith.constant dense<0.000000e+00> : vector<64x128xf32>
    %229 = tpu.matmul %226, %228, %cst_142 {dimension_numbers = #tpu.dot_dimension_numbers<[1], [0], [0], [1], [0, 0, 1, 1], [], []>} : vector<64x120xbf16>, vector<120x128xbf16>, vector<64x128xf32> -> vector<64x128xf32>
    %c63_i32_143 = arith.constant 63 : i32
    %230 = tpu.dynamic_rotate %225 by %c63_i32_143 dim 0 : vector<64x120xf32>, i32 -> vector<64x120xf32>
    %231 = arith.truncf %230 : vector<64x120xf32> to vector<64x120xbf16>
    %c3_144 = arith.constant 3 : index
    %c1_145 = arith.constant 1 : index
    %c0_146 = arith.constant 0 : index
    %c0_147 = arith.constant 0 : index
    %232 = vector.load %arg1[%c3_144, %c1_145, %c0_146, %c0_147] : memref<6x5x144x144xbf16, #tpu.memory_space<vmem>>, vector<1x1x120x128xbf16>
    %233 = vector.shape_cast %232 : vector<1x1x120x128xbf16> to vector<120x128xbf16>
    %cst_148 = arith.constant dense<0.000000e+00> : vector<64x128xf32>
    %234 = tpu.matmul %231, %233, %cst_148 {dimension_numbers = #tpu.dot_dimension_numbers<[1], [0], [0], [1], [0, 0, 1, 1], [], []>} : vector<64x120xbf16>, vector<120x128xbf16>, vector<64x128xf32> -> vector<64x128xf32>
    %235 = arith.addf %229, %234 : vector<64x128xf32>
    %c62_i32_149 = arith.constant 62 : i32
    %236 = tpu.dynamic_rotate %225 by %c62_i32_149 dim 0 : vector<64x120xf32>, i32 -> vector<64x120xf32>
    %237 = arith.truncf %236 : vector<64x120xf32> to vector<64x120xbf16>
    %c3_150 = arith.constant 3 : index
    %c2_151 = arith.constant 2 : index
    %c0_152 = arith.constant 0 : index
    %c0_153 = arith.constant 0 : index
    %238 = vector.load %arg1[%c3_150, %c2_151, %c0_152, %c0_153] : memref<6x5x144x144xbf16, #tpu.memory_space<vmem>>, vector<1x1x120x128xbf16>
    %239 = vector.shape_cast %238 : vector<1x1x120x128xbf16> to vector<120x128xbf16>
    %cst_154 = arith.constant dense<0.000000e+00> : vector<64x128xf32>
    %240 = tpu.matmul %237, %239, %cst_154 {dimension_numbers = #tpu.dot_dimension_numbers<[1], [0], [0], [1], [0, 0, 1, 1], [], []>} : vector<64x120xbf16>, vector<120x128xbf16>, vector<64x128xf32> -> vector<64x128xf32>
    %241 = arith.addf %235, %240 : vector<64x128xf32>
    %c61_i32_155 = arith.constant 61 : i32
    %242 = tpu.dynamic_rotate %225 by %c61_i32_155 dim 0 : vector<64x120xf32>, i32 -> vector<64x120xf32>
    %243 = arith.truncf %242 : vector<64x120xf32> to vector<64x120xbf16>
    %c3_156 = arith.constant 3 : index
    %c3_157 = arith.constant 3 : index
    %c0_158 = arith.constant 0 : index
    %c0_159 = arith.constant 0 : index
    %244 = vector.load %arg1[%c3_156, %c3_157, %c0_158, %c0_159] : memref<6x5x144x144xbf16, #tpu.memory_space<vmem>>, vector<1x1x120x128xbf16>
    %245 = vector.shape_cast %244 : vector<1x1x120x128xbf16> to vector<120x128xbf16>
    %cst_160 = arith.constant dense<0.000000e+00> : vector<64x128xf32>
    %246 = tpu.matmul %243, %245, %cst_160 {dimension_numbers = #tpu.dot_dimension_numbers<[1], [0], [0], [1], [0, 0, 1, 1], [], []>} : vector<64x120xbf16>, vector<120x128xbf16>, vector<64x128xf32> -> vector<64x128xf32>
    %247 = arith.addf %241, %246 : vector<64x128xf32>
    %c60_i32_161 = arith.constant 60 : i32
    %248 = tpu.dynamic_rotate %225 by %c60_i32_161 dim 0 : vector<64x120xf32>, i32 -> vector<64x120xf32>
    %249 = arith.truncf %248 : vector<64x120xf32> to vector<64x120xbf16>
    %c3_162 = arith.constant 3 : index
    %c4_163 = arith.constant 4 : index
    %c0_164 = arith.constant 0 : index
    %c0_165 = arith.constant 0 : index
    %250 = vector.load %arg1[%c3_162, %c4_163, %c0_164, %c0_165] : memref<6x5x144x144xbf16, #tpu.memory_space<vmem>>, vector<1x1x120x128xbf16>
    %251 = vector.shape_cast %250 : vector<1x1x120x128xbf16> to vector<120x128xbf16>
    %cst_166 = arith.constant dense<0.000000e+00> : vector<64x128xf32>
    %252 = tpu.matmul %249, %251, %cst_166 {dimension_numbers = #tpu.dot_dimension_numbers<[1], [0], [0], [1], [0, 0, 1, 1], [], []>} : vector<64x120xbf16>, vector<120x128xbf16>, vector<64x128xf32> -> vector<64x128xf32>
    %253 = arith.addf %247, %252 : vector<64x128xf32>
    %c16_i32 = arith.constant 16 : i32
    %254 = vector.broadcast %c16_i32 : i32 to vector<64x1xi32>
    %255 = arith.cmpi slt, %16, %254 : vector<64x1xi32>
    %cst_167 = arith.constant 1.000000e+00 : f32
    %cst_168 = arith.constant 0.000000e+00 : f32
    %256 = vector.broadcast %cst_167 : f32 to vector<64x1xf32>
    %257 = vector.broadcast %cst_168 : f32 to vector<64x1xf32>
    %258 = arith.select %255, %256, %257 : vector<64x1xi1>, vector<64x1xf32>
    %259 = vector.broadcast %258 : vector<64x1xf32> to vector<64x128xf32>
    %260 = arith.mulf %253, %259 : vector<64x128xf32>
    %cst_169 = arith.constant dense<0.000000e+00> : vector<128xf32>
    %261 = vector.multi_reduction <add>, %260, %cst_169 [0] : vector<64x128xf32> to vector<128xf32>
    %262 = vector.shape_cast %261 : vector<128xf32> to vector<1x128xf32>
    %263 = arith.mulf %260, %253 : vector<64x128xf32>
    %cst_170 = arith.constant dense<0.000000e+00> : vector<128xf32>
    %264 = vector.multi_reduction <add>, %263, %cst_170 [0] : vector<64x128xf32> to vector<128xf32>
    %265 = vector.shape_cast %264 : vector<128xf32> to vector<1x128xf32>
    %266 = tpu.concatenate %262, %265 in 0 : vector<1x128xf32>, vector<1x128xf32> -> vector<2x128xf32>
    %c3_171 = arith.constant 3 : index
    %c0_172 = arith.constant 0 : index
    %c0_173 = arith.constant 0 : index
    %267 = vector.load %arg2[%c3_171, %c0_172, %c0_173] : memref<6x144x144xf32, #tpu.memory_space<vmem>>, vector<1x128x128xf32>
    %268 = vector.shape_cast %267 : vector<1x128x128xf32> to vector<128x128xf32>
    %cst_174 = arith.constant dense<0.000000e+00> : vector<2x128xf32>
    %269 = tpu.matmul %266, %268, %cst_174 {dimension_numbers = #tpu.dot_dimension_numbers<[1], [0], [0], [1], [0, 0, 1, 1], [], []>} : vector<2x128xf32>, vector<128x128xf32>, vector<2x128xf32> -> vector<2x128xf32>
    %cst_175 = arith.constant 0.001953125 : f32
    %270 = vector.broadcast %cst_175 : f32 to vector<2x128xf32>
    %271 = arith.mulf %269, %270 : vector<2x128xf32>
    %272 = vector.extract_strided_slice %271 {offsets = [0, 0], sizes = [1, 128], strides = [1, 1]} : vector<2x128xf32> to vector<1x128xf32>
    %273 = vector.extract_strided_slice %271 {offsets = [1, 0], sizes = [1, 128], strides = [1, 1]} : vector<2x128xf32> to vector<1x128xf32>
    %274 = arith.mulf %272, %272 : vector<1x128xf32>
    %275 = arith.subf %273, %274 : vector<1x128xf32>
    %cst_176 = arith.constant 0.000000e+00 : f32
    %276 = vector.broadcast %cst_176 : f32 to vector<1x128xf32>
    %277 = arith.maximumf %275, %276 : vector<1x128xf32>
    %c3_177 = arith.constant 3 : index
    %c0_178 = arith.constant 0 : index
    %c0_179 = arith.constant 0 : index
    %278 = vector.load %arg3[%c3_177, %c0_178, %c0_179] : memref<6x2x144xf32, #tpu.memory_space<vmem>>, vector<1x1x128xf32>
    %279 = vector.shape_cast %278 : vector<1x1x128xf32> to vector<1x128xf32>
    %cst_180 = arith.constant 9.99999974E-6 : f32
    %280 = vector.broadcast %cst_180 : f32 to vector<1x128xf32>
    %281 = arith.addf %277, %280 : vector<1x128xf32>
    %282 = math.rsqrt %281 : vector<1x128xf32>
    %283 = arith.mulf %279, %282 : vector<1x128xf32>
    %c3_181 = arith.constant 3 : index
    %c1_182 = arith.constant 1 : index
    %c0_183 = arith.constant 0 : index
    %284 = vector.load %arg3[%c3_181, %c1_182, %c0_183] : memref<6x2x144xf32, #tpu.memory_space<vmem>>, vector<1x1x128xf32>
    %285 = vector.shape_cast %284 : vector<1x1x128xf32> to vector<1x128xf32>
    %286 = arith.mulf %272, %283 : vector<1x128xf32>
    %287 = arith.subf %285, %286 : vector<1x128xf32>
    %288 = vector.broadcast %283 : vector<1x128xf32> to vector<64x128xf32>
    %289 = arith.mulf %253, %288 : vector<64x128xf32>
    %290 = vector.broadcast %287 : vector<1x128xf32> to vector<64x128xf32>
    %291 = arith.addf %289, %290 : vector<64x128xf32>
    %cst_184 = arith.constant 0.000000e+00 : f32
    %292 = vector.broadcast %cst_184 : f32 to vector<64x128xf32>
    %293 = arith.maximumf %291, %292 : vector<64x128xf32>
    %294 = arith.truncf %293 : vector<64x128xf32> to vector<64x128xbf16>
    %c4_185 = arith.constant 4 : index
    %c0_186 = arith.constant 0 : index
    %c0_187 = arith.constant 0 : index
    %c0_188 = arith.constant 0 : index
    %295 = vector.load %arg1[%c4_185, %c0_186, %c0_187, %c0_188] : memref<6x5x144x144xbf16, #tpu.memory_space<vmem>>, vector<1x1x128x144xbf16>
    %296 = vector.shape_cast %295 : vector<1x1x128x144xbf16> to vector<128x144xbf16>
    %cst_189 = arith.constant dense<0.000000e+00> : vector<64x144xf32>
    %297 = tpu.matmul %294, %296, %cst_189 {dimension_numbers = #tpu.dot_dimension_numbers<[1], [0], [0], [1], [0, 0, 1, 1], [], []>} : vector<64x128xbf16>, vector<128x144xbf16>, vector<64x144xf32> -> vector<64x144xf32>
    %c63_i32_190 = arith.constant 63 : i32
    %298 = tpu.dynamic_rotate %293 by %c63_i32_190 dim 0 : vector<64x128xf32>, i32 -> vector<64x128xf32>
    %299 = arith.truncf %298 : vector<64x128xf32> to vector<64x128xbf16>
    %c4_191 = arith.constant 4 : index
    %c1_192 = arith.constant 1 : index
    %c0_193 = arith.constant 0 : index
    %c0_194 = arith.constant 0 : index
    %300 = vector.load %arg1[%c4_191, %c1_192, %c0_193, %c0_194] : memref<6x5x144x144xbf16, #tpu.memory_space<vmem>>, vector<1x1x128x144xbf16>
    %301 = vector.shape_cast %300 : vector<1x1x128x144xbf16> to vector<128x144xbf16>
    %cst_195 = arith.constant dense<0.000000e+00> : vector<64x144xf32>
    %302 = tpu.matmul %299, %301, %cst_195 {dimension_numbers = #tpu.dot_dimension_numbers<[1], [0], [0], [1], [0, 0, 1, 1], [], []>} : vector<64x128xbf16>, vector<128x144xbf16>, vector<64x144xf32> -> vector<64x144xf32>
    %303 = arith.addf %297, %302 : vector<64x144xf32>
    %c62_i32_196 = arith.constant 62 : i32
    %304 = tpu.dynamic_rotate %293 by %c62_i32_196 dim 0 : vector<64x128xf32>, i32 -> vector<64x128xf32>
    %305 = arith.truncf %304 : vector<64x128xf32> to vector<64x128xbf16>
    %c4_197 = arith.constant 4 : index
    %c2_198 = arith.constant 2 : index
    %c0_199 = arith.constant 0 : index
    %c0_200 = arith.constant 0 : index
    %306 = vector.load %arg1[%c4_197, %c2_198, %c0_199, %c0_200] : memref<6x5x144x144xbf16, #tpu.memory_space<vmem>>, vector<1x1x128x144xbf16>
    %307 = vector.shape_cast %306 : vector<1x1x128x144xbf16> to vector<128x144xbf16>
    %cst_201 = arith.constant dense<0.000000e+00> : vector<64x144xf32>
    %308 = tpu.matmul %305, %307, %cst_201 {dimension_numbers = #tpu.dot_dimension_numbers<[1], [0], [0], [1], [0, 0, 1, 1], [], []>} : vector<64x128xbf16>, vector<128x144xbf16>, vector<64x144xf32> -> vector<64x144xf32>
    %309 = arith.addf %303, %308 : vector<64x144xf32>
    %c61_i32_202 = arith.constant 61 : i32
    %310 = tpu.dynamic_rotate %293 by %c61_i32_202 dim 0 : vector<64x128xf32>, i32 -> vector<64x128xf32>
    %311 = arith.truncf %310 : vector<64x128xf32> to vector<64x128xbf16>
    %c4_203 = arith.constant 4 : index
    %c3_204 = arith.constant 3 : index
    %c0_205 = arith.constant 0 : index
    %c0_206 = arith.constant 0 : index
    %312 = vector.load %arg1[%c4_203, %c3_204, %c0_205, %c0_206] : memref<6x5x144x144xbf16, #tpu.memory_space<vmem>>, vector<1x1x128x144xbf16>
    %313 = vector.shape_cast %312 : vector<1x1x128x144xbf16> to vector<128x144xbf16>
    %cst_207 = arith.constant dense<0.000000e+00> : vector<64x144xf32>
    %314 = tpu.matmul %311, %313, %cst_207 {dimension_numbers = #tpu.dot_dimension_numbers<[1], [0], [0], [1], [0, 0, 1, 1], [], []>} : vector<64x128xbf16>, vector<128x144xbf16>, vector<64x144xf32> -> vector<64x144xf32>
    %315 = arith.addf %309, %314 : vector<64x144xf32>
    %c60_i32_208 = arith.constant 60 : i32
    %316 = tpu.dynamic_rotate %293 by %c60_i32_208 dim 0 : vector<64x128xf32>, i32 -> vector<64x128xf32>
    %317 = arith.truncf %316 : vector<64x128xf32> to vector<64x128xbf16>
    %c4_209 = arith.constant 4 : index
    %c4_210 = arith.constant 4 : index
    %c0_211 = arith.constant 0 : index
    %c0_212 = arith.constant 0 : index
    %318 = vector.load %arg1[%c4_209, %c4_210, %c0_211, %c0_212] : memref<6x5x144x144xbf16, #tpu.memory_space<vmem>>, vector<1x1x128x144xbf16>
    %319 = vector.shape_cast %318 : vector<1x1x128x144xbf16> to vector<128x144xbf16>
    %cst_213 = arith.constant dense<0.000000e+00> : vector<64x144xf32>
    %320 = tpu.matmul %317, %319, %cst_213 {dimension_numbers = #tpu.dot_dimension_numbers<[1], [0], [0], [1], [0, 0, 1, 1], [], []>} : vector<64x128xbf16>, vector<128x144xbf16>, vector<64x144xf32> -> vector<64x144xf32>
    %321 = arith.addf %315, %320 : vector<64x144xf32>
    %c12_i32 = arith.constant 12 : i32
    %322 = vector.broadcast %c12_i32 : i32 to vector<64x1xi32>
    %323 = arith.cmpi slt, %16, %322 : vector<64x1xi32>
    %cst_214 = arith.constant 1.000000e+00 : f32
    %cst_215 = arith.constant 0.000000e+00 : f32
    %324 = vector.broadcast %cst_214 : f32 to vector<64x1xf32>
    %325 = vector.broadcast %cst_215 : f32 to vector<64x1xf32>
    %326 = arith.select %323, %324, %325 : vector<64x1xi1>, vector<64x1xf32>
    %327 = vector.broadcast %326 : vector<64x1xf32> to vector<64x144xf32>
    %328 = arith.mulf %321, %327 : vector<64x144xf32>
    %cst_216 = arith.constant dense<0.000000e+00> : vector<144xf32>
    %329 = vector.multi_reduction <add>, %328, %cst_216 [0] : vector<64x144xf32> to vector<144xf32>
    %330 = vector.shape_cast %329 : vector<144xf32> to vector<1x144xf32>
    %331 = arith.mulf %328, %321 : vector<64x144xf32>
    %cst_217 = arith.constant dense<0.000000e+00> : vector<144xf32>
    %332 = vector.multi_reduction <add>, %331, %cst_217 [0] : vector<64x144xf32> to vector<144xf32>
    %333 = vector.shape_cast %332 : vector<144xf32> to vector<1x144xf32>
    %334 = tpu.concatenate %330, %333 in 0 : vector<1x144xf32>, vector<1x144xf32> -> vector<2x144xf32>
    %c4_218 = arith.constant 4 : index
    %c0_219 = arith.constant 0 : index
    %c0_220 = arith.constant 0 : index
    %335 = vector.load %arg2[%c4_218, %c0_219, %c0_220] : memref<6x144x144xf32, #tpu.memory_space<vmem>>, vector<1x144x144xf32>
    %336 = vector.shape_cast %335 : vector<1x144x144xf32> to vector<144x144xf32>
    %cst_221 = arith.constant dense<0.000000e+00> : vector<2x144xf32>
    %337 = tpu.matmul %334, %336, %cst_221 {dimension_numbers = #tpu.dot_dimension_numbers<[1], [0], [0], [1], [0, 0, 1, 1], [], []>} : vector<2x144xf32>, vector<144x144xf32>, vector<2x144xf32> -> vector<2x144xf32>
    %cst_222 = arith.constant 0.00347222225 : f32
    %338 = vector.broadcast %cst_222 : f32 to vector<2x144xf32>
    %339 = arith.mulf %337, %338 : vector<2x144xf32>
    %340 = vector.extract_strided_slice %339 {offsets = [0, 0], sizes = [1, 144], strides = [1, 1]} : vector<2x144xf32> to vector<1x144xf32>
    %341 = vector.extract_strided_slice %339 {offsets = [1, 0], sizes = [1, 144], strides = [1, 1]} : vector<2x144xf32> to vector<1x144xf32>
    %342 = arith.mulf %340, %340 : vector<1x144xf32>
    %343 = arith.subf %341, %342 : vector<1x144xf32>
    %cst_223 = arith.constant 0.000000e+00 : f32
    %344 = vector.broadcast %cst_223 : f32 to vector<1x144xf32>
    %345 = arith.maximumf %343, %344 : vector<1x144xf32>
    %c4_224 = arith.constant 4 : index
    %c0_225 = arith.constant 0 : index
    %c0_226 = arith.constant 0 : index
    %346 = vector.load %arg3[%c4_224, %c0_225, %c0_226] : memref<6x2x144xf32, #tpu.memory_space<vmem>>, vector<1x1x144xf32>
    %347 = vector.shape_cast %346 : vector<1x1x144xf32> to vector<1x144xf32>
    %cst_227 = arith.constant 9.99999974E-6 : f32
    %348 = vector.broadcast %cst_227 : f32 to vector<1x144xf32>
    %349 = arith.addf %345, %348 : vector<1x144xf32>
    %350 = math.rsqrt %349 : vector<1x144xf32>
    %351 = arith.mulf %347, %350 : vector<1x144xf32>
    %c4_228 = arith.constant 4 : index
    %c1_229 = arith.constant 1 : index
    %c0_230 = arith.constant 0 : index
    %352 = vector.load %arg3[%c4_228, %c1_229, %c0_230] : memref<6x2x144xf32, #tpu.memory_space<vmem>>, vector<1x1x144xf32>
    %353 = vector.shape_cast %352 : vector<1x1x144xf32> to vector<1x144xf32>
    %354 = arith.mulf %340, %351 : vector<1x144xf32>
    %355 = arith.subf %353, %354 : vector<1x144xf32>
    %356 = vector.broadcast %351 : vector<1x144xf32> to vector<64x144xf32>
    %357 = arith.mulf %321, %356 : vector<64x144xf32>
    %358 = vector.broadcast %355 : vector<1x144xf32> to vector<64x144xf32>
    %359 = arith.addf %357, %358 : vector<64x144xf32>
    %cst_231 = arith.constant 0.000000e+00 : f32
    %360 = vector.broadcast %cst_231 : f32 to vector<64x144xf32>
    %361 = arith.maximumf %359, %360 : vector<64x144xf32>
    %362 = arith.truncf %361 : vector<64x144xf32> to vector<64x144xbf16>
    %c5 = arith.constant 5 : index
    %c0_232 = arith.constant 0 : index
    %c0_233 = arith.constant 0 : index
    %c0_234 = arith.constant 0 : index
    %363 = vector.load %arg1[%c5, %c0_232, %c0_233, %c0_234] : memref<6x5x144x144xbf16, #tpu.memory_space<vmem>>, vector<1x1x144x128xbf16>
    %364 = vector.shape_cast %363 : vector<1x1x144x128xbf16> to vector<144x128xbf16>
    %cst_235 = arith.constant dense<0.000000e+00> : vector<64x128xf32>
    %365 = tpu.matmul %362, %364, %cst_235 {dimension_numbers = #tpu.dot_dimension_numbers<[1], [0], [0], [1], [0, 0, 1, 1], [], []>} : vector<64x144xbf16>, vector<144x128xbf16>, vector<64x128xf32> -> vector<64x128xf32>
    %c63_i32_236 = arith.constant 63 : i32
    %366 = tpu.dynamic_rotate %361 by %c63_i32_236 dim 0 : vector<64x144xf32>, i32 -> vector<64x144xf32>
    %367 = arith.truncf %366 : vector<64x144xf32> to vector<64x144xbf16>
    %c5_237 = arith.constant 5 : index
    %c1_238 = arith.constant 1 : index
    %c0_239 = arith.constant 0 : index
    %c0_240 = arith.constant 0 : index
    %368 = vector.load %arg1[%c5_237, %c1_238, %c0_239, %c0_240] : memref<6x5x144x144xbf16, #tpu.memory_space<vmem>>, vector<1x1x144x128xbf16>
    %369 = vector.shape_cast %368 : vector<1x1x144x128xbf16> to vector<144x128xbf16>
    %cst_241 = arith.constant dense<0.000000e+00> : vector<64x128xf32>
    %370 = tpu.matmul %367, %369, %cst_241 {dimension_numbers = #tpu.dot_dimension_numbers<[1], [0], [0], [1], [0, 0, 1, 1], [], []>} : vector<64x144xbf16>, vector<144x128xbf16>, vector<64x128xf32> -> vector<64x128xf32>
    %371 = arith.addf %365, %370 : vector<64x128xf32>
    %c62_i32_242 = arith.constant 62 : i32
    %372 = tpu.dynamic_rotate %361 by %c62_i32_242 dim 0 : vector<64x144xf32>, i32 -> vector<64x144xf32>
    %373 = arith.truncf %372 : vector<64x144xf32> to vector<64x144xbf16>
    %c5_243 = arith.constant 5 : index
    %c2_244 = arith.constant 2 : index
    %c0_245 = arith.constant 0 : index
    %c0_246 = arith.constant 0 : index
    %374 = vector.load %arg1[%c5_243, %c2_244, %c0_245, %c0_246] : memref<6x5x144x144xbf16, #tpu.memory_space<vmem>>, vector<1x1x144x128xbf16>
    %375 = vector.shape_cast %374 : vector<1x1x144x128xbf16> to vector<144x128xbf16>
    %cst_247 = arith.constant dense<0.000000e+00> : vector<64x128xf32>
    %376 = tpu.matmul %373, %375, %cst_247 {dimension_numbers = #tpu.dot_dimension_numbers<[1], [0], [0], [1], [0, 0, 1, 1], [], []>} : vector<64x144xbf16>, vector<144x128xbf16>, vector<64x128xf32> -> vector<64x128xf32>
    %377 = arith.addf %371, %376 : vector<64x128xf32>
    %c61_i32_248 = arith.constant 61 : i32
    %378 = tpu.dynamic_rotate %361 by %c61_i32_248 dim 0 : vector<64x144xf32>, i32 -> vector<64x144xf32>
    %379 = arith.truncf %378 : vector<64x144xf32> to vector<64x144xbf16>
    %c5_249 = arith.constant 5 : index
    %c3_250 = arith.constant 3 : index
    %c0_251 = arith.constant 0 : index
    %c0_252 = arith.constant 0 : index
    %380 = vector.load %arg1[%c5_249, %c3_250, %c0_251, %c0_252] : memref<6x5x144x144xbf16, #tpu.memory_space<vmem>>, vector<1x1x144x128xbf16>
    %381 = vector.shape_cast %380 : vector<1x1x144x128xbf16> to vector<144x128xbf16>
    %cst_253 = arith.constant dense<0.000000e+00> : vector<64x128xf32>
    %382 = tpu.matmul %379, %381, %cst_253 {dimension_numbers = #tpu.dot_dimension_numbers<[1], [0], [0], [1], [0, 0, 1, 1], [], []>} : vector<64x144xbf16>, vector<144x128xbf16>, vector<64x128xf32> -> vector<64x128xf32>
    %383 = arith.addf %377, %382 : vector<64x128xf32>
    %c60_i32_254 = arith.constant 60 : i32
    %384 = tpu.dynamic_rotate %361 by %c60_i32_254 dim 0 : vector<64x144xf32>, i32 -> vector<64x144xf32>
    %385 = arith.truncf %384 : vector<64x144xf32> to vector<64x144xbf16>
    %c5_255 = arith.constant 5 : index
    %c4_256 = arith.constant 4 : index
    %c0_257 = arith.constant 0 : index
    %c0_258 = arith.constant 0 : index
    %386 = vector.load %arg1[%c5_255, %c4_256, %c0_257, %c0_258] : memref<6x5x144x144xbf16, #tpu.memory_space<vmem>>, vector<1x1x144x128xbf16>
    %387 = vector.shape_cast %386 : vector<1x1x144x128xbf16> to vector<144x128xbf16>
    %cst_259 = arith.constant dense<0.000000e+00> : vector<64x128xf32>
    %388 = tpu.matmul %385, %387, %cst_259 {dimension_numbers = #tpu.dot_dimension_numbers<[1], [0], [0], [1], [0, 0, 1, 1], [], []>} : vector<64x144xbf16>, vector<144x128xbf16>, vector<64x128xf32> -> vector<64x128xf32>
    %389 = arith.addf %383, %388 : vector<64x128xf32>
    %c8_i32 = arith.constant 8 : i32
    %390 = vector.broadcast %c8_i32 : i32 to vector<64x1xi32>
    %391 = arith.cmpi slt, %16, %390 : vector<64x1xi32>
    %cst_260 = arith.constant 1.000000e+00 : f32
    %cst_261 = arith.constant 0.000000e+00 : f32
    %392 = vector.broadcast %cst_260 : f32 to vector<64x1xf32>
    %393 = vector.broadcast %cst_261 : f32 to vector<64x1xf32>
    %394 = arith.select %391, %392, %393 : vector<64x1xi1>, vector<64x1xf32>
    %395 = vector.broadcast %394 : vector<64x1xf32> to vector<64x128xf32>
    %396 = arith.mulf %389, %395 : vector<64x128xf32>
    %cst_262 = arith.constant dense<0.000000e+00> : vector<128xf32>
    %397 = vector.multi_reduction <add>, %396, %cst_262 [0] : vector<64x128xf32> to vector<128xf32>
    %398 = vector.shape_cast %397 : vector<128xf32> to vector<1x128xf32>
    %399 = arith.mulf %396, %389 : vector<64x128xf32>
    %cst_263 = arith.constant dense<0.000000e+00> : vector<128xf32>
    %400 = vector.multi_reduction <add>, %399, %cst_263 [0] : vector<64x128xf32> to vector<128xf32>
    %401 = vector.shape_cast %400 : vector<128xf32> to vector<1x128xf32>
    %402 = tpu.concatenate %398, %401 in 0 : vector<1x128xf32>, vector<1x128xf32> -> vector<2x128xf32>
    %c5_264 = arith.constant 5 : index
    %c0_265 = arith.constant 0 : index
    %c0_266 = arith.constant 0 : index
    %403 = vector.load %arg2[%c5_264, %c0_265, %c0_266] : memref<6x144x144xf32, #tpu.memory_space<vmem>>, vector<1x128x128xf32>
    %404 = vector.shape_cast %403 : vector<1x128x128xf32> to vector<128x128xf32>
    %cst_267 = arith.constant dense<0.000000e+00> : vector<2x128xf32>
    %405 = tpu.matmul %402, %404, %cst_267 {dimension_numbers = #tpu.dot_dimension_numbers<[1], [0], [0], [1], [0, 0, 1, 1], [], []>} : vector<2x128xf32>, vector<128x128xf32>, vector<2x128xf32> -> vector<2x128xf32>
    %cst_268 = arith.constant 7.812500e-03 : f32
    %406 = vector.broadcast %cst_268 : f32 to vector<2x128xf32>
    %407 = arith.mulf %405, %406 : vector<2x128xf32>
    %408 = vector.extract_strided_slice %407 {offsets = [0, 0], sizes = [1, 128], strides = [1, 1]} : vector<2x128xf32> to vector<1x128xf32>
    %409 = vector.extract_strided_slice %407 {offsets = [1, 0], sizes = [1, 128], strides = [1, 1]} : vector<2x128xf32> to vector<1x128xf32>
    %410 = arith.mulf %408, %408 : vector<1x128xf32>
    %411 = arith.subf %409, %410 : vector<1x128xf32>
    %cst_269 = arith.constant 0.000000e+00 : f32
    %412 = vector.broadcast %cst_269 : f32 to vector<1x128xf32>
    %413 = arith.maximumf %411, %412 : vector<1x128xf32>
    %c5_270 = arith.constant 5 : index
    %c0_271 = arith.constant 0 : index
    %c0_272 = arith.constant 0 : index
    %414 = vector.load %arg3[%c5_270, %c0_271, %c0_272] : memref<6x2x144xf32, #tpu.memory_space<vmem>>, vector<1x1x128xf32>
    %415 = vector.shape_cast %414 : vector<1x1x128xf32> to vector<1x128xf32>
    %cst_273 = arith.constant 9.99999974E-6 : f32
    %416 = vector.broadcast %cst_273 : f32 to vector<1x128xf32>
    %417 = arith.addf %413, %416 : vector<1x128xf32>
    %418 = math.rsqrt %417 : vector<1x128xf32>
    %419 = arith.mulf %415, %418 : vector<1x128xf32>
    %c5_274 = arith.constant 5 : index
    %c1_275 = arith.constant 1 : index
    %c0_276 = arith.constant 0 : index
    %420 = vector.load %arg3[%c5_274, %c1_275, %c0_276] : memref<6x2x144xf32, #tpu.memory_space<vmem>>, vector<1x1x128xf32>
    %421 = vector.shape_cast %420 : vector<1x1x128xf32> to vector<1x128xf32>
    %422 = arith.mulf %408, %419 : vector<1x128xf32>
    %423 = arith.subf %421, %422 : vector<1x128xf32>
    %424 = vector.broadcast %419 : vector<1x128xf32> to vector<64x128xf32>
    %425 = arith.mulf %389, %424 : vector<64x128xf32>
    %426 = vector.broadcast %423 : vector<1x128xf32> to vector<64x128xf32>
    %427 = arith.addf %425, %426 : vector<64x128xf32>
    %cst_277 = arith.constant 0.000000e+00 : f32
    %428 = vector.broadcast %cst_277 : f32 to vector<64x128xf32>
    %429 = arith.maximumf %427, %428 : vector<64x128xf32>
    %430 = vector.extract_strided_slice %429 {offsets = [0, 0], sizes = [8, 128], strides = [1, 1]} : vector<64x128xf32> to vector<8x128xf32>
    %431 = vector.extract_strided_slice %429 {offsets = [32, 0], sizes = [8, 128], strides = [1, 1]} : vector<64x128xf32> to vector<8x128xf32>
    %432 = tpu.concatenate %430, %431 in 0 : vector<8x128xf32>, vector<8x128xf32> -> vector<16x128xf32>
    %433 = arith.truncf %432 : vector<16x128xf32> to vector<16x128xbf16>
    %c0_278 = arith.constant 0 : index
    %c0_279 = arith.constant 0 : index
    %c0_280 = arith.constant 0 : index
    %434 = vector.load %arg4[%c0_278, %c0_279, %c0_280] : memref<8x128x512xbf16, #tpu.memory_space<vmem>>, vector<1x128x512xbf16>
    %435 = vector.shape_cast %434 : vector<1x128x512xbf16> to vector<128x512xbf16>
    %cst_281 = arith.constant dense<0.000000e+00> : vector<16x512xf32>
    %436 = tpu.matmul %433, %435, %cst_281 {dimension_numbers = #tpu.dot_dimension_numbers<[1], [0], [0], [1], [0, 0, 1, 1], [], []>} : vector<16x128xbf16>, vector<128x512xbf16>, vector<16x512xf32> -> vector<16x512xf32>
    %c15_i32 = arith.constant 15 : i32
    %437 = tpu.dynamic_rotate %432 by %c15_i32 dim 0 : vector<16x128xf32>, i32 -> vector<16x128xf32>
    %438 = arith.truncf %437 : vector<16x128xf32> to vector<16x128xbf16>
    %c1_282 = arith.constant 1 : index
    %c0_283 = arith.constant 0 : index
    %c0_284 = arith.constant 0 : index
    %439 = vector.load %arg4[%c1_282, %c0_283, %c0_284] : memref<8x128x512xbf16, #tpu.memory_space<vmem>>, vector<1x128x512xbf16>
    %440 = vector.shape_cast %439 : vector<1x128x512xbf16> to vector<128x512xbf16>
    %cst_285 = arith.constant dense<0.000000e+00> : vector<16x512xf32>
    %441 = tpu.matmul %438, %440, %cst_285 {dimension_numbers = #tpu.dot_dimension_numbers<[1], [0], [0], [1], [0, 0, 1, 1], [], []>} : vector<16x128xbf16>, vector<128x512xbf16>, vector<16x512xf32> -> vector<16x512xf32>
    %442 = arith.addf %436, %441 : vector<16x512xf32>
    %c14_i32 = arith.constant 14 : i32
    %443 = tpu.dynamic_rotate %432 by %c14_i32 dim 0 : vector<16x128xf32>, i32 -> vector<16x128xf32>
    %444 = arith.truncf %443 : vector<16x128xf32> to vector<16x128xbf16>
    %c2_286 = arith.constant 2 : index
    %c0_287 = arith.constant 0 : index
    %c0_288 = arith.constant 0 : index
    %445 = vector.load %arg4[%c2_286, %c0_287, %c0_288] : memref<8x128x512xbf16, #tpu.memory_space<vmem>>, vector<1x128x512xbf16>
    %446 = vector.shape_cast %445 : vector<1x128x512xbf16> to vector<128x512xbf16>
    %cst_289 = arith.constant dense<0.000000e+00> : vector<16x512xf32>
    %447 = tpu.matmul %444, %446, %cst_289 {dimension_numbers = #tpu.dot_dimension_numbers<[1], [0], [0], [1], [0, 0, 1, 1], [], []>} : vector<16x128xbf16>, vector<128x512xbf16>, vector<16x512xf32> -> vector<16x512xf32>
    %448 = arith.addf %442, %447 : vector<16x512xf32>
    %c13_i32 = arith.constant 13 : i32
    %449 = tpu.dynamic_rotate %432 by %c13_i32 dim 0 : vector<16x128xf32>, i32 -> vector<16x128xf32>
    %450 = arith.truncf %449 : vector<16x128xf32> to vector<16x128xbf16>
    %c3_290 = arith.constant 3 : index
    %c0_291 = arith.constant 0 : index
    %c0_292 = arith.constant 0 : index
    %451 = vector.load %arg4[%c3_290, %c0_291, %c0_292] : memref<8x128x512xbf16, #tpu.memory_space<vmem>>, vector<1x128x512xbf16>
    %452 = vector.shape_cast %451 : vector<1x128x512xbf16> to vector<128x512xbf16>
    %cst_293 = arith.constant dense<0.000000e+00> : vector<16x512xf32>
    %453 = tpu.matmul %450, %452, %cst_293 {dimension_numbers = #tpu.dot_dimension_numbers<[1], [0], [0], [1], [0, 0, 1, 1], [], []>} : vector<16x128xbf16>, vector<128x512xbf16>, vector<16x512xf32> -> vector<16x512xf32>
    %454 = arith.addf %448, %453 : vector<16x512xf32>
    %c12_i32_294 = arith.constant 12 : i32
    %455 = tpu.dynamic_rotate %432 by %c12_i32_294 dim 0 : vector<16x128xf32>, i32 -> vector<16x128xf32>
    %456 = arith.truncf %455 : vector<16x128xf32> to vector<16x128xbf16>
    %c4_295 = arith.constant 4 : index
    %c0_296 = arith.constant 0 : index
    %c0_297 = arith.constant 0 : index
    %457 = vector.load %arg4[%c4_295, %c0_296, %c0_297] : memref<8x128x512xbf16, #tpu.memory_space<vmem>>, vector<1x128x512xbf16>
    %458 = vector.shape_cast %457 : vector<1x128x512xbf16> to vector<128x512xbf16>
    %cst_298 = arith.constant dense<0.000000e+00> : vector<16x512xf32>
    %459 = tpu.matmul %456, %458, %cst_298 {dimension_numbers = #tpu.dot_dimension_numbers<[1], [0], [0], [1], [0, 0, 1, 1], [], []>} : vector<16x128xbf16>, vector<128x512xbf16>, vector<16x512xf32> -> vector<16x512xf32>
    %460 = arith.addf %454, %459 : vector<16x512xf32>
    %c11_i32 = arith.constant 11 : i32
    %461 = tpu.dynamic_rotate %432 by %c11_i32 dim 0 : vector<16x128xf32>, i32 -> vector<16x128xf32>
    %462 = arith.truncf %461 : vector<16x128xf32> to vector<16x128xbf16>
    %c5_299 = arith.constant 5 : index
    %c0_300 = arith.constant 0 : index
    %c0_301 = arith.constant 0 : index
    %463 = vector.load %arg4[%c5_299, %c0_300, %c0_301] : memref<8x128x512xbf16, #tpu.memory_space<vmem>>, vector<1x128x512xbf16>
    %464 = vector.shape_cast %463 : vector<1x128x512xbf16> to vector<128x512xbf16>
    %cst_302 = arith.constant dense<0.000000e+00> : vector<16x512xf32>
    %465 = tpu.matmul %462, %464, %cst_302 {dimension_numbers = #tpu.dot_dimension_numbers<[1], [0], [0], [1], [0, 0, 1, 1], [], []>} : vector<16x128xbf16>, vector<128x512xbf16>, vector<16x512xf32> -> vector<16x512xf32>
    %466 = arith.addf %460, %465 : vector<16x512xf32>
    %c10_i32 = arith.constant 10 : i32
    %467 = tpu.dynamic_rotate %432 by %c10_i32 dim 0 : vector<16x128xf32>, i32 -> vector<16x128xf32>
    %468 = arith.truncf %467 : vector<16x128xf32> to vector<16x128xbf16>
    %c6 = arith.constant 6 : index
    %c0_303 = arith.constant 0 : index
    %c0_304 = arith.constant 0 : index
    %469 = vector.load %arg4[%c6, %c0_303, %c0_304] : memref<8x128x512xbf16, #tpu.memory_space<vmem>>, vector<1x128x512xbf16>
    %470 = vector.shape_cast %469 : vector<1x128x512xbf16> to vector<128x512xbf16>
    %cst_305 = arith.constant dense<0.000000e+00> : vector<16x512xf32>
    %471 = tpu.matmul %468, %470, %cst_305 {dimension_numbers = #tpu.dot_dimension_numbers<[1], [0], [0], [1], [0, 0, 1, 1], [], []>} : vector<16x128xbf16>, vector<128x512xbf16>, vector<16x512xf32> -> vector<16x512xf32>
    %472 = arith.addf %466, %471 : vector<16x512xf32>
    %c9_i32 = arith.constant 9 : i32
    %473 = tpu.dynamic_rotate %432 by %c9_i32 dim 0 : vector<16x128xf32>, i32 -> vector<16x128xf32>
    %474 = arith.truncf %473 : vector<16x128xf32> to vector<16x128xbf16>
    %c7 = arith.constant 7 : index
    %c0_306 = arith.constant 0 : index
    %c0_307 = arith.constant 0 : index
    %475 = vector.load %arg4[%c7, %c0_306, %c0_307] : memref<8x128x512xbf16, #tpu.memory_space<vmem>>, vector<1x128x512xbf16>
    %476 = vector.shape_cast %475 : vector<1x128x512xbf16> to vector<128x512xbf16>
    %cst_308 = arith.constant dense<0.000000e+00> : vector<16x512xf32>
    %477 = tpu.matmul %474, %476, %cst_308 {dimension_numbers = #tpu.dot_dimension_numbers<[1], [0], [0], [1], [0, 0, 1, 1], [], []>} : vector<16x128xbf16>, vector<128x512xbf16>, vector<16x512xf32> -> vector<16x512xf32>
    %478 = arith.addf %472, %477 : vector<16x512xf32>
    %479 = vector.extract_strided_slice %478 {offsets = [0, 0], sizes = [1, 512], strides = [1, 1]} : vector<16x512xf32> to vector<1x512xf32>
    %480 = vector.extract_strided_slice %478 {offsets = [8, 0], sizes = [1, 512], strides = [1, 1]} : vector<16x512xf32> to vector<1x512xf32>
    %481 = tpu.concatenate %479, %480 in 0 : vector<1x512xf32>, vector<1x512xf32> -> vector<2x512xf32>
    %c0_309 = arith.constant 0 : index
    %c0_310 = arith.constant 0 : index
    %482 = vector.load %arg6[%c0_309, %c0_310] : memref<4x512xf32, #tpu.memory_space<vmem>>, vector<1x512xf32>
    %483 = vector.broadcast %482 : vector<1x512xf32> to vector<2x512xf32>
    %484 = arith.addf %481, %483 : vector<2x512xf32>
    %cst_311 = arith.constant 0.000000e+00 : f32
    %485 = vector.broadcast %cst_311 : f32 to vector<2x512xf32>
    %486 = arith.maximumf %484, %485 : vector<2x512xf32>
    %487 = arith.truncf %486 : vector<2x512xf32> to vector<2x512xbf16>
    %c0_312 = arith.constant 0 : index
    %c0_313 = arith.constant 0 : index
    %c0_314 = arith.constant 0 : index
    %488 = vector.load %arg5[%c0_312, %c0_313, %c0_314] : memref<3x512x256xbf16, #tpu.memory_space<vmem>>, vector<1x512x256xbf16>
    %489 = vector.shape_cast %488 : vector<1x512x256xbf16> to vector<512x256xbf16>
    %cst_315 = arith.constant dense<0.000000e+00> : vector<2x256xf32>
    %490 = tpu.matmul %487, %489, %cst_315 {dimension_numbers = #tpu.dot_dimension_numbers<[1], [0], [0], [1], [0, 0, 1, 1], [], []>} : vector<2x512xbf16>, vector<512x256xbf16>, vector<2x256xf32> -> vector<2x256xf32>
    %c1_316 = arith.constant 1 : index
    %c0_317 = arith.constant 0 : index
    %491 = vector.load %arg6[%c1_316, %c0_317] : memref<4x512xf32, #tpu.memory_space<vmem>>, vector<1x256xf32>
    %492 = vector.broadcast %491 : vector<1x256xf32> to vector<2x256xf32>
    %493 = arith.addf %490, %492 : vector<2x256xf32>
    %cst_318 = arith.constant 0.000000e+00 : f32
    %494 = vector.broadcast %cst_318 : f32 to vector<2x256xf32>
    %495 = arith.maximumf %493, %494 : vector<2x256xf32>
    %496 = arith.truncf %495 : vector<2x256xf32> to vector<2x256xbf16>
    %c1_319 = arith.constant 1 : index
    %c0_320 = arith.constant 0 : index
    %c0_321 = arith.constant 0 : index
    %497 = vector.load %arg5[%c1_319, %c0_320, %c0_321] : memref<3x512x256xbf16, #tpu.memory_space<vmem>>, vector<1x256x64xbf16>
    %498 = vector.shape_cast %497 : vector<1x256x64xbf16> to vector<256x64xbf16>
    %cst_322 = arith.constant dense<0.000000e+00> : vector<2x64xf32>
    %499 = tpu.matmul %496, %498, %cst_322 {dimension_numbers = #tpu.dot_dimension_numbers<[1], [0], [0], [1], [0, 0, 1, 1], [], []>} : vector<2x256xbf16>, vector<256x64xbf16>, vector<2x64xf32> -> vector<2x64xf32>
    %c2_323 = arith.constant 2 : index
    %c0_324 = arith.constant 0 : index
    %500 = vector.load %arg6[%c2_323, %c0_324] : memref<4x512xf32, #tpu.memory_space<vmem>>, vector<1x64xf32>
    %501 = vector.broadcast %500 : vector<1x64xf32> to vector<2x64xf32>
    %502 = arith.addf %499, %501 : vector<2x64xf32>
    %cst_325 = arith.constant 0.000000e+00 : f32
    %503 = vector.broadcast %cst_325 : f32 to vector<2x64xf32>
    %504 = arith.maximumf %502, %503 : vector<2x64xf32>
    %505 = arith.truncf %504 : vector<2x64xf32> to vector<2x64xbf16>
    %c2_326 = arith.constant 2 : index
    %c0_327 = arith.constant 0 : index
    %c0_328 = arith.constant 0 : index
    %506 = vector.load %arg5[%c2_326, %c0_327, %c0_328] : memref<3x512x256xbf16, #tpu.memory_space<vmem>>, vector<1x64x16xbf16>
    %507 = vector.shape_cast %506 : vector<1x64x16xbf16> to vector<64x16xbf16>
    %cst_329 = arith.constant dense<0.000000e+00> : vector<2x16xf32>
    %508 = tpu.matmul %505, %507, %cst_329 {dimension_numbers = #tpu.dot_dimension_numbers<[1], [0], [0], [1], [0, 0, 1, 1], [], []>} : vector<2x64xbf16>, vector<64x16xbf16>, vector<2x16xf32> -> vector<2x16xf32>
    %c3_330 = arith.constant 3 : index
    %c0_331 = arith.constant 0 : index
    %509 = vector.load %arg6[%c3_330, %c0_331] : memref<4x512xf32, #tpu.memory_space<vmem>>, vector<1x16xf32>
    %510 = vector.broadcast %509 : vector<1x16xf32> to vector<2x16xf32>
    %511 = arith.addf %508, %510 : vector<2x16xf32>
    %c0_332 = arith.constant 0 : index
    %c0_333 = arith.constant 0 : index
    %512 = vector.load %arg7[%c0_332, %c0_333] : memref<2x16xf32, #tpu.memory_space<vmem>>, vector<2x16xf32>
    tpu.vector_store %arg7[%c0_332, %c0_333], %511 {strides = array<i32>} : memref<2x16xf32, #tpu.memory_space<vmem>>, vector<2x16xf32>,
    return
  }
}

</mosaic_0001>

<llo_original>
// kernel: net_forward.1
$region0: #{net_forward.1}
  #allocation0 [shape = 'u32[]', space=smem, size = 0x4, offset = 0x4, fixed_abs, tag = 'smem constant byte address 0x4 - core index']
  #allocation1 [shape = 'u32[72,128]{1,0:T(1,128)}', space=vmem, size = 0x9000, scoped, tag = 'internal scratch']
  %s0 = inlined_call_operand.hbm [shape: f32[64,32], index: 0, kind: input, shape index: {}]
  %s1 = inlined_call_operand.hbm [shape: bf16[6,5,144,144], index: 1, kind: input, shape index: {}]
  %s2 = inlined_call_operand.hbm [shape: f32[6,144,144], index: 2, kind: input, shape index: {}]
  %s3 = inlined_call_operand.hbm [shape: f32[6,2,144], index: 3, kind: input, shape index: {}]
  %s4 = inlined_call_operand.hbm [shape: bf16[8,128,512], index: 4, kind: input, shape index: {}]
  %s5 = inlined_call_operand.hbm [shape: bf16[3,512,256], index: 5, kind: input, shape index: {}]
  %s6 = inlined_call_operand.hbm [shape: f32[4,512], index: 6, kind: input, shape index: {}]
  %s7 = inlined_call_operand.hbm [shape: f32[2,16], index: 7, kind: output, shape index: {}]
  %s8 = sld [smem:[#allocation0]]
  $region66: #{net_forward.1} parent=0
    _
  %s10 = ssub.s32 1, %s8
  %s11 = scalar_select 0, %s10, %s8
  $region1: #{net_forward.1} parent=0
    #allocation2 [shape = 'u8[32768]{0}', space=vmem, size = 0x8000, scoped, tag = 'input window, operand 0, single buffered']
    #allocation3 [shape = 's32[1]{0}', space=sflag, size = 0x4, scoped, tag = 'scoped memory for net_forward.1']
    #allocation4 [shape = 's32[1]{0}', space=sflag, size = 0x4, scoped, tag = 'scoped memory for net_forward.1']
    #allocation5 [shape = 'u8[2211840]{0}', space=vmem, size = 0x21c000, scoped, tag = 'input window, operand 1, single buffered']
    #allocation6 [shape = 's32[1]{0}', space=sflag, size = 0x4, scoped, tag = 'scoped memory for net_forward.1']
    #allocation7 [shape = 'u8[884736]{0}', space=vmem, size = 0xd8000, scoped, tag = 'input window, operand 2, single buffered']
    #allocation8 [shape = 'u8[12288]{0}', space=vmem, size = 0x3000, scoped, tag = 'input window, operand 3, single buffered']
    #allocation9 [shape = 's32[1]{0}', space=sflag, size = 0x4, scoped, tag = 'scoped memory for net_forward.1']
    #allocation10 [shape = 'u8[1048576]{0}', space=vmem, size = 0x100000, scoped, tag = 'input window, operand 4, single buffered']
    #allocation11 [shape = 'u8[786432]{0}', space=vmem, size = 0xc0000, scoped, tag = 'input window, operand 5, single buffered']
    #allocation12 [shape = 's32[1]{0}', space=sflag, size = 0x4, scoped, tag = 'scoped memory for net_forward.1']
    #allocation13 [shape = 'u8[8192]{0}', space=vmem, size = 0x2000, scoped, tag = 'input window, operand 6, single buffered']
    #allocation14 [shape = 'u8[1024]{0}', space=vmem, size = 0x400, scoped, tag = 'output window, operand 0, single buffered']
    %12 = vsyncpa [#allocation3], 0
    %13 = vsyncpa [#allocation6], 0
    %14 = vsyncpa [#allocation9], 0
    %15 = vsyncpa [#allocation12], 0
    %16 = vsyncpa [#allocation4], 0
    // Predicated region
    $region2: #{net_forward.1} parent=1 // pred_check
      _
    $region3: #{net_forward.1} parent=1 // pred_check_branch
      %18 = sbr.rel (0) target = $region5
    $region4: #{net_forward.1} parent=1 // pred_region
      %20 = vsyncadd [#allocation3], 0
      %s21 = sshll.u32 %s0, 4
      %s22 = int_to_ptr.hbm [resolvable:$true] %s21
      %s23 = sshll.u32 [#allocation2], 4
      %s24 = int_to_ptr.vmem [resolvable:$true] %s23
      %29 = dma.hbm_to_vmem [thread:$0]  %s22, 1024, %s24, [#allocation3], 128, 128, 8
    $region5: #{net_forward.1} parent=1 // pred_fallthru
      _
    // Predicated region
    $region6: #{net_forward.1} parent=1 // pred_check
      _
    $region7: #{net_forward.1} parent=1 // pred_check_branch
      %31 = sbr.rel (0) target = $region9
    $region8: #{net_forward.1} parent=1 // pred_region
      %33 = vsyncadd [#allocation6], 0
      %s34 = sshll.u32 %s1, 4
      %s35 = int_to_ptr.hbm [resolvable:$true] %s34
      %s36 = sshll.u32 [#allocation5], 4
      %s37 = int_to_ptr.vmem [resolvable:$true] %s36
      %42 = dma.hbm_to_vmem [thread:$0]  %s35, 69120, %s37, [#allocation6], 128, 128, 8
    $region9: #{net_forward.1} parent=1 // pred_fallthru
      _
    // Predicated region
    $region10: #{net_forward.1} parent=1 // pred_check
      _
    $region11: #{net_forward.1} parent=1 // pred_check_branch
      %44 = sbr.rel (0) target = $region13
    $region12: #{net_forward.1} parent=1 // pred_region
      %46 = vsyncadd [#allocation6], 0
      %s47 = sshll.u32 %s2, 4
      %s48 = int_to_ptr.hbm [resolvable:$true] %s47
      %s49 = sshll.u32 [#allocation7], 4
      %s50 = int_to_ptr.vmem [resolvable:$true] %s49
      %55 = dma.hbm_to_vmem [thread:$0]  %s48, 27648, %s50, [#allocation6], 256, 256, 16
    $region13: #{net_forward.1} parent=1 // pred_fallthru
      _
    // Predicated region
    $region14: #{net_forward.1} parent=1 // pred_check
      _
    $region15: #{net_forward.1} parent=1 // pred_check_branch
      %57 = sbr.rel (0) target = $region17
    $region16: #{net_forward.1} parent=1 // pred_region
      %59 = vsyncadd [#allocation9], 0
      %s60 = sshll.u32 %s3, 4
      %s61 = int_to_ptr.hbm [resolvable:$true] %s60
      %s62 = sshll.u32 [#allocation8], 4
      %s63 = int_to_ptr.vmem [resolvable:$true] %s62
      %68 = dma.hbm_to_vmem [thread:$0]  %s61, 384, %s63, [#allocation9], 64, 64, 4
    $region17: #{net_forward.1} parent=1 // pred_fallthru
      _
    // Predicated region
    $region18: #{net_forward.1} parent=1 // pred_check
      _
    $region19: #{net_forward.1} parent=1 // pred_check_branch
      %70 = sbr.rel (0) target = $region21
    $region20: #{net_forward.1} parent=1 // pred_region
      %72 = vsyncadd [#allocation9], 0
      %s73 = sshll.u32 %s4, 4
      %s74 = int_to_ptr.hbm [resolvable:$true] %s73
      %s75 = sshll.u32 [#allocation10], 4
      %s76 = int_to_ptr.vmem [resolvable:$true] %s75
      %81 = dma.hbm_to_vmem [thread:$0]  %s74, 32768, %s76, [#allocation9], 256, 256, 16
    $region21: #{net_forward.1} parent=1 // pred_fallthru
      _
    // Predicated region
    $region22: #{net_forward.1} parent=1 // pred_check
      _
    $region23: #{net_forward.1} parent=1 // pred_check_branch
      %83 = sbr.rel (0) target = $region25
    $region24: #{net_forward.1} parent=1 // pred_region
      %85 = vsyncadd [#allocation12], 0
      %s86 = sshll.u32 %s5, 4
      %s87 = int_to_ptr.hbm [resolvable:$true] %s86
      %s88 = sshll.u32 [#allocation11], 4
      %s89 = int_to_ptr.vmem [resolvable:$true] %s88
      %94 = dma.hbm_to_vmem [thread:$0]  %s87, 24576, %s89, [#allocation12], 128, 128, 8
    $region25: #{net_forward.1} parent=1 // pred_fallthru
      _
    // Predicated region
    $region26: #{net_forward.1} parent=1 // pred_check
      _
    $region27: #{net_forward.1} parent=1 // pred_check_branch
      %96 = sbr.rel (0) target = $region29
    $region28: #{net_forward.1} parent=1 // pred_region
      %98 = vsyncadd [#allocation12], 0
      %s100 = sshll.u32 %s6, 4
      %s101 = int_to_ptr.hbm [resolvable:$true] %s100
      %s102 = sshll.u32 [#allocation13], 4
      %s103 = int_to_ptr.vmem [resolvable:$true] %s102
      %105 = dma.hbm_to_vmem [thread:$0]  %s101, 256, %s103, [#allocation12]
    $region29: #{net_forward.1} parent=1 // pred_fallthru
      _
    // Predicated region
    $region30: #{net_forward.1} parent=1 // pred_check
      _
    $region31: #{net_forward.1} parent=1 // pred_check_branch
      %107 = sbr.rel (0) target = $region33
    $region32: #{net_forward.1} parent=1 // pred_region
      %109 = dma.done [#allocation3], 1024
    $region33: #{net_forward.1} parent=1 // pred_fallthru
      _
    // Predicated region
    $region34: #{net_forward.1} parent=1 // pred_check
      _
    $region35: #{net_forward.1} parent=1 // pred_check_branch
      %111 = sbr.rel (0) target = $region37
    $region36: #{net_forward.1} parent=1 // pred_region
      %113 = dma.done [#allocation6], 69120
    $region37: #{net_forward.1} parent=1 // pred_fallthru
      _
    // Predicated region
    $region38: #{net_forward.1} parent=1 // pred_check
      _
    $region39: #{net_forward.1} parent=1 // pred_check_branch
      %115 = sbr.rel (0) target = $region41
    $region40: #{net_forward.1} parent=1 // pred_region
      %117 = dma.done [#allocation6], 27648
    $region41: #{net_forward.1} parent=1 // pred_fallthru
      _
    // Predicated region
    $region42: #{net_forward.1} parent=1 // pred_check
      _
    $region43: #{net_forward.1} parent=1 // pred_check_branch
      %119 = sbr.rel (0) target = $region45
    $region44: #{net_forward.1} parent=1 // pred_region
      %121 = dma.done [#allocation9], 384
    $region45: #{net_forward.1} parent=1 // pred_fallthru
      _
    // Predicated region
    $region46: #{net_forward.1} parent=1 // pred_check
      _
    $region47: #{net_forward.1} parent=1 // pred_check_branch
      %123 = sbr.rel (0) target = $region49
    $region48: #{net_forward.1} parent=1 // pred_region
      %125 = dma.done [#allocation9], 32768
    $region49: #{net_forward.1} parent=1 // pred_fallthru
      _
    // Predicated region
    $region50: #{net_forward.1} parent=1 // pred_check
      _
    $region51: #{net_forward.1} parent=1 // pred_check_branch
      %127 = sbr.rel (0) target = $region53
    $region52: #{net_forward.1} parent=1 // pred_region
      %129 = dma.done [#allocation12], 24576
    $region53: #{net_forward.1} parent=1 // pred_fallthru
      _
    // Predicated region
    $region54: #{net_forward.1} parent=1 // pred_check
      _
    $region55: #{net_forward.1} parent=1 // pred_check_branch
      %131 = sbr.rel (0) target = $region57
    $region56: #{net_forward.1} parent=1 // pred_region
      %133 = dma.done [#allocation12], 256
    $region57: #{net_forward.1} parent=1 // pred_fallthru
      _
    %v135 = vlaneseq
    %v136 = vshrl.u32 %v135, 7
    %v137 = vadd.s32 %v136, 8
    %v138 = vadd.s32 %v136, 16
    %v139 = vadd.s32 %v136, 24
    %v140 = vadd.s32 %v136, 32
    %v141 = vadd.s32 %v136, 40
    %v142 = vadd.s32 %v136, 48
    %v143 = vadd.s32 %v136, 56
    %vm144 = vcmp.lt.s32.totalorder %v136, 0
    %v145 = vsub.s32 0, %v136
    %v146 = vsel %vm144, %v145, %v136
    %v147 = vshrl.u32 %v146, 5
    %v148 = vand.u32 %v146, 31
    %v149 = vsub.s32 0, %v148
    %v150 = vsel %vm144, %v149, %v148
    %vm151 = vcmp.lt.s32.totalorder %v137, 0
    %v152 = vsub.s32 0, %v137
    %v153 = vsel %vm151, %v152, %v137
    %v154 = vshrl.u32 %v153, 5
    %v155 = vand.u32 %v153, 31
    %v156 = vsub.s32 0, %v155
    %v157 = vsel %vm151, %v156, %v155
    %vm158 = vcmp.lt.s32.totalorder %v138, 0
    %v159 = vsub.s32 0, %v138
    %v160 = vsel %vm158, %v159, %v138
    %v161 = vshrl.u32 %v160, 5
    %v162 = vand.u32 %v160, 31
    %v163 = vsub.s32 0, %v162
    %v164 = vsel %vm158, %v163, %v162
    %vm165 = vcmp.lt.s32.totalorder %v139, 0
    %v166 = vsub.s32 0, %v139
    %v167 = vsel %vm165, %v166, %v139
    %v168 = vshrl.u32 %v167, 5
    %v169 = vand.u32 %v167, 31
    %v170 = vsub.s32 0, %v169
    %v171 = vsel %vm165, %v170, %v169
    %vm172 = vcmp.lt.s32.totalorder %v140, 0
    %v173 = vsub.s32 0, %v140
    %v174 = vsel %vm172, %v173, %v140
    %v175 = vshrl.u32 %v174, 5
    %v176 = vand.u32 %v174, 31
    %v177 = vsub.s32 0, %v176
    %v178 = vsel %vm172, %v177, %v176
    %vm179 = vcmp.lt.s32.totalorder %v141, 0
    %v180 = vsub.s32 0, %v141
    %v181 = vsel %vm179, %v180, %v141
    %v182 = vshrl.u32 %v181, 5
    %v183 = vand.u32 %v181, 31
    %v184 = vsub.s32 0, %v183
    %v185 = vsel %vm179, %v184, %v183
    %vm186 = vcmp.lt.s32.totalorder %v142, 0
    %v187 = vsub.s32 0, %v142
    %v188 = vsel %vm186, %v187, %v142
    %v189 = vshrl.u32 %v188, 5
    %v190 = vand.u32 %v188, 31
    %v191 = vsub.s32 0, %v190
    %v192 = vsel %vm186, %v191, %v190
    %vm193 = vcmp.lt.s32.totalorder %v143, 0
    %v194 = vsub.s32 0, %v143
    %v195 = vsel %vm193, %v194, %v143
    %v196 = vshrl.u32 %v195, 5
    %v197 = vand.u32 %v195, 31
    %v198 = vsub.s32 0, %v197
    %v199 = vsel %vm193, %v198, %v197
    %vm200 = vcmp.ne.s32.totalorder %v150, 0
    %vm201 = vcmp.ne.s32.totalorder %v157, 0
    %vm202 = vcmp.ne.s32.totalorder %v164, 0
    %vm203 = vcmp.ne.s32.totalorder %v171, 0
    %vm204 = vcmp.ne.s32.totalorder %v178, 0
    %vm205 = vcmp.ne.s32.totalorder %v185, 0
    %vm206 = vcmp.ne.s32.totalorder %v192, 0
    %vm207 = vcmp.ne.s32.totalorder %v199, 0
    %vm208 = vcmp.lt.s32.totalorder %v150, 0
    %vm209 = vcmp.lt.s32.totalorder %v157, 0
    %vm210 = vcmp.lt.s32.totalorder %v164, 0
    %vm211 = vcmp.lt.s32.totalorder %v171, 0
    %vm212 = vcmp.lt.s32.totalorder %v178, 0
    %vm213 = vcmp.lt.s32.totalorder %v185, 0
    %vm214 = vcmp.lt.s32.totalorder %v192, 0
    %vm215 = vcmp.lt.s32.totalorder %v199, 0
    %vm216 = vmand %vm208, %vm200
    %vm217 = vmand %vm209, %vm201
    %vm218 = vmand %vm210, %vm202
    %vm219 = vmand %vm211, %vm203
    %vm220 = vmand %vm212, %vm204
    %vm221 = vmand %vm213, %vm205
    %vm222 = vmand %vm214, %vm206
    %vm223 = vmand %vm215, %vm207
    %v224 = vadd.s32 %v150, 32
    %v225 = vadd.s32 %v157, 32
    %v226 = vadd.s32 %v164, 32
    %v227 = vadd.s32 %v171, 32
    %v228 = vadd.s32 %v178, 32
    %v229 = vadd.s32 %v185, 32
    %v230 = vadd.s32 %v192, 32
    %v231 = vadd.s32 %v199, 32
    %v232 = vsel %vm216, %v224, %v150
    %v233 = vsel %vm217, %v225, %v157
    %v234 = vsel %vm218, %v226, %v164
    %v235 = vsel %vm219, %v227, %v171
    %v236 = vsel %vm220, %v228, %v178
    %v237 = vsel %vm221, %v229, %v185
    %v238 = vsel %vm222, %v230, %v192
    %v239 = vsel %vm223, %v231, %v199
    %v240 = vld [vmem:[#allocation2] sm:$0xff]
    %v241 = vld [vmem:[#allocation2 + $0x8] sm:$0xff]
    %v242 = vld [vmem:[#allocation2 + $0x10] sm:$0xff]
    %v243 = vld [vmem:[#allocation2 + $0x18] sm:$0xff]
    %v244 = vld [vmem:[#allocation2 + $0x20] sm:$0xff]
    %v245 = vld [vmem:[#allocation2 + $0x28] sm:$0xff]
    %v246 = vld [vmem:[#allocation2 + $0x30] sm:$0xff]
    %v247 = vld [vmem:[#allocation2 + $0x38] sm:$0xff]
    %v248 = vmul.f32 %v240, 2.0
    %v249 = vmul.f32 %v241, 2.0
    %v250 = vmul.f32 %v242, 2.0
    %v251 = vmul.f32 %v243, 2.0
    %v252 = vmul.f32 %v244, 2.0
    %v253 = vmul.f32 %v245, 2.0
    %v254 = vmul.f32 %v246, 2.0
    %v255 = vmul.f32 %v247, 2.0
    %v256 = vsub.f32 %v248, 1.0
    %v257 = vsub.f32 %v249, 1.0
    %v258 = vsub.f32 %v250, 1.0
    %v259 = vsub.f32 %v251, 1.0
    %v260 = vsub.f32 %v252, 1.0
    %v261 = vsub.f32 %v253, 1.0
    %v262 = vsub.f32 %v254, 1.0
    %v263 = vsub.f32 %v255, 1.0
    %v264 = vpack.c.bf16 %v257, %v256
    %v265 = vpack.c.bf16 %v259, %v258
    %v266 = vpack.c.bf16 %v261, %v260
    %v267 = vpack.c.bf16 %v263, %v262
    %v268 = vld [vmem:[#allocation5] sm:$0xf]
    %v269 = vld [vmem:[#allocation5 + $0x8] sm:$0xf]
    %v270 = vld [vmem:[#allocation5 + $0x10] sm:$0xf]
    %v271 = vld [vmem:[#allocation5 + $0x18] sm:$0xf]
    %v272 = vrot.slane %v256, 1
    %v273 = vrot.slane %v257, 1
    %v274 = vrot.slane %v258, 1
    %v275 = vrot.slane %v259, 1
    %v276 = vrot.slane %v260, 1
    %v277 = vrot.slane %v261, 1
    %v278 = vrot.slane %v262, 1
    %v279 = vrot.slane %v263, 1
    %vm280 = vcmp.lt.s32.totalorder %v136, 7
    %v281 = vsel %vm280, %v278, %v279
    %v282 = vsel %vm280, %v277, %v278
    %v283 = vsel %vm280, %v276, %v277
    %v284 = vsel %vm280, %v275, %v276
    %v285 = vsel %vm280, %v274, %v275
    %v286 = vsel %vm280, %v273, %v274
    %v287 = vsel %vm280, %v272, %v273
    %v288 = vsel %vm280, %v279, %v272
    %v289 = vpack.c.bf16 %v286, %v287
    %v290 = vpack.c.bf16 %v284, %v285
    %v291 = vpack.c.bf16 %v282, %v283
    %v292 = vpack.c.bf16 %v288, %v281
    %s293 = scalar_lea.vmem [#allocation5], 144
    %v294 = vld [vmem:[%s293] sm:$0xf]
    %v295 = vld [vmem:[%s293 + $0x8] sm:$0xf]
    %v296 = vld [vmem:[%s293 + $0x10] sm:$0xf]
    %v297 = vld [vmem:[%s293 + $0x18] sm:$0xf]
    %v302 = vunpack.c.l.b16 %v294
    %v303 = vunpack.c.l.b16 %v295
    %v304 = vunpack.c.l.b16 %v296
    %v305 = vunpack.c.l.b16 %v297
    %v306 = vpack.c.b16 %v303, %v302
    %v307 = vpack.c.b16 %v305, %v304
    %vm310 = vcmask 261120
    %v312 = vsel %vm310, %v289, 0
    %v315 = vsel %vm310, %v290, 0
    %v318 = vsel %vm310, %v291, 0
    %v321 = vsel %vm310, %v292, 0
    %323 = vmatpush.bf16.msra.mxu0 0
    %324 = vmatpush.bf16.msra.mxu0 0
    %325 = vmatpush.bf16.msra.mxu0 0
    %326 = vmatpush.bf16.msra.mxu0 0
    %327 = vmatpush.bf16.msra.mxu0 0
    %328 = vmatpush.bf16.msra.mxu0 0
    %329 = vmatpush.bf16.msra.mxu0 %v307
    %330 = vmatpush.bf16.msra.mxu0 %v306
    %331 = vmatmul.bf16.gmra.mxu0 %v312
    %v332 = vpop.f32.mrf.mxu0
    %v333 = vadd.f32 0.0, %v332
    %v334 = vpop.f32.mrf.mxu0
    %v335 = vadd.f32 0.0, %v334
    %336 = vmatmul.bf16.gmra.mxu0 %v315
    %v337 = vpop.f32.mrf.mxu0
    %v338 = vadd.f32 0.0, %v337
    %v339 = vpop.f32.mrf.mxu0
    %v340 = vadd.f32 0.0, %v339
    %341 = vmatmul.bf16.gmra.mxu0 %v318
    %v342 = vpop.f32.mrf.mxu0
    %v343 = vadd.f32 0.0, %v342
    %v344 = vpop.f32.mrf.mxu0
    %v345 = vadd.f32 0.0, %v344
    %346 = vmatmul.bf16.gmra.mxu0 %v321
    %v347 = vpop.f32.mrf.mxu0
    %v348 = vadd.f32 0.0, %v347
    %v349 = vpop.f32.mrf.mxu0
    %v350 = vadd.f32 0.0, %v349
    %351 = vdwg.mxu0
    %v356 = vunpack.c.l.b16 %v268
    %v357 = vunpack.c.l.b16 %v269
    %v358 = vunpack.c.l.b16 %v270
    %v359 = vunpack.c.l.b16 %v271
    %v360 = vpack.c.b16 %v357, %v356
    %v361 = vpack.c.b16 %v359, %v358
    %v365 = vsel %vm310, %v264, 0
    %v368 = vsel %vm310, %v265, 0
    %v371 = vsel %vm310, %v266, 0
    %v374 = vsel %vm310, %v267, 0
    %376 = vmatpush.bf16.msra.mxu0 0
    %377 = vmatpush.bf16.msra.mxu0 0
    %378 = vmatpush.bf16.msra.mxu0 0
    %379 = vmatpush.bf16.msra.mxu0 0
    %380 = vmatpush.bf16.msra.mxu0 0
    %381 = vmatpush.bf16.msra.mxu0 0
    %382 = vmatpush.bf16.msra.mxu0 %v361
    %383 = vmatpush.bf16.msra.mxu0 %v360
    %384 = vmatmul.bf16.gmra.mxu0 %v365
    %v385 = vpop.f32.mrf.mxu0
    %v386 = vadd.f32 %v333, %v385
    %v387 = vpop.f32.mrf.mxu0
    %v388 = vadd.f32 %v335, %v387
    %389 = vmatmul.bf16.gmra.mxu0 %v368
    %v390 = vpop.f32.mrf.mxu0
    %v391 = vadd.f32 %v338, %v390
    %v392 = vpop.f32.mrf.mxu0
    %v393 = vadd.f32 %v340, %v392
    %394 = vmatmul.bf16.gmra.mxu0 %v371
    %v395 = vpop.f32.mrf.mxu0
    %v396 = vadd.f32 %v343, %v395
    %v397 = vpop.f32.mrf.mxu0
    %v398 = vadd.f32 %v345, %v397
    %399 = vmatmul.bf16.gmra.mxu0 %v374
    %v400 = vpop.f32.mrf.mxu0
    %v401 = vadd.f32 %v348, %v400
    %v402 = vpop.f32.mrf.mxu0
    %v403 = vadd.f32 %v350, %v402
    %404 = vdwg.mxu0
    %v405 = vrot.slane %v256, 2
    %v406 = vrot.slane %v257, 2
    %v407 = vrot.slane %v258, 2
    %v408 = vrot.slane %v259, 2
    %v409 = vrot.slane %v260, 2
    %v410 = vrot.slane %v261, 2
    %v411 = vrot.slane %v262, 2
    %v412 = vrot.slane %v263, 2
    %vm413 = vcmp.lt.s32.totalorder %v136, 6
    %v414 = vsel %vm413, %v411, %v412
    %v415 = vsel %vm413, %v410, %v411
    %v416 = vsel %vm413, %v409, %v410
    %v417 = vsel %vm413, %v408, %v409
    %v418 = vsel %vm413, %v407, %v408
    %v419 = vsel %vm413, %v406, %v407
    %v420 = vsel %vm413, %v405, %v406
    %v421 = vsel %vm413, %v412, %v405
    %v422 = vpack.c.bf16 %v419, %v420
    %v423 = vpack.c.bf16 %v417, %v418
    %v424 = vpack.c.bf16 %v415, %v416
    %v425 = vpack.c.bf16 %v421, %v414
    %s426 = scalar_lea.vmem [#allocation5], 288
    %v427 = vld [vmem:[%s426] sm:$0xf]
    %v428 = vld [vmem:[%s426 + $0x8] sm:$0xf]
    %v429 = vld [vmem:[%s426 + $0x10] sm:$0xf]
    %v430 = vld [vmem:[%s426 + $0x18] sm:$0xf]
    %v435 = vunpack.c.l.b16 %v427
    %v436 = vunpack.c.l.b16 %v428
    %v437 = vunpack.c.l.b16 %v429
    %v438 = vunpack.c.l.b16 %v430
    %v439 = vpack.c.b16 %v436, %v435
    %v440 = vpack.c.b16 %v438, %v437
    %v444 = vsel %vm310, %v422, 0
    %v447 = vsel %vm310, %v423, 0
    %v450 = vsel %vm310, %v424, 0
    %v453 = vsel %vm310, %v425, 0
    %455 = vmatpush.bf16.msra.mxu0 0
    %456 = vmatpush.bf16.msra.mxu0 0
    %457 = vmatpush.bf16.msra.mxu0 0
    %458 = vmatpush.bf16.msra.mxu0 0
    %459 = vmatpush.bf16.msra.mxu0 0
    %460 = vmatpush.bf16.msra.mxu0 0
    %461 = vmatpush.bf16.msra.mxu0 %v440
    %462 = vmatpush.bf16.msra.mxu0 %v439
    %463 = vmatmul.bf16.gmra.mxu0 %v444
    %v464 = vpop.f32.mrf.mxu0
    %v465 = vadd.f32 0.0, %v464
    %v466 = vpop.f32.mrf.mxu0
    %v467 = vadd.f32 0.0, %v466
    %468 = vmatmul.bf16.gmra.mxu0 %v447
    %v469 = vpop.f32.mrf.mxu0
    %v470 = vadd.f32 0.0, %v469
    %v471 = vpop.f32.mrf.mxu0
    %v472 = vadd.f32 0.0, %v471
    %473 = vmatmul.bf16.gmra.mxu0 %v450
    %v474 = vpop.f32.mrf.mxu0
    %v475 = vadd.f32 0.0, %v474
    %v476 = vpop.f32.mrf.mxu0
    %v477 = vadd.f32 0.0, %v476
    %478 = vmatmul.bf16.gmra.mxu0 %v453
    %v479 = vpop.f32.mrf.mxu0
    %v480 = vadd.f32 0.0, %v479
    %v481 = vpop.f32.mrf.mxu0
    %v482 = vadd.f32 0.0, %v481
    %483 = vdwg.mxu0
    %v484 = vadd.f32 %v386, %v465
    %v485 = vadd.f32 %v388, %v467
    %v486 = vadd.f32 %v391, %v470
    %v487 = vadd.f32 %v393, %v472
    %v488 = vadd.f32 %v396, %v475
    %v489 = vadd.f32 %v398, %v477
    %v490 = vadd.f32 %v401, %v480
    %v491 = vadd.f32 %v403, %v482
    %v492 = vrot.slane %v256, 3
    %v493 = vrot.slane %v257, 3
    %v494 = vrot.slane %v258, 3
    %v495 = vrot.slane %v259, 3
    %v496 = vrot.slane %v260, 3
    %v497 = vrot.slane %v261, 3
    %v498 = vrot.slane %v262, 3
    %v499 = vrot.slane %v263, 3
    %vm500 = vcmp.lt.s32.totalorder %v136, 5
    %v501 = vsel %vm500, %v498, %v499
    %v502 = vsel %vm500, %v497, %v498
    %v503 = vsel %vm500, %v496, %v497
    %v504 = vsel %vm500, %v495, %v496
    %v505 = vsel %vm500, %v494, %v495
    %v506 = vsel %vm500, %v493, %v494
    %v507 = vsel %vm500, %v492, %v493
    %v508 = vsel %vm500, %v499, %v492
    %v509 = vpack.c.bf16 %v506, %v507
    %v510 = vpack.c.bf16 %v504, %v505
    %v511 = vpack.c.bf16 %v502, %v503
    %v512 = vpack.c.bf16 %v508, %v501
    %s513 = scalar_lea.vmem [#allocation5], 432
    %v514 = vld [vmem:[%s513] sm:$0xf]
    %v515 = vld [vmem:[%s513 + $0x8] sm:$0xf]
    %v516 = vld [vmem:[%s513 + $0x10] sm:$0xf]
    %v517 = vld [vmem:[%s513 + $0x18] sm:$0xf]
    %v522 = vunpack.c.l.b16 %v514
    %v523 = vunpack.c.l.b16 %v515
    %v524 = vunpack.c.l.b16 %v516
    %v525 = vunpack.c.l.b16 %v517
    %v526 = vpack.c.b16 %v523, %v522
    %v527 = vpack.c.b16 %v525, %v524
    %v531 = vsel %vm310, %v509, 0
    %v534 = vsel %vm310, %v510, 0
    %v537 = vsel %vm310, %v511, 0
    %v540 = vsel %vm310, %v512, 0
    %542 = vmatpush.bf16.msra.mxu0 0
    %543 = vmatpush.bf16.msra.mxu0 0
    %544 = vmatpush.bf16.msra.mxu0 0
    %545 = vmatpush.bf16.msra.mxu0 0
    %546 = vmatpush.bf16.msra.mxu0 0
    %547 = vmatpush.bf16.msra.mxu0 0
    %548 = vmatpush.bf16.msra.mxu0 %v527
    %549 = vmatpush.bf16.msra.mxu0 %v526
    %550 = vmatmul.bf16.gmra.mxu0 %v531
    %v551 = vpop.f32.mrf.mxu0
    %v552 = vadd.f32 0.0, %v551
    %v553 = vpop.f32.mrf.mxu0
    %v554 = vadd.f32 0.0, %v553
    %555 = vmatmul.bf16.gmra.mxu0 %v534
    %v556 = vpop.f32.mrf.mxu0
    %v557 = vadd.f32 0.0, %v556
    %v558 = vpop.f32.mrf.mxu0
    %v559 = vadd.f32 0.0, %v558
    %560 = vmatmul.bf16.gmra.mxu0 %v537
    %v561 = vpop.f32.mrf.mxu0
    %v562 = vadd.f32 0.0, %v561
    %v563 = vpop.f32.mrf.mxu0
    %v564 = vadd.f32 0.0, %v563
    %565 = vmatmul.bf16.gmra.mxu0 %v540
    %v566 = vpop.f32.mrf.mxu0
    %v567 = vadd.f32 0.0, %v566
    %v568 = vpop.f32.mrf.mxu0
    %v569 = vadd.f32 0.0, %v568
    %570 = vdwg.mxu0
    %v571 = vadd.f32 %v484, %v552
    %v572 = vadd.f32 %v485, %v554
    %v573 = vadd.f32 %v486, %v557
    %v574 = vadd.f32 %v487, %v559
    %v575 = vadd.f32 %v488, %v562
    %v576 = vadd.f32 %v489, %v564
    %v577 = vadd.f32 %v490, %v567
    %v578 = vadd.f32 %v491, %v569
    %v579 = vrot.slane %v256, 4
    %v580 = vrot.slane %v257, 4
    %v581 = vrot.slane %v258, 4
    %v582 = vrot.slane %v259, 4
    %v583 = vrot.slane %v260, 4
    %v584 = vrot.slane %v261, 4
    %v585 = vrot.slane %v262, 4
    %v586 = vrot.slane %v263, 4
    %vm587 = vcmp.lt.s32.totalorder %v136, 4
    %v588 = vsel %vm587, %v585, %v586
    %v589 = vsel %vm587, %v584, %v585
    %v590 = vsel %vm587, %v583, %v584
    %v591 = vsel %vm587, %v582, %v583
    %v592 = vsel %vm587, %v581, %v582
    %v593 = vsel %vm587, %v580, %v581
    %v594 = vsel %vm587, %v579, %v580
    %v595 = vsel %vm587, %v586, %v579
    %v596 = vpack.c.bf16 %v593, %v594
    %v597 = vpack.c.bf16 %v591, %v592
    %v598 = vpack.c.bf16 %v589, %v590
    %v599 = vpack.c.bf16 %v595, %v588
    %s600 = scalar_lea.vmem [#allocation5], 576
    %v601 = vld [vmem:[%s600] sm:$0xf]
    %v602 = vld [vmem:[%s600 + $0x8] sm:$0xf]
    %v603 = vld [vmem:[%s600 + $0x10] sm:$0xf]
    %v604 = vld [vmem:[%s600 + $0x18] sm:$0xf]
    %v609 = vunpack.c.l.b16 %v601
    %v610 = vunpack.c.l.b16 %v602
    %v611 = vunpack.c.l.b16 %v603
    %v612 = vunpack.c.l.b16 %v604
    %v613 = vpack.c.b16 %v610, %v609
    %v614 = vpack.c.b16 %v612, %v611
    %v618 = vsel %vm310, %v596, 0
    %v621 = vsel %vm310, %v597, 0
    %v624 = vsel %vm310, %v598, 0
    %v627 = vsel %vm310, %v599, 0
    %629 = vmatpush.bf16.msra.mxu0 0
    %630 = vmatpush.bf16.msra.mxu0 0
    %631 = vmatpush.bf16.msra.mxu0 0
    %632 = vmatpush.bf16.msra.mxu0 0
    %633 = vmatpush.bf16.msra.mxu0 0
    %634 = vmatpush.bf16.msra.mxu0 0
    %635 = vmatpush.bf16.msra.mxu0 %v614
    %636 = vmatpush.bf16.msra.mxu0 %v613
    %637 = vmatmul.bf16.gmra.mxu0 %v618
    %v638 = vpop.f32.mrf.mxu0
    %v639 = vadd.f32 0.0, %v638
    %v640 = vpop.f32.mrf.mxu0
    %v641 = vadd.f32 0.0, %v640
    %642 = vmatmul.bf16.gmra.mxu0 %v621
    %v643 = vpop.f32.mrf.mxu0
    %v644 = vadd.f32 0.0, %v643
    %v645 = vpop.f32.mrf.mxu0
    %v646 = vadd.f32 0.0, %v645
    %647 = vmatmul.bf16.gmra.mxu0 %v624
    %v648 = vpop.f32.mrf.mxu0
    %v649 = vadd.f32 0.0, %v648
    %v650 = vpop.f32.mrf.mxu0
    %v651 = vadd.f32 0.0, %v650
    %652 = vmatmul.bf16.gmra.mxu0 %v627
    %v653 = vpop.f32.mrf.mxu0
    %v654 = vadd.f32 0.0, %v653
    %v655 = vpop.f32.mrf.mxu0
    %v656 = vadd.f32 0.0, %v655
    %657 = vdwg.mxu0
    %v658 = vadd.f32 %v571, %v639
    %v659 = vadd.f32 %v572, %v641
    %v660 = vadd.f32 %v573, %v644
    %v661 = vadd.f32 %v574, %v646
    %v662 = vadd.f32 %v575, %v649
    %v663 = vadd.f32 %v576, %v651
    %v664 = vadd.f32 %v577, %v654
    %v665 = vadd.f32 %v578, %v656
    %vm666 = vcmp.lt.s32.totalorder %v232, 28
    %vm667 = vcmp.lt.s32.totalorder %v233, 28
    %vm668 = vcmp.lt.s32.totalorder %v234, 28
    %vm669 = vcmp.lt.s32.totalorder %v235, 28
    %vm670 = vcmp.lt.s32.totalorder %v236, 28
    %vm671 = vcmp.lt.s32.totalorder %v237, 28
    %vm672 = vcmp.lt.s32.totalorder %v238, 28
    %vm673 = vcmp.lt.s32.totalorder %v239, 28
    %v674 = vsel %vm666, 1.0, 0.0
    %v675 = vsel %vm667, 1.0, 0.0
    %v676 = vsel %vm668, 1.0, 0.0
    %v677 = vsel %vm669, 1.0, 0.0
    %v678 = vsel %vm670, 1.0, 0.0
    %v679 = vsel %vm671, 1.0, 0.0
    %v680 = vsel %vm672, 1.0, 0.0
    %v681 = vsel %vm673, 1.0, 0.0
    %v682 = vmul.f32 %v658, %v674
    %v683 = vmul.f32 %v659, %v675
    %v684 = vmul.f32 %v660, %v676
    %v685 = vmul.f32 %v661, %v677
    %v686 = vmul.f32 %v662, %v678
    %v687 = vmul.f32 %v663, %v679
    %v688 = vmul.f32 %v664, %v680
    %v689 = vmul.f32 %v665, %v681
    %vm690 = vcmask 916480
    %v691 = vsel %vm690, %v682, 0.0
    %v692 = vsel %vm690, %v683, 0.0
    %v693 = vadd.f32 %v691, %v692
    %v694 = vsel %vm690, %v684, 0.0
    %v695 = vadd.f32 %v693, %v694
    %v696 = vsel %vm690, %v685, 0.0
    %v697 = vadd.f32 %v695, %v696
    %v698 = vsel %vm690, %v686, 0.0
    %v699 = vadd.f32 %v697, %v698
    %v700 = vsel %vm690, %v687, 0.0
    %v701 = vadd.f32 %v699, %v700
    %v702 = vsel %vm690, %v688, 0.0
    %v703 = vadd.f32 %v701, %v702
    %v704 = vsel %vm690, %v689, 0.0
    %v705 = vadd.f32 %v703, %v704
    %v706 = vrot.slane %v705, 4
    %v707 = vadd.f32 %v705, %v706
    %v708 = vrot.slane %v707, 2
    %v709 = vadd.f32 %v707, %v708
    %v710 = vrot.slane %v709, 1
    %v711 = vadd.f32 %v709, %v710
    %v712 = vmul.f32 %v682, %v658
    %v713 = vmul.f32 %v683, %v659
    %v714 = vmul.f32 %v684, %v660
    %v715 = vmul.f32 %v685, %v661
    %v716 = vmul.f32 %v686, %v662
    %v717 = vmul.f32 %v687, %v663
    %v718 = vmul.f32 %v688, %v664
    %v719 = vmul.f32 %v689, %v665
    %v720 = vsel %vm690, %v712, 0.0
    %v721 = vsel %vm690, %v713, 0.0
    %v722 = vadd.f32 %v720, %v721
    %v723 = vsel %vm690, %v714, 0.0
    %v724 = vadd.f32 %v722, %v723
    %v725 = vsel %vm690, %v715, 0.0
    %v726 = vadd.f32 %v724, %v725
    %v727 = vsel %vm690, %v716, 0.0
    %v728 = vadd.f32 %v726, %v727
    %v729 = vsel %vm690, %v717, 0.0
    %v730 = vadd.f32 %v728, %v729
    %v731 = vsel %vm690, %v718, 0.0
    %v732 = vadd.f32 %v730, %v731
    %v733 = vsel %vm690, %v719, 0.0
    %v734 = vadd.f32 %v732, %v733
    %v735 = vrot.slane %v734, 4
    %v736 = vadd.f32 %v734, %v735
    %v737 = vrot.slane %v736, 2
    %v738 = vadd.f32 %v736, %v737
    %v739 = vrot.slane %v738, 1
    %v740 = vadd.f32 %v738, %v739
    %vm741 = vcmask 1040384
    %v742 = vsel %vm741, %v711, %v740
    %v743 = vld [vmem:[#allocation7] sm:$0xff]
    %v744 = vld [vmem:[#allocation7 + $0x10] sm:$0xff]
    %v745 = vld [vmem:[#allocation7 + $0x20] sm:$0xff]
    %v746 = vld [vmem:[#allocation7 + $0x30] sm:$0xff]
    %v747 = vld [vmem:[#allocation7 + $0x40] sm:$0xff]
    %v748 = vld [vmem:[#allocation7 + $0x50] sm:$0xff]
    %v749 = vld [vmem:[#allocation7 + $0x60] sm:$0xff]
    %v750 = vld [vmem:[#allocation7 + $0x70] sm:$0xff]
    %v751 = vld [vmem:[#allocation7 + $0x80] sm:$0xff]
    %v752 = vld [vmem:[#allocation7 + $0x90] sm:$0xff]
    %v753 = vld [vmem:[#allocation7 + $0xa0] sm:$0xff]
    %v754 = vld [vmem:[#allocation7 + $0xb0] sm:$0xff]
    %v755 = vld [vmem:[#allocation7 + $0xc0] sm:$0xff]
    %v756 = vld [vmem:[#allocation7 + $0xd0] sm:$0xff]
    %v758 = vsel %vm690, %v742, 0
    %760 = vmatpush.msra.mxu0 0.0
    %761 = vmatpush.msra.mxu0 0.0
    %762 = vmatpush.msra.mxu0 %v756
    %763 = vmatpush.msra.mxu0 %v755
    %764 = vmatpush.msra.mxu0 %v754
    %765 = vmatpush.msra.mxu0 %v753
    %766 = vmatpush.msra.mxu0 %v752
    %767 = vmatpush.msra.mxu0 %v751
    %768 = vmatpush.msra.mxu0 %v750
    %769 = vmatpush.msra.mxu0 %v749
    %770 = vmatpush.msra.mxu0 %v748
    %771 = vmatpush.msra.mxu0 %v747
    %772 = vmatpush.msra.mxu0 %v746
    %773 = vmatpush.msra.mxu0 %v745
    %774 = vmatpush.msra.mxu0 %v744
    %775 = vmatpush.msra.mxu0 %v743
    %776 = vmatmul.f32.gmra.mxu0 %v758
    %v777 = vpop.f32.mrf.mxu0
    %v778 = vadd.f32 0.0, %v777
    %779 = vdwg.mxu0
    %v780 = vmul.f32 %v778, 0.0006377551
    %v781 = vmul.f32 %v780, %v780
    %v783 = vrot.slane %v781, 7
    %v785 = vsub.f32 %v780, %v783
    %v786 = vmax.f32 %v785, 0.0
    %v787 = vld [vmem:[#allocation8] sm:$0x1]
    %v788 = vadd.f32 %v786, 1e-05
    %v789 = vrsqrt.pop %v788
    %v790 = vmul.f32 %v789, %v788
    %v791 = vmul.f32 %v790, %v789
    %v792 = vmul.f32 0.5, %v791
    %v793 = vsub.f32 1.5, %v792
    %v794 = vmul.f32 %v789, %v793
    %vm795 = vweird.f32 %v788
    %vm796 = vweird.f32 %v789
    %vm797 = vmor %vm795, %vm796
    %v798 = vsel %vm797, %v789, %v794
    %v800 = vrot.slane %v798, 7
    %v801 = vrot.slane %v800, 2
    %v803 = vmul.f32 %v787, %v801
    %v804 = vld [vmem:[#allocation8 + $0x1] sm:$0x1]
    %v805 = vmul.f32 %v780, %v803
    %v806 = vsub.f32 %v804, %v805
    %v807 = vperm.slane %v803, 0
    %v808 = vmul.f32 %v658, %v807
    %v809 = vmul.f32 %v659, %v807
    %v810 = vmul.f32 %v660, %v807
    %v811 = vmul.f32 %v661, %v807
    %v812 = vmul.f32 %v662, %v807
    %v813 = vmul.f32 %v663, %v807
    %v814 = vmul.f32 %v664, %v807
    %v815 = vmul.f32 %v665, %v807
    %v816 = vperm.slane %v806, 0
    %v817 = vadd.f32 %v808, %v816
    %v818 = vadd.f32 %v809, %v816
    %v819 = vadd.f32 %v810, %v816
    %v820 = vadd.f32 %v811, %v816
    %v821 = vadd.f32 %v812, %v816
    %v822 = vadd.f32 %v813, %v816
    %v823 = vadd.f32 %v814, %v816
    %v824 = vadd.f32 %v815, %v816
    %v825 = vmax.f32 %v817, 0.0
    %v826 = vmax.f32 %v818, 0.0
    %v827 = vmax.f32 %v819, 0.0
    %v828 = vmax.f32 %v820, 0.0
    %v829 = vmax.f32 %v821, 0.0
    %v830 = vmax.f32 %v822, 0.0
    %v831 = vmax.f32 %v823, 0.0
    %v832 = vmax.f32 %v824, 0.0
    %v833 = vpack.c.bf16 %v826, %v825
    %v834 = vpack.c.bf16 %v828, %v827
    %v835 = vpack.c.bf16 %v830, %v829
    %v836 = vpack.c.bf16 %v832, %v831
    %s837 = scalar_lea.vmem [#allocation5], 720
    %v838 = vld [vmem:[%s837] sm:$0xf]
    %v839 = vld [vmem:[%s837 + $0x8] sm:$0xf]
    %v840 = vld [vmem:[%s837 + $0x10] sm:$0xf]
    %v841 = vld [vmem:[%s837 + $0x18] sm:$0xf]
    %v842 = vld [vmem:[%s837 + $0x20] sm:$0xf]
    %v843 = vld [vmem:[%s837 + $0x28] sm:$0xf]
    %v844 = vld [vmem:[%s837 + $0x30] sm:$0xf]
    %v845 = vld [vmem:[%s837 + $0x38] sm:$0xf]
    %v846 = vld [vmem:[%s837 + $0x40] sm:$0xf]
    %v847 = vld [vmem:[%s837 + $0x48] sm:$0xf]
    %v848 = vld [vmem:[%s837 + $0x50] sm:$0xf]
    %v849 = vld [vmem:[%s837 + $0x58] sm:$0xf]
    %v850 = vld [vmem:[%s837 + $0x60] sm:$0xf]
    %v851 = vld [vmem:[%s837 + $0x68] sm:$0xf]
    %v852 = vrot.slane %v825, 1
    %v853 = vrot.slane %v826, 1
    %v854 = vrot.slane %v827, 1
    %v855 = vrot.slane %v828, 1
    %v856 = vrot.slane %v829, 1
    %v857 = vrot.slane %v830, 1
    %v858 = vrot.slane %v831, 1
    %v859 = vrot.slane %v832, 1
    %v860 = vsel %vm280, %v858, %v859
    %v861 = vsel %vm280, %v857, %v858
    %v862 = vsel %vm280, %v856, %v857
    %v863 = vsel %vm280, %v855, %v856
    %v864 = vsel %vm280, %v854, %v855
    %v865 = vsel %vm280, %v853, %v854
    %v866 = vsel %vm280, %v852, %v853
    %v867 = vsel %vm280, %v859, %v852
    %v868 = vpack.c.bf16 %v865, %v866
    %v869 = vpack.c.bf16 %v863, %v864
    %v870 = vpack.c.bf16 %v861, %v862
    %v871 = vpack.c.bf16 %v867, %v860
    %s872 = scalar_lea.vmem [#allocation5], 864
    %v873 = vld [vmem:[%s872] sm:$0xf]
    %v874 = vld [vmem:[%s872 + $0x8] sm:$0xf]
    %v875 = vld [vmem:[%s872 + $0x10] sm:$0xf]
    %v876 = vld [vmem:[%s872 + $0x18] sm:$0xf]
    %v877 = vld [vmem:[%s872 + $0x20] sm:$0xf]
    %v878 = vld [vmem:[%s872 + $0x28] sm:$0xf]
    %v879 = vld [vmem:[%s872 + $0x30] sm:$0xf]
    %v880 = vld [vmem:[%s872 + $0x38] sm:$0xf]
    %v881 = vld [vmem:[%s872 + $0x40] sm:$0xf]
    %v882 = vld [vmem:[%s872 + $0x48] sm:$0xf]
    %v883 = vld [vmem:[%s872 + $0x50] sm:$0xf]
    %v884 = vld [vmem:[%s872 + $0x58] sm:$0xf]
    %v885 = vld [vmem:[%s872 + $0x60] sm:$0xf]
    %v886 = vld [vmem:[%s872 + $0x68] sm:$0xf]
    %v901 = vunpack.c.l.b16 %v873
    %v902 = vunpack.c.l.b16 %v874
    %v903 = vunpack.c.l.b16 %v875
    %v904 = vunpack.c.l.b16 %v876
    %v905 = vunpack.c.l.b16 %v877
    %v906 = vunpack.c.l.b16 %v878
    %v907 = vunpack.c.l.b16 %v879
    %v908 = vunpack.c.l.b16 %v880
    %v909 = vunpack.c.l.b16 %v881
    %v910 = vunpack.c.l.b16 %v882
    %v911 = vunpack.c.l.b16 %v883
    %v912 = vunpack.c.l.b16 %v884
    %v913 = vunpack.c.l.b16 %v885
    %v914 = vunpack.c.l.b16 %v886
    %v915 = vpack.c.b16 %v902, %v901
    %v916 = vpack.c.b16 %v904, %v903
    %v917 = vpack.c.b16 %v906, %v905
    %v918 = vpack.c.b16 %v908, %v907
    %v919 = vpack.c.b16 %v910, %v909
    %v920 = vpack.c.b16 %v912, %v911
    %v921 = vpack.c.b16 %v914, %v913
    %v930 = vsel %vm690, %v868, 0
    %v933 = vsel %vm690, %v869, 0
    %v936 = vsel %vm690, %v870, 0
    %v939 = vsel %vm690, %v871, 0
    %941 = vmatpush.bf16.msra.mxu0 0
    %942 = vmatpush.bf16.msra.mxu0 %v921
    %943 = vmatpush.bf16.msra.mxu0 %v920
    %944 = vmatpush.bf16.msra.mxu0 %v919
    %945 = vmatpush.bf16.msra.mxu0 %v918
    %946 = vmatpush.bf16.msra.mxu0 %v917
    %947 = vmatpush.bf16.msra.mxu0 %v916
    %948 = vmatpush.bf16.msra.mxu0 %v915
    %949 = vmatmul.bf16.gmra.mxu0 %v930
    %v950 = vpop.f32.mrf.mxu0
    %v951 = vadd.f32 0.0, %v950
    %v952 = vpop.f32.mrf.mxu0
    %v953 = vadd.f32 0.0, %v952
    %954 = vmatmul.bf16.gmra.mxu0 %v933
    %v955 = vpop.f32.mrf.mxu0
    %v956 = vadd.f32 0.0, %v955
    %v957 = vpop.f32.mrf.mxu0
    %v958 = vadd.f32 0.0, %v957
    %959 = vmatmul.bf16.gmra.mxu0 %v936
    %v960 = vpop.f32.mrf.mxu0
    %v961 = vadd.f32 0.0, %v960
    %v962 = vpop.f32.mrf.mxu0
    %v963 = vadd.f32 0.0, %v962
    %964 = vmatmul.bf16.gmra.mxu0 %v939
    %v965 = vpop.f32.mrf.mxu0
    %v966 = vadd.f32 0.0, %v965
    %v967 = vpop.f32.mrf.mxu0
    %v968 = vadd.f32 0.0, %v967
    %969 = vdwg.mxu0
    %v984 = vunpack.c.l.b16 %v838
    %v985 = vunpack.c.l.b16 %v839
    %v986 = vunpack.c.l.b16 %v840
    %v987 = vunpack.c.l.b16 %v841
    %v988 = vunpack.c.l.b16 %v842
    %v989 = vunpack.c.l.b16 %v843
    %v990 = vunpack.c.l.b16 %v844
    %v991 = vunpack.c.l.b16 %v845
    %v992 = vunpack.c.l.b16 %v846
    %v993 = vunpack.c.l.b16 %v847
    %v994 = vunpack.c.l.b16 %v848
    %v995 = vunpack.c.l.b16 %v849
    %v996 = vunpack.c.l.b16 %v850
    %v997 = vunpack.c.l.b16 %v851
    %v998 = vpack.c.b16 %v985, %v984
    %v999 = vpack.c.b16 %v987, %v986
    %v1000 = vpack.c.b16 %v989, %v988
    %v1001 = vpack.c.b16 %v991, %v990
    %v1002 = vpack.c.b16 %v993, %v992
    %v1003 = vpack.c.b16 %v995, %v994
    %v1004 = vpack.c.b16 %v997, %v996
    %v1013 = vsel %vm690, %v833, 0
    %v1016 = vsel %vm690, %v834, 0
    %v1019 = vsel %vm690, %v835, 0
    %v1022 = vsel %vm690, %v836, 0
    %1024 = vmatpush.bf16.msra.mxu0 0
    %1025 = vmatpush.bf16.msra.mxu0 %v1004
    %1026 = vmatpush.bf16.msra.mxu0 %v1003
    %1027 = vmatpush.bf16.msra.mxu0 %v1002
    %1028 = vmatpush.bf16.msra.mxu0 %v1001
    %1029 = vmatpush.bf16.msra.mxu0 %v1000
    %1030 = vmatpush.bf16.msra.mxu0 %v999
    %1031 = vmatpush.bf16.msra.mxu0 %v998
    %1032 = vmatmul.bf16.gmra.mxu0 %v1013
    %v1033 = vpop.f32.mrf.mxu0
    %v1034 = vadd.f32 %v951, %v1033
    %v1035 = vpop.f32.mrf.mxu0
    %v1036 = vadd.f32 %v953, %v1035
    %1037 = vmatmul.bf16.gmra.mxu0 %v1016
    %v1038 = vpop.f32.mrf.mxu0
    %v1039 = vadd.f32 %v956, %v1038
    %v1040 = vpop.f32.mrf.mxu0
    %v1041 = vadd.f32 %v958, %v1040
    %1042 = vmatmul.bf16.gmra.mxu0 %v1019
    %v1043 = vpop.f32.mrf.mxu0
    %v1044 = vadd.f32 %v961, %v1043
    %v1045 = vpop.f32.mrf.mxu0
    %v1046 = vadd.f32 %v963, %v1045
    %1047 = vmatmul.bf16.gmra.mxu0 %v1022
    %v1048 = vpop.f32.mrf.mxu0
    %v1049 = vadd.f32 %v966, %v1048
    %v1050 = vpop.f32.mrf.mxu0
    %v1051 = vadd.f32 %v968, %v1050
    %1052 = vdwg.mxu0
    %v1053 = vrot.slane %v825, 2
    %v1054 = vrot.slane %v826, 2
    %v1055 = vrot.slane %v827, 2
    %v1056 = vrot.slane %v828, 2
    %v1057 = vrot.slane %v829, 2
    %v1058 = vrot.slane %v830, 2
    %v1059 = vrot.slane %v831, 2
    %v1060 = vrot.slane %v832, 2
    %v1061 = vsel %vm413, %v1059, %v1060
    %v1062 = vsel %vm413, %v1058, %v1059
    %v1063 = vsel %vm413, %v1057, %v1058
    %v1064 = vsel %vm413, %v1056, %v1057
    %v1065 = vsel %vm413, %v1055, %v1056
    %v1066 = vsel %vm413, %v1054, %v1055
    %v1067 = vsel %vm413, %v1053, %v1054
    %v1068 = vsel %vm413, %v1060, %v1053
    %v1069 = vpack.c.bf16 %v1066, %v1067
    %v1070 = vpack.c.bf16 %v1064, %v1065
    %v1071 = vpack.c.bf16 %v1062, %v1063
    %v1072 = vpack.c.bf16 %v1068, %v1061
    %s1073 = scalar_lea.vmem [#allocation5], 1008
    %v1074 = vld [vmem:[%s1073] sm:$0xf]
    %v1075 = vld [vmem:[%s1073 + $0x8] sm:$0xf]
    %v1076 = vld [vmem:[%s1073 + $0x10] sm:$0xf]
    %v1077 = vld [vmem:[%s1073 + $0x18] sm:$0xf]
    %v1078 = vld [vmem:[%s1073 + $0x20] sm:$0xf]
    %v1079 = vld [vmem:[%s1073 + $0x28] sm:$0xf]
    %v1080 = vld [vmem:[%s1073 + $0x30] sm:$0xf]
    %v1081 = vld [vmem:[%s1073 + $0x38] sm:$0xf]
    %v1082 = vld [vmem:[%s1073 + $0x40] sm:$0xf]
    %v1083 = vld [vmem:[%s1073 + $0x48] sm:$0xf]
    %v1084 = vld [vmem:[%s1073 + $0x50] sm:$0xf]
    %v1085 = vld [vmem:[%s1073 + $0x58] sm:$0xf]
    %v1086 = vld [vmem:[%s1073 + $0x60] sm:$0xf]
    %v1087 = vld [vmem:[%s1073 + $0x68] sm:$0xf]
    %v1102 = vunpack.c.l.b16 %v1074
    %v1103 = vunpack.c.l.b16 %v1075
    %v1104 = vunpack.c.l.b16 %v1076
    %v1105 = vunpack.c.l.b16 %v1077
    %v1106 = vunpack.c.l.b16 %v1078
    %v1107 = vunpack.c.l.b16 %v1079
    %v1108 = vunpack.c.l.b16 %v1080
    %v1109 = vunpack.c.l.b16 %v1081
    %v1110 = vunpack.c.l.b16 %v1082
    %v1111 = vunpack.c.l.b16 %v1083
    %v1112 = vunpack.c.l.b16 %v1084
    %v1113 = vunpack.c.l.b16 %v1085
    %v1114 = vunpack.c.l.b16 %v1086
    %v1115 = vunpack.c.l.b16 %v1087
    %v1116 = vpack.c.b16 %v1103, %v1102
    %v1117 = vpack.c.b16 %v1105, %v1104
    %v1118 = vpack.c.b16 %v1107, %v1106
    %v1119 = vpack.c.b16 %v1109, %v1108
    %v1120 = vpack.c.b16 %v1111, %v1110
    %v1121 = vpack.c.b16 %v1113, %v1112
    %v1122 = vpack.c.b16 %v1115, %v1114
    %v1131 = vsel %vm690, %v1069, 0
    %v1134 = vsel %vm690, %v1070, 0
    %v1137 = vsel %vm690, %v1071, 0
    %v1140 = vsel %vm690, %v1072, 0
    %1142 = vmatpush.bf16.msra.mxu0 0
    %1143 = vmatpush.bf16.msra.mxu0 %v1122
    %1144 = vmatpush.bf16.msra.mxu0 %v1121
    %1145 = vmatpush.bf16.msra.mxu0 %v1120
    %1146 = vmatpush.bf16.msra.mxu0 %v1119
    %1147 = vmatpush.bf16.msra.mxu0 %v1118
    %1148 = vmatpush.bf16.msra.mxu0 %v1117
    %1149 = vmatpush.bf16.msra.mxu0 %v1116
    %1150 = vmatmul.bf16.gmra.mxu0 %v1131
    %v1151 = vpop.f32.mrf.mxu0
    %v1152 = vadd.f32 0.0, %v1151
    %v1153 = vpop.f32.mrf.mxu0
    %v1154 = vadd.f32 0.0, %v1153
    %1155 = vmatmul.bf16.gmra.mxu0 %v1134
    %v1156 = vpop.f32.mrf.mxu0
    %v1157 = vadd.f32 0.0, %v1156
    %v1158 = vpop.f32.mrf.mxu0
    %v1159 = vadd.f32 0.0, %v1158
    %1160 = vmatmul.bf16.gmra.mxu0 %v1137
    %v1161 = vpop.f32.mrf.mxu0
    %v1162 = vadd.f32 0.0, %v1161
    %v1163 = vpop.f32.mrf.mxu0
    %v1164 = vadd.f32 0.0, %v1163
    %1165 = vmatmul.bf16.gmra.mxu0 %v1140
    %v1166 = vpop.f32.mrf.mxu0
    %v1167 = vadd.f32 0.0, %v1166
    %v1168 = vpop.f32.mrf.mxu0
    %v1169 = vadd.f32 0.0, %v1168
    %1170 = vdwg.mxu0
    %v1171 = vadd.f32 %v1034, %v1152
    %v1172 = vadd.f32 %v1036, %v1154
    %v1173 = vadd.f32 %v1039, %v1157
    %v1174 = vadd.f32 %v1041, %v1159
    %v1175 = vadd.f32 %v1044, %v1162
    %v1176 = vadd.f32 %v1046, %v1164
    %v1177 = vadd.f32 %v1049, %v1167
    %v1178 = vadd.f32 %v1051, %v1169
    %v1179 = vrot.slane %v825, 3
    %v1180 = vrot.slane %v826, 3
    %v1181 = vrot.slane %v827, 3
    %v1182 = vrot.slane %v828, 3
    %v1183 = vrot.slane %v829, 3
    %v1184 = vrot.slane %v830, 3
    %v1185 = vrot.slane %v831, 3
    %v1186 = vrot.slane %v832, 3
    %v1187 = vsel %vm500, %v1185, %v1186
    %v1188 = vsel %vm500, %v1184, %v1185
    %v1189 = vsel %vm500, %v1183, %v1184
    %v1190 = vsel %vm500, %v1182, %v1183
    %v1191 = vsel %vm500, %v1181, %v1182
    %v1192 = vsel %vm500, %v1180, %v1181
    %v1193 = vsel %vm500, %v1179, %v1180
    %v1194 = vsel %vm500, %v1186, %v1179
    %v1195 = vpack.c.bf16 %v1192, %v1193
    %v1196 = vpack.c.bf16 %v1190, %v1191
    %v1197 = vpack.c.bf16 %v1188, %v1189
    %v1198 = vpack.c.bf16 %v1194, %v1187
    %s1199 = scalar_lea.vmem [#allocation5], 1152
    %v1200 = vld [vmem:[%s1199] sm:$0xf]
    %v1201 = vld [vmem:[%s1199 + $0x8] sm:$0xf]
    %v1202 = vld [vmem:[%s1199 + $0x10] sm:$0xf]
    %v1203 = vld [vmem:[%s1199 + $0x18] sm:$0xf]
    %v1204 = vld [vmem:[%s1199 + $0x20] sm:$0xf]
    %v1205 = vld [vmem:[%s1199 + $0x28] sm:$0xf]
    %v1206 = vld [vmem:[%s1199 + $0x30] sm:$0xf]
    %v1207 = vld [vmem:[%s1199 + $0x38] sm:$0xf]
    %v1208 = vld [vmem:[%s1199 + $0x40] sm:$0xf]
    %v1209 = vld [vmem:[%s1199 + $0x48] sm:$0xf]
    %v1210 = vld [vmem:[%s1199 + $0x50] sm:$0xf]
    %v1211 = vld [vmem:[%s1199 + $0x58] sm:$0xf]
    %v1212 = vld [vmem:[%s1199 + $0x60] sm:$0xf]
    %v1213 = vld [vmem:[%s1199 + $0x68] sm:$0xf]
    %v1228 = vunpack.c.l.b16 %v1200
    %v1229 = vunpack.c.l.b16 %v1201
    %v1230 = vunpack.c.l.b16 %v1202
    %v1231 = vunpack.c.l.b16 %v1203
    %v1232 = vunpack.c.l.b16 %v1204
    %v1233 = vunpack.c.l.b16 %v1205
    %v1234 = vunpack.c.l.b16 %v1206
    %v1235 = vunpack.c.l.b16 %v1207
    %v1236 = vunpack.c.l.b16 %v1208
    %v1237 = vunpack.c.l.b16 %v1209
    %v1238 = vunpack.c.l.b16 %v1210
    %v1239 = vunpack.c.l.b16 %v1211
    %v1240 = vunpack.c.l.b16 %v1212
    %v1241 = vunpack.c.l.b16 %v1213
    %v1242 = vpack.c.b16 %v1229, %v1228
    %v1243 = vpack.c.b16 %v1231, %v1230
    %v1244 = vpack.c.b16 %v1233, %v1232
    %v1245 = vpack.c.b16 %v1235, %v1234
    %v1246 = vpack.c.b16 %v1237, %v1236
    %v1247 = vpack.c.b16 %v1239, %v1238
    %v1248 = vpack.c.b16 %v1241, %v1240
    %v1257 = vsel %vm690, %v1195, 0
    %v1260 = vsel %vm690, %v1196, 0
    %v1263 = vsel %vm690, %v1197, 0
    %v1266 = vsel %vm690, %v1198, 0
    %1268 = vmatpush.bf16.msra.mxu0 0
    %1269 = vmatpush.bf16.msra.mxu0 %v1248
    %1270 = vmatpush.bf16.msra.mxu0 %v1247
    %1271 = vmatpush.bf16.msra.mxu0 %v1246
    %1272 = vmatpush.bf16.msra.mxu0 %v1245
    %1273 = vmatpush.bf16.msra.mxu0 %v1244
    %1274 = vmatpush.bf16.msra.mxu0 %v1243
    %1275 = vmatpush.bf16.msra.mxu0 %v1242
    %1276 = vmatmul.bf16.gmra.mxu0 %v1257
    %v1277 = vpop.f32.mrf.mxu0
    %v1278 = vadd.f32 0.0, %v1277
    %v1279 = vpop.f32.mrf.mxu0
    %v1280 = vadd.f32 0.0, %v1279
    %1281 = vmatmul.bf16.gmra.mxu0 %v1260
    %v1282 = vpop.f32.mrf.mxu0
    %v1283 = vadd.f32 0.0, %v1282
    %v1284 = vpop.f32.mrf.mxu0
    %v1285 = vadd.f32 0.0, %v1284
    %1286 = vmatmul.bf16.gmra.mxu0 %v1263
    %v1287 = vpop.f32.mrf.mxu0
    %v1288 = vadd.f32 0.0, %v1287
    %v1289 = vpop.f32.mrf.mxu0
    %v1290 = vadd.f32 0.0, %v1289
    %1291 = vmatmul.bf16.gmra.mxu0 %v1266
    %v1292 = vpop.f32.mrf.mxu0
    %v1293 = vadd.f32 0.0, %v1292
    %v1294 = vpop.f32.mrf.mxu0
    %v1295 = vadd.f32 0.0, %v1294
    %1296 = vdwg.mxu0
    %v1297 = vadd.f32 %v1171, %v1278
    %v1298 = vadd.f32 %v1172, %v1280
    %v1299 = vadd.f32 %v1173, %v1283
    %v1300 = vadd.f32 %v1174, %v1285
    %v1301 = vadd.f32 %v1175, %v1288
    %v1302 = vadd.f32 %v1176, %v1290
    %v1303 = vadd.f32 %v1177, %v1293
    %v1304 = vadd.f32 %v1178, %v1295
    %v1305 = vrot.slane %v825, 4
    %v1306 = vrot.slane %v826, 4
    %v1307 = vrot.slane %v827, 4
    %v1308 = vrot.slane %v828, 4
    %v1309 = vrot.slane %v829, 4
    %v1310 = vrot.slane %v830, 4
    %v1311 = vrot.slane %v831, 4
    %v1312 = vrot.slane %v832, 4
    %v1313 = vsel %vm587, %v1311, %v1312
    %v1314 = vsel %vm587, %v1310, %v1311
    %v1315 = vsel %vm587, %v1309, %v1310
    %v1316 = vsel %vm587, %v1308, %v1309
    %v1317 = vsel %vm587, %v1307, %v1308
    %v1318 = vsel %vm587, %v1306, %v1307
    %v1319 = vsel %vm587, %v1305, %v1306
    %v1320 = vsel %vm587, %v1312, %v1305
    %v1321 = vpack.c.bf16 %v1318, %v1319
    %v1322 = vpack.c.bf16 %v1316, %v1317
    %v1323 = vpack.c.bf16 %v1314, %v1315
    %v1324 = vpack.c.bf16 %v1320, %v1313
    %s1325 = scalar_lea.vmem [#allocation5], 1296
    %v1326 = vld [vmem:[%s1325] sm:$0xf]
    %v1327 = vld [vmem:[%s1325 + $0x8] sm:$0xf]
    %v1328 = vld [vmem:[%s1325 + $0x10] sm:$0xf]
    %v1329 = vld [vmem:[%s1325 + $0x18] sm:$0xf]
    %v1330 = vld [vmem:[%s1325 + $0x20] sm:$0xf]
    %v1331 = vld [vmem:[%s1325 + $0x28] sm:$0xf]
    %v1332 = vld [vmem:[%s1325 + $0x30] sm:$0xf]
    %v1333 = vld [vmem:[%s1325 + $0x38] sm:$0xf]
    %v1334 = vld [vmem:[%s1325 + $0x40] sm:$0xf]
    %v1335 = vld [vmem:[%s1325 + $0x48] sm:$0xf]
    %v1336 = vld [vmem:[%s1325 + $0x50] sm:$0xf]
    %v1337 = vld [vmem:[%s1325 + $0x58] sm:$0xf]
    %v1338 = vld [vmem:[%s1325 + $0x60] sm:$0xf]
    %v1339 = vld [vmem:[%s1325 + $0x68] sm:$0xf]
    %v1354 = vunpack.c.l.b16 %v1326
    %v1355 = vunpack.c.l.b16 %v1327
    %v1356 = vunpack.c.l.b16 %v1328
    %v1357 = vunpack.c.l.b16 %v1329
    %v1358 = vunpack.c.l.b16 %v1330
    %v1359 = vunpack.c.l.b16 %v1331
    %v1360 = vunpack.c.l.b16 %v1332
    %v1361 = vunpack.c.l.b16 %v1333
    %v1362 = vunpack.c.l.b16 %v1334
    %v1363 = vunpack.c.l.b16 %v1335
    %v1364 = vunpack.c.l.b16 %v1336
    %v1365 = vunpack.c.l.b16 %v1337
    %v1366 = vunpack.c.l.b16 %v1338
    %v1367 = vunpack.c.l.b16 %v1339
    %v1368 = vpack.c.b16 %v1355, %v1354
    %v1369 = vpack.c.b16 %v1357, %v1356
    %v1370 = vpack.c.b16 %v1359, %v1358
    %v1371 = vpack.c.b16 %v1361, %v1360
    %v1372 = vpack.c.b16 %v1363, %v1362
    %v1373 = vpack.c.b16 %v1365, %v1364
    %v1374 = vpack.c.b16 %v1367, %v1366
    %v1383 = vsel %vm690, %v1321, 0
    %v1386 = vsel %vm690, %v1322, 0
    %v1389 = vsel %vm690, %v1323, 0
    %v1392 = vsel %vm690, %v1324, 0
    %1394 = vmatpush.bf16.msra.mxu0 0
    %1395 = vmatpush.bf16.msra.mxu0 %v1374
    %1396 = vmatpush.bf16.msra.mxu0 %v1373
    %1397 = vmatpush.bf16.msra.mxu0 %v1372
    %1398 = vmatpush.bf16.msra.mxu0 %v1371
    %1399 = vmatpush.bf16.msra.mxu0 %v1370
    %1400 = vmatpush.bf16.msra.mxu0 %v1369
    %1401 = vmatpush.bf16.msra.mxu0 %v1368
    %1402 = vmatmul.bf16.gmra.mxu0 %v1383
    %v1403 = vpop.f32.mrf.mxu0
    %v1404 = vadd.f32 0.0, %v1403
    %v1405 = vpop.f32.mrf.mxu0
    %v1406 = vadd.f32 0.0, %v1405
    %1407 = vmatmul.bf16.gmra.mxu0 %v1386
    %v1408 = vpop.f32.mrf.mxu0
    %v1409 = vadd.f32 0.0, %v1408
    %v1410 = vpop.f32.mrf.mxu0
    %v1411 = vadd.f32 0.0, %v1410
    %1412 = vmatmul.bf16.gmra.mxu0 %v1389
    %v1413 = vpop.f32.mrf.mxu0
    %v1414 = vadd.f32 0.0, %v1413
    %v1415 = vpop.f32.mrf.mxu0
    %v1416 = vadd.f32 0.0, %v1415
    %1417 = vmatmul.bf16.gmra.mxu0 %v1392
    %v1418 = vpop.f32.mrf.mxu0
    %v1419 = vadd.f32 0.0, %v1418
    %v1420 = vpop.f32.mrf.mxu0
    %v1421 = vadd.f32 0.0, %v1420
    %1422 = vdwg.mxu0
    %v1423 = vadd.f32 %v1297, %v1404
    %v1424 = vadd.f32 %v1298, %v1406
    %v1425 = vadd.f32 %v1299, %v1409
    %v1426 = vadd.f32 %v1300, %v1411
    %v1427 = vadd.f32 %v1301, %v1414
    %v1428 = vadd.f32 %v1302, %v1416
    %v1429 = vadd.f32 %v1303, %v1419
    %v1430 = vadd.f32 %v1304, %v1421
    %vm1431 = vcmp.lt.s32.totalorder %v232, 24
    %vm1432 = vcmp.lt.s32.totalorder %v233, 24
    %vm1433 = vcmp.lt.s32.totalorder %v234, 24
    %vm1434 = vcmp.lt.s32.totalorder %v235, 24
    %vm1435 = vcmp.lt.s32.totalorder %v236, 24
    %vm1436 = vcmp.lt.s32.totalorder %v237, 24
    %vm1437 = vcmp.lt.s32.totalorder %v238, 24
    %vm1438 = vcmp.lt.s32.totalorder %v239, 24
    %v1439 = vsel %vm1431, 1.0, 0.0
    %v1440 = vsel %vm1432, 1.0, 0.0
    %v1441 = vsel %vm1433, 1.0, 0.0
    %v1442 = vsel %vm1434, 1.0, 0.0
    %v1443 = vsel %vm1435, 1.0, 0.0
    %v1444 = vsel %vm1436, 1.0, 0.0
    %v1445 = vsel %vm1437, 1.0, 0.0
    %v1446 = vsel %vm1438, 1.0, 0.0
    %v1447 = vmul.f32 %v1423, %v1439
    %v1448 = vmul.f32 %v1424, %v1440
    %v1449 = vmul.f32 %v1425, %v1441
    %v1450 = vmul.f32 %v1426, %v1442
    %v1451 = vmul.f32 %v1427, %v1443
    %v1452 = vmul.f32 %v1428, %v1444
    %v1453 = vmul.f32 %v1429, %v1445
    %v1454 = vmul.f32 %v1430, %v1446
    %vm1455 = vcmask 982016
    %v1456 = vsel %vm1455, %v1447, 0.0
    %v1457 = vsel %vm1455, %v1448, 0.0
    %v1458 = vadd.f32 %v1456, %v1457
    %v1459 = vsel %vm1455, %v1449, 0.0
    %v1460 = vadd.f32 %v1458, %v1459
    %v1461 = vsel %vm1455, %v1450, 0.0
    %v1462 = vadd.f32 %v1460, %v1461
    %v1463 = vsel %vm1455, %v1451, 0.0
    %v1464 = vadd.f32 %v1462, %v1463
    %v1465 = vsel %vm1455, %v1452, 0.0
    %v1466 = vadd.f32 %v1464, %v1465
    %v1467 = vsel %vm1455, %v1453, 0.0
    %v1468 = vadd.f32 %v1466, %v1467
    %v1469 = vsel %vm1455, %v1454, 0.0
    %v1470 = vadd.f32 %v1468, %v1469
    %v1471 = vrot.slane %v1470, 4
    %v1472 = vadd.f32 %v1470, %v1471
    %v1473 = vrot.slane %v1472, 2
    %v1474 = vadd.f32 %v1472, %v1473
    %v1475 = vrot.slane %v1474, 1
    %v1476 = vadd.f32 %v1474, %v1475
    %v1477 = vmul.f32 %v1447, %v1423
    %v1478 = vmul.f32 %v1448, %v1424
    %v1479 = vmul.f32 %v1449, %v1425
    %v1480 = vmul.f32 %v1450, %v1426
    %v1481 = vmul.f32 %v1451, %v1427
    %v1482 = vmul.f32 %v1452, %v1428
    %v1483 = vmul.f32 %v1453, %v1429
    %v1484 = vmul.f32 %v1454, %v1430
    %v1485 = vsel %vm1455, %v1477, 0.0
    %v1486 = vsel %vm1455, %v1478, 0.0
    %v1487 = vadd.f32 %v1485, %v1486
    %v1488 = vsel %vm1455, %v1479, 0.0
    %v1489 = vadd.f32 %v1487, %v1488
    %v1490 = vsel %vm1455, %v1480, 0.0
    %v1491 = vadd.f32 %v1489, %v1490
    %v1492 = vsel %vm1455, %v1481, 0.0
    %v1493 = vadd.f32 %v1491, %v1492
    %v1494 = vsel %vm1455, %v1482, 0.0
    %v1495 = vadd.f32 %v1493, %v1494
    %v1496 = vsel %vm1455, %v1483, 0.0
    %v1497 = vadd.f32 %v1495, %v1496
    %v1498 = vsel %vm1455, %v1484, 0.0
    %v1499 = vadd.f32 %v1497, %v1498
    %v1500 = vrot.slane %v1499, 4
    %v1501 = vadd.f32 %v1499, %v1500
    %v1502 = vrot.slane %v1501, 2
    %v1503 = vadd.f32 %v1501, %v1502
    %v1504 = vrot.slane %v1503, 1
    %v1505 = vadd.f32 %v1503, %v1504
    %v1506 = vsel %vm741, %v1476, %v1505
    %s1507 = scalar_lea.vmem [#allocation7], 288
    %v1508 = vld [vmem:[%s1507] sm:$0xff]
    %v1509 = vld [vmem:[%s1507 + $0x10] sm:$0xff]
    %v1510 = vld [vmem:[%s1507 + $0x20] sm:$0xff]
    %v1511 = vld [vmem:[%s1507 + $0x30] sm:$0xff]
    %v1512 = vld [vmem:[%s1507 + $0x40] sm:$0xff]
    %v1513 = vld [vmem:[%s1507 + $0x50] sm:$0xff]
    %v1514 = vld [vmem:[%s1507 + $0x60] sm:$0xff]
    %v1515 = vld [vmem:[%s1507 + $0x70] sm:$0xff]
    %v1516 = vld [vmem:[%s1507 + $0x80] sm:$0xff]
    %v1517 = vld [vmem:[%s1507 + $0x90] sm:$0xff]
    %v1518 = vld [vmem:[%s1507 + $0xa0] sm:$0xff]
    %v1519 = vld [vmem:[%s1507 + $0xb0] sm:$0xff]
    %v1520 = vld [vmem:[%s1507 + $0xc0] sm:$0xff]
    %v1521 = vld [vmem:[%s1507 + $0xd0] sm:$0xff]
    %v1522 = vld [vmem:[%s1507 + $0xe0] sm:$0xff]
    %v1524 = vsel %vm1455, %v1506, 0
    %1526 = vmatpush.msra.mxu0 0.0
    %1527 = vmatpush.msra.mxu0 %v1522
    %1528 = vmatpush.msra.mxu0 %v1521
    %1529 = vmatpush.msra.mxu0 %v1520
    %1530 = vmatpush.msra.mxu0 %v1519
    %1531 = vmatpush.msra.mxu0 %v1518
    %1532 = vmatpush.msra.mxu0 %v1517
    %1533 = vmatpush.msra.mxu0 %v1516
    %1534 = vmatpush.msra.mxu0 %v1515
    %1535 = vmatpush.msra.mxu0 %v1514
    %1536 = vmatpush.msra.mxu0 %v1513
    %1537 = vmatpush.msra.mxu0 %v1512
    %1538 = vmatpush.msra.mxu0 %v1511
    %1539 = vmatpush.msra.mxu0 %v1510
    %1540 = vmatpush.msra.mxu0 %v1509
    %1541 = vmatpush.msra.mxu0 %v1508
    %1542 = vmatmul.f32.gmra.mxu0 %v1524
    %v1543 = vpop.f32.mrf.mxu0
    %v1544 = vadd.f32 0.0, %v1543
    %1545 = vdwg.mxu0
    %v1546 = vmul.f32 %v1544, 0.00086805556
    %v1547 = vmul.f32 %v1546, %v1546
    %v1549 = vrot.slane %v1547, 7
    %v1551 = vsub.f32 %v1546, %v1549
    %v1552 = vmax.f32 %v1551, 0.0
    %s1553 = scalar_lea.vmem [#allocation8], 4
    %v1554 = vld [vmem:[%s1553] sm:$0x1]
    %v1555 = vadd.f32 %v1552, 1e-05
    %v1556 = vrsqrt.pop %v1555
    %v1557 = vmul.f32 %v1556, %v1555
    %v1558 = vmul.f32 %v1557, %v1556
    %v1559 = vmul.f32 0.5, %v1558
    %v1560 = vsub.f32 1.5, %v1559
    %v1561 = vmul.f32 %v1556, %v1560
    %vm1562 = vweird.f32 %v1555
    %vm1563 = vweird.f32 %v1556
    %vm1564 = vmor %vm1562, %vm1563
    %v1565 = vsel %vm1564, %v1556, %v1561
    %v1567 = vrot.slane %v1565, 7
    %v1568 = vrot.slane %v1567, 2
    %v1570 = vmul.f32 %v1554, %v1568
    %v1571 = vld [vmem:[%s1553 + $0x1] sm:$0x1]
    %v1572 = vmul.f32 %v1546, %v1570
    %v1573 = vsub.f32 %v1571, %v1572
    %v1574 = vperm.slane %v1570, 0
    %v1575 = vmul.f32 %v1423, %v1574
    %v1576 = vmul.f32 %v1424, %v1574
    %v1577 = vmul.f32 %v1425, %v1574
    %v1578 = vmul.f32 %v1426, %v1574
    %v1579 = vmul.f32 %v1427, %v1574
    %v1580 = vmul.f32 %v1428, %v1574
    %v1581 = vmul.f32 %v1429, %v1574
    %v1582 = vmul.f32 %v1430, %v1574
    %v1583 = vperm.slane %v1573, 0
    %v1584 = vadd.f32 %v1575, %v1583
    %v1585 = vadd.f32 %v1576, %v1583
    %v1586 = vadd.f32 %v1577, %v1583
    %v1587 = vadd.f32 %v1578, %v1583
    %v1588 = vadd.f32 %v1579, %v1583
    %v1589 = vadd.f32 %v1580, %v1583
    %v1590 = vadd.f32 %v1581, %v1583
    %v1591 = vadd.f32 %v1582, %v1583
    %v1592 = vmax.f32 %v1584, 0.0
    %v1593 = vmax.f32 %v1585, 0.0
    %v1594 = vmax.f32 %v1586, 0.0
    %v1595 = vmax.f32 %v1587, 0.0
    %v1596 = vmax.f32 %v1588, 0.0
    %v1597 = vmax.f32 %v1589, 0.0
    %v1598 = vmax.f32 %v1590, 0.0
    %v1599 = vmax.f32 %v1591, 0.0
    %v1600 = vpack.c.bf16 %v1593, %v1592
    %v1601 = vpack.c.bf16 %v1595, %v1594
    %v1602 = vpack.c.bf16 %v1597, %v1596
    %v1603 = vpack.c.bf16 %v1599, %v1598
    %s1604 = scalar_lea.vmem [#allocation5], 1440
    %v1605 = vld [vmem:[%s1604] sm:$0xf]
    %v1606 = vld [vmem:[%s1604 + $0x8] sm:$0xf]
    %v1607 = vld [vmem:[%s1604 + $0x10] sm:$0xf]
    %v1608 = vld [vmem:[%s1604 + $0x18] sm:$0xf]
    %v1609 = vld [vmem:[%s1604 + $0x20] sm:$0xf]
    %v1610 = vld [vmem:[%s1604 + $0x28] sm:$0xf]
    %v1611 = vld [vmem:[%s1604 + $0x30] sm:$0xf]
    %v1612 = vld [vmem:[%s1604 + $0x38] sm:$0xf]
    %v1613 = vld [vmem:[%s1604 + $0x40] sm:$0xf]
    %v1614 = vld [vmem:[%s1604 + $0x48] sm:$0xf]
    %v1615 = vld [vmem:[%s1604 + $0x50] sm:$0xf]
    %v1616 = vld [vmem:[%s1604 + $0x58] sm:$0xf]
    %v1617 = vld [vmem:[%s1604 + $0x60] sm:$0xf]
    %v1618 = vld [vmem:[%s1604 + $0x68] sm:$0xf]
    %v1619 = vld [vmem:[%s1604 + $0x70] sm:$0xf]
    %v1620 = vrot.slane %v1592, 1
    %v1621 = vrot.slane %v1593, 1
    %v1622 = vrot.slane %v1594, 1
    %v1623 = vrot.slane %v1595, 1
    %v1624 = vrot.slane %v1596, 1
    %v1625 = vrot.slane %v1597, 1
    %v1626 = vrot.slane %v1598, 1
    %v1627 = vrot.slane %v1599, 1
    %v1628 = vsel %vm280, %v1626, %v1627
    %v1629 = vsel %vm280, %v1625, %v1626
    %v1630 = vsel %vm280, %v1624, %v1625
    %v1631 = vsel %vm280, %v1623, %v1624
    %v1632 = vsel %vm280, %v1622, %v1623
    %v1633 = vsel %vm280, %v1621, %v1622
    %v1634 = vsel %vm280, %v1620, %v1621
    %v1635 = vsel %vm280, %v1627, %v1620
    %v1636 = vpack.c.bf16 %v1633, %v1634
    %v1637 = vpack.c.bf16 %v1631, %v1632
    %v1638 = vpack.c.bf16 %v1629, %v1630
    %v1639 = vpack.c.bf16 %v1635, %v1628
    %s1640 = scalar_lea.vmem [#allocation5], 1584
    %v1641 = vld [vmem:[%s1640] sm:$0xf]
    %v1642 = vld [vmem:[%s1640 + $0x8] sm:$0xf]
    %v1643 = vld [vmem:[%s1640 + $0x10] sm:$0xf]
    %v1644 = vld [vmem:[%s1640 + $0x18] sm:$0xf]
    %v1645 = vld [vmem:[%s1640 + $0x20] sm:$0xf]
    %v1646 = vld [vmem:[%s1640 + $0x28] sm:$0xf]
    %v1647 = vld [vmem:[%s1640 + $0x30] sm:$0xf]
    %v1648 = vld [vmem:[%s1640 + $0x38] sm:$0xf]
    %v1649 = vld [vmem:[%s1640 + $0x40] sm:$0xf]
    %v1650 = vld [vmem:[%s1640 + $0x48] sm:$0xf]
    %v1651 = vld [vmem:[%s1640 + $0x50] sm:$0xf]
    %v1652 = vld [vmem:[%s1640 + $0x58] sm:$0xf]
    %v1653 = vld [vmem:[%s1640 + $0x60] sm:$0xf]
    %v1654 = vld [vmem:[%s1640 + $0x68] sm:$0xf]
    %v1655 = vld [vmem:[%s1640 + $0x70] sm:$0xf]
    %v1671 = vunpack.c.l.b16 %v1641
    %v1672 = vunpack.c.l.b16 %v1642
    %v1673 = vunpack.c.l.b16 %v1643
    %v1674 = vunpack.c.l.b16 %v1644
    %v1675 = vunpack.c.l.b16 %v1645
    %v1676 = vunpack.c.l.b16 %v1646
    %v1677 = vunpack.c.l.b16 %v1647
    %v1678 = vunpack.c.l.b16 %v1648
    %v1679 = vunpack.c.l.b16 %v1649
    %v1680 = vunpack.c.l.b16 %v1650
    %v1681 = vunpack.c.l.b16 %v1651
    %v1682 = vunpack.c.l.b16 %v1652
    %v1683 = vunpack.c.l.b16 %v1653
    %v1684 = vunpack.c.l.b16 %v1654
    %v1685 = vunpack.c.l.b16 %v1655
    %v1686 = vpack.c.b16 %v1672, %v1671
    %v1687 = vpack.c.b16 %v1674, %v1673
    %v1688 = vpack.c.b16 %v1676, %v1675
    %v1689 = vpack.c.b16 %v1678, %v1677
    %v1690 = vpack.c.b16 %v1680, %v1679
    %v1691 = vpack.c.b16 %v1682, %v1681
    %v1692 = vpack.c.b16 %v1684, %v1683
    %v1693 = vpack.c.b16 %v1685, %v1685
    %v1702 = vsel %vm1455, %v1636, 0
    %v1705 = vsel %vm1455, %v1637, 0
    %v1708 = vsel %vm1455, %v1638, 0
    %v1711 = vsel %vm1455, %v1639, 0
    %vm1713 = vcmask 1043456
    %v1715 = vsel %vm1713, %v1693, 0
    %1717 = vmatpush.bf16.msra.mxu0 %v1715
    %1718 = vmatpush.bf16.msra.mxu0 %v1692
    %1719 = vmatpush.bf16.msra.mxu0 %v1691
    %1720 = vmatpush.bf16.msra.mxu0 %v1690
    %1721 = vmatpush.bf16.msra.mxu0 %v1689
    %1722 = vmatpush.bf16.msra.mxu0 %v1688
    %1723 = vmatpush.bf16.msra.mxu0 %v1687
    %1724 = vmatpush.bf16.msra.mxu0 %v1686
    %1725 = vmatmul.bf16.gmra.mxu0 %v1702
    %v1726 = vpop.f32.mrf.mxu0
    %v1727 = vadd.f32 0.0, %v1726
    %v1728 = vpop.f32.mrf.mxu0
    %v1729 = vadd.f32 0.0, %v1728
    %1730 = vmatmul.bf16.gmra.mxu0 %v1705
    %v1731 = vpop.f32.mrf.mxu0
    %v1732 = vadd.f32 0.0, %v1731
    %v1733 = vpop.f32.mrf.mxu0
    %v1734 = vadd.f32 0.0, %v1733
    %1735 = vmatmul.bf16.gmra.mxu0 %v1708
    %v1736 = vpop.f32.mrf.mxu0
    %v1737 = vadd.f32 0.0, %v1736
    %v1738 = vpop.f32.mrf.mxu0
    %v1739 = vadd.f32 0.0, %v1738
    %1740 = vmatmul.bf16.gmra.mxu0 %v1711
    %v1741 = vpop.f32.mrf.mxu0
    %v1742 = vadd.f32 0.0, %v1741
    %v1743 = vpop.f32.mrf.mxu0
    %v1744 = vadd.f32 0.0, %v1743
    %1745 = vdwg.mxu0
    %v1761 = vunpack.c.l.b16 %v1605
    %v1762 = vunpack.c.l.b16 %v1606
    %v1763 = vunpack.c.l.b16 %v1607
    %v1764 = vunpack.c.l.b16 %v1608
    %v1765 = vunpack.c.l.b16 %v1609
    %v1766 = vunpack.c.l.b16 %v1610
    %v1767 = vunpack.c.l.b16 %v1611
    %v1768 = vunpack.c.l.b16 %v1612
    %v1769 = vunpack.c.l.b16 %v1613
    %v1770 = vunpack.c.l.b16 %v1614
    %v1771 = vunpack.c.l.b16 %v1615
    %v1772 = vunpack.c.l.b16 %v1616
    %v1773 = vunpack.c.l.b16 %v1617
    %v1774 = vunpack.c.l.b16 %v1618
    %v1775 = vunpack.c.l.b16 %v1619
    %v1776 = vpack.c.b16 %v1762, %v1761
    %v1777 = vpack.c.b16 %v1764, %v1763
    %v1778 = vpack.c.b16 %v1766, %v1765
    %v1779 = vpack.c.b16 %v1768, %v1767
    %v1780 = vpack.c.b16 %v1770, %v1769
    %v1781 = vpack.c.b16 %v1772, %v1771
    %v1782 = vpack.c.b16 %v1774, %v1773
    %v1783 = vpack.c.b16 %v1775, %v1775
    %v1792 = vsel %vm1455, %v1600, 0
    %v1795 = vsel %vm1455, %v1601, 0
    %v1798 = vsel %vm1455, %v1602, 0
    %v1801 = vsel %vm1455, %v1603, 0
    %v1804 = vsel %vm1713, %v1783, 0
    %1806 = vmatpush.bf16.msra.mxu0 %v1804
    %1807 = vmatpush.bf16.msra.mxu0 %v1782
    %1808 = vmatpush.bf16.msra.mxu0 %v1781
    %1809 = vmatpush.bf16.msra.mxu0 %v1780
    %1810 = vmatpush.bf16.msra.mxu0 %v1779
    %1811 = vmatpush.bf16.msra.mxu0 %v1778
    %1812 = vmatpush.bf16.msra.mxu0 %v1777
    %1813 = vmatpush.bf16.msra.mxu0 %v1776
    %1814 = vmatmul.bf16.gmra.mxu0 %v1792
    %v1815 = vpop.f32.mrf.mxu0
    %v1816 = vadd.f32 %v1727, %v1815
    %v1817 = vpop.f32.mrf.mxu0
    %v1818 = vadd.f32 %v1729, %v1817
    %1819 = vmatmul.bf16.gmra.mxu0 %v1795
    %v1820 = vpop.f32.mrf.mxu0
    %v1821 = vadd.f32 %v1732, %v1820
    %v1822 = vpop.f32.mrf.mxu0
    %v1823 = vadd.f32 %v1734, %v1822
    %1824 = vmatmul.bf16.gmra.mxu0 %v1798
    %v1825 = vpop.f32.mrf.mxu0
    %v1826 = vadd.f32 %v1737, %v1825
    %v1827 = vpop.f32.mrf.mxu0
    %v1828 = vadd.f32 %v1739, %v1827
    %1829 = vmatmul.bf16.gmra.mxu0 %v1801
    %v1830 = vpop.f32.mrf.mxu0
    %v1831 = vadd.f32 %v1742, %v1830
    %v1832 = vpop.f32.mrf.mxu0
    %v1833 = vadd.f32 %v1744, %v1832
    %1834 = vdwg.mxu0
    %v1835 = vrot.slane %v1592, 2
    %v1836 = vrot.slane %v1593, 2
    %v1837 = vrot.slane %v1594, 2
    %v1838 = vrot.slane %v1595, 2
    %v1839 = vrot.slane %v1596, 2
    %v1840 = vrot.slane %v1597, 2
    %v1841 = vrot.slane %v1598, 2
    %v1842 = vrot.slane %v1599, 2
    %v1843 = vsel %vm413, %v1841, %v1842
    %v1844 = vsel %vm413, %v1840, %v1841
    %v1845 = vsel %vm413, %v1839, %v1840
    %v1846 = vsel %vm413, %v1838, %v1839
    %v1847 = vsel %vm413, %v1837, %v1838
    %v1848 = vsel %vm413, %v1836, %v1837
    %v1849 = vsel %vm413, %v1835, %v1836
    %v1850 = vsel %vm413, %v1842, %v1835
    %v1851 = vpack.c.bf16 %v1848, %v1849
    %v1852 = vpack.c.bf16 %v1846, %v1847
    %v1853 = vpack.c.bf16 %v1844, %v1845
    %v1854 = vpack.c.bf16 %v1850, %v1843
    %s1855 = scalar_lea.vmem [#allocation5], 1728
    %v1856 = vld [vmem:[%s1855] sm:$0xf]
    %v1857 = vld [vmem:[%s1855 + $0x8] sm:$0xf]
    %v1858 = vld [vmem:[%s1855 + $0x10] sm:$0xf]
    %v1859 = vld [vmem:[%s1855 + $0x18] sm:$0xf]
    %v1860 = vld [vmem:[%s1855 + $0x20] sm:$0xf]
    %v1861 = vld [vmem:[%s1855 + $0x28] sm:$0xf]
    %v1862 = vld [vmem:[%s1855 + $0x30] sm:$0xf]
    %v1863 = vld [vmem:[%s1855 + $0x38] sm:$0xf]
    %v1864 = vld [vmem:[%s1855 + $0x40] sm:$0xf]
    %v1865 = vld [vmem:[%s1855 + $0x48] sm:$0xf]
    %v1866 = vld [vmem:[%s1855 + $0x50] sm:$0xf]
    %v1867 = vld [vmem:[%s1855 + $0x58] sm:$0xf]
    %v1868 = vld [vmem:[%s1855 + $0x60] sm:$0xf]
    %v1869 = vld [vmem:[%s1855 + $0x68] sm:$0xf]
    %v1870 = vld [vmem:[%s1855 + $0x70] sm:$0xf]
    %v1886 = vunpack.c.l.b16 %v1856
    %v1887 = vunpack.c.l.b16 %v1857
    %v1888 = vunpack.c.l.b16 %v1858
    %v1889 = vunpack.c.l.b16 %v1859
    %v1890 = vunpack.c.l.b16 %v1860
    %v1891 = vunpack.c.l.b16 %v1861
    %v1892 = vunpack.c.l.b16 %v1862
    %v1893 = vunpack.c.l.b16 %v1863
    %v1894 = vunpack.c.l.b16 %v1864
    %v1895 = vunpack.c.l.b16 %v1865
    %v1896 = vunpack.c.l.b16 %v1866
    %v1897 = vunpack.c.l.b16 %v1867
    %v1898 = vunpack.c.l.b16 %v1868
    %v1899 = vunpack.c.l.b16 %v1869
    %v1900 = vunpack.c.l.b16 %v1870
    %v1901 = vpack.c.b16 %v1887, %v1886
    %v1902 = vpack.c.b16 %v1889, %v1888
    %v1903 = vpack.c.b16 %v1891, %v1890
    %v1904 = vpack.c.b16 %v1893, %v1892
    %v1905 = vpack.c.b16 %v1895, %v1894
    %v1906 = vpack.c.b16 %v1897, %v1896
    %v1907 = vpack.c.b16 %v1899, %v1898
    %v1908 = vpack.c.b16 %v1900, %v1900
    %v1917 = vsel %vm1455, %v1851, 0
    %v1920 = vsel %vm1455, %v1852, 0
    %v1923 = vsel %vm1455, %v1853, 0
    %v1926 = vsel %vm1455, %v1854, 0
    %v1929 = vsel %vm1713, %v1908, 0
    %1931 = vmatpush.bf16.msra.mxu0 %v1929
    %1932 = vmatpush.bf16.msra.mxu0 %v1907
    %1933 = vmatpush.bf16.msra.mxu0 %v1906
    %1934 = vmatpush.bf16.msra.mxu0 %v1905
    %1935 = vmatpush.bf16.msra.mxu0 %v1904
    %1936 = vmatpush.bf16.msra.mxu0 %v1903
    %1937 = vmatpush.bf16.msra.mxu0 %v1902
    %1938 = vmatpush.bf16.msra.mxu0 %v1901
    %1939 = vmatmul.bf16.gmra.mxu0 %v1917
    %v1940 = vpop.f32.mrf.mxu0
    %v1941 = vadd.f32 0.0, %v1940
    %v1942 = vpop.f32.mrf.mxu0
    %v1943 = vadd.f32 0.0, %v1942
    %1944 = vmatmul.bf16.gmra.mxu0 %v1920
    %v1945 = vpop.f32.mrf.mxu0
    %v1946 = vadd.f32 0.0, %v1945
    %v1947 = vpop.f32.mrf.mxu0
    %v1948 = vadd.f32 0.0, %v1947
    %1949 = vmatmul.bf16.gmra.mxu0 %v1923
    %v1950 = vpop.f32.mrf.mxu0
    %v1951 = vadd.f32 0.0, %v1950
    %v1952 = vpop.f32.mrf.mxu0
    %v1953 = vadd.f32 0.0, %v1952
    %1954 = vmatmul.bf16.gmra.mxu0 %v1926
    %v1955 = vpop.f32.mrf.mxu0
    %v1956 = vadd.f32 0.0, %v1955
    %v1957 = vpop.f32.mrf.mxu0
    %v1958 = vadd.f32 0.0, %v1957
    %1959 = vdwg.mxu0
    %v1960 = vadd.f32 %v1816, %v1941
    %v1961 = vadd.f32 %v1818, %v1943
    %v1962 = vadd.f32 %v1821, %v1946
    %v1963 = vadd.f32 %v1823, %v1948
    %v1964 = vadd.f32 %v1826, %v1951
    %v1965 = vadd.f32 %v1828, %v1953
    %v1966 = vadd.f32 %v1831, %v1956
    %v1967 = vadd.f32 %v1833, %v1958
    %v1968 = vrot.slane %v1592, 3
    %v1969 = vrot.slane %v1593, 3
    %v1970 = vrot.slane %v1594, 3
    %v1971 = vrot.slane %v1595, 3
    %v1972 = vrot.slane %v1596, 3
    %v1973 = vrot.slane %v1597, 3
    %v1974 = vrot.slane %v1598, 3
    %v1975 = vrot.slane %v1599, 3
    %v1976 = vsel %vm500, %v1974, %v1975
    %v1977 = vsel %vm500, %v1973, %v1974
    %v1978 = vsel %vm500, %v1972, %v1973
    %v1979 = vsel %vm500, %v1971, %v1972
    %v1980 = vsel %vm500, %v1970, %v1971
    %v1981 = vsel %vm500, %v1969, %v1970
    %v1982 = vsel %vm500, %v1968, %v1969
    %v1983 = vsel %vm500, %v1975, %v1968
    %v1984 = vpack.c.bf16 %v1981, %v1982
    %v1985 = vpack.c.bf16 %v1979, %v1980
    %v1986 = vpack.c.bf16 %v1977, %v1978
    %v1987 = vpack.c.bf16 %v1983, %v1976
    %s1988 = scalar_lea.vmem [#allocation5], 1872
    %v1989 = vld [vmem:[%s1988] sm:$0xf]
    %v1990 = vld [vmem:[%s1988 + $0x8] sm:$0xf]
    %v1991 = vld [vmem:[%s1988 + $0x10] sm:$0xf]
    %v1992 = vld [vmem:[%s1988 + $0x18] sm:$0xf]
    %v1993 = vld [vmem:[%s1988 + $0x20] sm:$0xf]
    %v1994 = vld [vmem:[%s1988 + $0x28] sm:$0xf]
    %v1995 = vld [vmem:[%s1988 + $0x30] sm:$0xf]
    %v1996 = vld [vmem:[%s1988 + $0x38] sm:$0xf]
    %v1997 = vld [vmem:[%s1988 + $0x40] sm:$0xf]
    %v1998 = vld [vmem:[%s1988 + $0x48] sm:$0xf]
    %v1999 = vld [vmem:[%s1988 + $0x50] sm:$0xf]
    %v2000 = vld [vmem:[%s1988 + $0x58] sm:$0xf]
    %v2001 = vld [vmem:[%s1988 + $0x60] sm:$0xf]
    %v2002 = vld [vmem:[%s1988 + $0x68] sm:$0xf]
    %v2003 = vld [vmem:[%s1988 + $0x70] sm:$0xf]
    %v2019 = vunpack.c.l.b16 %v1989
    %v2020 = vunpack.c.l.b16 %v1990
    %v2021 = vunpack.c.l.b16 %v1991
    %v2022 = vunpack.c.l.b16 %v1992
    %v2023 = vunpack.c.l.b16 %v1993
    %v2024 = vunpack.c.l.b16 %v1994
    %v2025 = vunpack.c.l.b16 %v1995
    %v2026 = vunpack.c.l.b16 %v1996
    %v2027 = vunpack.c.l.b16 %v1997
    %v2028 = vunpack.c.l.b16 %v1998
    %v2029 = vunpack.c.l.b16 %v1999
    %v2030 = vunpack.c.l.b16 %v2000
    %v2031 = vunpack.c.l.b16 %v2001
    %v2032 = vunpack.c.l.b16 %v2002
    %v2033 = vunpack.c.l.b16 %v2003
    %v2034 = vpack.c.b16 %v2020, %v2019
    %v2035 = vpack.c.b16 %v2022, %v2021
    %v2036 = vpack.c.b16 %v2024, %v2023
    %v2037 = vpack.c.b16 %v2026, %v2025
    %v2038 = vpack.c.b16 %v2028, %v2027
    %v2039 = vpack.c.b16 %v2030, %v2029
    %v2040 = vpack.c.b16 %v2032, %v2031
    %v2041 = vpack.c.b16 %v2033, %v2033
    %v2050 = vsel %vm1455, %v1984, 0
    %v2053 = vsel %vm1455, %v1985, 0
    %v2056 = vsel %vm1455, %v1986, 0
    %v2059 = vsel %vm1455, %v1987, 0
    %v2062 = vsel %vm1713, %v2041, 0
    %2064 = vmatpush.bf16.msra.mxu0 %v2062
    %2065 = vmatpush.bf16.msra.mxu0 %v2040
    %2066 = vmatpush.bf16.msra.mxu0 %v2039
    %2067 = vmatpush.bf16.msra.mxu0 %v2038
    %2068 = vmatpush.bf16.msra.mxu0 %v2037
    %2069 = vmatpush.bf16.msra.mxu0 %v2036
    %2070 = vmatpush.bf16.msra.mxu0 %v2035
    %2071 = vmatpush.bf16.msra.mxu0 %v2034
    %2072 = vmatmul.bf16.gmra.mxu0 %v2050
    %v2073 = vpop.f32.mrf.mxu0
    %v2074 = vadd.f32 0.0, %v2073
    %v2075 = vpop.f32.mrf.mxu0
    %v2076 = vadd.f32 0.0, %v2075
    %2077 = vmatmul.bf16.gmra.mxu0 %v2053
    %v2078 = vpop.f32.mrf.mxu0
    %v2079 = vadd.f32 0.0, %v2078
    %v2080 = vpop.f32.mrf.mxu0
    %v2081 = vadd.f32 0.0, %v2080
    %2082 = vmatmul.bf16.gmra.mxu0 %v2056
    %v2083 = vpop.f32.mrf.mxu0
    %v2084 = vadd.f32 0.0, %v2083
    %v2085 = vpop.f32.mrf.mxu0
    %v2086 = vadd.f32 0.0, %v2085
    %2087 = vmatmul.bf16.gmra.mxu0 %v2059
    %v2088 = vpop.f32.mrf.mxu0
    %v2089 = vadd.f32 0.0, %v2088
    %v2090 = vpop.f32.mrf.mxu0
    %v2091 = vadd.f32 0.0, %v2090
    %2092 = vdwg.mxu0
    %v2093 = vadd.f32 %v1960, %v2074
    %v2094 = vadd.f32 %v1961, %v2076
    %v2095 = vadd.f32 %v1962, %v2079
    %v2096 = vadd.f32 %v1963, %v2081
    %v2097 = vadd.f32 %v1964, %v2084
    %v2098 = vadd.f32 %v1965, %v2086
    %v2099 = vadd.f32 %v1966, %v2089
    %v2100 = vadd.f32 %v1967, %v2091
    %v2101 = vrot.slane %v1592, 4
    %v2102 = vrot.slane %v1593, 4
    %v2103 = vrot.slane %v1594, 4
    %v2104 = vrot.slane %v1595, 4
    %v2105 = vrot.slane %v1596, 4
    %v2106 = vrot.slane %v1597, 4
    %v2107 = vrot.slane %v1598, 4
    %v2108 = vrot.slane %v1599, 4
    %v2109 = vsel %vm587, %v2107, %v2108
    %v2110 = vsel %vm587, %v2106, %v2107
    %v2111 = vsel %vm587, %v2105, %v2106
    %v2112 = vsel %vm587, %v2104, %v2105
    %v2113 = vsel %vm587, %v2103, %v2104
    %v2114 = vsel %vm587, %v2102, %v2103
    %v2115 = vsel %vm587, %v2101, %v2102
    %v2116 = vsel %vm587, %v2108, %v2101
    %v2117 = vpack.c.bf16 %v2114, %v2115
    %v2118 = vpack.c.bf16 %v2112, %v2113
    %v2119 = vpack.c.bf16 %v2110, %v2111
    %v2120 = vpack.c.bf16 %v2116, %v2109
    %s2121 = scalar_lea.vmem [#allocation5], 2016
    %v2122 = vld [vmem:[%s2121] sm:$0xf]
    %v2123 = vld [vmem:[%s2121 + $0x8] sm:$0xf]
    %v2124 = vld [vmem:[%s2121 + $0x10] sm:$0xf]
    %v2125 = vld [vmem:[%s2121 + $0x18] sm:$0xf]
    %v2126 = vld [vmem:[%s2121 + $0x20] sm:$0xf]
    %v2127 = vld [vmem:[%s2121 + $0x28] sm:$0xf]
    %v2128 = vld [vmem:[%s2121 + $0x30] sm:$0xf]
    %v2129 = vld [vmem:[%s2121 + $0x38] sm:$0xf]
    %v2130 = vld [vmem:[%s2121 + $0x40] sm:$0xf]
    %v2131 = vld [vmem:[%s2121 + $0x48] sm:$0xf]
    %v2132 = vld [vmem:[%s2121 + $0x50] sm:$0xf]
    %v2133 = vld [vmem:[%s2121 + $0x58] sm:$0xf]
    %v2134 = vld [vmem:[%s2121 + $0x60] sm:$0xf]
    %v2135 = vld [vmem:[%s2121 + $0x68] sm:$0xf]
    %v2136 = vld [vmem:[%s2121 + $0x70] sm:$0xf]
    %v2152 = vunpack.c.l.b16 %v2122
    %v2153 = vunpack.c.l.b16 %v2123
    %v2154 = vunpack.c.l.b16 %v2124
    %v2155 = vunpack.c.l.b16 %v2125
    %v2156 = vunpack.c.l.b16 %v2126
    %v2157 = vunpack.c.l.b16 %v2127
    %v2158 = vunpack.c.l.b16 %v2128
    %v2159 = vunpack.c.l.b16 %v2129
    %v2160 = vunpack.c.l.b16 %v2130
    %v2161 = vunpack.c.l.b16 %v2131
    %v2162 = vunpack.c.l.b16 %v2132
    %v2163 = vunpack.c.l.b16 %v2133
    %v2164 = vunpack.c.l.b16 %v2134
    %v2165 = vunpack.c.l.b16 %v2135
    %v2166 = vunpack.c.l.b16 %v2136
    %v2167 = vpack.c.b16 %v2153, %v2152
    %v2168 = vpack.c.b16 %v2155, %v2154
    %v2169 = vpack.c.b16 %v2157, %v2156
    %v2170 = vpack.c.b16 %v2159, %v2158
    %v2171 = vpack.c.b16 %v2161, %v2160
    %v2172 = vpack.c.b16 %v2163, %v2162
    %v2173 = vpack.c.b16 %v2165, %v2164
    %v2174 = vpack.c.b16 %v2166, %v2166
    %v2183 = vsel %vm1455, %v2117, 0
    %v2186 = vsel %vm1455, %v2118, 0
    %v2189 = vsel %vm1455, %v2119, 0
    %v2192 = vsel %vm1455, %v2120, 0
    %v2195 = vsel %vm1713, %v2174, 0
    %2197 = vmatpush.bf16.msra.mxu0 %v2195
    %2198 = vmatpush.bf16.msra.mxu0 %v2173
    %2199 = vmatpush.bf16.msra.mxu0 %v2172
    %2200 = vmatpush.bf16.msra.mxu0 %v2171
    %2201 = vmatpush.bf16.msra.mxu0 %v2170
    %2202 = vmatpush.bf16.msra.mxu0 %v2169
    %2203 = vmatpush.bf16.msra.mxu0 %v2168
    %2204 = vmatpush.bf16.msra.mxu0 %v2167
    %2205 = vmatmul.bf16.gmra.mxu0 %v2183
    %v2206 = vpop.f32.mrf.mxu0
    %v2207 = vadd.f32 0.0, %v2206
    %v2208 = vpop.f32.mrf.mxu0
    %v2209 = vadd.f32 0.0, %v2208
    %2210 = vmatmul.bf16.gmra.mxu0 %v2186
    %v2211 = vpop.f32.mrf.mxu0
    %v2212 = vadd.f32 0.0, %v2211
    %v2213 = vpop.f32.mrf.mxu0
    %v2214 = vadd.f32 0.0, %v2213
    %2215 = vmatmul.bf16.gmra.mxu0 %v2189
    %v2216 = vpop.f32.mrf.mxu0
    %v2217 = vadd.f32 0.0, %v2216
    %v2218 = vpop.f32.mrf.mxu0
    %v2219 = vadd.f32 0.0, %v2218
    %2220 = vmatmul.bf16.gmra.mxu0 %v2192
    %v2221 = vpop.f32.mrf.mxu0
    %v2222 = vadd.f32 0.0, %v2221
    %v2223 = vpop.f32.mrf.mxu0
    %v2224 = vadd.f32 0.0, %v2223
    %2225 = vdwg.mxu0
    %v2226 = vadd.f32 %v2093, %v2207
    %v2227 = vadd.f32 %v2094, %v2209
    %v2228 = vadd.f32 %v2095, %v2212
    %v2229 = vadd.f32 %v2096, %v2214
    %v2230 = vadd.f32 %v2097, %v2217
    %v2231 = vadd.f32 %v2098, %v2219
    %v2232 = vadd.f32 %v2099, %v2222
    %v2233 = vadd.f32 %v2100, %v2224
    %vm2234 = vcmp.lt.s32.totalorder %v232, 20
    %vm2235 = vcmp.lt.s32.totalorder %v233, 20
    %vm2236 = vcmp.lt.s32.totalorder %v234, 20
    %vm2237 = vcmp.lt.s32.totalorder %v235, 20
    %vm2238 = vcmp.lt.s32.totalorder %v236, 20
    %vm2239 = vcmp.lt.s32.totalorder %v237, 20
    %vm2240 = vcmp.lt.s32.totalorder %v238, 20
    %vm2241 = vcmp.lt.s32.totalorder %v239, 20
    %v2242 = vsel %vm2234, 1.0, 0.0
    %v2243 = vsel %vm2235, 1.0, 0.0
    %v2244 = vsel %vm2236, 1.0, 0.0
    %v2245 = vsel %vm2237, 1.0, 0.0
    %v2246 = vsel %vm2238, 1.0, 0.0
    %v2247 = vsel %vm2239, 1.0, 0.0
    %v2248 = vsel %vm2240, 1.0, 0.0
    %v2249 = vsel %vm2241, 1.0, 0.0
    %v2250 = vmul.f32 %v2226, %v2242
    %v2251 = vmul.f32 %v2227, %v2243
    %v2252 = vmul.f32 %v2228, %v2244
    %v2253 = vmul.f32 %v2229, %v2245
    %v2254 = vmul.f32 %v2230, %v2246
    %v2255 = vmul.f32 %v2231, %v2247
    %v2256 = vmul.f32 %v2232, %v2248
    %v2257 = vmul.f32 %v2233, %v2249
    %v2258 = vsel %vm1455, %v2250, 0.0
    %v2259 = vsel %vm1455, %v2251, 0.0
    %v2260 = vadd.f32 %v2258, %v2259
    %v2261 = vsel %vm1455, %v2252, 0.0
    %v2262 = vadd.f32 %v2260, %v2261
    %v2263 = vsel %vm1455, %v2253, 0.0
    %v2264 = vadd.f32 %v2262, %v2263
    %v2265 = vsel %vm1455, %v2254, 0.0
    %v2266 = vadd.f32 %v2264, %v2265
    %v2267 = vsel %vm1455, %v2255, 0.0
    %v2268 = vadd.f32 %v2266, %v2267
    %v2269 = vsel %vm1455, %v2256, 0.0
    %v2270 = vadd.f32 %v2268, %v2269
    %v2271 = vsel %vm1455, %v2257, 0.0
    %v2272 = vadd.f32 %v2270, %v2271
    %v2273 = vrot.slane %v2272, 4
    %v2274 = vadd.f32 %v2272, %v2273
    %v2275 = vrot.slane %v2274, 2
    %v2276 = vadd.f32 %v2274, %v2275
    %v2277 = vrot.slane %v2276, 1
    %v2278 = vadd.f32 %v2276, %v2277
    %v2279 = vmul.f32 %v2250, %v2226
    %v2280 = vmul.f32 %v2251, %v2227
    %v2281 = vmul.f32 %v2252, %v2228
    %v2282 = vmul.f32 %v2253, %v2229
    %v2283 = vmul.f32 %v2254, %v2230
    %v2284 = vmul.f32 %v2255, %v2231
    %v2285 = vmul.f32 %v2256, %v2232
    %v2286 = vmul.f32 %v2257, %v2233
    %v2287 = vsel %vm1455, %v2279, 0.0
    %v2288 = vsel %vm1455, %v2280, 0.0
    %v2289 = vadd.f32 %v2287, %v2288
    %v2290 = vsel %vm1455, %v2281, 0.0
    %v2291 = vadd.f32 %v2289, %v2290
    %v2292 = vsel %vm1455, %v2282, 0.0
    %v2293 = vadd.f32 %v2291, %v2292
    %v2294 = vsel %vm1455, %v2283, 0.0
    %v2295 = vadd.f32 %v2293, %v2294
    %v2296 = vsel %vm1455, %v2284, 0.0
    %v2297 = vadd.f32 %v2295, %v2296
    %v2298 = vsel %vm1455, %v2285, 0.0
    %v2299 = vadd.f32 %v2297, %v2298
    %v2300 = vsel %vm1455, %v2286, 0.0
    %v2301 = vadd.f32 %v2299, %v2300
    %v2302 = vrot.slane %v2301, 4
    %v2303 = vadd.f32 %v2301, %v2302
    %v2304 = vrot.slane %v2303, 2
    %v2305 = vadd.f32 %v2303, %v2304
    %v2306 = vrot.slane %v2305, 1
    %v2307 = vadd.f32 %v2305, %v2306
    %v2308 = vsel %vm741, %v2278, %v2307
    %s2309 = scalar_lea.vmem [#allocation7], 576
    %v2310 = vld [vmem:[%s2309] sm:$0xff]
    %v2311 = vld [vmem:[%s2309 + $0x10] sm:$0xff]
    %v2312 = vld [vmem:[%s2309 + $0x20] sm:$0xff]
    %v2313 = vld [vmem:[%s2309 + $0x30] sm:$0xff]
    %v2314 = vld [vmem:[%s2309 + $0x40] sm:$0xff]
    %v2315 = vld [vmem:[%s2309 + $0x50] sm:$0xff]
    %v2316 = vld [vmem:[%s2309 + $0x60] sm:$0xff]
    %v2317 = vld [vmem:[%s2309 + $0x70] sm:$0xff]
    %v2318 = vld [vmem:[%s2309 + $0x80] sm:$0xff]
    %v2319 = vld [vmem:[%s2309 + $0x90] sm:$0xff]
    %v2320 = vld [vmem:[%s2309 + $0xa0] sm:$0xff]
    %v2321 = vld [vmem:[%s2309 + $0xb0] sm:$0xff]
    %v2322 = vld [vmem:[%s2309 + $0xc0] sm:$0xff]
    %v2323 = vld [vmem:[%s2309 + $0xd0] sm:$0xff]
    %v2324 = vld [vmem:[%s2309 + $0xe0] sm:$0xff]
    %v2326 = vsel %vm1455, %v2308, 0
    %2328 = vmatpush.msra.mxu0 0.0
    %2329 = vmatpush.msra.mxu0 %v2324
    %2330 = vmatpush.msra.mxu0 %v2323
    %2331 = vmatpush.msra.mxu0 %v2322
    %2332 = vmatpush.msra.mxu0 %v2321
    %2333 = vmatpush.msra.mxu0 %v2320
    %2334 = vmatpush.msra.mxu0 %v2319
    %2335 = vmatpush.msra.mxu0 %v2318
    %2336 = vmatpush.msra.mxu0 %v2317
    %2337 = vmatpush.msra.mxu0 %v2316
    %2338 = vmatpush.msra.mxu0 %v2315
    %2339 = vmatpush.msra.mxu0 %v2314
    %2340 = vmatpush.msra.mxu0 %v2313
    %2341 = vmatpush.msra.mxu0 %v2312
    %2342 = vmatpush.msra.mxu0 %v2311
    %2343 = vmatpush.msra.mxu0 %v2310
    %2344 = vmatmul.f32.gmra.mxu0 %v2326
    %v2345 = vpop.f32.mrf.mxu0
    %v2346 = vadd.f32 0.0, %v2345
    %2347 = vdwg.mxu0
    %v2348 = vmul.f32 %v2346, 0.00125
    %v2349 = vmul.f32 %v2348, %v2348
    %v2351 = vrot.slane %v2349, 7
    %v2353 = vsub.f32 %v2348, %v2351
    %v2354 = vmax.f32 %v2353, 0.0
    %s2355 = scalar_lea.vmem [#allocation8], 8
    %v2356 = vld [vmem:[%s2355] sm:$0x1]
    %v2357 = vadd.f32 %v2354, 1e-05
    %v2358 = vrsqrt.pop %v2357
    %v2359 = vmul.f32 %v2358, %v2357
    %v2360 = vmul.f32 %v2359, %v2358
    %v2361 = vmul.f32 0.5, %v2360
    %v2362 = vsub.f32 1.5, %v2361
    %v2363 = vmul.f32 %v2358, %v2362
    %vm2364 = vweird.f32 %v2357
    %vm2365 = vweird.f32 %v2358
    %vm2366 = vmor %vm2364, %vm2365
    %v2367 = vsel %vm2366, %v2358, %v2363
    %v2369 = vrot.slane %v2367, 7
    %v2370 = vrot.slane %v2369, 2
    %v2372 = vmul.f32 %v2356, %v2370
    %v2373 = vld [vmem:[%s2355 + $0x1] sm:$0x1]
    %v2374 = vmul.f32 %v2348, %v2372
    %v2375 = vsub.f32 %v2373, %v2374
    %v2376 = vperm.slane %v2372, 0
    %v2377 = vmul.f32 %v2226, %v2376
    %v2378 = vmul.f32 %v2227, %v2376
    %v2379 = vmul.f32 %v2228, %v2376
    %v2380 = vmul.f32 %v2229, %v2376
    %v2381 = vmul.f32 %v2230, %v2376
    %v2382 = vmul.f32 %v2231, %v2376
    %v2383 = vmul.f32 %v2232, %v2376
    %v2384 = vmul.f32 %v2233, %v2376
    %v2385 = vperm.slane %v2375, 0
    %v2386 = vadd.f32 %v2377, %v2385
    %v2387 = vadd.f32 %v2378, %v2385
    %v2388 = vadd.f32 %v2379, %v2385
    %v2389 = vadd.f32 %v2380, %v2385
    %v2390 = vadd.f32 %v2381, %v2385
    %v2391 = vadd.f32 %v2382, %v2385
    %v2392 = vadd.f32 %v2383, %v2385
    %v2393 = vadd.f32 %v2384, %v2385
    %v2394 = vmax.f32 %v2386, 0.0
    %v2395 = vmax.f32 %v2387, 0.0
    %v2396 = vmax.f32 %v2388, 0.0
    %v2397 = vmax.f32 %v2389, 0.0
    %v2398 = vmax.f32 %v2390, 0.0
    %v2399 = vmax.f32 %v2391, 0.0
    %v2400 = vmax.f32 %v2392, 0.0
    %v2401 = vmax.f32 %v2393, 0.0
    %v2402 = vpack.c.bf16 %v2395, %v2394
    %v2403 = vpack.c.bf16 %v2397, %v2396
    %v2404 = vpack.c.bf16 %v2399, %v2398
    %v2405 = vpack.c.bf16 %v2401, %v2400
    %s2406 = scalar_lea.vmem [#allocation5], 2160
    %v2407 = vld [vmem:[%s2406] sm:$0xf]
    %v2408 = vld [vmem:[%s2406 + $0x8] sm:$0xf]
    %v2409 = vld [vmem:[%s2406 + $0x10] sm:$0xf]
    %v2410 = vld [vmem:[%s2406 + $0x18] sm:$0xf]
    %v2411 = vld [vmem:[%s2406 + $0x20] sm:$0xf]
    %v2412 = vld [vmem:[%s2406 + $0x28] sm:$0xf]
    %v2413 = vld [vmem:[%s2406 + $0x30] sm:$0xf]
    %v2414 = vld [vmem:[%s2406 + $0x38] sm:$0xf]
    %v2415 = vld [vmem:[%s2406 + $0x40] sm:$0xf]
    %v2416 = vld [vmem:[%s2406 + $0x48] sm:$0xf]
    %v2417 = vld [vmem:[%s2406 + $0x50] sm:$0xf]
    %v2418 = vld [vmem:[%s2406 + $0x58] sm:$0xf]
    %v2419 = vld [vmem:[%s2406 + $0x60] sm:$0xf]
    %v2420 = vld [vmem:[%s2406 + $0x68] sm:$0xf]
    %v2421 = vld [vmem:[%s2406 + $0x70] sm:$0xf]
    %v2422 = vrot.slane %v2394, 1
    %v2423 = vrot.slane %v2395, 1
    %v2424 = vrot.slane %v2396, 1
    %v2425 = vrot.slane %v2397, 1
    %v2426 = vrot.slane %v2398, 1
    %v2427 = vrot.slane %v2399, 1
    %v2428 = vrot.slane %v2400, 1
    %v2429 = vrot.slane %v2401, 1
    %v2430 = vsel %vm280, %v2428, %v2429
    %v2431 = vsel %vm280, %v2427, %v2428
    %v2432 = vsel %vm280, %v2426, %v2427
    %v2433 = vsel %vm280, %v2425, %v2426
    %v2434 = vsel %vm280, %v2424, %v2425
    %v2435 = vsel %vm280, %v2423, %v2424
    %v2436 = vsel %vm280, %v2422, %v2423
    %v2437 = vsel %vm280, %v2429, %v2422
    %v2438 = vpack.c.bf16 %v2435, %v2436
    %v2439 = vpack.c.bf16 %v2433, %v2434
    %v2440 = vpack.c.bf16 %v2431, %v2432
    %v2441 = vpack.c.bf16 %v2437, %v2430
    %s2442 = scalar_lea.vmem [#allocation5], 2304
    %v2443 = vld [vmem:[%s2442] sm:$0xf]
    %v2444 = vld [vmem:[%s2442 + $0x8] sm:$0xf]
    %v2445 = vld [vmem:[%s2442 + $0x10] sm:$0xf]
    %v2446 = vld [vmem:[%s2442 + $0x18] sm:$0xf]
    %v2447 = vld [vmem:[%s2442 + $0x20] sm:$0xf]
    %v2448 = vld [vmem:[%s2442 + $0x28] sm:$0xf]
    %v2449 = vld [vmem:[%s2442 + $0x30] sm:$0xf]
    %v2450 = vld [vmem:[%s2442 + $0x38] sm:$0xf]
    %v2451 = vld [vmem:[%s2442 + $0x40] sm:$0xf]
    %v2452 = vld [vmem:[%s2442 + $0x48] sm:$0xf]
    %v2453 = vld [vmem:[%s2442 + $0x50] sm:$0xf]
    %v2454 = vld [vmem:[%s2442 + $0x58] sm:$0xf]
    %v2455 = vld [vmem:[%s2442 + $0x60] sm:$0xf]
    %v2456 = vld [vmem:[%s2442 + $0x68] sm:$0xf]
    %v2457 = vld [vmem:[%s2442 + $0x70] sm:$0xf]
    %v2473 = vunpack.c.l.b16 %v2443
    %v2474 = vunpack.c.l.b16 %v2444
    %v2475 = vunpack.c.l.b16 %v2445
    %v2476 = vunpack.c.l.b16 %v2446
    %v2477 = vunpack.c.l.b16 %v2447
    %v2478 = vunpack.c.l.b16 %v2448
    %v2479 = vunpack.c.l.b16 %v2449
    %v2480 = vunpack.c.l.b16 %v2450
    %v2481 = vunpack.c.l.b16 %v2451
    %v2482 = vunpack.c.l.b16 %v2452
    %v2483 = vunpack.c.l.b16 %v2453
    %v2484 = vunpack.c.l.b16 %v2454
    %v2485 = vunpack.c.l.b16 %v2455
    %v2486 = vunpack.c.l.b16 %v2456
    %v2487 = vunpack.c.l.b16 %v2457
    %v2488 = vpack.c.b16 %v2474, %v2473
    %v2489 = vpack.c.b16 %v2476, %v2475
    %v2490 = vpack.c.b16 %v2478, %v2477
    %v2491 = vpack.c.b16 %v2480, %v2479
    %v2492 = vpack.c.b16 %v2482, %v2481
    %v2493 = vpack.c.b16 %v2484, %v2483
    %v2494 = vpack.c.b16 %v2486, %v2485
    %v2495 = vpack.c.b16 %v2487, %v2487
    %v2504 = vsel %vm1455, %v2438, 0
    %v2507 = vsel %vm1455, %v2439, 0
    %v2510 = vsel %vm1455, %v2440, 0
    %v2513 = vsel %vm1455, %v2441, 0
    %v2516 = vsel %vm1713, %v2495, 0
    %2518 = vmatpush.bf16.msra.mxu0 %v2516
    %2519 = vmatpush.bf16.msra.mxu0 %v2494
    %2520 = vmatpush.bf16.msra.mxu0 %v2493
    %2521 = vmatpush.bf16.msra.mxu0 %v2492
    %2522 = vmatpush.bf16.msra.mxu0 %v2491
    %2523 = vmatpush.bf16.msra.mxu0 %v2490
    %2524 = vmatpush.bf16.msra.mxu0 %v2489
    %2525 = vmatpush.bf16.msra.mxu0 %v2488
    %2526 = vmatmul.bf16.gmra.mxu0 %v2504
    %v2527 = vpop.f32.mrf.mxu0
    %v2528 = vadd.f32 0.0, %v2527
    %v2529 = vpop.f32.mrf.mxu0
    %v2530 = vadd.f32 0.0, %v2529
    %2531 = vmatmul.bf16.gmra.mxu0 %v2507
    %v2532 = vpop.f32.mrf.mxu0
    %v2533 = vadd.f32 0.0, %v2532
    %v2534 = vpop.f32.mrf.mxu0
    %v2535 = vadd.f32 0.0, %v2534
    %2536 = vmatmul.bf16.gmra.mxu0 %v2510
    %v2537 = vpop.f32.mrf.mxu0
    %v2538 = vadd.f32 0.0, %v2537
    %v2539 = vpop.f32.mrf.mxu0
    %v2540 = vadd.f32 0.0, %v2539
    %2541 = vmatmul.bf16.gmra.mxu0 %v2513
    %v2542 = vpop.f32.mrf.mxu0
    %v2543 = vadd.f32 0.0, %v2542
    %v2544 = vpop.f32.mrf.mxu0
    %v2545 = vadd.f32 0.0, %v2544
    %2546 = vdwg.mxu0
    %v2562 = vunpack.c.l.b16 %v2407
    %v2563 = vunpack.c.l.b16 %v2408
    %v2564 = vunpack.c.l.b16 %v2409
    %v2565 = vunpack.c.l.b16 %v2410
    %v2566 = vunpack.c.l.b16 %v2411
    %v2567 = vunpack.c.l.b16 %v2412
    %v2568 = vunpack.c.l.b16 %v2413
    %v2569 = vunpack.c.l.b16 %v2414
    %v2570 = vunpack.c.l.b16 %v2415
    %v2571 = vunpack.c.l.b16 %v2416
    %v2572 = vunpack.c.l.b16 %v2417
    %v2573 = vunpack.c.l.b16 %v2418
    %v2574 = vunpack.c.l.b16 %v2419
    %v2575 = vunpack.c.l.b16 %v2420
    %v2576 = vunpack.c.l.b16 %v2421
    %v2577 = vpack.c.b16 %v2563, %v2562
    %v2578 = vpack.c.b16 %v2565, %v2564
    %v2579 = vpack.c.b16 %v2567, %v2566
    %v2580 = vpack.c.b16 %v2569, %v2568
    %v2581 = vpack.c.b16 %v2571, %v2570
    %v2582 = vpack.c.b16 %v2573, %v2572
    %v2583 = vpack.c.b16 %v2575, %v2574
    %v2584 = vpack.c.b16 %v2576, %v2576
    %v2593 = vsel %vm1455, %v2402, 0
    %v2596 = vsel %vm1455, %v2403, 0
    %v2599 = vsel %vm1455, %v2404, 0
    %v2602 = vsel %vm1455, %v2405, 0
    %v2605 = vsel %vm1713, %v2584, 0
    %2607 = vmatpush.bf16.msra.mxu0 %v2605
    %2608 = vmatpush.bf16.msra.mxu0 %v2583
    %2609 = vmatpush.bf16.msra.mxu0 %v2582
    %2610 = vmatpush.bf16.msra.mxu0 %v2581
    %2611 = vmatpush.bf16.msra.mxu0 %v2580
    %2612 = vmatpush.bf16.msra.mxu0 %v2579
    %2613 = vmatpush.bf16.msra.mxu0 %v2578
    %2614 = vmatpush.bf16.msra.mxu0 %v2577
    %2615 = vmatmul.bf16.gmra.mxu0 %v2593
    %v2616 = vpop.f32.mrf.mxu0
    %v2617 = vadd.f32 %v2528, %v2616
    %v2618 = vpop.f32.mrf.mxu0
    %v2619 = vadd.f32 %v2530, %v2618
    %2620 = vmatmul.bf16.gmra.mxu0 %v2596
    %v2621 = vpop.f32.mrf.mxu0
    %v2622 = vadd.f32 %v2533, %v2621
    %v2623 = vpop.f32.mrf.mxu0
    %v2624 = vadd.f32 %v2535, %v2623
    %2625 = vmatmul.bf16.gmra.mxu0 %v2599
    %v2626 = vpop.f32.mrf.mxu0
    %v2627 = vadd.f32 %v2538, %v2626
    %v2628 = vpop.f32.mrf.mxu0
    %v2629 = vadd.f32 %v2540, %v2628
    %2630 = vmatmul.bf16.gmra.mxu0 %v2602
    %v2631 = vpop.f32.mrf.mxu0
    %v2632 = vadd.f32 %v2543, %v2631
    %v2633 = vpop.f32.mrf.mxu0
    %v2634 = vadd.f32 %v2545, %v2633
    %2635 = vdwg.mxu0
    %v2636 = vrot.slane %v2394, 2
    %v2637 = vrot.slane %v2395, 2
    %v2638 = vrot.slane %v2396, 2
    %v2639 = vrot.slane %v2397, 2
    %v2640 = vrot.slane %v2398, 2
    %v2641 = vrot.slane %v2399, 2
    %v2642 = vrot.slane %v2400, 2
    %v2643 = vrot.slane %v2401, 2
    %v2644 = vsel %vm413, %v2642, %v2643
    %v2645 = vsel %vm413, %v2641, %v2642
    %v2646 = vsel %vm413, %v2640, %v2641
    %v2647 = vsel %vm413, %v2639, %v2640
    %v2648 = vsel %vm413, %v2638, %v2639
    %v2649 = vsel %vm413, %v2637, %v2638
    %v2650 = vsel %vm413, %v2636, %v2637
    %v2651 = vsel %vm413, %v2643, %v2636
    %v2652 = vpack.c.bf16 %v2649, %v2650
    %v2653 = vpack.c.bf16 %v2647, %v2648
    %v2654 = vpack.c.bf16 %v2645, %v2646
    %v2655 = vpack.c.bf16 %v2651, %v2644
    %s2656 = scalar_lea.vmem [#allocation5], 2448
    %v2657 = vld [vmem:[%s2656] sm:$0xf]
    %v2658 = vld [vmem:[%s2656 + $0x8] sm:$0xf]
    %v2659 = vld [vmem:[%s2656 + $0x10] sm:$0xf]
    %v2660 = vld [vmem:[%s2656 + $0x18] sm:$0xf]
    %v2661 = vld [vmem:[%s2656 + $0x20] sm:$0xf]
    %v2662 = vld [vmem:[%s2656 + $0x28] sm:$0xf]
    %v2663 = vld [vmem:[%s2656 + $0x30] sm:$0xf]
    %v2664 = vld [vmem:[%s2656 + $0x38] sm:$0xf]
    %v2665 = vld [vmem:[%s2656 + $0x40] sm:$0xf]
    %v2666 = vld [vmem:[%s2656 + $0x48] sm:$0xf]
    %v2667 = vld [vmem:[%s2656 + $0x50] sm:$0xf]
    %v2668 = vld [vmem:[%s2656 + $0x58] sm:$0xf]
    %v2669 = vld [vmem:[%s2656 + $0x60] sm:$0xf]
    %v2670 = vld [vmem:[%s2656 + $0x68] sm:$0xf]
    %v2671 = vld [vmem:[%s2656 + $0x70] sm:$0xf]
    %v2687 = vunpack.c.l.b16 %v2657
    %v2688 = vunpack.c.l.b16 %v2658
    %v2689 = vunpack.c.l.b16 %v2659
    %v2690 = vunpack.c.l.b16 %v2660
    %v2691 = vunpack.c.l.b16 %v2661
    %v2692 = vunpack.c.l.b16 %v2662
    %v2693 = vunpack.c.l.b16 %v2663
    %v2694 = vunpack.c.l.b16 %v2664
    %v2695 = vunpack.c.l.b16 %v2665
    %v2696 = vunpack.c.l.b16 %v2666
    %v2697 = vunpack.c.l.b16 %v2667
    %v2698 = vunpack.c.l.b16 %v2668
    %v2699 = vunpack.c.l.b16 %v2669
    %v2700 = vunpack.c.l.b16 %v2670
    %v2701 = vunpack.c.l.b16 %v2671
    %v2702 = vpack.c.b16 %v2688, %v2687
    %v2703 = vpack.c.b16 %v2690, %v2689
    %v2704 = vpack.c.b16 %v2692, %v2691
    %v2705 = vpack.c.b16 %v2694, %v2693
    %v2706 = vpack.c.b16 %v2696, %v2695
    %v2707 = vpack.c.b16 %v2698, %v2697
    %v2708 = vpack.c.b16 %v2700, %v2699
    %v2709 = vpack.c.b16 %v2701, %v2701
    %v2718 = vsel %vm1455, %v2652, 0
    %v2721 = vsel %vm1455, %v2653, 0
    %v2724 = vsel %vm1455, %v2654, 0
    %v2727 = vsel %vm1455, %v2655, 0
    %v2730 = vsel %vm1713, %v2709, 0
    %2732 = vmatpush.bf16.msra.mxu0 %v2730
    %2733 = vmatpush.bf16.msra.mxu0 %v2708
    %2734 = vmatpush.bf16.msra.mxu0 %v2707
    %2735 = vmatpush.bf16.msra.mxu0 %v2706
    %2736 = vmatpush.bf16.msra.mxu0 %v2705
    %2737 = vmatpush.bf16.msra.mxu0 %v2704
    %2738 = vmatpush.bf16.msra.mxu0 %v2703
    %2739 = vmatpush.bf16.msra.mxu0 %v2702
    %2740 = vmatmul.bf16.gmra.mxu0 %v2718
    %v2741 = vpop.f32.mrf.mxu0
    %v2742 = vadd.f32 0.0, %v2741
    %v2743 = vpop.f32.mrf.mxu0
    %v2744 = vadd.f32 0.0, %v2743
    %2745 = vmatmul.bf16.gmra.mxu0 %v2721
    %v2746 = vpop.f32.mrf.mxu0
    %v2747 = vadd.f32 0.0, %v2746
    %v2748 = vpop.f32.mrf.mxu0
    %v2749 = vadd.f32 0.0, %v2748
    %2750 = vmatmul.bf16.gmra.mxu0 %v2724
    %v2751 = vpop.f32.mrf.mxu0
    %v2752 = vadd.f32 0.0, %v2751
    %v2753 = vpop.f32.mrf.mxu0
    %v2754 = vadd.f32 0.0, %v2753
    %2755 = vmatmul.bf16.gmra.mxu0 %v2727
    %v2756 = vpop.f32.mrf.mxu0
    %v2757 = vadd.f32 0.0, %v2756
    %v2758 = vpop.f32.mrf.mxu0
    %v2759 = vadd.f32 0.0, %v2758
    %2760 = vdwg.mxu0
    %v2761 = vadd.f32 %v2617, %v2742
    %v2762 = vadd.f32 %v2619, %v2744
    %v2763 = vadd.f32 %v2622, %v2747
    %v2764 = vadd.f32 %v2624, %v2749
    %v2765 = vadd.f32 %v2627, %v2752
    %v2766 = vadd.f32 %v2629, %v2754
    %v2767 = vadd.f32 %v2632, %v2757
    %v2768 = vadd.f32 %v2634, %v2759
    %v2769 = vrot.slane %v2394, 3
    %v2770 = vrot.slane %v2395, 3
    %v2771 = vrot.slane %v2396, 3
    %v2772 = vrot.slane %v2397, 3
    %v2773 = vrot.slane %v2398, 3
    %v2774 = vrot.slane %v2399, 3
    %v2775 = vrot.slane %v2400, 3
    %v2776 = vrot.slane %v2401, 3
    %v2777 = vsel %vm500, %v2775, %v2776
    %v2778 = vsel %vm500, %v2774, %v2775
    %v2779 = vsel %vm500, %v2773, %v2774
    %v2780 = vsel %vm500, %v2772, %v2773
    %v2781 = vsel %vm500, %v2771, %v2772
    %v2782 = vsel %vm500, %v2770, %v2771
    %v2783 = vsel %vm500, %v2769, %v2770
    %v2784 = vsel %vm500, %v2776, %v2769
    %v2785 = vpack.c.bf16 %v2782, %v2783
    %v2786 = vpack.c.bf16 %v2780, %v2781
    %v2787 = vpack.c.bf16 %v2778, %v2779
    %v2788 = vpack.c.bf16 %v2784, %v2777
    %s2789 = scalar_lea.vmem [#allocation5], 2592
    %v2790 = vld [vmem:[%s2789] sm:$0xf]
    %v2791 = vld [vmem:[%s2789 + $0x8] sm:$0xf]
    %v2792 = vld [vmem:[%s2789 + $0x10] sm:$0xf]
    %v2793 = vld [vmem:[%s2789 + $0x18] sm:$0xf]
    %v2794 = vld [vmem:[%s2789 + $0x20] sm:$0xf]
    %v2795 = vld [vmem:[%s2789 + $0x28] sm:$0xf]
    %v2796 = vld [vmem:[%s2789 + $0x30] sm:$0xf]
    %v2797 = vld [vmem:[%s2789 + $0x38] sm:$0xf]
    %v2798 = vld [vmem:[%s2789 + $0x40] sm:$0xf]
    %v2799 = vld [vmem:[%s2789 + $0x48] sm:$0xf]
    %v2800 = vld [vmem:[%s2789 + $0x50] sm:$0xf]
    %v2801 = vld [vmem:[%s2789 + $0x58] sm:$0xf]
    %v2802 = vld [vmem:[%s2789 + $0x60] sm:$0xf]
    %v2803 = vld [vmem:[%s2789 + $0x68] sm:$0xf]
    %v2804 = vld [vmem:[%s2789 + $0x70] sm:$0xf]
    %v2820 = vunpack.c.l.b16 %v2790
    %v2821 = vunpack.c.l.b16 %v2791
    %v2822 = vunpack.c.l.b16 %v2792
    %v2823 = vunpack.c.l.b16 %v2793
    %v2824 = vunpack.c.l.b16 %v2794
    %v2825 = vunpack.c.l.b16 %v2795
    %v2826 = vunpack.c.l.b16 %v2796
    %v2827 = vunpack.c.l.b16 %v2797
    %v2828 = vunpack.c.l.b16 %v2798
    %v2829 = vunpack.c.l.b16 %v2799
    %v2830 = vunpack.c.l.b16 %v2800
    %v2831 = vunpack.c.l.b16 %v2801
    %v2832 = vunpack.c.l.b16 %v2802
    %v2833 = vunpack.c.l.b16 %v2803
    %v2834 = vunpack.c.l.b16 %v2804
    %v2835 = vpack.c.b16 %v2821, %v2820
    %v2836 = vpack.c.b16 %v2823, %v2822
    %v2837 = vpack.c.b16 %v2825, %v2824
    %v2838 = vpack.c.b16 %v2827, %v2826
    %v2839 = vpack.c.b16 %v2829, %v2828
    %v2840 = vpack.c.b16 %v2831, %v2830
    %v2841 = vpack.c.b16 %v2833, %v2832
    %v2842 = vpack.c.b16 %v2834, %v2834
    %v2851 = vsel %vm1455, %v2785, 0
    %v2854 = vsel %vm1455, %v2786, 0
    %v2857 = vsel %vm1455, %v2787, 0
    %v2860 = vsel %vm1455, %v2788, 0
    %v2863 = vsel %vm1713, %v2842, 0
    %2865 = vmatpush.bf16.msra.mxu0 %v2863
    %2866 = vmatpush.bf16.msra.mxu0 %v2841
    %2867 = vmatpush.bf16.msra.mxu0 %v2840
    %2868 = vmatpush.bf16.msra.mxu0 %v2839
    %2869 = vmatpush.bf16.msra.mxu0 %v2838
    %2870 = vmatpush.bf16.msra.mxu0 %v2837
    %2871 = vmatpush.bf16.msra.mxu0 %v2836
    %2872 = vmatpush.bf16.msra.mxu0 %v2835
    %2873 = vmatmul.bf16.gmra.mxu0 %v2851
    %v2874 = vpop.f32.mrf.mxu0
    %v2875 = vadd.f32 0.0, %v2874
    %v2876 = vpop.f32.mrf.mxu0
    %v2877 = vadd.f32 0.0, %v2876
    %2878 = vmatmul.bf16.gmra.mxu0 %v2854
    %v2879 = vpop.f32.mrf.mxu0
    %v2880 = vadd.f32 0.0, %v2879
    %v2881 = vpop.f32.mrf.mxu0
    %v2882 = vadd.f32 0.0, %v2881
    %2883 = vmatmul.bf16.gmra.mxu0 %v2857
    %v2884 = vpop.f32.mrf.mxu0
    %v2885 = vadd.f32 0.0, %v2884
    %v2886 = vpop.f32.mrf.mxu0
    %v2887 = vadd.f32 0.0, %v2886
    %2888 = vmatmul.bf16.gmra.mxu0 %v2860
    %v2889 = vpop.f32.mrf.mxu0
    %v2890 = vadd.f32 0.0, %v2889
    %v2891 = vpop.f32.mrf.mxu0
    %v2892 = vadd.f32 0.0, %v2891
    %2893 = vdwg.mxu0
    %v2894 = vadd.f32 %v2761, %v2875
    %v2895 = vadd.f32 %v2762, %v2877
    %v2896 = vadd.f32 %v2763, %v2880
    %v2897 = vadd.f32 %v2764, %v2882
    %v2898 = vadd.f32 %v2765, %v2885
    %v2899 = vadd.f32 %v2766, %v2887
    %v2900 = vadd.f32 %v2767, %v2890
    %v2901 = vadd.f32 %v2768, %v2892
    %v2902 = vrot.slane %v2394, 4
    %v2903 = vrot.slane %v2395, 4
    %v2904 = vrot.slane %v2396, 4
    %v2905 = vrot.slane %v2397, 4
    %v2906 = vrot.slane %v2398, 4
    %v2907 = vrot.slane %v2399, 4
    %v2908 = vrot.slane %v2400, 4
    %v2909 = vrot.slane %v2401, 4
    %v2910 = vsel %vm587, %v2908, %v2909
    %v2911 = vsel %vm587, %v2907, %v2908
    %v2912 = vsel %vm587, %v2906, %v2907
    %v2913 = vsel %vm587, %v2905, %v2906
    %v2914 = vsel %vm587, %v2904, %v2905
    %v2915 = vsel %vm587, %v2903, %v2904
    %v2916 = vsel %vm587, %v2902, %v2903
    %v2917 = vsel %vm587, %v2909, %v2902
    %v2918 = vpack.c.bf16 %v2915, %v2916
    %v2919 = vpack.c.bf16 %v2913, %v2914
    %v2920 = vpack.c.bf16 %v2911, %v2912
    %v2921 = vpack.c.bf16 %v2917, %v2910
    %s2922 = scalar_lea.vmem [#allocation5], 2736
    %v2923 = vld [vmem:[%s2922] sm:$0xf]
    %v2924 = vld [vmem:[%s2922 + $0x8] sm:$0xf]
    %v2925 = vld [vmem:[%s2922 + $0x10] sm:$0xf]
    %v2926 = vld [vmem:[%s2922 + $0x18] sm:$0xf]
    %v2927 = vld [vmem:[%s2922 + $0x20] sm:$0xf]
    %v2928 = vld [vmem:[%s2922 + $0x28] sm:$0xf]
    %v2929 = vld [vmem:[%s2922 + $0x30] sm:$0xf]
    %v2930 = vld [vmem:[%s2922 + $0x38] sm:$0xf]
    %v2931 = vld [vmem:[%s2922 + $0x40] sm:$0xf]
    %v2932 = vld [vmem:[%s2922 + $0x48] sm:$0xf]
    %v2933 = vld [vmem:[%s2922 + $0x50] sm:$0xf]
    %v2934 = vld [vmem:[%s2922 + $0x58] sm:$0xf]
    %v2935 = vld [vmem:[%s2922 + $0x60] sm:$0xf]
    %v2936 = vld [vmem:[%s2922 + $0x68] sm:$0xf]
    %v2937 = vld [vmem:[%s2922 + $0x70] sm:$0xf]
    %v2953 = vunpack.c.l.b16 %v2923
    %v2954 = vunpack.c.l.b16 %v2924
    %v2955 = vunpack.c.l.b16 %v2925
    %v2956 = vunpack.c.l.b16 %v2926
    %v2957 = vunpack.c.l.b16 %v2927
    %v2958 = vunpack.c.l.b16 %v2928
    %v2959 = vunpack.c.l.b16 %v2929
    %v2960 = vunpack.c.l.b16 %v2930
    %v2961 = vunpack.c.l.b16 %v2931
    %v2962 = vunpack.c.l.b16 %v2932
    %v2963 = vunpack.c.l.b16 %v2933
    %v2964 = vunpack.c.l.b16 %v2934
    %v2965 = vunpack.c.l.b16 %v2935
    %v2966 = vunpack.c.l.b16 %v2936
    %v2967 = vunpack.c.l.b16 %v2937
    %v2968 = vpack.c.b16 %v2954, %v2953
    %v2969 = vpack.c.b16 %v2956, %v2955
    %v2970 = vpack.c.b16 %v2958, %v2957
    %v2971 = vpack.c.b16 %v2960, %v2959
    %v2972 = vpack.c.b16 %v2962, %v2961
    %v2973 = vpack.c.b16 %v2964, %v2963
    %v2974 = vpack.c.b16 %v2966, %v2965
    %v2975 = vpack.c.b16 %v2967, %v2967
    %v2984 = vsel %vm1455, %v2918, 0
    %v2987 = vsel %vm1455, %v2919, 0
    %v2990 = vsel %vm1455, %v2920, 0
    %v2993 = vsel %vm1455, %v2921, 0
    %v2996 = vsel %vm1713, %v2975, 0
    %2998 = vmatpush.bf16.msra.mxu0 %v2996
    %2999 = vmatpush.bf16.msra.mxu0 %v2974
    %3000 = vmatpush.bf16.msra.mxu0 %v2973
    %3001 = vmatpush.bf16.msra.mxu0 %v2972
    %3002 = vmatpush.bf16.msra.mxu0 %v2971
    %3003 = vmatpush.bf16.msra.mxu0 %v2970
    %3004 = vmatpush.bf16.msra.mxu0 %v2969
    %3005 = vmatpush.bf16.msra.mxu0 %v2968
    %3006 = vmatmul.bf16.gmra.mxu0 %v2984
    %v3007 = vpop.f32.mrf.mxu0
    %v3008 = vadd.f32 0.0, %v3007
    %v3009 = vpop.f32.mrf.mxu0
    %v3010 = vadd.f32 0.0, %v3009
    %3011 = vmatmul.bf16.gmra.mxu0 %v2987
    %v3012 = vpop.f32.mrf.mxu0
    %v3013 = vadd.f32 0.0, %v3012
    %v3014 = vpop.f32.mrf.mxu0
    %v3015 = vadd.f32 0.0, %v3014
    %3016 = vmatmul.bf16.gmra.mxu0 %v2990
    %v3017 = vpop.f32.mrf.mxu0
    %v3018 = vadd.f32 0.0, %v3017
    %v3019 = vpop.f32.mrf.mxu0
    %v3020 = vadd.f32 0.0, %v3019
    %3021 = vmatmul.bf16.gmra.mxu0 %v2993
    %v3022 = vpop.f32.mrf.mxu0
    %v3023 = vadd.f32 0.0, %v3022
    %v3024 = vpop.f32.mrf.mxu0
    %v3025 = vadd.f32 0.0, %v3024
    %3026 = vdwg.mxu0
    %v3027 = vadd.f32 %v2894, %v3008
    %v3028 = vadd.f32 %v2895, %v3010
    %v3029 = vadd.f32 %v2896, %v3013
    %v3030 = vadd.f32 %v2897, %v3015
    %v3031 = vadd.f32 %v2898, %v3018
    %v3032 = vadd.f32 %v2899, %v3020
    %v3033 = vadd.f32 %v2900, %v3023
    %v3034 = vadd.f32 %v2901, %v3025
    %vm3035 = vcmp.lt.s32.totalorder %v232, 16
    %vm3036 = vcmp.lt.s32.totalorder %v233, 16
    %vm3037 = vcmp.lt.s32.totalorder %v234, 16
    %vm3038 = vcmp.lt.s32.totalorder %v235, 16
    %vm3039 = vcmp.lt.s32.totalorder %v236, 16
    %vm3040 = vcmp.lt.s32.totalorder %v237, 16
    %vm3041 = vcmp.lt.s32.totalorder %v238, 16
    %vm3042 = vcmp.lt.s32.totalorder %v239, 16
    %v3043 = vsel %vm3035, 1.0, 0.0
    %v3044 = vsel %vm3036, 1.0, 0.0
    %v3045 = vsel %vm3037, 1.0, 0.0
    %v3046 = vsel %vm3038, 1.0, 0.0
    %v3047 = vsel %vm3039, 1.0, 0.0
    %v3048 = vsel %vm3040, 1.0, 0.0
    %v3049 = vsel %vm3041, 1.0, 0.0
    %v3050 = vsel %vm3042, 1.0, 0.0
    %v3051 = vmul.f32 %v3027, %v3043
    %v3052 = vmul.f32 %v3028, %v3044
    %v3053 = vmul.f32 %v3029, %v3045
    %v3054 = vmul.f32 %v3030, %v3046
    %v3055 = vmul.f32 %v3031, %v3047
    %v3056 = vmul.f32 %v3032, %v3048
    %v3057 = vmul.f32 %v3033, %v3049
    %v3058 = vmul.f32 %v3034, %v3050
    %v3059 = vadd.f32 %v3051, %v3052
    %v3060 = vadd.f32 %v3059, %v3053
    %v3061 = vadd.f32 %v3060, %v3054
    %v3062 = vadd.f32 %v3061, %v3055
    %v3063 = vadd.f32 %v3062, %v3056
    %v3064 = vadd.f32 %v3063, %v3057
    %v3065 = vadd.f32 %v3064, %v3058
    %v3066 = vrot.slane %v3065, 4
    %v3067 = vadd.f32 %v3065, %v3066
    %v3068 = vrot.slane %v3067, 2
    %v3069 = vadd.f32 %v3067, %v3068
    %v3070 = vrot.slane %v3069, 1
    %v3071 = vadd.f32 %v3069, %v3070
    %v3072 = vmul.f32 %v3051, %v3027
    %v3073 = vmul.f32 %v3052, %v3028
    %v3074 = vmul.f32 %v3053, %v3029
    %v3075 = vmul.f32 %v3054, %v3030
    %v3076 = vmul.f32 %v3055, %v3031
    %v3077 = vmul.f32 %v3056, %v3032
    %v3078 = vmul.f32 %v3057, %v3033
    %v3079 = vmul.f32 %v3058, %v3034
    %v3080 = vadd.f32 %v3072, %v3073
    %v3081 = vadd.f32 %v3080, %v3074
    %v3082 = vadd.f32 %v3081, %v3075
    %v3083 = vadd.f32 %v3082, %v3076
    %v3084 = vadd.f32 %v3083, %v3077
    %v3085 = vadd.f32 %v3084, %v3078
    %v3086 = vadd.f32 %v3085, %v3079
    %v3087 = vrot.slane %v3086, 4
    %v3088 = vadd.f32 %v3086, %v3087
    %v3089 = vrot.slane %v3088, 2
    %v3090 = vadd.f32 %v3088, %v3089
    %v3091 = vrot.slane %v3090, 1
    %v3092 = vadd.f32 %v3090, %v3091
    %v3093 = vsel %vm741, %v3071, %v3092
    %s3094 = scalar_lea.vmem [#allocation7], 864
    %v3095 = vld [vmem:[%s3094] sm:$0xff]
    %v3096 = vld [vmem:[%s3094 + $0x10] sm:$0xff]
    %v3097 = vld [vmem:[%s3094 + $0x20] sm:$0xff]
    %v3098 = vld [vmem:[%s3094 + $0x30] sm:$0xff]
    %v3099 = vld [vmem:[%s3094 + $0x40] sm:$0xff]
    %v3100 = vld [vmem:[%s3094 + $0x50] sm:$0xff]
    %v3101 = vld [vmem:[%s3094 + $0x60] sm:$0xff]
    %v3102 = vld [vmem:[%s3094 + $0x70] sm:$0xff]
    %v3103 = vld [vmem:[%s3094 + $0x80] sm:$0xff]
    %v3104 = vld [vmem:[%s3094 + $0x90] sm:$0xff]
    %v3105 = vld [vmem:[%s3094 + $0xa0] sm:$0xff]
    %v3106 = vld [vmem:[%s3094 + $0xb0] sm:$0xff]
    %v3107 = vld [vmem:[%s3094 + $0xc0] sm:$0xff]
    %v3108 = vld [vmem:[%s3094 + $0xd0] sm:$0xff]
    %v3109 = vld [vmem:[%s3094 + $0xe0] sm:$0xff]
    %v3110 = vld [vmem:[%s3094 + $0xf0] sm:$0xff]
    %3111 = vmatpush.msra.mxu0 %v3110
    %3112 = vmatpush.msra.mxu0 %v3109
    %3113 = vmatpush.msra.mxu0 %v3108
    %3114 = vmatpush.msra.mxu0 %v3107
    %3115 = vmatpush.msra.mxu0 %v3106
    %3116 = vmatpush.msra.mxu0 %v3105
    %3117 = vmatpush.msra.mxu0 %v3104
    %3118 = vmatpush.msra.mxu0 %v3103
    %3119 = vmatpush.msra.mxu0 %v3102
    %3120 = vmatpush.msra.mxu0 %v3101
    %3121 = vmatpush.msra.mxu0 %v3100
    %3122 = vmatpush.msra.mxu0 %v3099
    %3123 = vmatpush.msra.mxu0 %v3098
    %3124 = vmatpush.msra.mxu0 %v3097
    %3125 = vmatpush.msra.mxu0 %v3096
    %3126 = vmatpush.msra.mxu0 %v3095
    %3127 = vmatmul.f32.gmra.mxu0 %v3093
    %v3128 = vpop.f32.mrf.mxu0
    %v3129 = vadd.f32 0.0, %v3128
    %3130 = vdwg.mxu0
    %v3131 = vmul.f32 %v3129, 0.001953125
    %v3132 = vmul.f32 %v3131, %v3131
    %v3134 = vrot.slane %v3132, 7
    %v3136 = vsub.f32 %v3131, %v3134
    %v3137 = vmax.f32 %v3136, 0.0
    %s3138 = scalar_lea.vmem [#allocation8], 12
    %v3139 = vld [vmem:[%s3138] sm:$0x1]
    %v3140 = vadd.f32 %v3137, 1e-05
    %v3141 = vrsqrt.pop %v3140
    %v3142 = vmul.f32 %v3141, %v3140
    %v3143 = vmul.f32 %v3142, %v3141
    %v3144 = vmul.f32 0.5, %v3143
    %v3145 = vsub.f32 1.5, %v3144
    %v3146 = vmul.f32 %v3141, %v3145
    %vm3147 = vweird.f32 %v3140
    %vm3148 = vweird.f32 %v3141
    %vm3149 = vmor %vm3147, %vm3148
    %v3150 = vsel %vm3149, %v3141, %v3146
    %v3152 = vrot.slane %v3150, 7
    %v3153 = vrot.slane %v3152, 2
    %v3155 = vmul.f32 %v3139, %v3153
    %v3156 = vld [vmem:[%s3138 + $0x1] sm:$0x1]
    %v3157 = vmul.f32 %v3131, %v3155
    %v3158 = vsub.f32 %v3156, %v3157
    %v3159 = vperm.slane %v3155, 0
    %v3160 = vmul.f32 %v3027, %v3159
    %v3161 = vmul.f32 %v3028, %v3159
    %v3162 = vmul.f32 %v3029, %v3159
    %v3163 = vmul.f32 %v3030, %v3159
    %v3164 = vmul.f32 %v3031, %v3159
    %v3165 = vmul.f32 %v3032, %v3159
    %v3166 = vmul.f32 %v3033, %v3159
    %v3167 = vmul.f32 %v3034, %v3159
    %v3168 = vperm.slane %v3158, 0
    %v3169 = vadd.f32 %v3160, %v3168
    %v3170 = vadd.f32 %v3161, %v3168
    %v3171 = vadd.f32 %v3162, %v3168
    %v3172 = vadd.f32 %v3163, %v3168
    %v3173 = vadd.f32 %v3164, %v3168
    %v3174 = vadd.f32 %v3165, %v3168
    %v3175 = vadd.f32 %v3166, %v3168
    %v3176 = vadd.f32 %v3167, %v3168
    %v3177 = vmax.f32 %v3169, 0.0
    %v3178 = vmax.f32 %v3170, 0.0
    %v3179 = vmax.f32 %v3171, 0.0
    %v3180 = vmax.f32 %v3172, 0.0
    %v3181 = vmax.f32 %v3173, 0.0
    %v3182 = vmax.f32 %v3174, 0.0
    %v3183 = vmax.f32 %v3175, 0.0
    %v3184 = vmax.f32 %v3176, 0.0
    %v3185 = vpack.c.bf16 %v3178, %v3177
    %v3186 = vpack.c.bf16 %v3180, %v3179
    %v3187 = vpack.c.bf16 %v3182, %v3181
    %v3188 = vpack.c.bf16 %v3184, %v3183
    %s3189 = scalar_lea.vmem [#allocation5], 2880
    %v3190 = vld [vmem:[%s3189] sm:$0xff]
    %v3191 = vld [vmem:[%s3189 + $0x8] sm:$0xff]
    %v3192 = vld [vmem:[%s3189 + $0x10] sm:$0xff]
    %v3193 = vld [vmem:[%s3189 + $0x18] sm:$0xff]
    %v3194 = vld [vmem:[%s3189 + $0x20] sm:$0xff]
    %v3195 = vld [vmem:[%s3189 + $0x28] sm:$0xff]
    %v3196 = vld [vmem:[%s3189 + $0x30] sm:$0xff]
    %v3197 = vld [vmem:[%s3189 + $0x38] sm:$0xff]
    %v3198 = vld [vmem:[%s3189 + $0x40] sm:$0xff]
    %v3199 = vld [vmem:[%s3189 + $0x48] sm:$0xff]
    %v3200 = vld [vmem:[%s3189 + $0x50] sm:$0xff]
    %v3201 = vld [vmem:[%s3189 + $0x58] sm:$0xff]
    %v3202 = vld [vmem:[%s3189 + $0x60] sm:$0xff]
    %v3203 = vld [vmem:[%s3189 + $0x68] sm:$0xff]
    %v3204 = vld [vmem:[%s3189 + $0x70] sm:$0xff]
    %v3205 = vld [vmem:[%s3189 + $0x78] sm:$0xff]
    %v3206 = vrot.slane %v3177, 1
    %v3207 = vrot.slane %v3178, 1
    %v3208 = vrot.slane %v3179, 1
    %v3209 = vrot.slane %v3180, 1
    %v3210 = vrot.slane %v3181, 1
    %v3211 = vrot.slane %v3182, 1
    %v3212 = vrot.slane %v3183, 1
    %v3213 = vrot.slane %v3184, 1
    %v3214 = vsel %vm280, %v3212, %v3213
    %v3215 = vsel %vm280, %v3211, %v3212
    %v3216 = vsel %vm280, %v3210, %v3211
    %v3217 = vsel %vm280, %v3209, %v3210
    %v3218 = vsel %vm280, %v3208, %v3209
    %v3219 = vsel %vm280, %v3207, %v3208
    %v3220 = vsel %vm280, %v3206, %v3207
    %v3221 = vsel %vm280, %v3213, %v3206
    %v3222 = vpack.c.bf16 %v3219, %v3220
    %v3223 = vpack.c.bf16 %v3217, %v3218
    %v3224 = vpack.c.bf16 %v3215, %v3216
    %v3225 = vpack.c.bf16 %v3221, %v3214
    %s3226 = scalar_lea.vmem [#allocation5], 3024
    %v3227 = vld [vmem:[%s3226] sm:$0xff]
    %v3228 = vld [vmem:[%s3226 + $0x8] sm:$0xff]
    %v3229 = vld [vmem:[%s3226 + $0x10] sm:$0xff]
    %v3230 = vld [vmem:[%s3226 + $0x18] sm:$0xff]
    %v3231 = vld [vmem:[%s3226 + $0x20] sm:$0xff]
    %v3232 = vld [vmem:[%s3226 + $0x28] sm:$0xff]
    %v3233 = vld [vmem:[%s3226 + $0x30] sm:$0xff]
    %v3234 = vld [vmem:[%s3226 + $0x38] sm:$0xff]
    %v3235 = vld [vmem:[%s3226 + $0x40] sm:$0xff]
    %v3236 = vld [vmem:[%s3226 + $0x48] sm:$0xff]
    %v3237 = vld [vmem:[%s3226 + $0x50] sm:$0xff]
    %v3238 = vld [vmem:[%s3226 + $0x58] sm:$0xff]
    %v3239 = vld [vmem:[%s3226 + $0x60] sm:$0xff]
    %v3240 = vld [vmem:[%s3226 + $0x68] sm:$0xff]
    %v3241 = vld [vmem:[%s3226 + $0x70] sm:$0xff]
    %v3242 = vld [vmem:[%s3226 + $0x78] sm:$0xff]
    %v3259 = vunpack.c.l.b16 %v3227
    %v3260 = vunpack.c.h.b16 %v3227
    %v3261 = vunpack.c.l.b16 %v3228
    %v3262 = vunpack.c.h.b16 %v3228
    %v3263 = vunpack.c.l.b16 %v3229
    %v3264 = vunpack.c.h.b16 %v3229
    %v3265 = vunpack.c.l.b16 %v3230
    %v3266 = vunpack.c.h.b16 %v3230
    %v3267 = vunpack.c.l.b16 %v3231
    %v3268 = vunpack.c.h.b16 %v3231
    %v3269 = vunpack.c.l.b16 %v3232
    %v3270 = vunpack.c.h.b16 %v3232
    %v3271 = vunpack.c.l.b16 %v3233
    %v3272 = vunpack.c.h.b16 %v3233
    %v3273 = vunpack.c.l.b16 %v3234
    %v3274 = vunpack.c.h.b16 %v3234
    %v3275 = vunpack.c.l.b16 %v3235
    %v3276 = vunpack.c.h.b16 %v3235
    %v3277 = vunpack.c.l.b16 %v3236
    %v3278 = vunpack.c.h.b16 %v3236
    %v3279 = vunpack.c.l.b16 %v3237
    %v3280 = vunpack.c.h.b16 %v3237
    %v3281 = vunpack.c.l.b16 %v3238
    %v3282 = vunpack.c.h.b16 %v3238
    %v3283 = vunpack.c.l.b16 %v3239
    %v3284 = vunpack.c.h.b16 %v3239
    %v3285 = vunpack.c.l.b16 %v3240
    %v3286 = vunpack.c.h.b16 %v3240
    %v3287 = vunpack.c.l.b16 %v3241
    %v3288 = vunpack.c.h.b16 %v3241
    %v3289 = vunpack.c.l.b16 %v3242
    %v3290 = vunpack.c.h.b16 %v3242
    %v3291 = vpack.c.b16 %v3261, %v3259
    %v3292 = vpack.c.b16 %v3262, %v3260
    %v3293 = vpack.c.b16 %v3265, %v3263
    %v3294 = vpack.c.b16 %v3266, %v3264
    %v3295 = vpack.c.b16 %v3269, %v3267
    %v3296 = vpack.c.b16 %v3270, %v3268
    %v3297 = vpack.c.b16 %v3273, %v3271
    %v3298 = vpack.c.b16 %v3274, %v3272
    %v3299 = vpack.c.b16 %v3277, %v3275
    %v3300 = vpack.c.b16 %v3278, %v3276
    %v3301 = vpack.c.b16 %v3281, %v3279
    %v3302 = vpack.c.b16 %v3282, %v3280
    %v3303 = vpack.c.b16 %v3285, %v3283
    %v3304 = vpack.c.b16 %v3286, %v3284
    %v3305 = vpack.c.b16 %v3289, %v3287
    %v3306 = vpack.c.b16 %v3290, %v3288
    %3323 = vmatpush.bf16.msra.mxu0 %v3305
    %3324 = vmatpush.bf16.msra.mxu0 %v3303
    %3325 = vmatpush.bf16.msra.mxu0 %v3301
    %3326 = vmatpush.bf16.msra.mxu0 %v3299
    %3327 = vmatpush.bf16.msra.mxu0 %v3297
    %3328 = vmatpush.bf16.msra.mxu0 %v3295
    %3329 = vmatpush.bf16.msra.mxu0 %v3293
    %3330 = vmatpush.bf16.msra.mxu0 %v3291
    %3331 = vmatmul.bf16.gmra.mxu0 %v3222
    %v3332 = vpop.f32.mrf.mxu0
    %v3333 = vadd.f32 0.0, %v3332
    %v3334 = vpop.f32.mrf.mxu0
    %v3335 = vadd.f32 0.0, %v3334
    %3336 = vmatmul.bf16.gmra.mxu0 %v3223
    %v3337 = vpop.f32.mrf.mxu0
    %v3338 = vadd.f32 0.0, %v3337
    %v3339 = vpop.f32.mrf.mxu0
    %v3340 = vadd.f32 0.0, %v3339
    %3341 = vmatmul.bf16.gmra.mxu0 %v3224
    %v3342 = vpop.f32.mrf.mxu0
    %v3343 = vadd.f32 0.0, %v3342
    %v3344 = vpop.f32.mrf.mxu0
    %v3345 = vadd.f32 0.0, %v3344
    %3346 = vmatmul.bf16.gmra.mxu0 %v3225
    %v3347 = vpop.f32.mrf.mxu0
    %v3348 = vadd.f32 0.0, %v3347
    %v3349 = vpop.f32.mrf.mxu0
    %v3350 = vadd.f32 0.0, %v3349
    %3351 = vdwg.mxu0
    %3352 = vmatpush.bf16.msra.mxu0 %v3306
    %3353 = vmatpush.bf16.msra.mxu0 %v3304
    %3354 = vmatpush.bf16.msra.mxu0 %v3302
    %3355 = vmatpush.bf16.msra.mxu0 %v3300
    %3356 = vmatpush.bf16.msra.mxu0 %v3298
    %3357 = vmatpush.bf16.msra.mxu0 %v3296
    %3358 = vmatpush.bf16.msra.mxu0 %v3294
    %3359 = vmatpush.bf16.msra.mxu0 %v3292
    %3360 = vmatmul.bf16.gmra.mxu0 %v3222
    %v3361 = vpop.f32.mrf.mxu0
    %v3362 = vadd.f32 0.0, %v3361
    %v3363 = vpop.f32.mrf.mxu0
    %v3364 = vadd.f32 0.0, %v3363
    %3365 = vmatmul.bf16.gmra.mxu0 %v3223
    %v3366 = vpop.f32.mrf.mxu0
    %v3367 = vadd.f32 0.0, %v3366
    %v3368 = vpop.f32.mrf.mxu0
    %v3369 = vadd.f32 0.0, %v3368
    %3370 = vmatmul.bf16.gmra.mxu0 %v3224
    %v3371 = vpop.f32.mrf.mxu0
    %v3372 = vadd.f32 0.0, %v3371
    %v3373 = vpop.f32.mrf.mxu0
    %v3374 = vadd.f32 0.0, %v3373
    %3375 = vmatmul.bf16.gmra.mxu0 %v3225
    %v3376 = vpop.f32.mrf.mxu0
    %v3377 = vadd.f32 0.0, %v3376
    %v3378 = vpop.f32.mrf.mxu0
    %v3379 = vadd.f32 0.0, %v3378
    %3380 = vdwg.mxu0
    %v3397 = vunpack.c.l.b16 %v3190
    %v3398 = vunpack.c.h.b16 %v3190
    %v3399 = vunpack.c.l.b16 %v3191
    %v3400 = vunpack.c.h.b16 %v3191
    %v3401 = vunpack.c.l.b16 %v3192
    %v3402 = vunpack.c.h.b16 %v3192
    %v3403 = vunpack.c.l.b16 %v3193
    %v3404 = vunpack.c.h.b16 %v3193
    %v3405 = vunpack.c.l.b16 %v3194
    %v3406 = vunpack.c.h.b16 %v3194
    %v3407 = vunpack.c.l.b16 %v3195
    %v3408 = vunpack.c.h.b16 %v3195
    %v3409 = vunpack.c.l.b16 %v3196
    %v3410 = vunpack.c.h.b16 %v3196
    %v3411 = vunpack.c.l.b16 %v3197
    %v3412 = vunpack.c.h.b16 %v3197
    %v3413 = vunpack.c.l.b16 %v3198
    %v3414 = vunpack.c.h.b16 %v3198
    %v3415 = vunpack.c.l.b16 %v3199
    %v3416 = vunpack.c.h.b16 %v3199
    %v3417 = vunpack.c.l.b16 %v3200
    %v3418 = vunpack.c.h.b16 %v3200
    %v3419 = vunpack.c.l.b16 %v3201
    %v3420 = vunpack.c.h.b16 %v3201
    %v3421 = vunpack.c.l.b16 %v3202
    %v3422 = vunpack.c.h.b16 %v3202
    %v3423 = vunpack.c.l.b16 %v3203
    %v3424 = vunpack.c.h.b16 %v3203
    %v3425 = vunpack.c.l.b16 %v3204
    %v3426 = vunpack.c.h.b16 %v3204
    %v3427 = vunpack.c.l.b16 %v3205
    %v3428 = vunpack.c.h.b16 %v3205
    %v3429 = vpack.c.b16 %v3399, %v3397
    %v3430 = vpack.c.b16 %v3400, %v3398
    %v3431 = vpack.c.b16 %v3403, %v3401
    %v3432 = vpack.c.b16 %v3404, %v3402
    %v3433 = vpack.c.b16 %v3407, %v3405
    %v3434 = vpack.c.b16 %v3408, %v3406
    %v3435 = vpack.c.b16 %v3411, %v3409
    %v3436 = vpack.c.b16 %v3412, %v3410
    %v3437 = vpack.c.b16 %v3415, %v3413
    %v3438 = vpack.c.b16 %v3416, %v3414
    %v3439 = vpack.c.b16 %v3419, %v3417
    %v3440 = vpack.c.b16 %v3420, %v3418
    %v3441 = vpack.c.b16 %v3423, %v3421
    %v3442 = vpack.c.b16 %v3424, %v3422
    %v3443 = vpack.c.b16 %v3427, %v3425
    %v3444 = vpack.c.b16 %v3428, %v3426
    %3461 = vmatpush.bf16.msra.mxu0 %v3443
    %3462 = vmatpush.bf16.msra.mxu0 %v3441
    %3463 = vmatpush.bf16.msra.mxu0 %v3439
    %3464 = vmatpush.bf16.msra.mxu0 %v3437
    %3465 = vmatpush.bf16.msra.mxu0 %v3435
    %3466 = vmatpush.bf16.msra.mxu0 %v3433
    %3467 = vmatpush.bf16.msra.mxu0 %v3431
    %3468 = vmatpush.bf16.msra.mxu0 %v3429
    %3469 = vmatmul.bf16.gmra.mxu0 %v3185
    %v3470 = vpop.f32.mrf.mxu0
    %v3471 = vadd.f32 %v3333, %v3470
    %v3472 = vpop.f32.mrf.mxu0
    %v3473 = vadd.f32 %v3335, %v3472
    %3474 = vmatmul.bf16.gmra.mxu0 %v3186
    %v3475 = vpop.f32.mrf.mxu0
    %v3476 = vadd.f32 %v3338, %v3475
    %v3477 = vpop.f32.mrf.mxu0
    %v3478 = vadd.f32 %v3340, %v3477
    %3479 = vmatmul.bf16.gmra.mxu0 %v3187
    %v3480 = vpop.f32.mrf.mxu0
    %v3481 = vadd.f32 %v3343, %v3480
    %v3482 = vpop.f32.mrf.mxu0
    %v3483 = vadd.f32 %v3345, %v3482
    %3484 = vmatmul.bf16.gmra.mxu0 %v3188
    %v3485 = vpop.f32.mrf.mxu0
    %v3486 = vadd.f32 %v3348, %v3485
    %v3487 = vpop.f32.mrf.mxu0
    %v3488 = vadd.f32 %v3350, %v3487
    %3489 = vdwg.mxu0
    %3490 = vmatpush.bf16.msra.mxu0 %v3444
    %3491 = vmatpush.bf16.msra.mxu0 %v3442
    %3492 = vmatpush.bf16.msra.mxu0 %v3440
    %3493 = vmatpush.bf16.msra.mxu0 %v3438
    %3494 = vmatpush.bf16.msra.mxu0 %v3436
    %3495 = vmatpush.bf16.msra.mxu0 %v3434
    %3496 = vmatpush.bf16.msra.mxu0 %v3432
    %3497 = vmatpush.bf16.msra.mxu0 %v3430
    %3498 = vmatmul.bf16.gmra.mxu0 %v3185
    %v3499 = vpop.f32.mrf.mxu0
    %v3500 = vadd.f32 %v3362, %v3499
    %v3501 = vpop.f32.mrf.mxu0
    %v3502 = vadd.f32 %v3364, %v3501
    %3503 = vmatmul.bf16.gmra.mxu0 %v3186
    %v3504 = vpop.f32.mrf.mxu0
    %v3505 = vadd.f32 %v3367, %v3504
    %v3506 = vpop.f32.mrf.mxu0
    %v3507 = vadd.f32 %v3369, %v3506
    %3508 = vmatmul.bf16.gmra.mxu0 %v3187
    %v3509 = vpop.f32.mrf.mxu0
    %v3510 = vadd.f32 %v3372, %v3509
    %v3511 = vpop.f32.mrf.mxu0
    %v3512 = vadd.f32 %v3374, %v3511
    %3513 = vmatmul.bf16.gmra.mxu0 %v3188
    %v3514 = vpop.f32.mrf.mxu0
    %v3515 = vadd.f32 %v3377, %v3514
    %v3516 = vpop.f32.mrf.mxu0
    %v3517 = vadd.f32 %v3379, %v3516
    %3518 = vdwg.mxu0
    %v3519 = vrot.slane %v3177, 2
    %v3520 = vrot.slane %v3178, 2
    %v3521 = vrot.slane %v3179, 2
    %v3522 = vrot.slane %v3180, 2
    %v3523 = vrot.slane %v3181, 2
    %v3524 = vrot.slane %v3182, 2
    %v3525 = vrot.slane %v3183, 2
    %v3526 = vrot.slane %v3184, 2
    %v3527 = vsel %vm413, %v3525, %v3526
    %v3528 = vsel %vm413, %v3524, %v3525
    %v3529 = vsel %vm413, %v3523, %v3524
    %v3530 = vsel %vm413, %v3522, %v3523
    %v3531 = vsel %vm413, %v3521, %v3522
    %v3532 = vsel %vm413, %v3520, %v3521
    %v3533 = vsel %vm413, %v3519, %v3520
    %v3534 = vsel %vm413, %v3526, %v3519
    %v3535 = vpack.c.bf16 %v3532, %v3533
    %v3536 = vpack.c.bf16 %v3530, %v3531
    %v3537 = vpack.c.bf16 %v3528, %v3529
    %v3538 = vpack.c.bf16 %v3534, %v3527
    %s3539 = scalar_lea.vmem [#allocation5], 3168
    %v3540 = vld [vmem:[%s3539] sm:$0xff]
    %v3541 = vld [vmem:[%s3539 + $0x8] sm:$0xff]
    %v3542 = vld [vmem:[%s3539 + $0x10] sm:$0xff]
    %v3543 = vld [vmem:[%s3539 + $0x18] sm:$0xff]
    %v3544 = vld [vmem:[%s3539 + $0x20] sm:$0xff]
    %v3545 = vld [vmem:[%s3539 + $0x28] sm:$0xff]
    %v3546 = vld [vmem:[%s3539 + $0x30] sm:$0xff]
    %v3547 = vld [vmem:[%s3539 + $0x38] sm:$0xff]
    %v3548 = vld [vmem:[%s3539 + $0x40] sm:$0xff]
    %v3549 = vld [vmem:[%s3539 + $0x48] sm:$0xff]
    %v3550 = vld [vmem:[%s3539 + $0x50] sm:$0xff]
    %v3551 = vld [vmem:[%s3539 + $0x58] sm:$0xff]
    %v3552 = vld [vmem:[%s3539 + $0x60] sm:$0xff]
    %v3553 = vld [vmem:[%s3539 + $0x68] sm:$0xff]
    %v3554 = vld [vmem:[%s3539 + $0x70] sm:$0xff]
    %v3555 = vld [vmem:[%s3539 + $0x78] sm:$0xff]
    %v3572 = vunpack.c.l.b16 %v3540
    %v3573 = vunpack.c.h.b16 %v3540
    %v3574 = vunpack.c.l.b16 %v3541
    %v3575 = vunpack.c.h.b16 %v3541
    %v3576 = vunpack.c.l.b16 %v3542
    %v3577 = vunpack.c.h.b16 %v3542
    %v3578 = vunpack.c.l.b16 %v3543
    %v3579 = vunpack.c.h.b16 %v3543
    %v3580 = vunpack.c.l.b16 %v3544
    %v3581 = vunpack.c.h.b16 %v3544
    %v3582 = vunpack.c.l.b16 %v3545
    %v3583 = vunpack.c.h.b16 %v3545
    %v3584 = vunpack.c.l.b16 %v3546
    %v3585 = vunpack.c.h.b16 %v3546
    %v3586 = vunpack.c.l.b16 %v3547
    %v3587 = vunpack.c.h.b16 %v3547
    %v3588 = vunpack.c.l.b16 %v3548
    %v3589 = vunpack.c.h.b16 %v3548
    %v3590 = vunpack.c.l.b16 %v3549
    %v3591 = vunpack.c.h.b16 %v3549
    %v3592 = vunpack.c.l.b16 %v3550
    %v3593 = vunpack.c.h.b16 %v3550
    %v3594 = vunpack.c.l.b16 %v3551
    %v3595 = vunpack.c.h.b16 %v3551
    %v3596 = vunpack.c.l.b16 %v3552
    %v3597 = vunpack.c.h.b16 %v3552
    %v3598 = vunpack.c.l.b16 %v3553
    %v3599 = vunpack.c.h.b16 %v3553
    %v3600 = vunpack.c.l.b16 %v3554
    %v3601 = vunpack.c.h.b16 %v3554
    %v3602 = vunpack.c.l.b16 %v3555
    %v3603 = vunpack.c.h.b16 %v3555
    %v3604 = vpack.c.b16 %v3574, %v3572
    %v3605 = vpack.c.b16 %v3575, %v3573
    %v3606 = vpack.c.b16 %v3578, %v3576
    %v3607 = vpack.c.b16 %v3579, %v3577
    %v3608 = vpack.c.b16 %v3582, %v3580
    %v3609 = vpack.c.b16 %v3583, %v3581
    %v3610 = vpack.c.b16 %v3586, %v3584
    %v3611 = vpack.c.b16 %v3587, %v3585
    %v3612 = vpack.c.b16 %v3590, %v3588
    %v3613 = vpack.c.b16 %v3591, %v3589
    %v3614 = vpack.c.b16 %v3594, %v3592
    %v3615 = vpack.c.b16 %v3595, %v3593
    %v3616 = vpack.c.b16 %v3598, %v3596
    %v3617 = vpack.c.b16 %v3599, %v3597
    %v3618 = vpack.c.b16 %v3602, %v3600
    %v3619 = vpack.c.b16 %v3603, %v3601
    %3636 = vmatpush.bf16.msra.mxu0 %v3618
    %3637 = vmatpush.bf16.msra.mxu0 %v3616
    %3638 = vmatpush.bf16.msra.mxu0 %v3614
    %3639 = vmatpush.bf16.msra.mxu0 %v3612
    %3640 = vmatpush.bf16.msra.mxu0 %v3610
    %3641 = vmatpush.bf16.msra.mxu0 %v3608
    %3642 = vmatpush.bf16.msra.mxu0 %v3606
    %3643 = vmatpush.bf16.msra.mxu0 %v3604
    %3644 = vmatmul.bf16.gmra.mxu0 %v3535
    %v3645 = vpop.f32.mrf.mxu0
    %v3646 = vadd.f32 0.0, %v3645
    %v3647 = vpop.f32.mrf.mxu0
    %v3648 = vadd.f32 0.0, %v3647
    %3649 = vmatmul.bf16.gmra.mxu0 %v3536
    %v3650 = vpop.f32.mrf.mxu0
    %v3651 = vadd.f32 0.0, %v3650
    %v3652 = vpop.f32.mrf.mxu0
    %v3653 = vadd.f32 0.0, %v3652
    %3654 = vmatmul.bf16.gmra.mxu0 %v3537
    %v3655 = vpop.f32.mrf.mxu0
    %v3656 = vadd.f32 0.0, %v3655
    %v3657 = vpop.f32.mrf.mxu0
    %v3658 = vadd.f32 0.0, %v3657
    %3659 = vmatmul.bf16.gmra.mxu0 %v3538
    %v3660 = vpop.f32.mrf.mxu0
    %v3661 = vadd.f32 0.0, %v3660
    %v3662 = vpop.f32.mrf.mxu0
    %v3663 = vadd.f32 0.0, %v3662
    %3664 = vdwg.mxu0
    %3665 = vmatpush.bf16.msra.mxu0 %v3619
    %3666 = vmatpush.bf16.msra.mxu0 %v3617
    %3667 = vmatpush.bf16.msra.mxu0 %v3615
    %3668 = vmatpush.bf16.msra.mxu0 %v3613
    %3669 = vmatpush.bf16.msra.mxu0 %v3611
    %3670 = vmatpush.bf16.msra.mxu0 %v3609
    %3671 = vmatpush.bf16.msra.mxu0 %v3607
    %3672 = vmatpush.bf16.msra.mxu0 %v3605
    %3673 = vmatmul.bf16.gmra.mxu0 %v3535
    %v3674 = vpop.f32.mrf.mxu0
    %v3675 = vadd.f32 0.0, %v3674
    %v3676 = vpop.f32.mrf.mxu0
    %v3677 = vadd.f32 0.0, %v3676
    %3678 = vmatmul.bf16.gmra.mxu0 %v3536
    %v3679 = vpop.f32.mrf.mxu0
    %v3680 = vadd.f32 0.0, %v3679
    %v3681 = vpop.f32.mrf.mxu0
    %v3682 = vadd.f32 0.0, %v3681
    %3683 = vmatmul.bf16.gmra.mxu0 %v3537
    %v3684 = vpop.f32.mrf.mxu0
    %v3685 = vadd.f32 0.0, %v3684
    %v3686 = vpop.f32.mrf.mxu0
    %v3687 = vadd.f32 0.0, %v3686
    %3688 = vmatmul.bf16.gmra.mxu0 %v3538
    %v3689 = vpop.f32.mrf.mxu0
    %v3690 = vadd.f32 0.0, %v3689
    %v3691 = vpop.f32.mrf.mxu0
    %v3692 = vadd.f32 0.0, %v3691
    %3693 = vdwg.mxu0
    %v3694 = vadd.f32 %v3471, %v3646
    %v3695 = vadd.f32 %v3500, %v3675
    %v3696 = vadd.f32 %v3473, %v3648
    %v3697 = vadd.f32 %v3502, %v3677
    %v3698 = vadd.f32 %v3476, %v3651
    %v3699 = vadd.f32 %v3505, %v3680
    %v3700 = vadd.f32 %v3478, %v3653
    %v3701 = vadd.f32 %v3507, %v3682
    %v3702 = vadd.f32 %v3481, %v3656
    %v3703 = vadd.f32 %v3510, %v3685
    %v3704 = vadd.f32 %v3483, %v3658
    %v3705 = vadd.f32 %v3512, %v3687
    %v3706 = vadd.f32 %v3486, %v3661
    %v3707 = vadd.f32 %v3515, %v3690
    %v3708 = vadd.f32 %v3488, %v3663
    %v3709 = vadd.f32 %v3517, %v3692
    %v3710 = vrot.slane %v3177, 3
    %v3711 = vrot.slane %v3178, 3
    %v3712 = vrot.slane %v3179, 3
    %v3713 = vrot.slane %v3180, 3
    %v3714 = vrot.slane %v3181, 3
    %v3715 = vrot.slane %v3182, 3
    %v3716 = vrot.slane %v3183, 3
    %v3717 = vrot.slane %v3184, 3
    %v3718 = vsel %vm500, %v3716, %v3717
    %v3719 = vsel %vm500, %v3715, %v3716
    %v3720 = vsel %vm500, %v3714, %v3715
    %v3721 = vsel %vm500, %v3713, %v3714
    %v3722 = vsel %vm500, %v3712, %v3713
    %v3723 = vsel %vm500, %v3711, %v3712
    %v3724 = vsel %vm500, %v3710, %v3711
    %v3725 = vsel %vm500, %v3717, %v3710
    %v3726 = vpack.c.bf16 %v3723, %v3724
    %v3727 = vpack.c.bf16 %v3721, %v3722
    %v3728 = vpack.c.bf16 %v3719, %v3720
    %v3729 = vpack.c.bf16 %v3725, %v3718
    %s3730 = scalar_lea.vmem [#allocation5], 3312
    %v3731 = vld [vmem:[%s3730] sm:$0xff]
    %v3732 = vld [vmem:[%s3730 + $0x8] sm:$0xff]
    %v3733 = vld [vmem:[%s3730 + $0x10] sm:$0xff]
    %v3734 = vld [vmem:[%s3730 + $0x18] sm:$0xff]
    %v3735 = vld [vmem:[%s3730 + $0x20] sm:$0xff]
    %v3736 = vld [vmem:[%s3730 + $0x28] sm:$0xff]
    %v3737 = vld [vmem:[%s3730 + $0x30] sm:$0xff]
    %v3738 = vld [vmem:[%s3730 + $0x38] sm:$0xff]
    %v3739 = vld [vmem:[%s3730 + $0x40] sm:$0xff]
    %v3740 = vld [vmem:[%s3730 + $0x48] sm:$0xff]
    %v3741 = vld [vmem:[%s3730 + $0x50] sm:$0xff]
    %v3742 = vld [vmem:[%s3730 + $0x58] sm:$0xff]
    %v3743 = vld [vmem:[%s3730 + $0x60] sm:$0xff]
    %v3744 = vld [vmem:[%s3730 + $0x68] sm:$0xff]
    %v3745 = vld [vmem:[%s3730 + $0x70] sm:$0xff]
    %v3746 = vld [vmem:[%s3730 + $0x78] sm:$0xff]
    %v3763 = vunpack.c.l.b16 %v3731
    %v3764 = vunpack.c.h.b16 %v3731
    %v3765 = vunpack.c.l.b16 %v3732
    %v3766 = vunpack.c.h.b16 %v3732
    %v3767 = vunpack.c.l.b16 %v3733
    %v3768 = vunpack.c.h.b16 %v3733
    %v3769 = vunpack.c.l.b16 %v3734
    %v3770 = vunpack.c.h.b16 %v3734
    %v3771 = vunpack.c.l.b16 %v3735
    %v3772 = vunpack.c.h.b16 %v3735
    %v3773 = vunpack.c.l.b16 %v3736
    %v3774 = vunpack.c.h.b16 %v3736
    %v3775 = vunpack.c.l.b16 %v3737
    %v3776 = vunpack.c.h.b16 %v3737
    %v3777 = vunpack.c.l.b16 %v3738
    %v3778 = vunpack.c.h.b16 %v3738
    %v3779 = vunpack.c.l.b16 %v3739
    %v3780 = vunpack.c.h.b16 %v3739
    %v3781 = vunpack.c.l.b16 %v3740
    %v3782 = vunpack.c.h.b16 %v3740
    %v3783 = vunpack.c.l.b16 %v3741
    %v3784 = vunpack.c.h.b16 %v3741
    %v3785 = vunpack.c.l.b16 %v3742
    %v3786 = vunpack.c.h.b16 %v3742
    %v3787 = vunpack.c.l.b16 %v3743
    %v3788 = vunpack.c.h.b16 %v3743
    %v3789 = vunpack.c.l.b16 %v3744
    %v3790 = vunpack.c.h.b16 %v3744
    %v3791 = vunpack.c.l.b16 %v3745
    %v3792 = vunpack.c.h.b16 %v3745
    %v3793 = vunpack.c.l.b16 %v3746
    %v3794 = vunpack.c.h.b16 %v3746
    %v3795 = vpack.c.b16 %v3765, %v3763
    %v3796 = vpack.c.b16 %v3766, %v3764
    %v3797 = vpack.c.b16 %v3769, %v3767
    %v3798 = vpack.c.b16 %v3770, %v3768
    %v3799 = vpack.c.b16 %v3773, %v3771
    %v3800 = vpack.c.b16 %v3774, %v3772
    %v3801 = vpack.c.b16 %v3777, %v3775
    %v3802 = vpack.c.b16 %v3778, %v3776
    %v3803 = vpack.c.b16 %v3781, %v3779
    %v3804 = vpack.c.b16 %v3782, %v3780
    %v3805 = vpack.c.b16 %v3785, %v3783
    %v3806 = vpack.c.b16 %v3786, %v3784
    %v3807 = vpack.c.b16 %v3789, %v3787
    %v3808 = vpack.c.b16 %v3790, %v3788
    %v3809 = vpack.c.b16 %v3793, %v3791
    %v3810 = vpack.c.b16 %v3794, %v3792
    %3827 = vmatpush.bf16.msra.mxu0 %v3809
    %3828 = vmatpush.bf16.msra.mxu0 %v3807
    %3829 = vmatpush.bf16.msra.mxu0 %v3805
    %3830 = vmatpush.bf16.msra.mxu0 %v3803
    %3831 = vmatpush.bf16.msra.mxu0 %v3801
    %3832 = vmatpush.bf16.msra.mxu0 %v3799
    %3833 = vmatpush.bf16.msra.mxu0 %v3797
    %3834 = vmatpush.bf16.msra.mxu0 %v3795
    %3835 = vmatmul.bf16.gmra.mxu0 %v3726
    %v3836 = vpop.f32.mrf.mxu0
    %v3837 = vadd.f32 0.0, %v3836
    %v3838 = vpop.f32.mrf.mxu0
    %v3839 = vadd.f32 0.0, %v3838
    %3840 = vmatmul.bf16.gmra.mxu0 %v3727
    %v3841 = vpop.f32.mrf.mxu0
    %v3842 = vadd.f32 0.0, %v3841
    %v3843 = vpop.f32.mrf.mxu0
    %v3844 = vadd.f32 0.0, %v3843
    %3845 = vmatmul.bf16.gmra.mxu0 %v3728
    %v3846 = vpop.f32.mrf.mxu0
    %v3847 = vadd.f32 0.0, %v3846
    %v3848 = vpop.f32.mrf.mxu0
    %v3849 = vadd.f32 0.0, %v3848
    %3850 = vmatmul.bf16.gmra.mxu0 %v3729
    %v3851 = vpop.f32.mrf.mxu0
    %v3852 = vadd.f32 0.0, %v3851
    %v3853 = vpop.f32.mrf.mxu0
    %v3854 = vadd.f32 0.0, %v3853
    %3855 = vdwg.mxu0
    %3856 = vmatpush.bf16.msra.mxu0 %v3810
    %3857 = vmatpush.bf16.msra.mxu0 %v3808
    %3858 = vmatpush.bf16.msra.mxu0 %v3806
    %3859 = vmatpush.bf16.msra.mxu0 %v3804
    %3860 = vmatpush.bf16.msra.mxu0 %v3802
    %3861 = vmatpush.bf16.msra.mxu0 %v3800
    %3862 = vmatpush.bf16.msra.mxu0 %v3798
    %3863 = vmatpush.bf16.msra.mxu0 %v3796
    %3864 = vmatmul.bf16.gmra.mxu0 %v3726
    %v3865 = vpop.f32.mrf.mxu0
    %v3866 = vadd.f32 0.0, %v3865
    %v3867 = vpop.f32.mrf.mxu0
    %v3868 = vadd.f32 0.0, %v3867
    %3869 = vmatmul.bf16.gmra.mxu0 %v3727
    %v3870 = vpop.f32.mrf.mxu0
    %v3871 = vadd.f32 0.0, %v3870
    %v3872 = vpop.f32.mrf.mxu0
    %v3873 = vadd.f32 0.0, %v3872
    %3874 = vmatmul.bf16.gmra.mxu0 %v3728
    %v3875 = vpop.f32.mrf.mxu0
    %v3876 = vadd.f32 0.0, %v3875
    %v3877 = vpop.f32.mrf.mxu0
    %v3878 = vadd.f32 0.0, %v3877
    %3879 = vmatmul.bf16.gmra.mxu0 %v3729
    %v3880 = vpop.f32.mrf.mxu0
    %v3881 = vadd.f32 0.0, %v3880
    %v3882 = vpop.f32.mrf.mxu0
    %v3883 = vadd.f32 0.0, %v3882
    %3884 = vdwg.mxu0
    %v3885 = vadd.f32 %v3694, %v3837
    %v3886 = vadd.f32 %v3695, %v3866
    %v3887 = vadd.f32 %v3696, %v3839
    %v3888 = vadd.f32 %v3697, %v3868
    %v3889 = vadd.f32 %v3698, %v3842
    %v3890 = vadd.f32 %v3699, %v3871
    %v3891 = vadd.f32 %v3700, %v3844
    %v3892 = vadd.f32 %v3701, %v3873
    %v3893 = vadd.f32 %v3702, %v3847
    %v3894 = vadd.f32 %v3703, %v3876
    %v3895 = vadd.f32 %v3704, %v3849
    %v3896 = vadd.f32 %v3705, %v3878
    %v3897 = vadd.f32 %v3706, %v3852
    %v3898 = vadd.f32 %v3707, %v3881
    %v3899 = vadd.f32 %v3708, %v3854
    %v3900 = vadd.f32 %v3709, %v3883
    %v3901 = vrot.slane %v3177, 4
    %v3902 = vrot.slane %v3178, 4
    %v3903 = vrot.slane %v3179, 4
    %v3904 = vrot.slane %v3180, 4
    %v3905 = vrot.slane %v3181, 4
    %v3906 = vrot.slane %v3182, 4
    %v3907 = vrot.slane %v3183, 4
    %v3908 = vrot.slane %v3184, 4
    %v3909 = vsel %vm587, %v3907, %v3908
    %v3910 = vsel %vm587, %v3906, %v3907
    %v3911 = vsel %vm587, %v3905, %v3906
    %v3912 = vsel %vm587, %v3904, %v3905
    %v3913 = vsel %vm587, %v3903, %v3904
    %v3914 = vsel %vm587, %v3902, %v3903
    %v3915 = vsel %vm587, %v3901, %v3902
    %v3916 = vsel %vm587, %v3908, %v3901
    %v3917 = vpack.c.bf16 %v3914, %v3915
    %v3918 = vpack.c.bf16 %v3912, %v3913
    %v3919 = vpack.c.bf16 %v3910, %v3911
    %v3920 = vpack.c.bf16 %v3916, %v3909
    %s3921 = scalar_lea.vmem [#allocation5], 3456
    %v3922 = vld [vmem:[%s3921] sm:$0xff]
    %v3923 = vld [vmem:[%s3921 + $0x8] sm:$0xff]
    %v3924 = vld [vmem:[%s3921 + $0x10] sm:$0xff]
    %v3925 = vld [vmem:[%s3921 + $0x18] sm:$0xff]
    %v3926 = vld [vmem:[%s3921 + $0x20] sm:$0xff]
    %v3927 = vld [vmem:[%s3921 + $0x28] sm:$0xff]
    %v3928 = vld [vmem:[%s3921 + $0x30] sm:$0xff]
    %v3929 = vld [vmem:[%s3921 + $0x38] sm:$0xff]
    %v3930 = vld [vmem:[%s3921 + $0x40] sm:$0xff]
    %v3931 = vld [vmem:[%s3921 + $0x48] sm:$0xff]
    %v3932 = vld [vmem:[%s3921 + $0x50] sm:$0xff]
    %v3933 = vld [vmem:[%s3921 + $0x58] sm:$0xff]
    %v3934 = vld [vmem:[%s3921 + $0x60] sm:$0xff]
    %v3935 = vld [vmem:[%s3921 + $0x68] sm:$0xff]
    %v3936 = vld [vmem:[%s3921 + $0x70] sm:$0xff]
    %v3937 = vld [vmem:[%s3921 + $0x78] sm:$0xff]
    %v3954 = vunpack.c.l.b16 %v3922
    %v3955 = vunpack.c.h.b16 %v3922
    %v3956 = vunpack.c.l.b16 %v3923
    %v3957 = vunpack.c.h.b16 %v3923
    %v3958 = vunpack.c.l.b16 %v3924
    %v3959 = vunpack.c.h.b16 %v3924
    %v3960 = vunpack.c.l.b16 %v3925
    %v3961 = vunpack.c.h.b16 %v3925
    %v3962 = vunpack.c.l.b16 %v3926
    %v3963 = vunpack.c.h.b16 %v3926
    %v3964 = vunpack.c.l.b16 %v3927
    %v3965 = vunpack.c.h.b16 %v3927
    %v3966 = vunpack.c.l.b16 %v3928
    %v3967 = vunpack.c.h.b16 %v3928
    %v3968 = vunpack.c.l.b16 %v3929
    %v3969 = vunpack.c.h.b16 %v3929
    %v3970 = vunpack.c.l.b16 %v3930
    %v3971 = vunpack.c.h.b16 %v3930
    %v3972 = vunpack.c.l.b16 %v3931
    %v3973 = vunpack.c.h.b16 %v3931
    %v3974 = vunpack.c.l.b16 %v3932
    %v3975 = vunpack.c.h.b16 %v3932
    %v3976 = vunpack.c.l.b16 %v3933
    %v3977 = vunpack.c.h.b16 %v3933
    %v3978 = vunpack.c.l.b16 %v3934
    %v3979 = vunpack.c.h.b16 %v3934
    %v3980 = vunpack.c.l.b16 %v3935
    %v3981 = vunpack.c.h.b16 %v3935
    %v3982 = vunpack.c.l.b16 %v3936
    %v3983 = vunpack.c.h.b16 %v3936
    %v3984 = vunpack.c.l.b16 %v3937
    %v3985 = vunpack.c.h.b16 %v3937
    %v3986 = vpack.c.b16 %v3956, %v3954
    %v3987 = vpack.c.b16 %v3957, %v3955
    %v3988 = vpack.c.b16 %v3960, %v3958
    %v3989 = vpack.c.b16 %v3961, %v3959
    %v3990 = vpack.c.b16 %v3964, %v3962
    %v3991 = vpack.c.b16 %v3965, %v3963
    %v3992 = vpack.c.b16 %v3968, %v3966
    %v3993 = vpack.c.b16 %v3969, %v3967
    %v3994 = vpack.c.b16 %v3972, %v3970
    %v3995 = vpack.c.b16 %v3973, %v3971
    %v3996 = vpack.c.b16 %v3976, %v3974
    %v3997 = vpack.c.b16 %v3977, %v3975
    %v3998 = vpack.c.b16 %v3980, %v3978
    %v3999 = vpack.c.b16 %v3981, %v3979
    %v4000 = vpack.c.b16 %v3984, %v3982
    %v4001 = vpack.c.b16 %v3985, %v3983
    %4018 = vmatpush.bf16.msra.mxu0 %v4000
    %4019 = vmatpush.bf16.msra.mxu0 %v3998
    %4020 = vmatpush.bf16.msra.mxu0 %v3996
    %4021 = vmatpush.bf16.msra.mxu0 %v3994
    %4022 = vmatpush.bf16.msra.mxu0 %v3992
    %4023 = vmatpush.bf16.msra.mxu0 %v3990
    %4024 = vmatpush.bf16.msra.mxu0 %v3988
    %4025 = vmatpush.bf16.msra.mxu0 %v3986
    %4026 = vmatmul.bf16.gmra.mxu0 %v3917
    %v4027 = vpop.f32.mrf.mxu0
    %v4028 = vadd.f32 0.0, %v4027
    %v4029 = vpop.f32.mrf.mxu0
    %v4030 = vadd.f32 0.0, %v4029
    %4031 = vmatmul.bf16.gmra.mxu0 %v3918
    %v4032 = vpop.f32.mrf.mxu0
    %v4033 = vadd.f32 0.0, %v4032
    %v4034 = vpop.f32.mrf.mxu0
    %v4035 = vadd.f32 0.0, %v4034
    %4036 = vmatmul.bf16.gmra.mxu0 %v3919
    %v4037 = vpop.f32.mrf.mxu0
    %v4038 = vadd.f32 0.0, %v4037
    %v4039 = vpop.f32.mrf.mxu0
    %v4040 = vadd.f32 0.0, %v4039
    %4041 = vmatmul.bf16.gmra.mxu0 %v3920
    %v4042 = vpop.f32.mrf.mxu0
    %v4043 = vadd.f32 0.0, %v4042
    %v4044 = vpop.f32.mrf.mxu0
    %v4045 = vadd.f32 0.0, %v4044
    %4046 = vdwg.mxu0
    %4047 = vmatpush.bf16.msra.mxu0 %v4001
    %4048 = vmatpush.bf16.msra.mxu0 %v3999
    %4049 = vmatpush.bf16.msra.mxu0 %v3997
    %4050 = vmatpush.bf16.msra.mxu0 %v3995
    %4051 = vmatpush.bf16.msra.mxu0 %v3993
    %4052 = vmatpush.bf16.msra.mxu0 %v3991
    %4053 = vmatpush.bf16.msra.mxu0 %v3989
    %4054 = vmatpush.bf16.msra.mxu0 %v3987
    %4055 = vmatmul.bf16.gmra.mxu0 %v3917
    %v4056 = vpop.f32.mrf.mxu0
    %v4057 = vadd.f32 0.0, %v4056
    %v4058 = vpop.f32.mrf.mxu0
    %v4059 = vadd.f32 0.0, %v4058
    %4060 = vmatmul.bf16.gmra.mxu0 %v3918
    %v4061 = vpop.f32.mrf.mxu0
    %v4062 = vadd.f32 0.0, %v4061
    %v4063 = vpop.f32.mrf.mxu0
    %v4064 = vadd.f32 0.0, %v4063
    %4065 = vmatmul.bf16.gmra.mxu0 %v3919
    %v4066 = vpop.f32.mrf.mxu0
    %v4067 = vadd.f32 0.0, %v4066
    %v4068 = vpop.f32.mrf.mxu0
    %v4069 = vadd.f32 0.0, %v4068
    %4070 = vmatmul.bf16.gmra.mxu0 %v3920
    %v4071 = vpop.f32.mrf.mxu0
    %v4072 = vadd.f32 0.0, %v4071
    %v4073 = vpop.f32.mrf.mxu0
    %v4074 = vadd.f32 0.0, %v4073
    %4075 = vdwg.mxu0
    %v4076 = vadd.f32 %v3885, %v4028
    %v4077 = vadd.f32 %v3886, %v4057
    %v4078 = vadd.f32 %v3887, %v4030
    %v4079 = vadd.f32 %v3888, %v4059
    %v4080 = vadd.f32 %v3889, %v4033
    %v4081 = vadd.f32 %v3890, %v4062
    %v4082 = vadd.f32 %v3891, %v4035
    %v4083 = vadd.f32 %v3892, %v4064
    %v4084 = vadd.f32 %v3893, %v4038
    %v4085 = vadd.f32 %v3894, %v4067
    %v4086 = vadd.f32 %v3895, %v4040
    %v4087 = vadd.f32 %v3896, %v4069
    %v4088 = vadd.f32 %v3897, %v4043
    %v4089 = vadd.f32 %v3898, %v4072
    %v4090 = vadd.f32 %v3899, %v4045
    %v4091 = vadd.f32 %v3900, %v4074
    %vm4092 = vcmp.lt.s32.totalorder %v232, 12
    %vm4093 = vcmp.lt.s32.totalorder %v233, 12
    %vm4094 = vcmp.lt.s32.totalorder %v234, 12
    %vm4095 = vcmp.lt.s32.totalorder %v235, 12
    %vm4096 = vcmp.lt.s32.totalorder %v236, 12
    %vm4097 = vcmp.lt.s32.totalorder %v237, 12
    %vm4098 = vcmp.lt.s32.totalorder %v238, 12
    %vm4099 = vcmp.lt.s32.totalorder %v239, 12
    %v4100 = vsel %vm4092, 1.0, 0.0
    %v4101 = vsel %vm4093, 1.0, 0.0
    %v4102 = vsel %vm4094, 1.0, 0.0
    %v4103 = vsel %vm4095, 1.0, 0.0
    %v4104 = vsel %vm4096, 1.0, 0.0
    %v4105 = vsel %vm4097, 1.0, 0.0
    %v4106 = vsel %vm4098, 1.0, 0.0
    %v4107 = vsel %vm4099, 1.0, 0.0
    %v4108 = vmul.f32 %v4076, %v4100
    %v4109 = vmul.f32 %v4077, %v4100
    %v4110 = vmul.f32 %v4078, %v4101
    %v4111 = vmul.f32 %v4079, %v4101
    %v4112 = vmul.f32 %v4080, %v4102
    %v4113 = vmul.f32 %v4081, %v4102
    %v4114 = vmul.f32 %v4082, %v4103
    %v4115 = vmul.f32 %v4083, %v4103
    %v4116 = vmul.f32 %v4084, %v4104
    %v4117 = vmul.f32 %v4085, %v4104
    %v4118 = vmul.f32 %v4086, %v4105
    %v4119 = vmul.f32 %v4087, %v4105
    %v4120 = vmul.f32 %v4088, %v4106
    %v4121 = vmul.f32 %v4089, %v4106
    %v4122 = vmul.f32 %v4090, %v4107
    %v4123 = vmul.f32 %v4091, %v4107
    %v4124 = vadd.f32 %v4108, %v4110
    %v4125 = vadd.f32 %v4124, %v4112
    %v4126 = vadd.f32 %v4125, %v4114
    %v4127 = vadd.f32 %v4126, %v4116
    %v4128 = vadd.f32 %v4127, %v4118
    %v4129 = vadd.f32 %v4128, %v4120
    %v4130 = vadd.f32 %v4129, %v4122
    %v4131 = vrot.slane %v4130, 4
    %v4132 = vadd.f32 %v4130, %v4131
    %v4133 = vrot.slane %v4132, 2
    %v4134 = vadd.f32 %v4132, %v4133
    %v4135 = vrot.slane %v4134, 1
    %v4136 = vadd.f32 %v4134, %v4135
    %vm4137 = vcmask 130048
    %v4138 = vsel %vm4137, %v4109, 0.0
    %v4139 = vsel %vm4137, %v4111, 0.0
    %v4140 = vadd.f32 %v4138, %v4139
    %v4141 = vsel %vm4137, %v4113, 0.0
    %v4142 = vadd.f32 %v4140, %v4141
    %v4143 = vsel %vm4137, %v4115, 0.0
    %v4144 = vadd.f32 %v4142, %v4143
    %v4145 = vsel %vm4137, %v4117, 0.0
    %v4146 = vadd.f32 %v4144, %v4145
    %v4147 = vsel %vm4137, %v4119, 0.0
    %v4148 = vadd.f32 %v4146, %v4147
    %v4149 = vsel %vm4137, %v4121, 0.0
    %v4150 = vadd.f32 %v4148, %v4149
    %v4151 = vsel %vm4137, %v4123, 0.0
    %v4152 = vadd.f32 %v4150, %v4151
    %v4153 = vrot.slane %v4152, 4
    %v4154 = vadd.f32 %v4152, %v4153
    %v4155 = vrot.slane %v4154, 2
    %v4156 = vadd.f32 %v4154, %v4155
    %v4157 = vrot.slane %v4156, 1
    %v4158 = vadd.f32 %v4156, %v4157
    %v4159 = vmul.f32 %v4108, %v4076
    %v4160 = vmul.f32 %v4109, %v4077
    %v4161 = vmul.f32 %v4110, %v4078
    %v4162 = vmul.f32 %v4111, %v4079
    %v4163 = vmul.f32 %v4112, %v4080
    %v4164 = vmul.f32 %v4113, %v4081
    %v4165 = vmul.f32 %v4114, %v4082
    %v4166 = vmul.f32 %v4115, %v4083
    %v4167 = vmul.f32 %v4116, %v4084
    %v4168 = vmul.f32 %v4117, %v4085
    %v4169 = vmul.f32 %v4118, %v4086
    %v4170 = vmul.f32 %v4119, %v4087
    %v4171 = vmul.f32 %v4120, %v4088
    %v4172 = vmul.f32 %v4121, %v4089
    %v4173 = vmul.f32 %v4122, %v4090
    %v4174 = vmul.f32 %v4123, %v4091
    %v4175 = vadd.f32 %v4159, %v4161
    %v4176 = vadd.f32 %v4175, %v4163
    %v4177 = vadd.f32 %v4176, %v4165
    %v4178 = vadd.f32 %v4177, %v4167
    %v4179 = vadd.f32 %v4178, %v4169
    %v4180 = vadd.f32 %v4179, %v4171
    %v4181 = vadd.f32 %v4180, %v4173
    %v4182 = vrot.slane %v4181, 4
    %v4183 = vadd.f32 %v4181, %v4182
    %v4184 = vrot.slane %v4183, 2
    %v4185 = vadd.f32 %v4183, %v4184
    %v4186 = vrot.slane %v4185, 1
    %v4187 = vadd.f32 %v4185, %v4186
    %v4188 = vsel %vm4137, %v4160, 0.0
    %v4189 = vsel %vm4137, %v4162, 0.0
    %v4190 = vadd.f32 %v4188, %v4189
    %v4191 = vsel %vm4137, %v4164, 0.0
    %v4192 = vadd.f32 %v4190, %v4191
    %v4193 = vsel %vm4137, %v4166, 0.0
    %v4194 = vadd.f32 %v4192, %v4193
    %v4195 = vsel %vm4137, %v4168, 0.0
    %v4196 = vadd.f32 %v4194, %v4195
    %v4197 = vsel %vm4137, %v4170, 0.0
    %v4198 = vadd.f32 %v4196, %v4197
    %v4199 = vsel %vm4137, %v4172, 0.0
    %v4200 = vadd.f32 %v4198, %v4199
    %v4201 = vsel %vm4137, %v4174, 0.0
    %v4202 = vadd.f32 %v4200, %v4201
    %v4203 = vrot.slane %v4202, 4
    %v4204 = vadd.f32 %v4202, %v4203
    %v4205 = vrot.slane %v4204, 2
    %v4206 = vadd.f32 %v4204, %v4205
    %v4207 = vrot.slane %v4206, 1
    %v4208 = vadd.f32 %v4206, %v4207
    %v4209 = vsel %vm741, %v4136, %v4187
    %v4210 = vsel %vm741, %v4158, %v4208
    %s4211 = scalar_lea.vmem [#allocation7], 1152
    %v4212 = vld [vmem:[%s4211] sm:$0xff]
    %v4213 = vld [vmem:[%s4211 + $0x8] sm:$0xff]
    %v4214 = vld [vmem:[%s4211 + $0x10] sm:$0xff]
    %v4215 = vld [vmem:[%s4211 + $0x18] sm:$0xff]
    %v4216 = vld [vmem:[%s4211 + $0x20] sm:$0xff]
    %v4217 = vld [vmem:[%s4211 + $0x28] sm:$0xff]
    %v4218 = vld [vmem:[%s4211 + $0x30] sm:$0xff]
    %v4219 = vld [vmem:[%s4211 + $0x38] sm:$0xff]
    %v4220 = vld [vmem:[%s4211 + $0x40] sm:$0xff]
    %v4221 = vld [vmem:[%s4211 + $0x48] sm:$0xff]
    %v4222 = vld [vmem:[%s4211 + $0x50] sm:$0xff]
    %v4223 = vld [vmem:[%s4211 + $0x58] sm:$0xff]
    %v4224 = vld [vmem:[%s4211 + $0x60] sm:$0xff]
    %v4225 = vld [vmem:[%s4211 + $0x68] sm:$0xff]
    %v4226 = vld [vmem:[%s4211 + $0x70] sm:$0xff]
    %v4227 = vld [vmem:[%s4211 + $0x78] sm:$0xff]
    %v4228 = vld [vmem:[%s4211 + $0x80] sm:$0xff]
    %v4229 = vld [vmem:[%s4211 + $0x88] sm:$0xff]
    %v4230 = vld [vmem:[%s4211 + $0x90] sm:$0xff]
    %v4231 = vld [vmem:[%s4211 + $0x98] sm:$0xff]
    %v4232 = vld [vmem:[%s4211 + $0xa0] sm:$0xff]
    %v4233 = vld [vmem:[%s4211 + $0xa8] sm:$0xff]
    %v4234 = vld [vmem:[%s4211 + $0xb0] sm:$0xff]
    %v4235 = vld [vmem:[%s4211 + $0xb8] sm:$0xff]
    %v4236 = vld [vmem:[%s4211 + $0xc0] sm:$0xff]
    %v4237 = vld [vmem:[%s4211 + $0xc8] sm:$0xff]
    %v4238 = vld [vmem:[%s4211 + $0xd0] sm:$0xff]
    %v4239 = vld [vmem:[%s4211 + $0xd8] sm:$0xff]
    %v4240 = vld [vmem:[%s4211 + $0xe0] sm:$0xff]
    %v4241 = vld [vmem:[%s4211 + $0xe8] sm:$0xff]
    %v4242 = vld [vmem:[%s4211 + $0xf0] sm:$0xff]
    %v4243 = vld [vmem:[%s4211 + $0xf8] sm:$0xff]
    %v4244 = vld [vmem:[%s4211 + $0x100] sm:$0xff]
    %v4245 = vld [vmem:[%s4211 + $0x108] sm:$0xff]
    %v4246 = vld [vmem:[%s4211 + $0x110] sm:$0xff]
    %v4247 = vld [vmem:[%s4211 + $0x118] sm:$0xff]
    %v4249 = vsel %vm4137, %v4210, 0
    %4251 = vmatpush.msra.mxu0 %v4242
    %4252 = vmatpush.msra.mxu0 %v4240
    %4253 = vmatpush.msra.mxu0 %v4238
    %4254 = vmatpush.msra.mxu0 %v4236
    %4255 = vmatpush.msra.mxu0 %v4234
    %4256 = vmatpush.msra.mxu0 %v4232
    %4257 = vmatpush.msra.mxu0 %v4230
    %4258 = vmatpush.msra.mxu0 %v4228
    %4259 = vmatpush.msra.mxu0 %v4226
    %4260 = vmatpush.msra.mxu0 %v4224
    %4261 = vmatpush.msra.mxu0 %v4222
    %4262 = vmatpush.msra.mxu0 %v4220
    %4263 = vmatpush.msra.mxu0 %v4218
    %4264 = vmatpush.msra.mxu0 %v4216
    %4265 = vmatpush.msra.mxu0 %v4214
    %4266 = vmatpush.msra.mxu0 %v4212
    %4267 = vmatmul.f32.gmra.mxu0 %v4209
    %v4268 = vpop.f32.mrf.mxu0
    %v4269 = vadd.f32 0.0, %v4268
    %4270 = vdwg.mxu0
    %4271 = vmatpush.msra.mxu0 0.0
    %4272 = vmatpush.msra.mxu0 0.0
    %4273 = vmatpush.msra.mxu0 0.0
    %4274 = vmatpush.msra.mxu0 0.0
    %4275 = vmatpush.msra.mxu0 0.0
    %4276 = vmatpush.msra.mxu0 0.0
    %4277 = vmatpush.msra.mxu0 0.0
    %4278 = vmatpush.msra.mxu0 0.0
    %4279 = vmatpush.msra.mxu0 0.0
    %4280 = vmatpush.msra.mxu0 0.0
    %4281 = vmatpush.msra.mxu0 0.0
    %4282 = vmatpush.msra.mxu0 0.0
    %4283 = vmatpush.msra.mxu0 0.0
    %4284 = vmatpush.msra.mxu0 0.0
    %4285 = vmatpush.msra.mxu0 %v4246
    %4286 = vmatpush.msra.mxu0 %v4244
    %4287 = vmatmul.f32.gmra.mxu0 %v4249
    %v4288 = vpop.f32.mrf.mxu0
    %v4289 = vadd.f32 %v4269, %v4288
    %4290 = vdwg.mxu0
    %4291 = vmatpush.msra.mxu0 %v4243
    %4292 = vmatpush.msra.mxu0 %v4241
    %4293 = vmatpush.msra.mxu0 %v4239
    %4294 = vmatpush.msra.mxu0 %v4237
    %4295 = vmatpush.msra.mxu0 %v4235
    %4296 = vmatpush.msra.mxu0 %v4233
    %4297 = vmatpush.msra.mxu0 %v4231
    %4298 = vmatpush.msra.mxu0 %v4229
    %4299 = vmatpush.msra.mxu0 %v4227
    %4300 = vmatpush.msra.mxu0 %v4225
    %4301 = vmatpush.msra.mxu0 %v4223
    %4302 = vmatpush.msra.mxu0 %v4221
    %4303 = vmatpush.msra.mxu0 %v4219
    %4304 = vmatpush.msra.mxu0 %v4217
    %4305 = vmatpush.msra.mxu0 %v4215
    %4306 = vmatpush.msra.mxu0 %v4213
    %4307 = vmatmul.f32.gmra.mxu0 %v4209
    %v4308 = vpop.f32.mrf.mxu0
    %v4309 = vadd.f32 0.0, %v4308
    %4310 = vdwg.mxu0
    %4311 = vmatpush.msra.mxu0 0.0
    %4312 = vmatpush.msra.mxu0 0.0
    %4313 = vmatpush.msra.mxu0 0.0
    %4314 = vmatpush.msra.mxu0 0.0
    %4315 = vmatpush.msra.mxu0 0.0
    %4316 = vmatpush.msra.mxu0 0.0
    %4317 = vmatpush.msra.mxu0 0.0
    %4318 = vmatpush.msra.mxu0 0.0
    %4319 = vmatpush.msra.mxu0 0.0
    %4320 = vmatpush.msra.mxu0 0.0
    %4321 = vmatpush.msra.mxu0 0.0
    %4322 = vmatpush.msra.mxu0 0.0
    %4323 = vmatpush.msra.mxu0 0.0
    %4324 = vmatpush.msra.mxu0 0.0
    %4325 = vmatpush.msra.mxu0 %v4247
    %4326 = vmatpush.msra.mxu0 %v4245
    %4327 = vmatmul.f32.gmra.mxu0 %v4249
    %v4328 = vpop.f32.mrf.mxu0
    %v4329 = vadd.f32 %v4309, %v4328
    %4330 = vdwg.mxu0
    %v4331 = vmul.f32 %v4289, 0.0034722222
    %v4332 = vmul.f32 %v4329, 0.0034722222
    %v4333 = vmul.f32 %v4331, %v4331
    %v4334 = vmul.f32 %v4332, %v4332
    %v4337 = vrot.slane %v4333, 7
    %v4338 = vrot.slane %v4334, 7
    %v4341 = vsub.f32 %v4331, %v4337
    %v4342 = vsub.f32 %v4332, %v4338
    %v4343 = vmax.f32 %v4341, 0.0
    %v4344 = vmax.f32 %v4342, 0.0
    %s4345 = scalar_lea.vmem [#allocation8], 16
    %v4346 = vld [vmem:[%s4345] ss:$2 sm:$0x3]
    %v4347 = vadd.f32 %v4343, 1e-05
    %v4348 = vadd.f32 %v4344, 1e-05
    %v4349 = vrsqrt.pop %v4347
    %v4350 = vmul.f32 %v4349, %v4347
    %v4351 = vmul.f32 %v4350, %v4349
    %v4352 = vmul.f32 0.5, %v4351
    %v4353 = vsub.f32 1.5, %v4352
    %v4354 = vmul.f32 %v4349, %v4353
    %vm4355 = vweird.f32 %v4347
    %vm4356 = vweird.f32 %v4349
    %vm4357 = vmor %vm4355, %vm4356
    %v4358 = vsel %vm4357, %v4349, %v4354
    %v4359 = vrsqrt.pop %v4348
    %v4360 = vmul.f32 %v4359, %v4348
    %v4361 = vmul.f32 %v4360, %v4359
    %v4362 = vmul.f32 0.5, %v4361
    %v4363 = vsub.f32 1.5, %v4362
    %v4364 = vmul.f32 %v4359, %v4363
    %vm4365 = vweird.f32 %v4348
    %vm4366 = vweird.f32 %v4359
    %vm4367 = vmor %vm4365, %vm4366
    %v4368 = vsel %vm4367, %v4359, %v4364
    %4371 = vst [vmem:[#allocation1] sm:$0xff] %v4358
    %4372 = vst [vmem:[#allocation1 + $0x9] sm:$0xff] %v4368
    %s4373 = scalar_lea.vmem [#allocation1], 1
    %v4374 = vld [vmem:[%s4373] ss:$9 sm:$0xff]
    %v4376 = vmul.f32 %v4346, %v4374
    %s4377 = scalar_lea.vmem %s4345, 1 [#allocation8]
    %v4378 = vld [vmem:[%s4377] ss:$2 sm:$0x3]
    %v4380 = vperm.slane %v4376, 0
    %v4381 = vperm.slane %v4376, 1
    %v4384 = vmul.f32 %v4331, %v4380
    %v4385 = vmul.f32 %v4332, %v4381
    %v4388 = vrot.slane %v4385, 7
    %v4389 = vsel %vm741, %v4384, %v4388
    %v4391 = vsub.f32 %v4378, %v4389
    %v4392 = vmul.f32 %v4076, %v4380
    %v4393 = vmul.f32 %v4077, %v4381
    %v4394 = vmul.f32 %v4078, %v4380
    %v4395 = vmul.f32 %v4079, %v4381
    %v4396 = vmul.f32 %v4080, %v4380
    %v4397 = vmul.f32 %v4081, %v4381
    %v4398 = vmul.f32 %v4082, %v4380
    %v4399 = vmul.f32 %v4083, %v4381
    %v4400 = vmul.f32 %v4084, %v4380
    %v4401 = vmul.f32 %v4085, %v4381
    %v4402 = vmul.f32 %v4086, %v4380
    %v4403 = vmul.f32 %v4087, %v4381
    %v4404 = vmul.f32 %v4088, %v4380
    %v4405 = vmul.f32 %v4089, %v4381
    %v4406 = vmul.f32 %v4090, %v4380
    %v4407 = vmul.f32 %v4091, %v4381
    %v4409 = vperm.slane %v4391, 0
    %v4410 = vperm.slane %v4391, 1
    %v4413 = vadd.f32 %v4392, %v4409
    %v4414 = vadd.f32 %v4393, %v4410
    %v4415 = vadd.f32 %v4394, %v4409
    %v4416 = vadd.f32 %v4395, %v4410
    %v4417 = vadd.f32 %v4396, %v4409
    %v4418 = vadd.f32 %v4397, %v4410
    %v4419 = vadd.f32 %v4398, %v4409
    %v4420 = vadd.f32 %v4399, %v4410
    %v4421 = vadd.f32 %v4400, %v4409
    %v4422 = vadd.f32 %v4401, %v4410
    %v4423 = vadd.f32 %v4402, %v4409
    %v4424 = vadd.f32 %v4403, %v4410
    %v4425 = vadd.f32 %v4404, %v4409
    %v4426 = vadd.f32 %v4405, %v4410
    %v4427 = vadd.f32 %v4406, %v4409
    %v4428 = vadd.f32 %v4407, %v4410
    %v4429 = vmax.f32 %v4413, 0.0
    %v4430 = vmax.f32 %v4414, 0.0
    %v4431 = vmax.f32 %v4415, 0.0
    %v4432 = vmax.f32 %v4416, 0.0
    %v4433 = vmax.f32 %v4417, 0.0
    %v4434 = vmax.f32 %v4418, 0.0
    %v4435 = vmax.f32 %v4419, 0.0
    %v4436 = vmax.f32 %v4420, 0.0
    %v4437 = vmax.f32 %v4421, 0.0
    %v4438 = vmax.f32 %v4422, 0.0
    %v4439 = vmax.f32 %v4423, 0.0
    %v4440 = vmax.f32 %v4424, 0.0
    %v4441 = vmax.f32 %v4425, 0.0
    %v4442 = vmax.f32 %v4426, 0.0
    %v4443 = vmax.f32 %v4427, 0.0
    %v4444 = vmax.f32 %v4428, 0.0
    %v4445 = vpack.c.bf16 %v4431, %v4429
    %v4446 = vpack.c.bf16 %v4432, %v4430
    %v4447 = vpack.c.bf16 %v4435, %v4433
    %v4448 = vpack.c.bf16 %v4436, %v4434
    %v4449 = vpack.c.bf16 %v4439, %v4437
    %v4450 = vpack.c.bf16 %v4440, %v4438
    %v4451 = vpack.c.bf16 %v4443, %v4441
    %v4452 = vpack.c.bf16 %v4444, %v4442
    %s4453 = scalar_lea.vmem [#allocation5], 3600
    %v4454 = vld [vmem:[%s4453] sm:$0xf]
    %v4455 = vld [vmem:[%s4453 + $0x8] sm:$0xf]
    %v4456 = vld [vmem:[%s4453 + $0x10] sm:$0xf]
    %v4457 = vld [vmem:[%s4453 + $0x18] sm:$0xf]
    %v4458 = vld [vmem:[%s4453 + $0x20] sm:$0xf]
    %v4459 = vld [vmem:[%s4453 + $0x28] sm:$0xf]
    %v4460 = vld [vmem:[%s4453 + $0x30] sm:$0xf]
    %v4461 = vld [vmem:[%s4453 + $0x38] sm:$0xf]
    %v4462 = vld [vmem:[%s4453 + $0x40] sm:$0xf]
    %v4463 = vld [vmem:[%s4453 + $0x48] sm:$0xf]
    %v4464 = vld [vmem:[%s4453 + $0x50] sm:$0xf]
    %v4465 = vld [vmem:[%s4453 + $0x58] sm:$0xf]
    %v4466 = vld [vmem:[%s4453 + $0x60] sm:$0xf]
    %v4467 = vld [vmem:[%s4453 + $0x68] sm:$0xf]
    %v4468 = vld [vmem:[%s4453 + $0x70] sm:$0xf]
    %v4469 = vld [vmem:[%s4453 + $0x78] sm:$0xf]
    %v4470 = vld [vmem:[%s4453 + $0x80] sm:$0xf]
    %v4471 = vld [vmem:[%s4453 + $0x88] sm:$0xf]
    %v4472 = vrot.slane %v4429, 1
    %v4473 = vrot.slane %v4430, 1
    %v4474 = vrot.slane %v4431, 1
    %v4475 = vrot.slane %v4432, 1
    %v4476 = vrot.slane %v4433, 1
    %v4477 = vrot.slane %v4434, 1
    %v4478 = vrot.slane %v4435, 1
    %v4479 = vrot.slane %v4436, 1
    %v4480 = vrot.slane %v4437, 1
    %v4481 = vrot.slane %v4438, 1
    %v4482 = vrot.slane %v4439, 1
    %v4483 = vrot.slane %v4440, 1
    %v4484 = vrot.slane %v4441, 1
    %v4485 = vrot.slane %v4442, 1
    %v4486 = vrot.slane %v4443, 1
    %v4487 = vrot.slane %v4444, 1
    %v4488 = vsel %vm280, %v4484, %v4486
    %v4489 = vsel %vm280, %v4485, %v4487
    %v4490 = vsel %vm280, %v4482, %v4484
    %v4491 = vsel %vm280, %v4483, %v4485
    %v4492 = vsel %vm280, %v4480, %v4482
    %v4493 = vsel %vm280, %v4481, %v4483
    %v4494 = vsel %vm280, %v4478, %v4480
    %v4495 = vsel %vm280, %v4479, %v4481
    %v4496 = vsel %vm280, %v4476, %v4478
    %v4497 = vsel %vm280, %v4477, %v4479
    %v4498 = vsel %vm280, %v4474, %v4476
    %v4499 = vsel %vm280, %v4475, %v4477
    %v4500 = vsel %vm280, %v4472, %v4474
    %v4501 = vsel %vm280, %v4473, %v4475
    %v4502 = vsel %vm280, %v4486, %v4472
    %v4503 = vsel %vm280, %v4487, %v4473
    %v4504 = vpack.c.bf16 %v4498, %v4500
    %v4505 = vpack.c.bf16 %v4499, %v4501
    %v4506 = vpack.c.bf16 %v4494, %v4496
    %v4507 = vpack.c.bf16 %v4495, %v4497
    %v4508 = vpack.c.bf16 %v4490, %v4492
    %v4509 = vpack.c.bf16 %v4491, %v4493
    %v4510 = vpack.c.bf16 %v4502, %v4488
    %v4511 = vpack.c.bf16 %v4503, %v4489
    %s4512 = scalar_lea.vmem [#allocation5], 3744
    %v4513 = vld [vmem:[%s4512] sm:$0xf]
    %v4514 = vld [vmem:[%s4512 + $0x8] sm:$0xf]
    %v4515 = vld [vmem:[%s4512 + $0x10] sm:$0xf]
    %v4516 = vld [vmem:[%s4512 + $0x18] sm:$0xf]
    %v4517 = vld [vmem:[%s4512 + $0x20] sm:$0xf]
    %v4518 = vld [vmem:[%s4512 + $0x28] sm:$0xf]
    %v4519 = vld [vmem:[%s4512 + $0x30] sm:$0xf]
    %v4520 = vld [vmem:[%s4512 + $0x38] sm:$0xf]
    %v4521 = vld [vmem:[%s4512 + $0x40] sm:$0xf]
    %v4522 = vld [vmem:[%s4512 + $0x48] sm:$0xf]
    %v4523 = vld [vmem:[%s4512 + $0x50] sm:$0xf]
    %v4524 = vld [vmem:[%s4512 + $0x58] sm:$0xf]
    %v4525 = vld [vmem:[%s4512 + $0x60] sm:$0xf]
    %v4526 = vld [vmem:[%s4512 + $0x68] sm:$0xf]
    %v4527 = vld [vmem:[%s4512 + $0x70] sm:$0xf]
    %v4528 = vld [vmem:[%s4512 + $0x78] sm:$0xf]
    %v4529 = vld [vmem:[%s4512 + $0x80] sm:$0xf]
    %v4530 = vld [vmem:[%s4512 + $0x88] sm:$0xf]
    %v4549 = vunpack.c.l.b16 %v4513
    %v4550 = vunpack.c.l.b16 %v4514
    %v4551 = vunpack.c.l.b16 %v4515
    %v4552 = vunpack.c.l.b16 %v4516
    %v4553 = vunpack.c.l.b16 %v4517
    %v4554 = vunpack.c.l.b16 %v4518
    %v4555 = vunpack.c.l.b16 %v4519
    %v4556 = vunpack.c.l.b16 %v4520
    %v4557 = vunpack.c.l.b16 %v4521
    %v4558 = vunpack.c.l.b16 %v4522
    %v4559 = vunpack.c.l.b16 %v4523
    %v4560 = vunpack.c.l.b16 %v4524
    %v4561 = vunpack.c.l.b16 %v4525
    %v4562 = vunpack.c.l.b16 %v4526
    %v4563 = vunpack.c.l.b16 %v4527
    %v4564 = vunpack.c.l.b16 %v4528
    %v4565 = vunpack.c.l.b16 %v4529
    %v4566 = vunpack.c.l.b16 %v4530
    %v4567 = vpack.c.b16 %v4550, %v4549
    %v4568 = vpack.c.b16 %v4552, %v4551
    %v4569 = vpack.c.b16 %v4554, %v4553
    %v4570 = vpack.c.b16 %v4556, %v4555
    %v4571 = vpack.c.b16 %v4558, %v4557
    %v4572 = vpack.c.b16 %v4560, %v4559
    %v4573 = vpack.c.b16 %v4562, %v4561
    %v4574 = vpack.c.b16 %v4564, %v4563
    %v4575 = vpack.c.b16 %v4566, %v4565
    %v4586 = vsel %vm4137, %v4505, 0
    %v4589 = vsel %vm4137, %v4507, 0
    %v4592 = vsel %vm4137, %v4509, 0
    %v4595 = vsel %vm4137, %v4511, 0
    %4597 = vmatpush.bf16.msra.mxu0 %v4574
    %4598 = vmatpush.bf16.msra.mxu0 %v4573
    %4599 = vmatpush.bf16.msra.mxu0 %v4572
    %4600 = vmatpush.bf16.msra.mxu0 %v4571
    %4601 = vmatpush.bf16.msra.mxu0 %v4570
    %4602 = vmatpush.bf16.msra.mxu0 %v4569
    %4603 = vmatpush.bf16.msra.mxu0 %v4568
    %4604 = vmatpush.bf16.msra.mxu0 %v4567
    %4605 = vmatmul.bf16.gmra.mxu0 %v4504
    %v4606 = vpop.f32.mrf.mxu0
    %v4607 = vadd.f32 0.0, %v4606
    %v4608 = vpop.f32.mrf.mxu0
    %v4609 = vadd.f32 0.0, %v4608
    %4610 = vmatmul.bf16.gmra.mxu0 %v4506
    %v4611 = vpop.f32.mrf.mxu0
    %v4612 = vadd.f32 0.0, %v4611
    %v4613 = vpop.f32.mrf.mxu0
    %v4614 = vadd.f32 0.0, %v4613
    %4615 = vmatmul.bf16.gmra.mxu0 %v4508
    %v4616 = vpop.f32.mrf.mxu0
    %v4617 = vadd.f32 0.0, %v4616
    %v4618 = vpop.f32.mrf.mxu0
    %v4619 = vadd.f32 0.0, %v4618
    %4620 = vmatmul.bf16.gmra.mxu0 %v4510
    %v4621 = vpop.f32.mrf.mxu0
    %v4622 = vadd.f32 0.0, %v4621
    %v4623 = vpop.f32.mrf.mxu0
    %v4624 = vadd.f32 0.0, %v4623
    %4625 = vdwg.mxu0
    %4626 = vmatpush.bf16.msra.mxu0 0
    %4627 = vmatpush.bf16.msra.mxu0 0
    %4628 = vmatpush.bf16.msra.mxu0 0
    %4629 = vmatpush.bf16.msra.mxu0 0
    %4630 = vmatpush.bf16.msra.mxu0 0
    %4631 = vmatpush.bf16.msra.mxu0 0
    %4632 = vmatpush.bf16.msra.mxu0 0
    %4633 = vmatpush.bf16.msra.mxu0 %v4575
    %4634 = vmatmul.bf16.gmra.mxu0 %v4586
    %v4635 = vpop.f32.mrf.mxu0
    %v4636 = vadd.f32 %v4607, %v4635
    %v4637 = vpop.f32.mrf.mxu0
    %v4638 = vadd.f32 %v4609, %v4637
    %4639 = vmatmul.bf16.gmra.mxu0 %v4589
    %v4640 = vpop.f32.mrf.mxu0
    %v4641 = vadd.f32 %v4612, %v4640
    %v4642 = vpop.f32.mrf.mxu0
    %v4643 = vadd.f32 %v4614, %v4642
    %4644 = vmatmul.bf16.gmra.mxu0 %v4592
    %v4645 = vpop.f32.mrf.mxu0
    %v4646 = vadd.f32 %v4617, %v4645
    %v4647 = vpop.f32.mrf.mxu0
    %v4648 = vadd.f32 %v4619, %v4647
    %4649 = vmatmul.bf16.gmra.mxu0 %v4595
    %v4650 = vpop.f32.mrf.mxu0
    %v4651 = vadd.f32 %v4622, %v4650
    %v4652 = vpop.f32.mrf.mxu0
    %v4653 = vadd.f32 %v4624, %v4652
    %4654 = vdwg.mxu0
    %v4673 = vunpack.c.l.b16 %v4454
    %v4674 = vunpack.c.l.b16 %v4455
    %v4675 = vunpack.c.l.b16 %v4456
    %v4676 = vunpack.c.l.b16 %v4457
    %v4677 = vunpack.c.l.b16 %v4458
    %v4678 = vunpack.c.l.b16 %v4459
    %v4679 = vunpack.c.l.b16 %v4460
    %v4680 = vunpack.c.l.b16 %v4461
    %v4681 = vunpack.c.l.b16 %v4462
    %v4682 = vunpack.c.l.b16 %v4463
    %v4683 = vunpack.c.l.b16 %v4464
    %v4684 = vunpack.c.l.b16 %v4465
    %v4685 = vunpack.c.l.b16 %v4466
    %v4686 = vunpack.c.l.b16 %v4467
    %v4687 = vunpack.c.l.b16 %v4468
    %v4688 = vunpack.c.l.b16 %v4469
    %v4689 = vunpack.c.l.b16 %v4470
    %v4690 = vunpack.c.l.b16 %v4471
    %v4691 = vpack.c.b16 %v4674, %v4673
    %v4692 = vpack.c.b16 %v4676, %v4675
    %v4693 = vpack.c.b16 %v4678, %v4677
    %v4694 = vpack.c.b16 %v4680, %v4679
    %v4695 = vpack.c.b16 %v4682, %v4681
    %v4696 = vpack.c.b16 %v4684, %v4683
    %v4697 = vpack.c.b16 %v4686, %v4685
    %v4698 = vpack.c.b16 %v4688, %v4687
    %v4699 = vpack.c.b16 %v4690, %v4689
    %v4710 = vsel %vm4137, %v4446, 0
    %v4713 = vsel %vm4137, %v4448, 0
    %v4716 = vsel %vm4137, %v4450, 0
    %v4719 = vsel %vm4137, %v4452, 0
    %4721 = vmatpush.bf16.msra.mxu0 %v4698
    %4722 = vmatpush.bf16.msra.mxu0 %v4697
    %4723 = vmatpush.bf16.msra.mxu0 %v4696
    %4724 = vmatpush.bf16.msra.mxu0 %v4695
    %4725 = vmatpush.bf16.msra.mxu0 %v4694
    %4726 = vmatpush.bf16.msra.mxu0 %v4693
    %4727 = vmatpush.bf16.msra.mxu0 %v4692
    %4728 = vmatpush.bf16.msra.mxu0 %v4691
    %4729 = vmatmul.bf16.gmra.mxu0 %v4445
    %v4730 = vpop.f32.mrf.mxu0
    %v4731 = vadd.f32 %v4636, %v4730
    %v4732 = vpop.f32.mrf.mxu0
    %v4733 = vadd.f32 %v4638, %v4732
    %4734 = vmatmul.bf16.gmra.mxu0 %v4447
    %v4735 = vpop.f32.mrf.mxu0
    %v4736 = vadd.f32 %v4641, %v4735
    %v4737 = vpop.f32.mrf.mxu0
    %v4738 = vadd.f32 %v4643, %v4737
    %4739 = vmatmul.bf16.gmra.mxu0 %v4449
    %v4740 = vpop.f32.mrf.mxu0
    %v4741 = vadd.f32 %v4646, %v4740
    %v4742 = vpop.f32.mrf.mxu0
    %v4743 = vadd.f32 %v4648, %v4742
    %4744 = vmatmul.bf16.gmra.mxu0 %v4451
    %v4745 = vpop.f32.mrf.mxu0
    %v4746 = vadd.f32 %v4651, %v4745
    %v4747 = vpop.f32.mrf.mxu0
    %v4748 = vadd.f32 %v4653, %v4747
    %4749 = vdwg.mxu0
    %4750 = vmatpush.bf16.msra.mxu0 0
    %4751 = vmatpush.bf16.msra.mxu0 0
    %4752 = vmatpush.bf16.msra.mxu0 0
    %4753 = vmatpush.bf16.msra.mxu0 0
    %4754 = vmatpush.bf16.msra.mxu0 0
    %4755 = vmatpush.bf16.msra.mxu0 0
    %4756 = vmatpush.bf16.msra.mxu0 0
    %4757 = vmatpush.bf16.msra.mxu0 %v4699
    %4758 = vmatmul.bf16.gmra.mxu0 %v4710
    %v4759 = vpop.f32.mrf.mxu0
    %v4760 = vadd.f32 %v4731, %v4759
    %v4761 = vpop.f32.mrf.mxu0
    %v4762 = vadd.f32 %v4733, %v4761
    %4763 = vmatmul.bf16.gmra.mxu0 %v4713
    %v4764 = vpop.f32.mrf.mxu0
    %v4765 = vadd.f32 %v4736, %v4764
    %v4766 = vpop.f32.mrf.mxu0
    %v4767 = vadd.f32 %v4738, %v4766
    %4768 = vmatmul.bf16.gmra.mxu0 %v4716
    %v4769 = vpop.f32.mrf.mxu0
    %v4770 = vadd.f32 %v4741, %v4769
    %v4771 = vpop.f32.mrf.mxu0
    %v4772 = vadd.f32 %v4743, %v4771
    %4773 = vmatmul.bf16.gmra.mxu0 %v4719
    %v4774 = vpop.f32.mrf.mxu0
    %v4775 = vadd.f32 %v4746, %v4774
    %v4776 = vpop.f32.mrf.mxu0
    %v4777 = vadd.f32 %v4748, %v4776
    %4778 = vdwg.mxu0
    %v4779 = vrot.slane %v4429, 2
    %v4780 = vrot.slane %v4430, 2
    %v4781 = vrot.slane %v4431, 2
    %v4782 = vrot.slane %v4432, 2
    %v4783 = vrot.slane %v4433, 2
    %v4784 = vrot.slane %v4434, 2
    %v4785 = vrot.slane %v4435, 2
    %v4786 = vrot.slane %v4436, 2
    %v4787 = vrot.slane %v4437, 2
    %v4788 = vrot.slane %v4438, 2
    %v4789 = vrot.slane %v4439, 2
    %v4790 = vrot.slane %v4440, 2
    %v4791 = vrot.slane %v4441, 2
    %v4792 = vrot.slane %v4442, 2
    %v4793 = vrot.slane %v4443, 2
    %v4794 = vrot.slane %v4444, 2
    %v4795 = vsel %vm413, %v4791, %v4793
    %v4796 = vsel %vm413, %v4792, %v4794
    %v4797 = vsel %vm413, %v4789, %v4791
    %v4798 = vsel %vm413, %v4790, %v4792
    %v4799 = vsel %vm413, %v4787, %v4789
    %v4800 = vsel %vm413, %v4788, %v4790
    %v4801 = vsel %vm413, %v4785, %v4787
    %v4802 = vsel %vm413, %v4786, %v4788
    %v4803 = vsel %vm413, %v4783, %v4785
    %v4804 = vsel %vm413, %v4784, %v4786
    %v4805 = vsel %vm413, %v4781, %v4783
    %v4806 = vsel %vm413, %v4782, %v4784
    %v4807 = vsel %vm413, %v4779, %v4781
    %v4808 = vsel %vm413, %v4780, %v4782
    %v4809 = vsel %vm413, %v4793, %v4779
    %v4810 = vsel %vm413, %v4794, %v4780
    %v4811 = vpack.c.bf16 %v4805, %v4807
    %v4812 = vpack.c.bf16 %v4806, %v4808
    %v4813 = vpack.c.bf16 %v4801, %v4803
    %v4814 = vpack.c.bf16 %v4802, %v4804
    %v4815 = vpack.c.bf16 %v4797, %v4799
    %v4816 = vpack.c.bf16 %v4798, %v4800
    %v4817 = vpack.c.bf16 %v4809, %v4795
    %v4818 = vpack.c.bf16 %v4810, %v4796
    %s4819 = scalar_lea.vmem [#allocation5], 3888
    %v4820 = vld [vmem:[%s4819] sm:$0xf]
    %v4821 = vld [vmem:[%s4819 + $0x8] sm:$0xf]
    %v4822 = vld [vmem:[%s4819 + $0x10] sm:$0xf]
    %v4823 = vld [vmem:[%s4819 + $0x18] sm:$0xf]
    %v4824 = vld [vmem:[%s4819 + $0x20] sm:$0xf]
    %v4825 = vld [vmem:[%s4819 + $0x28] sm:$0xf]
    %v4826 = vld [vmem:[%s4819 + $0x30] sm:$0xf]
    %v4827 = vld [vmem:[%s4819 + $0x38] sm:$0xf]
    %v4828 = vld [vmem:[%s4819 + $0x40] sm:$0xf]
    %v4829 = vld [vmem:[%s4819 + $0x48] sm:$0xf]
    %v4830 = vld [vmem:[%s4819 + $0x50] sm:$0xf]
    %v4831 = vld [vmem:[%s4819 + $0x58] sm:$0xf]
    %v4832 = vld [vmem:[%s4819 + $0x60] sm:$0xf]
    %v4833 = vld [vmem:[%s4819 + $0x68] sm:$0xf]
    %v4834 = vld [vmem:[%s4819 + $0x70] sm:$0xf]
    %v4835 = vld [vmem:[%s4819 + $0x78] sm:$0xf]
    %v4836 = vld [vmem:[%s4819 + $0x80] sm:$0xf]
    %v4837 = vld [vmem:[%s4819 + $0x88] sm:$0xf]
    %v4856 = vunpack.c.l.b16 %v4820
    %v4857 = vunpack.c.l.b16 %v4821
    %v4858 = vunpack.c.l.b16 %v4822
    %v4859 = vunpack.c.l.b16 %v4823
    %v4860 = vunpack.c.l.b16 %v4824
    %v4861 = vunpack.c.l.b16 %v4825
    %v4862 = vunpack.c.l.b16 %v4826
    %v4863 = vunpack.c.l.b16 %v4827
    %v4864 = vunpack.c.l.b16 %v4828
    %v4865 = vunpack.c.l.b16 %v4829
    %v4866 = vunpack.c.l.b16 %v4830
    %v4867 = vunpack.c.l.b16 %v4831
    %v4868 = vunpack.c.l.b16 %v4832
    %v4869 = vunpack.c.l.b16 %v4833
    %v4870 = vunpack.c.l.b16 %v4834
    %v4871 = vunpack.c.l.b16 %v4835
    %v4872 = vunpack.c.l.b16 %v4836
    %v4873 = vunpack.c.l.b16 %v4837
    %v4874 = vpack.c.b16 %v4857, %v4856
    %v4875 = vpack.c.b16 %v4859, %v4858
    %v4876 = vpack.c.b16 %v4861, %v4860
    %v4877 = vpack.c.b16 %v4863, %v4862
    %v4878 = vpack.c.b16 %v4865, %v4864
    %v4879 = vpack.c.b16 %v4867, %v4866
    %v4880 = vpack.c.b16 %v4869, %v4868
    %v4881 = vpack.c.b16 %v4871, %v4870
    %v4882 = vpack.c.b16 %v4873, %v4872
    %v4893 = vsel %vm4137, %v4812, 0
    %v4896 = vsel %vm4137, %v4814, 0
    %v4899 = vsel %vm4137, %v4816, 0
    %v4902 = vsel %vm4137, %v4818, 0
    %4904 = vmatpush.bf16.msra.mxu0 %v4881
    %4905 = vmatpush.bf16.msra.mxu0 %v4880
    %4906 = vmatpush.bf16.msra.mxu0 %v4879
    %4907 = vmatpush.bf16.msra.mxu0 %v4878
    %4908 = vmatpush.bf16.msra.mxu0 %v4877
    %4909 = vmatpush.bf16.msra.mxu0 %v4876
    %4910 = vmatpush.bf16.msra.mxu0 %v4875
    %4911 = vmatpush.bf16.msra.mxu0 %v4874
    %4912 = vmatmul.bf16.gmra.mxu0 %v4811
    %v4913 = vpop.f32.mrf.mxu0
    %v4914 = vadd.f32 0.0, %v4913
    %v4915 = vpop.f32.mrf.mxu0
    %v4916 = vadd.f32 0.0, %v4915
    %4917 = vmatmul.bf16.gmra.mxu0 %v4813
    %v4918 = vpop.f32.mrf.mxu0
    %v4919 = vadd.f32 0.0, %v4918
    %v4920 = vpop.f32.mrf.mxu0
    %v4921 = vadd.f32 0.0, %v4920
    %4922 = vmatmul.bf16.gmra.mxu0 %v4815
    %v4923 = vpop.f32.mrf.mxu0
    %v4924 = vadd.f32 0.0, %v4923
    %v4925 = vpop.f32.mrf.mxu0
    %v4926 = vadd.f32 0.0, %v4925
    %4927 = vmatmul.bf16.gmra.mxu0 %v4817
    %v4928 = vpop.f32.mrf.mxu0
    %v4929 = vadd.f32 0.0, %v4928
    %v4930 = vpop.f32.mrf.mxu0
    %v4931 = vadd.f32 0.0, %v4930
    %4932 = vdwg.mxu0
    %4933 = vmatpush.bf16.msra.mxu0 0
    %4934 = vmatpush.bf16.msra.mxu0 0
    %4935 = vmatpush.bf16.msra.mxu0 0
    %4936 = vmatpush.bf16.msra.mxu0 0
    %4937 = vmatpush.bf16.msra.mxu0 0
    %4938 = vmatpush.bf16.msra.mxu0 0
    %4939 = vmatpush.bf16.msra.mxu0 0
    %4940 = vmatpush.bf16.msra.mxu0 %v4882
    %4941 = vmatmul.bf16.gmra.mxu0 %v4893
    %v4942 = vpop.f32.mrf.mxu0
    %v4943 = vadd.f32 %v4914, %v4942
    %v4944 = vpop.f32.mrf.mxu0
    %v4945 = vadd.f32 %v4916, %v4944
    %4946 = vmatmul.bf16.gmra.mxu0 %v4896
    %v4947 = vpop.f32.mrf.mxu0
    %v4948 = vadd.f32 %v4919, %v4947
    %v4949 = vpop.f32.mrf.mxu0
    %v4950 = vadd.f32 %v4921, %v4949
    %4951 = vmatmul.bf16.gmra.mxu0 %v4899
    %v4952 = vpop.f32.mrf.mxu0
    %v4953 = vadd.f32 %v4924, %v4952
    %v4954 = vpop.f32.mrf.mxu0
    %v4955 = vadd.f32 %v4926, %v4954
    %4956 = vmatmul.bf16.gmra.mxu0 %v4902
    %v4957 = vpop.f32.mrf.mxu0
    %v4958 = vadd.f32 %v4929, %v4957
    %v4959 = vpop.f32.mrf.mxu0
    %v4960 = vadd.f32 %v4931, %v4959
    %4961 = vdwg.mxu0
    %v4962 = vadd.f32 %v4760, %v4943
    %v4963 = vadd.f32 %v4762, %v4945
    %v4964 = vadd.f32 %v4765, %v4948
    %v4965 = vadd.f32 %v4767, %v4950
    %v4966 = vadd.f32 %v4770, %v4953
    %v4967 = vadd.f32 %v4772, %v4955
    %v4968 = vadd.f32 %v4775, %v4958
    %v4969 = vadd.f32 %v4777, %v4960
    %v4970 = vrot.slane %v4429, 3
    %v4971 = vrot.slane %v4430, 3
    %v4972 = vrot.slane %v4431, 3
    %v4973 = vrot.slane %v4432, 3
    %v4974 = vrot.slane %v4433, 3
    %v4975 = vrot.slane %v4434, 3
    %v4976 = vrot.slane %v4435, 3
    %v4977 = vrot.slane %v4436, 3
    %v4978 = vrot.slane %v4437, 3
    %v4979 = vrot.slane %v4438, 3
    %v4980 = vrot.slane %v4439, 3
    %v4981 = vrot.slane %v4440, 3
    %v4982 = vrot.slane %v4441, 3
    %v4983 = vrot.slane %v4442, 3
    %v4984 = vrot.slane %v4443, 3
    %v4985 = vrot.slane %v4444, 3
    %v4986 = vsel %vm500, %v4982, %v4984
    %v4987 = vsel %vm500, %v4983, %v4985
    %v4988 = vsel %vm500, %v4980, %v4982
    %v4989 = vsel %vm500, %v4981, %v4983
    %v4990 = vsel %vm500, %v4978, %v4980
    %v4991 = vsel %vm500, %v4979, %v4981
    %v4992 = vsel %vm500, %v4976, %v4978
    %v4993 = vsel %vm500, %v4977, %v4979
    %v4994 = vsel %vm500, %v4974, %v4976
    %v4995 = vsel %vm500, %v4975, %v4977
    %v4996 = vsel %vm500, %v4972, %v4974
    %v4997 = vsel %vm500, %v4973, %v4975
    %v4998 = vsel %vm500, %v4970, %v4972
    %v4999 = vsel %vm500, %v4971, %v4973
    %v5000 = vsel %vm500, %v4984, %v4970
    %v5001 = vsel %vm500, %v4985, %v4971
    %v5002 = vpack.c.bf16 %v4996, %v4998
    %v5003 = vpack.c.bf16 %v4997, %v4999
    %v5004 = vpack.c.bf16 %v4992, %v4994
    %v5005 = vpack.c.bf16 %v4993, %v4995
    %v5006 = vpack.c.bf16 %v4988, %v4990
    %v5007 = vpack.c.bf16 %v4989, %v4991
    %v5008 = vpack.c.bf16 %v5000, %v4986
    %v5009 = vpack.c.bf16 %v5001, %v4987
    %s5010 = scalar_lea.vmem [#allocation5], 4032
    %v5011 = vld [vmem:[%s5010] sm:$0xf]
    %v5012 = vld [vmem:[%s5010 + $0x8] sm:$0xf]
    %v5013 = vld [vmem:[%s5010 + $0x10] sm:$0xf]
    %v5014 = vld [vmem:[%s5010 + $0x18] sm:$0xf]
    %v5015 = vld [vmem:[%s5010 + $0x20] sm:$0xf]
    %v5016 = vld [vmem:[%s5010 + $0x28] sm:$0xf]
    %v5017 = vld [vmem:[%s5010 + $0x30] sm:$0xf]
    %v5018 = vld [vmem:[%s5010 + $0x38] sm:$0xf]
    %v5019 = vld [vmem:[%s5010 + $0x40] sm:$0xf]
    %v5020 = vld [vmem:[%s5010 + $0x48] sm:$0xf]
    %v5021 = vld [vmem:[%s5010 + $0x50] sm:$0xf]
    %v5022 = vld [vmem:[%s5010 + $0x58] sm:$0xf]
    %v5023 = vld [vmem:[%s5010 + $0x60] sm:$0xf]
    %v5024 = vld [vmem:[%s5010 + $0x68] sm:$0xf]
    %v5025 = vld [vmem:[%s5010 + $0x70] sm:$0xf]
    %v5026 = vld [vmem:[%s5010 + $0x78] sm:$0xf]
    %v5027 = vld [vmem:[%s5010 + $0x80] sm:$0xf]
    %v5028 = vld [vmem:[%s5010 + $0x88] sm:$0xf]
    %v5047 = vunpack.c.l.b16 %v5011
    %v5048 = vunpack.c.l.b16 %v5012
    %v5049 = vunpack.c.l.b16 %v5013
    %v5050 = vunpack.c.l.b16 %v5014
    %v5051 = vunpack.c.l.b16 %v5015
    %v5052 = vunpack.c.l.b16 %v5016
    %v5053 = vunpack.c.l.b16 %v5017
    %v5054 = vunpack.c.l.b16 %v5018
    %v5055 = vunpack.c.l.b16 %v5019
    %v5056 = vunpack.c.l.b16 %v5020
    %v5057 = vunpack.c.l.b16 %v5021
    %v5058 = vunpack.c.l.b16 %v5022
    %v5059 = vunpack.c.l.b16 %v5023
    %v5060 = vunpack.c.l.b16 %v5024
    %v5061 = vunpack.c.l.b16 %v5025
    %v5062 = vunpack.c.l.b16 %v5026
    %v5063 = vunpack.c.l.b16 %v5027
    %v5064 = vunpack.c.l.b16 %v5028
    %v5065 = vpack.c.b16 %v5048, %v5047
    %v5066 = vpack.c.b16 %v5050, %v5049
    %v5067 = vpack.c.b16 %v5052, %v5051
    %v5068 = vpack.c.b16 %v5054, %v5053
    %v5069 = vpack.c.b16 %v5056, %v5055
    %v5070 = vpack.c.b16 %v5058, %v5057
    %v5071 = vpack.c.b16 %v5060, %v5059
    %v5072 = vpack.c.b16 %v5062, %v5061
    %v5073 = vpack.c.b16 %v5064, %v5063
    %v5084 = vsel %vm4137, %v5003, 0
    %v5087 = vsel %vm4137, %v5005, 0
    %v5090 = vsel %vm4137, %v5007, 0
    %v5093 = vsel %vm4137, %v5009, 0
    %5095 = vmatpush.bf16.msra.mxu0 %v5072
    %5096 = vmatpush.bf16.msra.mxu0 %v5071
    %5097 = vmatpush.bf16.msra.mxu0 %v5070
    %5098 = vmatpush.bf16.msra.mxu0 %v5069
    %5099 = vmatpush.bf16.msra.mxu0 %v5068
    %5100 = vmatpush.bf16.msra.mxu0 %v5067
    %5101 = vmatpush.bf16.msra.mxu0 %v5066
    %5102 = vmatpush.bf16.msra.mxu0 %v5065
    %5103 = vmatmul.bf16.gmra.mxu0 %v5002
    %v5104 = vpop.f32.mrf.mxu0
    %v5105 = vadd.f32 0.0, %v5104
    %v5106 = vpop.f32.mrf.mxu0
    %v5107 = vadd.f32 0.0, %v5106
    %5108 = vmatmul.bf16.gmra.mxu0 %v5004
    %v5109 = vpop.f32.mrf.mxu0
    %v5110 = vadd.f32 0.0, %v5109
    %v5111 = vpop.f32.mrf.mxu0
    %v5112 = vadd.f32 0.0, %v5111
    %5113 = vmatmul.bf16.gmra.mxu0 %v5006
    %v5114 = vpop.f32.mrf.mxu0
    %v5115 = vadd.f32 0.0, %v5114
    %v5116 = vpop.f32.mrf.mxu0
    %v5117 = vadd.f32 0.0, %v5116
    %5118 = vmatmul.bf16.gmra.mxu0 %v5008
    %v5119 = vpop.f32.mrf.mxu0
    %v5120 = vadd.f32 0.0, %v5119
    %v5121 = vpop.f32.mrf.mxu0
    %v5122 = vadd.f32 0.0, %v5121
    %5123 = vdwg.mxu0
    %5124 = vmatpush.bf16.msra.mxu0 0
    %5125 = vmatpush.bf16.msra.mxu0 0
    %5126 = vmatpush.bf16.msra.mxu0 0
    %5127 = vmatpush.bf16.msra.mxu0 0
    %5128 = vmatpush.bf16.msra.mxu0 0
    %5129 = vmatpush.bf16.msra.mxu0 0
    %5130 = vmatpush.bf16.msra.mxu0 0
    %5131 = vmatpush.bf16.msra.mxu0 %v5073
    %5132 = vmatmul.bf16.gmra.mxu0 %v5084
    %v5133 = vpop.f32.mrf.mxu0
    %v5134 = vadd.f32 %v5105, %v5133
    %v5135 = vpop.f32.mrf.mxu0
    %v5136 = vadd.f32 %v5107, %v5135
    %5137 = vmatmul.bf16.gmra.mxu0 %v5087
    %v5138 = vpop.f32.mrf.mxu0
    %v5139 = vadd.f32 %v5110, %v5138
    %v5140 = vpop.f32.mrf.mxu0
    %v5141 = vadd.f32 %v5112, %v5140
    %5142 = vmatmul.bf16.gmra.mxu0 %v5090
    %v5143 = vpop.f32.mrf.mxu0
    %v5144 = vadd.f32 %v5115, %v5143
    %v5145 = vpop.f32.mrf.mxu0
    %v5146 = vadd.f32 %v5117, %v5145
    %5147 = vmatmul.bf16.gmra.mxu0 %v5093
    %v5148 = vpop.f32.mrf.mxu0
    %v5149 = vadd.f32 %v5120, %v5148
    %v5150 = vpop.f32.mrf.mxu0
    %v5151 = vadd.f32 %v5122, %v5150
    %5152 = vdwg.mxu0
    %v5153 = vadd.f32 %v4962, %v5134
    %v5154 = vadd.f32 %v4963, %v5136
    %v5155 = vadd.f32 %v4964, %v5139
    %v5156 = vadd.f32 %v4965, %v5141
    %v5157 = vadd.f32 %v4966, %v5144
    %v5158 = vadd.f32 %v4967, %v5146
    %v5159 = vadd.f32 %v4968, %v5149
    %v5160 = vadd.f32 %v4969, %v5151
    %v5161 = vrot.slane %v4429, 4
    %v5162 = vrot.slane %v4430, 4
    %v5163 = vrot.slane %v4431, 4
    %v5164 = vrot.slane %v4432, 4
    %v5165 = vrot.slane %v4433, 4
    %v5166 = vrot.slane %v4434, 4
    %v5167 = vrot.slane %v4435, 4
    %v5168 = vrot.slane %v4436, 4
    %v5169 = vrot.slane %v4437, 4
    %v5170 = vrot.slane %v4438, 4
    %v5171 = vrot.slane %v4439, 4
    %v5172 = vrot.slane %v4440, 4
    %v5173 = vrot.slane %v4441, 4
    %v5174 = vrot.slane %v4442, 4
    %v5175 = vrot.slane %v4443, 4
    %v5176 = vrot.slane %v4444, 4
    %v5177 = vsel %vm587, %v5173, %v5175
    %v5178 = vsel %vm587, %v5174, %v5176
    %v5179 = vsel %vm587, %v5171, %v5173
    %v5180 = vsel %vm587, %v5172, %v5174
    %v5181 = vsel %vm587, %v5169, %v5171
    %v5182 = vsel %vm587, %v5170, %v5172
    %v5183 = vsel %vm587, %v5167, %v5169
    %v5184 = vsel %vm587, %v5168, %v5170
    %v5185 = vsel %vm587, %v5165, %v5167
    %v5186 = vsel %vm587, %v5166, %v5168
    %v5187 = vsel %vm587, %v5163, %v5165
    %v5188 = vsel %vm587, %v5164, %v5166
    %v5189 = vsel %vm587, %v5161, %v5163
    %v5190 = vsel %vm587, %v5162, %v5164
    %v5191 = vsel %vm587, %v5175, %v5161
    %v5192 = vsel %vm587, %v5176, %v5162
    %v5193 = vpack.c.bf16 %v5187, %v5189
    %v5194 = vpack.c.bf16 %v5188, %v5190
    %v5195 = vpack.c.bf16 %v5183, %v5185
    %v5196 = vpack.c.bf16 %v5184, %v5186
    %v5197 = vpack.c.bf16 %v5179, %v5181
    %v5198 = vpack.c.bf16 %v5180, %v5182
    %v5199 = vpack.c.bf16 %v5191, %v5177
    %v5200 = vpack.c.bf16 %v5192, %v5178
    %s5201 = scalar_lea.vmem [#allocation5], 4176
    %v5202 = vld [vmem:[%s5201] sm:$0xf]
    %v5203 = vld [vmem:[%s5201 + $0x8] sm:$0xf]
    %v5204 = vld [vmem:[%s5201 + $0x10] sm:$0xf]
    %v5205 = vld [vmem:[%s5201 + $0x18] sm:$0xf]
    %v5206 = vld [vmem:[%s5201 + $0x20] sm:$0xf]
    %v5207 = vld [vmem:[%s5201 + $0x28] sm:$0xf]
    %v5208 = vld [vmem:[%s5201 + $0x30] sm:$0xf]
    %v5209 = vld [vmem:[%s5201 + $0x38] sm:$0xf]
    %v5210 = vld [vmem:[%s5201 + $0x40] sm:$0xf]
    %v5211 = vld [vmem:[%s5201 + $0x48] sm:$0xf]
    %v5212 = vld [vmem:[%s5201 + $0x50] sm:$0xf]
    %v5213 = vld [vmem:[%s5201 + $0x58] sm:$0xf]
    %v5214 = vld [vmem:[%s5201 + $0x60] sm:$0xf]
    %v5215 = vld [vmem:[%s5201 + $0x68] sm:$0xf]
    %v5216 = vld [vmem:[%s5201 + $0x70] sm:$0xf]
    %v5217 = vld [vmem:[%s5201 + $0x78] sm:$0xf]
    %v5218 = vld [vmem:[%s5201 + $0x80] sm:$0xf]
    %v5219 = vld [vmem:[%s5201 + $0x88] sm:$0xf]
    %v5238 = vunpack.c.l.b16 %v5202
    %v5239 = vunpack.c.l.b16 %v5203
    %v5240 = vunpack.c.l.b16 %v5204
    %v5241 = vunpack.c.l.b16 %v5205
    %v5242 = vunpack.c.l.b16 %v5206
    %v5243 = vunpack.c.l.b16 %v5207
    %v5244 = vunpack.c.l.b16 %v5208
    %v5245 = vunpack.c.l.b16 %v5209
    %v5246 = vunpack.c.l.b16 %v5210
    %v5247 = vunpack.c.l.b16 %v5211
    %v5248 = vunpack.c.l.b16 %v5212
    %v5249 = vunpack.c.l.b16 %v5213
    %v5250 = vunpack.c.l.b16 %v5214
    %v5251 = vunpack.c.l.b16 %v5215
    %v5252 = vunpack.c.l.b16 %v5216
    %v5253 = vunpack.c.l.b16 %v5217
    %v5254 = vunpack.c.l.b16 %v5218
    %v5255 = vunpack.c.l.b16 %v5219
    %v5256 = vpack.c.b16 %v5239, %v5238
    %v5257 = vpack.c.b16 %v5241, %v5240
    %v5258 = vpack.c.b16 %v5243, %v5242
    %v5259 = vpack.c.b16 %v5245, %v5244
    %v5260 = vpack.c.b16 %v5247, %v5246
    %v5261 = vpack.c.b16 %v5249, %v5248
    %v5262 = vpack.c.b16 %v5251, %v5250
    %v5263 = vpack.c.b16 %v5253, %v5252
    %v5264 = vpack.c.b16 %v5255, %v5254
    %v5275 = vsel %vm4137, %v5194, 0
    %v5278 = vsel %vm4137, %v5196, 0
    %v5281 = vsel %vm4137, %v5198, 0
    %v5284 = vsel %vm4137, %v5200, 0
    %5286 = vmatpush.bf16.msra.mxu0 %v5263
    %5287 = vmatpush.bf16.msra.mxu0 %v5262
    %5288 = vmatpush.bf16.msra.mxu0 %v5261
    %5289 = vmatpush.bf16.msra.mxu0 %v5260
    %5290 = vmatpush.bf16.msra.mxu0 %v5259
    %5291 = vmatpush.bf16.msra.mxu0 %v5258
    %5292 = vmatpush.bf16.msra.mxu0 %v5257
    %5293 = vmatpush.bf16.msra.mxu0 %v5256
    %5294 = vmatmul.bf16.gmra.mxu0 %v5193
    %v5295 = vpop.f32.mrf.mxu0
    %v5296 = vadd.f32 0.0, %v5295
    %v5297 = vpop.f32.mrf.mxu0
    %v5298 = vadd.f32 0.0, %v5297
    %5299 = vmatmul.bf16.gmra.mxu0 %v5195
    %v5300 = vpop.f32.mrf.mxu0
    %v5301 = vadd.f32 0.0, %v5300
    %v5302 = vpop.f32.mrf.mxu0
    %v5303 = vadd.f32 0.0, %v5302
    %5304 = vmatmul.bf16.gmra.mxu0 %v5197
    %v5305 = vpop.f32.mrf.mxu0
    %v5306 = vadd.f32 0.0, %v5305
    %v5307 = vpop.f32.mrf.mxu0
    %v5308 = vadd.f32 0.0, %v5307
    %5309 = vmatmul.bf16.gmra.mxu0 %v5199
    %v5310 = vpop.f32.mrf.mxu0
    %v5311 = vadd.f32 0.0, %v5310
    %v5312 = vpop.f32.mrf.mxu0
    %v5313 = vadd.f32 0.0, %v5312
    %5314 = vdwg.mxu0
    %5315 = vmatpush.bf16.msra.mxu0 0
    %5316 = vmatpush.bf16.msra.mxu0 0
    %5317 = vmatpush.bf16.msra.mxu0 0
    %5318 = vmatpush.bf16.msra.mxu0 0
    %5319 = vmatpush.bf16.msra.mxu0 0
    %5320 = vmatpush.bf16.msra.mxu0 0
    %5321 = vmatpush.bf16.msra.mxu0 0
    %5322 = vmatpush.bf16.msra.mxu0 %v5264
    %5323 = vmatmul.bf16.gmra.mxu0 %v5275
    %v5324 = vpop.f32.mrf.mxu0
    %v5325 = vadd.f32 %v5296, %v5324
    %v5326 = vpop.f32.mrf.mxu0
    %v5327 = vadd.f32 %v5298, %v5326
    %5328 = vmatmul.bf16.gmra.mxu0 %v5278
    %v5329 = vpop.f32.mrf.mxu0
    %v5330 = vadd.f32 %v5301, %v5329
    %v5331 = vpop.f32.mrf.mxu0
    %v5332 = vadd.f32 %v5303, %v5331
    %5333 = vmatmul.bf16.gmra.mxu0 %v5281
    %v5334 = vpop.f32.mrf.mxu0
    %v5335 = vadd.f32 %v5306, %v5334
    %v5336 = vpop.f32.mrf.mxu0
    %v5337 = vadd.f32 %v5308, %v5336
    %5338 = vmatmul.bf16.gmra.mxu0 %v5284
    %v5339 = vpop.f32.mrf.mxu0
    %v5340 = vadd.f32 %v5311, %v5339
    %v5341 = vpop.f32.mrf.mxu0
    %v5342 = vadd.f32 %v5313, %v5341
    %5343 = vdwg.mxu0
    %v5344 = vadd.f32 %v5153, %v5325
    %v5345 = vadd.f32 %v5154, %v5327
    %v5346 = vadd.f32 %v5155, %v5330
    %v5347 = vadd.f32 %v5156, %v5332
    %v5348 = vadd.f32 %v5157, %v5335
    %v5349 = vadd.f32 %v5158, %v5337
    %v5350 = vadd.f32 %v5159, %v5340
    %v5351 = vadd.f32 %v5160, %v5342
    %vm5352 = vcmp.lt.s32.totalorder %v232, 8
    %vm5353 = vcmp.lt.s32.totalorder %v233, 8
    %vm5354 = vcmp.lt.s32.totalorder %v234, 8
    %vm5355 = vcmp.lt.s32.totalorder %v235, 8
    %vm5356 = vcmp.lt.s32.totalorder %v236, 8
    %vm5357 = vcmp.lt.s32.totalorder %v237, 8
    %vm5358 = vcmp.lt.s32.totalorder %v238, 8
    %vm5359 = vcmp.lt.s32.totalorder %v239, 8
    %v5360 = vsel %vm5352, 1.0, 0.0
    %v5361 = vsel %vm5353, 1.0, 0.0
    %v5362 = vsel %vm5354, 1.0, 0.0
    %v5363 = vsel %vm5355, 1.0, 0.0
    %v5364 = vsel %vm5356, 1.0, 0.0
    %v5365 = vsel %vm5357, 1.0, 0.0
    %v5366 = vsel %vm5358, 1.0, 0.0
    %v5367 = vsel %vm5359, 1.0, 0.0
    %v5368 = vmul.f32 %v5344, %v5360
    %v5369 = vmul.f32 %v5345, %v5361
    %v5370 = vmul.f32 %v5346, %v5362
    %v5371 = vmul.f32 %v5347, %v5363
    %v5372 = vmul.f32 %v5348, %v5364
    %v5373 = vmul.f32 %v5349, %v5365
    %v5374 = vmul.f32 %v5350, %v5366
    %v5375 = vmul.f32 %v5351, %v5367
    %v5376 = vadd.f32 %v5368, %v5369
    %v5377 = vadd.f32 %v5376, %v5370
    %v5378 = vadd.f32 %v5377, %v5371
    %v5379 = vadd.f32 %v5378, %v5372
    %v5380 = vadd.f32 %v5379, %v5373
    %v5381 = vadd.f32 %v5380, %v5374
    %v5382 = vadd.f32 %v5381, %v5375
    %v5383 = vrot.slane %v5382, 4
    %v5384 = vadd.f32 %v5382, %v5383
    %v5385 = vrot.slane %v5384, 2
    %v5386 = vadd.f32 %v5384, %v5385
    %v5387 = vrot.slane %v5386, 1
    %v5388 = vadd.f32 %v5386, %v5387
    %v5389 = vmul.f32 %v5368, %v5344
    %v5390 = vmul.f32 %v5369, %v5345
    %v5391 = vmul.f32 %v5370, %v5346
    %v5392 = vmul.f32 %v5371, %v5347
    %v5393 = vmul.f32 %v5372, %v5348
    %v5394 = vmul.f32 %v5373, %v5349
    %v5395 = vmul.f32 %v5374, %v5350
    %v5396 = vmul.f32 %v5375, %v5351
    %v5397 = vadd.f32 %v5389, %v5390
    %v5398 = vadd.f32 %v5397, %v5391
    %v5399 = vadd.f32 %v5398, %v5392
    %v5400 = vadd.f32 %v5399, %v5393
    %v5401 = vadd.f32 %v5400, %v5394
    %v5402 = vadd.f32 %v5401, %v5395
    %v5403 = vadd.f32 %v5402, %v5396
    %v5404 = vrot.slane %v5403, 4
    %v5405 = vadd.f32 %v5403, %v5404
    %v5406 = vrot.slane %v5405, 2
    %v5407 = vadd.f32 %v5405, %v5406
    %v5408 = vrot.slane %v5407, 1
    %v5409 = vadd.f32 %v5407, %v5408
    %v5410 = vsel %vm741, %v5388, %v5409
    %s5411 = scalar_lea.vmem [#allocation7], 1440
    %v5412 = vld [vmem:[%s5411] sm:$0xff]
    %v5413 = vld [vmem:[%s5411 + $0x10] sm:$0xff]
    %v5414 = vld [vmem:[%s5411 + $0x20] sm:$0xff]
    %v5415 = vld [vmem:[%s5411 + $0x30] sm:$0xff]
    %v5416 = vld [vmem:[%s5411 + $0x40] sm:$0xff]
    %v5417 = vld [vmem:[%s5411 + $0x50] sm:$0xff]
    %v5418 = vld [vmem:[%s5411 + $0x60] sm:$0xff]
    %v5419 = vld [vmem:[%s5411 + $0x70] sm:$0xff]
    %v5420 = vld [vmem:[%s5411 + $0x80] sm:$0xff]
    %v5421 = vld [vmem:[%s5411 + $0x90] sm:$0xff]
    %v5422 = vld [vmem:[%s5411 + $0xa0] sm:$0xff]
    %v5423 = vld [vmem:[%s5411 + $0xb0] sm:$0xff]
    %v5424 = vld [vmem:[%s5411 + $0xc0] sm:$0xff]
    %v5425 = vld [vmem:[%s5411 + $0xd0] sm:$0xff]
    %v5426 = vld [vmem:[%s5411 + $0xe0] sm:$0xff]
    %v5427 = vld [vmem:[%s5411 + $0xf0] sm:$0xff]
    %5428 = vmatpush.msra.mxu0 %v5427
    %5429 = vmatpush.msra.mxu0 %v5426
    %5430 = vmatpush.msra.mxu0 %v5425
    %5431 = vmatpush.msra.mxu0 %v5424
    %5432 = vmatpush.msra.mxu0 %v5423
    %5433 = vmatpush.msra.mxu0 %v5422
    %5434 = vmatpush.msra.mxu0 %v5421
    %5435 = vmatpush.msra.mxu0 %v5420
    %5436 = vmatpush.msra.mxu0 %v5419
    %5437 = vmatpush.msra.mxu0 %v5418
    %5438 = vmatpush.msra.mxu0 %v5417
    %5439 = vmatpush.msra.mxu0 %v5416
    %5440 = vmatpush.msra.mxu0 %v5415
    %5441 = vmatpush.msra.mxu0 %v5414
    %5442 = vmatpush.msra.mxu0 %v5413
    %5443 = vmatpush.msra.mxu0 %v5412
    %5444 = vmatmul.f32.gmra.mxu0 %v5410
    %v5445 = vpop.f32.mrf.mxu0
    %v5446 = vadd.f32 0.0, %v5445
    %5447 = vdwg.mxu0
    %v5448 = vmul.f32 %v5446, 0.0078125
    %v5449 = vmul.f32 %v5448, %v5448
    %v5451 = vrot.slane %v5449, 7
    %v5453 = vsub.f32 %v5448, %v5451
    %v5454 = vmax.f32 %v5453, 0.0
    %s5455 = scalar_lea.vmem [#allocation8], 20
    %v5456 = vld [vmem:[%s5455] sm:$0x1]
    %v5457 = vadd.f32 %v5454, 1e-05
    %v5458 = vrsqrt.pop %v5457
    %v5459 = vmul.f32 %v5458, %v5457
    %v5460 = vmul.f32 %v5459, %v5458
    %v5461 = vmul.f32 0.5, %v5460
    %v5462 = vsub.f32 1.5, %v5461
    %v5463 = vmul.f32 %v5458, %v5462
    %vm5464 = vweird.f32 %v5457
    %vm5465 = vweird.f32 %v5458
    %vm5466 = vmor %vm5464, %vm5465
    %v5467 = vsel %vm5466, %v5458, %v5463
    %v5469 = vrot.slane %v5467, 7
    %v5470 = vrot.slane %v5469, 2
    %v5472 = vmul.f32 %v5456, %v5470
    %v5473 = vld [vmem:[%s5455 + $0x1] sm:$0x1]
    %v5474 = vmul.f32 %v5448, %v5472
    %v5475 = vsub.f32 %v5473, %v5474
    %v5476 = vperm.slane %v5472, 0
    %v5477 = vmul.f32 %v5344, %v5476
    %v5478 = vmul.f32 %v5348, %v5476
    %v5479 = vperm.slane %v5475, 0
    %v5480 = vadd.f32 %v5477, %v5479
    %v5481 = vadd.f32 %v5478, %v5479
    %v5482 = vmax.f32 %v5480, 0.0
    %v5483 = vmax.f32 %v5481, 0.0
    %v5484 = vpack.c.bf16 %v5483, %v5482
    %v5485 = vld [vmem:[#allocation10] sm:$0xff]
    %v5486 = vld [vmem:[#allocation10 + $0x8] sm:$0xff]
    %v5487 = vld [vmem:[#allocation10 + $0x10] sm:$0xff]
    %v5488 = vld [vmem:[#allocation10 + $0x18] sm:$0xff]
    %v5489 = vld [vmem:[#allocation10 + $0x20] sm:$0xff]
    %v5490 = vld [vmem:[#allocation10 + $0x28] sm:$0xff]
    %v5491 = vld [vmem:[#allocation10 + $0x30] sm:$0xff]
    %v5492 = vld [vmem:[#allocation10 + $0x38] sm:$0xff]
    %v5493 = vld [vmem:[#allocation10 + $0x40] sm:$0xff]
    %v5494 = vld [vmem:[#allocation10 + $0x48] sm:$0xff]
    %v5495 = vld [vmem:[#allocation10 + $0x50] sm:$0xff]
    %v5496 = vld [vmem:[#allocation10 + $0x58] sm:$0xff]
    %v5497 = vld [vmem:[#allocation10 + $0x60] sm:$0xff]
    %v5498 = vld [vmem:[#allocation10 + $0x68] sm:$0xff]
    %v5499 = vld [vmem:[#allocation10 + $0x70] sm:$0xff]
    %v5500 = vld [vmem:[#allocation10 + $0x78] sm:$0xff]
    %v5501 = vld [vmem:[#allocation10 + $0x80] sm:$0xff]
    %v5502 = vld [vmem:[#allocation10 + $0x88] sm:$0xff]
    %v5503 = vld [vmem:[#allocation10 + $0x90] sm:$0xff]
    %v5504 = vld [vmem:[#allocation10 + $0x98] sm:$0xff]
    %v5505 = vld [vmem:[#allocation10 + $0xa0] sm:$0xff]
    %v5506 = vld [vmem:[#allocation10 + $0xa8] sm:$0xff]
    %v5507 = vld [vmem:[#allocation10 + $0xb0] sm:$0xff]
    %v5508 = vld [vmem:[#allocation10 + $0xb8] sm:$0xff]
    %v5509 = vld [vmem:[#allocation10 + $0xc0] sm:$0xff]
    %v5510 = vld [vmem:[#allocation10 + $0xc8] sm:$0xff]
    %v5511 = vld [vmem:[#allocation10 + $0xd0] sm:$0xff]
    %v5512 = vld [vmem:[#allocation10 + $0xd8] sm:$0xff]
    %v5513 = vld [vmem:[#allocation10 + $0xe0] sm:$0xff]
    %v5514 = vld [vmem:[#allocation10 + $0xe8] sm:$0xff]
    %v5515 = vld [vmem:[#allocation10 + $0xf0] sm:$0xff]
    %v5516 = vld [vmem:[#allocation10 + $0xf8] sm:$0xff]
    %v5517 = vrot.slane %v5482, 1
    %v5518 = vrot.slane %v5483, 1
    %v5519 = vsel %vm280, %v5517, %v5518
    %v5520 = vsel %vm280, %v5518, %v5517
    %v5521 = vpack.c.bf16 %v5520, %v5519
    %s5522 = scalar_lea.vmem [#allocation10], 256
    %v5523 = vld [vmem:[%s5522] sm:$0xff]
    %v5524 = vld [vmem:[%s5522 + $0x8] sm:$0xff]
    %v5525 = vld [vmem:[%s5522 + $0x10] sm:$0xff]
    %v5526 = vld [vmem:[%s5522 + $0x18] sm:$0xff]
    %v5527 = vld [vmem:[%s5522 + $0x20] sm:$0xff]
    %v5528 = vld [vmem:[%s5522 + $0x28] sm:$0xff]
    %v5529 = vld [vmem:[%s5522 + $0x30] sm:$0xff]
    %v5530 = vld [vmem:[%s5522 + $0x38] sm:$0xff]
    %v5531 = vld [vmem:[%s5522 + $0x40] sm:$0xff]
    %v5532 = vld [vmem:[%s5522 + $0x48] sm:$0xff]
    %v5533 = vld [vmem:[%s5522 + $0x50] sm:$0xff]
    %v5534 = vld [vmem:[%s5522 + $0x58] sm:$0xff]
    %v5535 = vld [vmem:[%s5522 + $0x60] sm:$0xff]
    %v5536 = vld [vmem:[%s5522 + $0x68] sm:$0xff]
    %v5537 = vld [vmem:[%s5522 + $0x70] sm:$0xff]
    %v5538 = vld [vmem:[%s5522 + $0x78] sm:$0xff]
    %v5539 = vld [vmem:[%s5522 + $0x80] sm:$0xff]
    %v5540 = vld [vmem:[%s5522 + $0x88] sm:$0xff]
    %v5541 = vld [vmem:[%s5522 + $0x90] sm:$0xff]
    %v5542 = vld [vmem:[%s5522 + $0x98] sm:$0xff]
    %v5543 = vld [vmem:[%s5522 + $0xa0] sm:$0xff]
    %v5544 = vld [vmem:[%s5522 + $0xa8] sm:$0xff]
    %v5545 = vld [vmem:[%s5522 + $0xb0] sm:$0xff]
    %v5546 = vld [vmem:[%s5522 + $0xb8] sm:$0xff]
    %v5547 = vld [vmem:[%s5522 + $0xc0] sm:$0xff]
    %v5548 = vld [vmem:[%s5522 + $0xc8] sm:$0xff]
    %v5549 = vld [vmem:[%s5522 + $0xd0] sm:$0xff]
    %v5550 = vld [vmem:[%s5522 + $0xd8] sm:$0xff]
    %v5551 = vld [vmem:[%s5522 + $0xe0] sm:$0xff]
    %v5552 = vld [vmem:[%s5522 + $0xe8] sm:$0xff]
    %v5553 = vld [vmem:[%s5522 + $0xf0] sm:$0xff]
    %v5554 = vld [vmem:[%s5522 + $0xf8] sm:$0xff]
    %v5587 = vunpack.c.l.b16 %v5523
    %v5588 = vunpack.c.h.b16 %v5523
    %v5589 = vunpack.c.l.b16 %v5524
    %v5590 = vunpack.c.h.b16 %v5524
    %v5591 = vunpack.c.l.b16 %v5525
    %v5592 = vunpack.c.h.b16 %v5525
    %v5593 = vunpack.c.l.b16 %v5526
    %v5594 = vunpack.c.h.b16 %v5526
    %v5595 = vunpack.c.l.b16 %v5527
    %v5596 = vunpack.c.h.b16 %v5527
    %v5597 = vunpack.c.l.b16 %v5528
    %v5598 = vunpack.c.h.b16 %v5528
    %v5599 = vunpack.c.l.b16 %v5529
    %v5600 = vunpack.c.h.b16 %v5529
    %v5601 = vunpack.c.l.b16 %v5530
    %v5602 = vunpack.c.h.b16 %v5530
    %v5603 = vunpack.c.l.b16 %v5531
    %v5604 = vunpack.c.h.b16 %v5531
    %v5605 = vunpack.c.l.b16 %v5532
    %v5606 = vunpack.c.h.b16 %v5532
    %v5607 = vunpack.c.l.b16 %v5533
    %v5608 = vunpack.c.h.b16 %v5533
    %v5609 = vunpack.c.l.b16 %v5534
    %v5610 = vunpack.c.h.b16 %v5534
    %v5611 = vunpack.c.l.b16 %v5535
    %v5612 = vunpack.c.h.b16 %v5535
    %v5613 = vunpack.c.l.b16 %v5536
    %v5614 = vunpack.c.h.b16 %v5536
    %v5615 = vunpack.c.l.b16 %v5537
    %v5616 = vunpack.c.h.b16 %v5537
    %v5617 = vunpack.c.l.b16 %v5538
    %v5618 = vunpack.c.h.b16 %v5538
    %v5619 = vunpack.c.l.b16 %v5539
    %v5620 = vunpack.c.h.b16 %v5539
    %v5621 = vunpack.c.l.b16 %v5540
    %v5622 = vunpack.c.h.b16 %v5540
    %v5623 = vunpack.c.l.b16 %v5541
    %v5624 = vunpack.c.h.b16 %v5541
    %v5625 = vunpack.c.l.b16 %v5542
    %v5626 = vunpack.c.h.b16 %v5542
    %v5627 = vunpack.c.l.b16 %v5543
    %v5628 = vunpack.c.h.b16 %v5543
    %v5629 = vunpack.c.l.b16 %v5544
    %v5630 = vunpack.c.h.b16 %v5544
    %v5631 = vunpack.c.l.b16 %v5545
    %v5632 = vunpack.c.h.b16 %v5545
    %v5633 = vunpack.c.l.b16 %v5546
    %v5634 = vunpack.c.h.b16 %v5546
    %v5635 = vunpack.c.l.b16 %v5547
    %v5636 = vunpack.c.h.b16 %v5547
    %v5637 = vunpack.c.l.b16 %v5548
    %v5638 = vunpack.c.h.b16 %v5548
    %v5639 = vunpack.c.l.b16 %v5549
    %v5640 = vunpack.c.h.b16 %v5549
    %v5641 = vunpack.c.l.b16 %v5550
    %v5642 = vunpack.c.h.b16 %v5550
    %v5643 = vunpack.c.l.b16 %v5551
    %v5644 = vunpack.c.h.b16 %v5551
    %v5645 = vunpack.c.l.b16 %v5552
    %v5646 = vunpack.c.h.b16 %v5552
    %v5647 = vunpack.c.l.b16 %v5553
    %v5648 = vunpack.c.h.b16 %v5553
    %v5649 = vunpack.c.l.b16 %v5554
    %v5650 = vunpack.c.h.b16 %v5554
    %v5651 = vpack.c.b16 %v5591, %v5587
    %v5652 = vpack.c.b16 %v5592, %v5588
    %v5653 = vpack.c.b16 %v5593, %v5589
    %v5654 = vpack.c.b16 %v5594, %v5590
    %v5655 = vpack.c.b16 %v5599, %v5595
    %v5656 = vpack.c.b16 %v5600, %v5596
    %v5657 = vpack.c.b16 %v5601, %v5597
    %v5658 = vpack.c.b16 %v5602, %v5598
    %v5659 = vpack.c.b16 %v5607, %v5603
    %v5660 = vpack.c.b16 %v5608, %v5604
    %v5661 = vpack.c.b16 %v5609, %v5605
    %v5662 = vpack.c.b16 %v5610, %v5606
    %v5663 = vpack.c.b16 %v5615, %v5611
    %v5664 = vpack.c.b16 %v5616, %v5612
    %v5665 = vpack.c.b16 %v5617, %v5613
    %v5666 = vpack.c.b16 %v5618, %v5614
    %v5667 = vpack.c.b16 %v5623, %v5619
    %v5668 = vpack.c.b16 %v5624, %v5620
    %v5669 = vpack.c.b16 %v5625, %v5621
    %v5670 = vpack.c.b16 %v5626, %v5622
    %v5671 = vpack.c.b16 %v5631, %v5627
    %v5672 = vpack.c.b16 %v5632, %v5628
    %v5673 = vpack.c.b16 %v5633, %v5629
    %v5674 = vpack.c.b16 %v5634, %v5630
    %v5675 = vpack.c.b16 %v5639, %v5635
    %v5676 = vpack.c.b16 %v5640, %v5636
    %v5677 = vpack.c.b16 %v5641, %v5637
    %v5678 = vpack.c.b16 %v5642, %v5638
    %v5679 = vpack.c.b16 %v5647, %v5643
    %v5680 = vpack.c.b16 %v5648, %v5644
    %v5681 = vpack.c.b16 %v5649, %v5645
    %v5682 = vpack.c.b16 %v5650, %v5646
    %5715 = vmatpush.bf16.msra.mxu0 %v5679
    %5716 = vmatpush.bf16.msra.mxu0 %v5675
    %5717 = vmatpush.bf16.msra.mxu0 %v5671
    %5718 = vmatpush.bf16.msra.mxu0 %v5667
    %5719 = vmatpush.bf16.msra.mxu0 %v5663
    %5720 = vmatpush.bf16.msra.mxu0 %v5659
    %5721 = vmatpush.bf16.msra.mxu0 %v5655
    %5722 = vmatpush.bf16.msra.mxu0 %v5651
    %5723 = vmatmul.bf16.gmra.mxu0 %v5521
    %v5724 = vpop.f32.mrf.mxu0
    %v5725 = vadd.f32 0.0, %v5724
    %v5726 = vpop.f32.mrf.mxu0
    %v5727 = vadd.f32 0.0, %v5726
    %5728 = vdwg.mxu0
    %5729 = vmatpush.bf16.msra.mxu0 %v5680
    %5730 = vmatpush.bf16.msra.mxu0 %v5676
    %5731 = vmatpush.bf16.msra.mxu0 %v5672
    %5732 = vmatpush.bf16.msra.mxu0 %v5668
    %5733 = vmatpush.bf16.msra.mxu0 %v5664
    %5734 = vmatpush.bf16.msra.mxu0 %v5660
    %5735 = vmatpush.bf16.msra.mxu0 %v5656
    %5736 = vmatpush.bf16.msra.mxu0 %v5652
    %5737 = vmatmul.bf16.gmra.mxu0 %v5521
    %v5738 = vpop.f32.mrf.mxu0
    %v5739 = vadd.f32 0.0, %v5738
    %v5740 = vpop.f32.mrf.mxu0
    %v5741 = vadd.f32 0.0, %v5740
    %5742 = vdwg.mxu0
    %5743 = vmatpush.bf16.msra.mxu0 %v5681
    %5744 = vmatpush.bf16.msra.mxu0 %v5677
    %5745 = vmatpush.bf16.msra.mxu0 %v5673
    %5746 = vmatpush.bf16.msra.mxu0 %v5669
    %5747 = vmatpush.bf16.msra.mxu0 %v5665
    %5748 = vmatpush.bf16.msra.mxu0 %v5661
    %5749 = vmatpush.bf16.msra.mxu0 %v5657
    %5750 = vmatpush.bf16.msra.mxu0 %v5653
    %5751 = vmatmul.bf16.gmra.mxu0 %v5521
    %v5752 = vpop.f32.mrf.mxu0
    %v5753 = vadd.f32 0.0, %v5752
    %v5754 = vpop.f32.mrf.mxu0
    %v5755 = vadd.f32 0.0, %v5754
    %5756 = vdwg.mxu0
    %5757 = vmatpush.bf16.msra.mxu0 %v5682
    %5758 = vmatpush.bf16.msra.mxu0 %v5678
    %5759 = vmatpush.bf16.msra.mxu0 %v5674
    %5760 = vmatpush.bf16.msra.mxu0 %v5670
    %5761 = vmatpush.bf16.msra.mxu0 %v5666
    %5762 = vmatpush.bf16.msra.mxu0 %v5662
    %5763 = vmatpush.bf16.msra.mxu0 %v5658
    %5764 = vmatpush.bf16.msra.mxu0 %v5654
    %5765 = vmatmul.bf16.gmra.mxu0 %v5521
    %v5766 = vpop.f32.mrf.mxu0
    %v5767 = vadd.f32 0.0, %v5766
    %v5768 = vpop.f32.mrf.mxu0
    %v5769 = vadd.f32 0.0, %v5768
    %5770 = vdwg.mxu0
    %v5803 = vunpack.c.l.b16 %v5485
    %v5804 = vunpack.c.h.b16 %v5485
    %v5805 = vunpack.c.l.b16 %v5486
    %v5806 = vunpack.c.h.b16 %v5486
    %v5807 = vunpack.c.l.b16 %v5487
    %v5808 = vunpack.c.h.b16 %v5487
    %v5809 = vunpack.c.l.b16 %v5488
    %v5810 = vunpack.c.h.b16 %v5488
    %v5811 = vunpack.c.l.b16 %v5489
    %v5812 = vunpack.c.h.b16 %v5489
    %v5813 = vunpack.c.l.b16 %v5490
    %v5814 = vunpack.c.h.b16 %v5490
    %v5815 = vunpack.c.l.b16 %v5491
    %v5816 = vunpack.c.h.b16 %v5491
    %v5817 = vunpack.c.l.b16 %v5492
    %v5818 = vunpack.c.h.b16 %v5492
    %v5819 = vunpack.c.l.b16 %v5493
    %v5820 = vunpack.c.h.b16 %v5493
    %v5821 = vunpack.c.l.b16 %v5494
    %v5822 = vunpack.c.h.b16 %v5494
    %v5823 = vunpack.c.l.b16 %v5495
    %v5824 = vunpack.c.h.b16 %v5495
    %v5825 = vunpack.c.l.b16 %v5496
    %v5826 = vunpack.c.h.b16 %v5496
    %v5827 = vunpack.c.l.b16 %v5497
    %v5828 = vunpack.c.h.b16 %v5497
    %v5829 = vunpack.c.l.b16 %v5498
    %v5830 = vunpack.c.h.b16 %v5498
    %v5831 = vunpack.c.l.b16 %v5499
    %v5832 = vunpack.c.h.b16 %v5499
    %v5833 = vunpack.c.l.b16 %v5500
    %v5834 = vunpack.c.h.b16 %v5500
    %v5835 = vunpack.c.l.b16 %v5501
    %v5836 = vunpack.c.h.b16 %v5501
    %v5837 = vunpack.c.l.b16 %v5502
    %v5838 = vunpack.c.h.b16 %v5502
    %v5839 = vunpack.c.l.b16 %v5503
    %v5840 = vunpack.c.h.b16 %v5503
    %v5841 = vunpack.c.l.b16 %v5504
    %v5842 = vunpack.c.h.b16 %v5504
    %v5843 = vunpack.c.l.b16 %v5505
    %v5844 = vunpack.c.h.b16 %v5505
    %v5845 = vunpack.c.l.b16 %v5506
    %v5846 = vunpack.c.h.b16 %v5506
    %v5847 = vunpack.c.l.b16 %v5507
    %v5848 = vunpack.c.h.b16 %v5507
    %v5849 = vunpack.c.l.b16 %v5508
    %v5850 = vunpack.c.h.b16 %v5508
    %v5851 = vunpack.c.l.b16 %v5509
    %v5852 = vunpack.c.h.b16 %v5509
    %v5853 = vunpack.c.l.b16 %v5510
    %v5854 = vunpack.c.h.b16 %v5510
    %v5855 = vunpack.c.l.b16 %v5511
    %v5856 = vunpack.c.h.b16 %v5511
    %v5857 = vunpack.c.l.b16 %v5512
    %v5858 = vunpack.c.h.b16 %v5512
    %v5859 = vunpack.c.l.b16 %v5513
    %v5860 = vunpack.c.h.b16 %v5513
    %v5861 = vunpack.c.l.b16 %v5514
    %v5862 = vunpack.c.h.b16 %v5514
    %v5863 = vunpack.c.l.b16 %v5515
    %v5864 = vunpack.c.h.b16 %v5515
    %v5865 = vunpack.c.l.b16 %v5516
    %v5866 = vunpack.c.h.b16 %v5516
    %v5867 = vpack.c.b16 %v5807, %v5803
    %v5868 = vpack.c.b16 %v5808, %v5804
    %v5869 = vpack.c.b16 %v5809, %v5805
    %v5870 = vpack.c.b16 %v5810, %v5806
    %v5871 = vpack.c.b16 %v5815, %v5811
    %v5872 = vpack.c.b16 %v5816, %v5812
    %v5873 = vpack.c.b16 %v5817, %v5813
    %v5874 = vpack.c.b16 %v5818, %v5814
    %v5875 = vpack.c.b16 %v5823, %v5819
    %v5876 = vpack.c.b16 %v5824, %v5820
    %v5877 = vpack.c.b16 %v5825, %v5821
    %v5878 = vpack.c.b16 %v5826, %v5822
    %v5879 = vpack.c.b16 %v5831, %v5827
    %v5880 = vpack.c.b16 %v5832, %v5828
    %v5881 = vpack.c.b16 %v5833, %v5829
    %v5882 = vpack.c.b16 %v5834, %v5830
    %v5883 = vpack.c.b16 %v5839, %v5835
    %v5884 = vpack.c.b16 %v5840, %v5836
    %v5885 = vpack.c.b16 %v5841, %v5837
    %v5886 = vpack.c.b16 %v5842, %v5838
    %v5887 = vpack.c.b16 %v5847, %v5843
    %v5888 = vpack.c.b16 %v5848, %v5844
    %v5889 = vpack.c.b16 %v5849, %v5845
    %v5890 = vpack.c.b16 %v5850, %v5846
    %v5891 = vpack.c.b16 %v5855, %v5851
    %v5892 = vpack.c.b16 %v5856, %v5852
    %v5893 = vpack.c.b16 %v5857, %v5853
    %v5894 = vpack.c.b16 %v5858, %v5854
    %v5895 = vpack.c.b16 %v5863, %v5859
    %v5896 = vpack.c.b16 %v5864, %v5860
    %v5897 = vpack.c.b16 %v5865, %v5861
    %v5898 = vpack.c.b16 %v5866, %v5862
    %5931 = vmatpush.bf16.msra.mxu0 %v5895
    %5932 = vmatpush.bf16.msra.mxu0 %v5891
    %5933 = vmatpush.bf16.msra.mxu0 %v5887
    %5934 = vmatpush.bf16.msra.mxu0 %v5883
    %5935 = vmatpush.bf16.msra.mxu0 %v5879
    %5936 = vmatpush.bf16.msra.mxu0 %v5875
    %5937 = vmatpush.bf16.msra.mxu0 %v5871
    %5938 = vmatpush.bf16.msra.mxu0 %v5867
    %5939 = vmatmul.bf16.gmra.mxu0 %v5484
    %v5940 = vpop.f32.mrf.mxu0
    %v5941 = vadd.f32 %v5725, %v5940
    %v5942 = vpop.f32.mrf.mxu0
    %v5943 = vadd.f32 %v5727, %v5942
    %5944 = vdwg.mxu0
    %5945 = vmatpush.bf16.msra.mxu0 %v5896
    %5946 = vmatpush.bf16.msra.mxu0 %v5892
    %5947 = vmatpush.bf16.msra.mxu0 %v5888
    %5948 = vmatpush.bf16.msra.mxu0 %v5884
    %5949 = vmatpush.bf16.msra.mxu0 %v5880
    %5950 = vmatpush.bf16.msra.mxu0 %v5876
    %5951 = vmatpush.bf16.msra.mxu0 %v5872
    %5952 = vmatpush.bf16.msra.mxu0 %v5868
    %5953 = vmatmul.bf16.gmra.mxu0 %v5484
    %v5954 = vpop.f32.mrf.mxu0
    %v5955 = vadd.f32 %v5739, %v5954
    %v5956 = vpop.f32.mrf.mxu0
    %v5957 = vadd.f32 %v5741, %v5956
    %5958 = vdwg.mxu0
    %5959 = vmatpush.bf16.msra.mxu0 %v5897
    %5960 = vmatpush.bf16.msra.mxu0 %v5893
    %5961 = vmatpush.bf16.msra.mxu0 %v5889
    %5962 = vmatpush.bf16.msra.mxu0 %v5885
    %5963 = vmatpush.bf16.msra.mxu0 %v5881
    %5964 = vmatpush.bf16.msra.mxu0 %v5877
    %5965 = vmatpush.bf16.msra.mxu0 %v5873
    %5966 = vmatpush.bf16.msra.mxu0 %v5869
    %5967 = vmatmul.bf16.gmra.mxu0 %v5484
    %v5968 = vpop.f32.mrf.mxu0
    %v5969 = vadd.f32 %v5753, %v5968
    %v5970 = vpop.f32.mrf.mxu0
    %v5971 = vadd.f32 %v5755, %v5970
    %5972 = vdwg.mxu0
    %5973 = vmatpush.bf16.msra.mxu0 %v5898
    %5974 = vmatpush.bf16.msra.mxu0 %v5894
    %5975 = vmatpush.bf16.msra.mxu0 %v5890
    %5976 = vmatpush.bf16.msra.mxu0 %v5886
    %5977 = vmatpush.bf16.msra.mxu0 %v5882
    %5978 = vmatpush.bf16.msra.mxu0 %v5878
    %5979 = vmatpush.bf16.msra.mxu0 %v5874
    %5980 = vmatpush.bf16.msra.mxu0 %v5870
    %5981 = vmatmul.bf16.gmra.mxu0 %v5484
    %v5982 = vpop.f32.mrf.mxu0
    %v5983 = vadd.f32 %v5767, %v5982
    %v5984 = vpop.f32.mrf.mxu0
    %v5985 = vadd.f32 %v5769, %v5984
    %5986 = vdwg.mxu0
    %v5987 = vrot.slane %v5482, 2
    %v5988 = vrot.slane %v5483, 2
    %v5989 = vsel %vm413, %v5987, %v5988
    %v5990 = vsel %vm413, %v5988, %v5987
    %v5991 = vpack.c.bf16 %v5990, %v5989
    %s5992 = scalar_lea.vmem [#allocation10], 512
    %v5993 = vld [vmem:[%s5992] sm:$0xff]
    %v5994 = vld [vmem:[%s5992 + $0x8] sm:$0xff]
    %v5995 = vld [vmem:[%s5992 + $0x10] sm:$0xff]
    %v5996 = vld [vmem:[%s5992 + $0x18] sm:$0xff]
    %v5997 = vld [vmem:[%s5992 + $0x20] sm:$0xff]
    %v5998 = vld [vmem:[%s5992 + $0x28] sm:$0xff]
    %v5999 = vld [vmem:[%s5992 + $0x30] sm:$0xff]
    %v6000 = vld [vmem:[%s5992 + $0x38] sm:$0xff]
    %v6001 = vld [vmem:[%s5992 + $0x40] sm:$0xff]
    %v6002 = vld [vmem:[%s5992 + $0x48] sm:$0xff]
    %v6003 = vld [vmem:[%s5992 + $0x50] sm:$0xff]
    %v6004 = vld [vmem:[%s5992 + $0x58] sm:$0xff]
    %v6005 = vld [vmem:[%s5992 + $0x60] sm:$0xff]
    %v6006 = vld [vmem:[%s5992 + $0x68] sm:$0xff]
    %v6007 = vld [vmem:[%s5992 + $0x70] sm:$0xff]
    %v6008 = vld [vmem:[%s5992 + $0x78] sm:$0xff]
    %v6009 = vld [vmem:[%s5992 + $0x80] sm:$0xff]
    %v6010 = vld [vmem:[%s5992 + $0x88] sm:$0xff]
    %v6011 = vld [vmem:[%s5992 + $0x90] sm:$0xff]
    %v6012 = vld [vmem:[%s5992 + $0x98] sm:$0xff]
    %v6013 = vld [vmem:[%s5992 + $0xa0] sm:$0xff]
    %v6014 = vld [vmem:[%s5992 + $0xa8] sm:$0xff]
    %v6015 = vld [vmem:[%s5992 + $0xb0] sm:$0xff]
    %v6016 = vld [vmem:[%s5992 + $0xb8] sm:$0xff]
    %v6017 = vld [vmem:[%s5992 + $0xc0] sm:$0xff]
    %v6018 = vld [vmem:[%s5992 + $0xc8] sm:$0xff]
    %v6019 = vld [vmem:[%s5992 + $0xd0] sm:$0xff]
    %v6020 = vld [vmem:[%s5992 + $0xd8] sm:$0xff]
    %v6021 = vld [vmem:[%s5992 + $0xe0] sm:$0xff]
    %v6022 = vld [vmem:[%s5992 + $0xe8] sm:$0xff]
    %v6023 = vld [vmem:[%s5992 + $0xf0] sm:$0xff]
    %v6024 = vld [vmem:[%s5992 + $0xf8] sm:$0xff]
    %v6057 = vunpack.c.l.b16 %v5993
    %v6058 = vunpack.c.h.b16 %v5993
    %v6059 = vunpack.c.l.b16 %v5994
    %v6060 = vunpack.c.h.b16 %v5994
    %v6061 = vunpack.c.l.b16 %v5995
    %v6062 = vunpack.c.h.b16 %v5995
    %v6063 = vunpack.c.l.b16 %v5996
    %v6064 = vunpack.c.h.b16 %v5996
    %v6065 = vunpack.c.l.b16 %v5997
    %v6066 = vunpack.c.h.b16 %v5997
    %v6067 = vunpack.c.l.b16 %v5998
    %v6068 = vunpack.c.h.b16 %v5998
    %v6069 = vunpack.c.l.b16 %v5999
    %v6070 = vunpack.c.h.b16 %v5999
    %v6071 = vunpack.c.l.b16 %v6000
    %v6072 = vunpack.c.h.b16 %v6000
    %v6073 = vunpack.c.l.b16 %v6001
    %v6074 = vunpack.c.h.b16 %v6001
    %v6075 = vunpack.c.l.b16 %v6002
    %v6076 = vunpack.c.h.b16 %v6002
    %v6077 = vunpack.c.l.b16 %v6003
    %v6078 = vunpack.c.h.b16 %v6003
    %v6079 = vunpack.c.l.b16 %v6004
    %v6080 = vunpack.c.h.b16 %v6004
    %v6081 = vunpack.c.l.b16 %v6005
    %v6082 = vunpack.c.h.b16 %v6005
    %v6083 = vunpack.c.l.b16 %v6006
    %v6084 = vunpack.c.h.b16 %v6006
    %v6085 = vunpack.c.l.b16 %v6007
    %v6086 = vunpack.c.h.b16 %v6007
    %v6087 = vunpack.c.l.b16 %v6008
    %v6088 = vunpack.c.h.b16 %v6008
    %v6089 = vunpack.c.l.b16 %v6009
    %v6090 = vunpack.c.h.b16 %v6009
    %v6091 = vunpack.c.l.b16 %v6010
    %v6092 = vunpack.c.h.b16 %v6010
    %v6093 = vunpack.c.l.b16 %v6011
    %v6094 = vunpack.c.h.b16 %v6011
    %v6095 = vunpack.c.l.b16 %v6012
    %v6096 = vunpack.c.h.b16 %v6012
    %v6097 = vunpack.c.l.b16 %v6013
    %v6098 = vunpack.c.h.b16 %v6013
    %v6099 = vunpack.c.l.b16 %v6014
    %v6100 = vunpack.c.h.b16 %v6014
    %v6101 = vunpack.c.l.b16 %v6015
    %v6102 = vunpack.c.h.b16 %v6015
    %v6103 = vunpack.c.l.b16 %v6016
    %v6104 = vunpack.c.h.b16 %v6016
    %v6105 = vunpack.c.l.b16 %v6017
    %v6106 = vunpack.c.h.b16 %v6017
    %v6107 = vunpack.c.l.b16 %v6018
    %v6108 = vunpack.c.h.b16 %v6018
    %v6109 = vunpack.c.l.b16 %v6019
    %v6110 = vunpack.c.h.b16 %v6019
    %v6111 = vunpack.c.l.b16 %v6020
    %v6112 = vunpack.c.h.b16 %v6020
    %v6113 = vunpack.c.l.b16 %v6021
    %v6114 = vunpack.c.h.b16 %v6021
    %v6115 = vunpack.c.l.b16 %v6022
    %v6116 = vunpack.c.h.b16 %v6022
    %v6117 = vunpack.c.l.b16 %v6023
    %v6118 = vunpack.c.h.b16 %v6023
    %v6119 = vunpack.c.l.b16 %v6024
    %v6120 = vunpack.c.h.b16 %v6024
    %v6121 = vpack.c.b16 %v6061, %v6057
    %v6122 = vpack.c.b16 %v6062, %v6058
    %v6123 = vpack.c.b16 %v6063, %v6059
    %v6124 = vpack.c.b16 %v6064, %v6060
    %v6125 = vpack.c.b16 %v6069, %v6065
    %v6126 = vpack.c.b16 %v6070, %v6066
    %v6127 = vpack.c.b16 %v6071, %v6067
    %v6128 = vpack.c.b16 %v6072, %v6068
    %v6129 = vpack.c.b16 %v6077, %v6073
    %v6130 = vpack.c.b16 %v6078, %v6074
    %v6131 = vpack.c.b16 %v6079, %v6075
    %v6132 = vpack.c.b16 %v6080, %v6076
    %v6133 = vpack.c.b16 %v6085, %v6081
    %v6134 = vpack.c.b16 %v6086, %v6082
    %v6135 = vpack.c.b16 %v6087, %v6083
    %v6136 = vpack.c.b16 %v6088, %v6084
    %v6137 = vpack.c.b16 %v6093, %v6089
    %v6138 = vpack.c.b16 %v6094, %v6090
    %v6139 = vpack.c.b16 %v6095, %v6091
    %v6140 = vpack.c.b16 %v6096, %v6092
    %v6141 = vpack.c.b16 %v6101, %v6097
    %v6142 = vpack.c.b16 %v6102, %v6098
    %v6143 = vpack.c.b16 %v6103, %v6099
    %v6144 = vpack.c.b16 %v6104, %v6100
    %v6145 = vpack.c.b16 %v6109, %v6105
    %v6146 = vpack.c.b16 %v6110, %v6106
    %v6147 = vpack.c.b16 %v6111, %v6107
    %v6148 = vpack.c.b16 %v6112, %v6108
    %v6149 = vpack.c.b16 %v6117, %v6113
    %v6150 = vpack.c.b16 %v6118, %v6114
    %v6151 = vpack.c.b16 %v6119, %v6115
    %v6152 = vpack.c.b16 %v6120, %v6116
    %6185 = vmatpush.bf16.msra.mxu0 %v6149
    %6186 = vmatpush.bf16.msra.mxu0 %v6145
    %6187 = vmatpush.bf16.msra.mxu0 %v6141
    %6188 = vmatpush.bf16.msra.mxu0 %v6137
    %6189 = vmatpush.bf16.msra.mxu0 %v6133
    %6190 = vmatpush.bf16.msra.mxu0 %v6129
    %6191 = vmatpush.bf16.msra.mxu0 %v6125
    %6192 = vmatpush.bf16.msra.mxu0 %v6121
    %6193 = vmatmul.bf16.gmra.mxu0 %v5991
    %v6194 = vpop.f32.mrf.mxu0
    %v6195 = vadd.f32 0.0, %v6194
    %v6196 = vpop.f32.mrf.mxu0
    %v6197 = vadd.f32 0.0, %v6196
    %6198 = vdwg.mxu0
    %6199 = vmatpush.bf16.msra.mxu0 %v6150
    %6200 = vmatpush.bf16.msra.mxu0 %v6146
    %6201 = vmatpush.bf16.msra.mxu0 %v6142
    %6202 = vmatpush.bf16.msra.mxu0 %v6138
    %6203 = vmatpush.bf16.msra.mxu0 %v6134
    %6204 = vmatpush.bf16.msra.mxu0 %v6130
    %6205 = vmatpush.bf16.msra.mxu0 %v6126
    %6206 = vmatpush.bf16.msra.mxu0 %v6122
    %6207 = vmatmul.bf16.gmra.mxu0 %v5991
    %v6208 = vpop.f32.mrf.mxu0
    %v6209 = vadd.f32 0.0, %v6208
    %v6210 = vpop.f32.mrf.mxu0
    %v6211 = vadd.f32 0.0, %v6210
    %6212 = vdwg.mxu0
    %6213 = vmatpush.bf16.msra.mxu0 %v6151
    %6214 = vmatpush.bf16.msra.mxu0 %v6147
    %6215 = vmatpush.bf16.msra.mxu0 %v6143
    %6216 = vmatpush.bf16.msra.mxu0 %v6139
    %6217 = vmatpush.bf16.msra.mxu0 %v6135
    %6218 = vmatpush.bf16.msra.mxu0 %v6131
    %6219 = vmatpush.bf16.msra.mxu0 %v6127
    %6220 = vmatpush.bf16.msra.mxu0 %v6123
    %6221 = vmatmul.bf16.gmra.mxu0 %v5991
    %v6222 = vpop.f32.mrf.mxu0
    %v6223 = vadd.f32 0.0, %v6222
    %v6224 = vpop.f32.mrf.mxu0
    %v6225 = vadd.f32 0.0, %v6224
    %6226 = vdwg.mxu0
    %6227 = vmatpush.bf16.msra.mxu0 %v6152
    %6228 = vmatpush.bf16.msra.mxu0 %v6148
    %6229 = vmatpush.bf16.msra.mxu0 %v6144
    %6230 = vmatpush.bf16.msra.mxu0 %v6140
    %6231 = vmatpush.bf16.msra.mxu0 %v6136
    %6232 = vmatpush.bf16.msra.mxu0 %v6132
    %6233 = vmatpush.bf16.msra.mxu0 %v6128
    %6234 = vmatpush.bf16.msra.mxu0 %v6124
    %6235 = vmatmul.bf16.gmra.mxu0 %v5991
    %v6236 = vpop.f32.mrf.mxu0
    %v6237 = vadd.f32 0.0, %v6236
    %v6238 = vpop.f32.mrf.mxu0
    %v6239 = vadd.f32 0.0, %v6238
    %6240 = vdwg.mxu0
    %v6241 = vadd.f32 %v5941, %v6195
    %v6242 = vadd.f32 %v5955, %v6209
    %v6243 = vadd.f32 %v5969, %v6223
    %v6244 = vadd.f32 %v5983, %v6237
    %v6245 = vadd.f32 %v5943, %v6197
    %v6246 = vadd.f32 %v5957, %v6211
    %v6247 = vadd.f32 %v5971, %v6225
    %v6248 = vadd.f32 %v5985, %v6239
    %v6249 = vrot.slane %v5482, 3
    %v6250 = vrot.slane %v5483, 3
    %v6251 = vsel %vm500, %v6249, %v6250
    %v6252 = vsel %vm500, %v6250, %v6249
    %v6253 = vpack.c.bf16 %v6252, %v6251
    %s6254 = scalar_lea.vmem [#allocation10], 768
    %v6255 = vld [vmem:[%s6254] sm:$0xff]
    %v6256 = vld [vmem:[%s6254 + $0x8] sm:$0xff]
    %v6257 = vld [vmem:[%s6254 + $0x10] sm:$0xff]
    %v6258 = vld [vmem:[%s6254 + $0x18] sm:$0xff]
    %v6259 = vld [vmem:[%s6254 + $0x20] sm:$0xff]
    %v6260 = vld [vmem:[%s6254 + $0x28] sm:$0xff]
    %v6261 = vld [vmem:[%s6254 + $0x30] sm:$0xff]
    %v6262 = vld [vmem:[%s6254 + $0x38] sm:$0xff]
    %v6263 = vld [vmem:[%s6254 + $0x40] sm:$0xff]
    %v6264 = vld [vmem:[%s6254 + $0x48] sm:$0xff]
    %v6265 = vld [vmem:[%s6254 + $0x50] sm:$0xff]
    %v6266 = vld [vmem:[%s6254 + $0x58] sm:$0xff]
    %v6267 = vld [vmem:[%s6254 + $0x60] sm:$0xff]
    %v6268 = vld [vmem:[%s6254 + $0x68] sm:$0xff]
    %v6269 = vld [vmem:[%s6254 + $0x70] sm:$0xff]
    %v6270 = vld [vmem:[%s6254 + $0x78] sm:$0xff]
    %v6271 = vld [vmem:[%s6254 + $0x80] sm:$0xff]
    %v6272 = vld [vmem:[%s6254 + $0x88] sm:$0xff]
    %v6273 = vld [vmem:[%s6254 + $0x90] sm:$0xff]
    %v6274 = vld [vmem:[%s6254 + $0x98] sm:$0xff]
    %v6275 = vld [vmem:[%s6254 + $0xa0] sm:$0xff]
    %v6276 = vld [vmem:[%s6254 + $0xa8] sm:$0xff]
    %v6277 = vld [vmem:[%s6254 + $0xb0] sm:$0xff]
    %v6278 = vld [vmem:[%s6254 + $0xb8] sm:$0xff]
    %v6279 = vld [vmem:[%s6254 + $0xc0] sm:$0xff]
    %v6280 = vld [vmem:[%s6254 + $0xc8] sm:$0xff]
    %v6281 = vld [vmem:[%s6254 + $0xd0] sm:$0xff]
    %v6282 = vld [vmem:[%s6254 + $0xd8] sm:$0xff]
    %v6283 = vld [vmem:[%s6254 + $0xe0] sm:$0xff]
    %v6284 = vld [vmem:[%s6254 + $0xe8] sm:$0xff]
    %v6285 = vld [vmem:[%s6254 + $0xf0] sm:$0xff]
    %v6286 = vld [vmem:[%s6254 + $0xf8] sm:$0xff]
    %v6319 = vunpack.c.l.b16 %v6255
    %v6320 = vunpack.c.h.b16 %v6255
    %v6321 = vunpack.c.l.b16 %v6256
    %v6322 = vunpack.c.h.b16 %v6256
    %v6323 = vunpack.c.l.b16 %v6257
    %v6324 = vunpack.c.h.b16 %v6257
    %v6325 = vunpack.c.l.b16 %v6258
    %v6326 = vunpack.c.h.b16 %v6258
    %v6327 = vunpack.c.l.b16 %v6259
    %v6328 = vunpack.c.h.b16 %v6259
    %v6329 = vunpack.c.l.b16 %v6260
    %v6330 = vunpack.c.h.b16 %v6260
    %v6331 = vunpack.c.l.b16 %v6261
    %v6332 = vunpack.c.h.b16 %v6261
    %v6333 = vunpack.c.l.b16 %v6262
    %v6334 = vunpack.c.h.b16 %v6262
    %v6335 = vunpack.c.l.b16 %v6263
    %v6336 = vunpack.c.h.b16 %v6263
    %v6337 = vunpack.c.l.b16 %v6264
    %v6338 = vunpack.c.h.b16 %v6264
    %v6339 = vunpack.c.l.b16 %v6265
    %v6340 = vunpack.c.h.b16 %v6265
    %v6341 = vunpack.c.l.b16 %v6266
    %v6342 = vunpack.c.h.b16 %v6266
    %v6343 = vunpack.c.l.b16 %v6267
    %v6344 = vunpack.c.h.b16 %v6267
    %v6345 = vunpack.c.l.b16 %v6268
    %v6346 = vunpack.c.h.b16 %v6268
    %v6347 = vunpack.c.l.b16 %v6269
    %v6348 = vunpack.c.h.b16 %v6269
    %v6349 = vunpack.c.l.b16 %v6270
    %v6350 = vunpack.c.h.b16 %v6270
    %v6351 = vunpack.c.l.b16 %v6271
    %v6352 = vunpack.c.h.b16 %v6271
    %v6353 = vunpack.c.l.b16 %v6272
    %v6354 = vunpack.c.h.b16 %v6272
    %v6355 = vunpack.c.l.b16 %v6273
    %v6356 = vunpack.c.h.b16 %v6273
    %v6357 = vunpack.c.l.b16 %v6274
    %v6358 = vunpack.c.h.b16 %v6274
    %v6359 = vunpack.c.l.b16 %v6275
    %v6360 = vunpack.c.h.b16 %v6275
    %v6361 = vunpack.c.l.b16 %v6276
    %v6362 = vunpack.c.h.b16 %v6276
    %v6363 = vunpack.c.l.b16 %v6277
    %v6364 = vunpack.c.h.b16 %v6277
    %v6365 = vunpack.c.l.b16 %v6278
    %v6366 = vunpack.c.h.b16 %v6278
    %v6367 = vunpack.c.l.b16 %v6279
    %v6368 = vunpack.c.h.b16 %v6279
    %v6369 = vunpack.c.l.b16 %v6280
    %v6370 = vunpack.c.h.b16 %v6280
    %v6371 = vunpack.c.l.b16 %v6281
    %v6372 = vunpack.c.h.b16 %v6281
    %v6373 = vunpack.c.l.b16 %v6282
    %v6374 = vunpack.c.h.b16 %v6282
    %v6375 = vunpack.c.l.b16 %v6283
    %v6376 = vunpack.c.h.b16 %v6283
    %v6377 = vunpack.c.l.b16 %v6284
    %v6378 = vunpack.c.h.b16 %v6284
    %v6379 = vunpack.c.l.b16 %v6285
    %v6380 = vunpack.c.h.b16 %v6285
    %v6381 = vunpack.c.l.b16 %v6286
    %v6382 = vunpack.c.h.b16 %v6286
    %v6383 = vpack.c.b16 %v6323, %v6319
    %v6384 = vpack.c.b16 %v6324, %v6320
    %v6385 = vpack.c.b16 %v6325, %v6321
    %v6386 = vpack.c.b16 %v6326, %v6322
    %v6387 = vpack.c.b16 %v6331, %v6327
    %v6388 = vpack.c.b16 %v6332, %v6328
    %v6389 = vpack.c.b16 %v6333, %v6329
    %v6390 = vpack.c.b16 %v6334, %v6330
    %v6391 = vpack.c.b16 %v6339, %v6335
    %v6392 = vpack.c.b16 %v6340, %v6336
    %v6393 = vpack.c.b16 %v6341, %v6337
    %v6394 = vpack.c.b16 %v6342, %v6338
    %v6395 = vpack.c.b16 %v6347, %v6343
    %v6396 = vpack.c.b16 %v6348, %v6344
    %v6397 = vpack.c.b16 %v6349, %v6345
    %v6398 = vpack.c.b16 %v6350, %v6346
    %v6399 = vpack.c.b16 %v6355, %v6351
    %v6400 = vpack.c.b16 %v6356, %v6352
    %v6401 = vpack.c.b16 %v6357, %v6353
    %v6402 = vpack.c.b16 %v6358, %v6354
    %v6403 = vpack.c.b16 %v6363, %v6359
    %v6404 = vpack.c.b16 %v6364, %v6360
    %v6405 = vpack.c.b16 %v6365, %v6361
    %v6406 = vpack.c.b16 %v6366, %v6362
    %v6407 = vpack.c.b16 %v6371, %v6367
    %v6408 = vpack.c.b16 %v6372, %v6368
    %v6409 = vpack.c.b16 %v6373, %v6369
    %v6410 = vpack.c.b16 %v6374, %v6370
    %v6411 = vpack.c.b16 %v6379, %v6375
    %v6412 = vpack.c.b16 %v6380, %v6376
    %v6413 = vpack.c.b16 %v6381, %v6377
    %v6414 = vpack.c.b16 %v6382, %v6378
    %6447 = vmatpush.bf16.msra.mxu0 %v6411
    %6448 = vmatpush.bf16.msra.mxu0 %v6407
    %6449 = vmatpush.bf16.msra.mxu0 %v6403
    %6450 = vmatpush.bf16.msra.mxu0 %v6399
    %6451 = vmatpush.bf16.msra.mxu0 %v6395
    %6452 = vmatpush.bf16.msra.mxu0 %v6391
    %6453 = vmatpush.bf16.msra.mxu0 %v6387
    %6454 = vmatpush.bf16.msra.mxu0 %v6383
    %6455 = vmatmul.bf16.gmra.mxu0 %v6253
    %v6456 = vpop.f32.mrf.mxu0
    %v6457 = vadd.f32 0.0, %v6456
    %v6458 = vpop.f32.mrf.mxu0
    %v6459 = vadd.f32 0.0, %v6458
    %6460 = vdwg.mxu0
    %6461 = vmatpush.bf16.msra.mxu0 %v6412
    %6462 = vmatpush.bf16.msra.mxu0 %v6408
    %6463 = vmatpush.bf16.msra.mxu0 %v6404
    %6464 = vmatpush.bf16.msra.mxu0 %v6400
    %6465 = vmatpush.bf16.msra.mxu0 %v6396
    %6466 = vmatpush.bf16.msra.mxu0 %v6392
    %6467 = vmatpush.bf16.msra.mxu0 %v6388
    %6468 = vmatpush.bf16.msra.mxu0 %v6384
    %6469 = vmatmul.bf16.gmra.mxu0 %v6253
    %v6470 = vpop.f32.mrf.mxu0
    %v6471 = vadd.f32 0.0, %v6470
    %v6472 = vpop.f32.mrf.mxu0
    %v6473 = vadd.f32 0.0, %v6472
    %6474 = vdwg.mxu0
    %6475 = vmatpush.bf16.msra.mxu0 %v6413
    %6476 = vmatpush.bf16.msra.mxu0 %v6409
    %6477 = vmatpush.bf16.msra.mxu0 %v6405
    %6478 = vmatpush.bf16.msra.mxu0 %v6401
    %6479 = vmatpush.bf16.msra.mxu0 %v6397
    %6480 = vmatpush.bf16.msra.mxu0 %v6393
    %6481 = vmatpush.bf16.msra.mxu0 %v6389
    %6482 = vmatpush.bf16.msra.mxu0 %v6385
    %6483 = vmatmul.bf16.gmra.mxu0 %v6253
    %v6484 = vpop.f32.mrf.mxu0
    %v6485 = vadd.f32 0.0, %v6484
    %v6486 = vpop.f32.mrf.mxu0
    %v6487 = vadd.f32 0.0, %v6486
    %6488 = vdwg.mxu0
    %6489 = vmatpush.bf16.msra.mxu0 %v6414
    %6490 = vmatpush.bf16.msra.mxu0 %v6410
    %6491 = vmatpush.bf16.msra.mxu0 %v6406
    %6492 = vmatpush.bf16.msra.mxu0 %v6402
    %6493 = vmatpush.bf16.msra.mxu0 %v6398
    %6494 = vmatpush.bf16.msra.mxu0 %v6394
    %6495 = vmatpush.bf16.msra.mxu0 %v6390
    %6496 = vmatpush.bf16.msra.mxu0 %v6386
    %6497 = vmatmul.bf16.gmra.mxu0 %v6253
    %v6498 = vpop.f32.mrf.mxu0
    %v6499 = vadd.f32 0.0, %v6498
    %v6500 = vpop.f32.mrf.mxu0
    %v6501 = vadd.f32 0.0, %v6500
    %6502 = vdwg.mxu0
    %v6503 = vadd.f32 %v6241, %v6457
    %v6504 = vadd.f32 %v6242, %v6471
    %v6505 = vadd.f32 %v6243, %v6485
    %v6506 = vadd.f32 %v6244, %v6499
    %v6507 = vadd.f32 %v6245, %v6459
    %v6508 = vadd.f32 %v6246, %v6473
    %v6509 = vadd.f32 %v6247, %v6487
    %v6510 = vadd.f32 %v6248, %v6501
    %v6511 = vrot.slane %v5482, 4
    %v6512 = vrot.slane %v5483, 4
    %v6513 = vsel %vm587, %v6511, %v6512
    %v6514 = vsel %vm587, %v6512, %v6511
    %v6515 = vpack.c.bf16 %v6514, %v6513
    %s6516 = scalar_lea.vmem [#allocation10], 1024
    %v6517 = vld [vmem:[%s6516] sm:$0xff]
    %v6518 = vld [vmem:[%s6516 + $0x8] sm:$0xff]
    %v6519 = vld [vmem:[%s6516 + $0x10] sm:$0xff]
    %v6520 = vld [vmem:[%s6516 + $0x18] sm:$0xff]
    %v6521 = vld [vmem:[%s6516 + $0x20] sm:$0xff]
    %v6522 = vld [vmem:[%s6516 + $0x28] sm:$0xff]
    %v6523 = vld [vmem:[%s6516 + $0x30] sm:$0xff]
    %v6524 = vld [vmem:[%s6516 + $0x38] sm:$0xff]
    %v6525 = vld [vmem:[%s6516 + $0x40] sm:$0xff]
    %v6526 = vld [vmem:[%s6516 + $0x48] sm:$0xff]
    %v6527 = vld [vmem:[%s6516 + $0x50] sm:$0xff]
    %v6528 = vld [vmem:[%s6516 + $0x58] sm:$0xff]
    %v6529 = vld [vmem:[%s6516 + $0x60] sm:$0xff]
    %v6530 = vld [vmem:[%s6516 + $0x68] sm:$0xff]
    %v6531 = vld [vmem:[%s6516 + $0x70] sm:$0xff]
    %v6532 = vld [vmem:[%s6516 + $0x78] sm:$0xff]
    %v6533 = vld [vmem:[%s6516 + $0x80] sm:$0xff]
    %v6534 = vld [vmem:[%s6516 + $0x88] sm:$0xff]
    %v6535 = vld [vmem:[%s6516 + $0x90] sm:$0xff]
    %v6536 = vld [vmem:[%s6516 + $0x98] sm:$0xff]
    %v6537 = vld [vmem:[%s6516 + $0xa0] sm:$0xff]
    %v6538 = vld [vmem:[%s6516 + $0xa8] sm:$0xff]
    %v6539 = vld [vmem:[%s6516 + $0xb0] sm:$0xff]
    %v6540 = vld [vmem:[%s6516 + $0xb8] sm:$0xff]
    %v6541 = vld [vmem:[%s6516 + $0xc0] sm:$0xff]
    %v6542 = vld [vmem:[%s6516 + $0xc8] sm:$0xff]
    %v6543 = vld [vmem:[%s6516 + $0xd0] sm:$0xff]
    %v6544 = vld [vmem:[%s6516 + $0xd8] sm:$0xff]
    %v6545 = vld [vmem:[%s6516 + $0xe0] sm:$0xff]
    %v6546 = vld [vmem:[%s6516 + $0xe8] sm:$0xff]
    %v6547 = vld [vmem:[%s6516 + $0xf0] sm:$0xff]
    %v6548 = vld [vmem:[%s6516 + $0xf8] sm:$0xff]
    %v6581 = vunpack.c.l.b16 %v6517
    %v6582 = vunpack.c.h.b16 %v6517
    %v6583 = vunpack.c.l.b16 %v6518
    %v6584 = vunpack.c.h.b16 %v6518
    %v6585 = vunpack.c.l.b16 %v6519
    %v6586 = vunpack.c.h.b16 %v6519
    %v6587 = vunpack.c.l.b16 %v6520
    %v6588 = vunpack.c.h.b16 %v6520
    %v6589 = vunpack.c.l.b16 %v6521
    %v6590 = vunpack.c.h.b16 %v6521
    %v6591 = vunpack.c.l.b16 %v6522
    %v6592 = vunpack.c.h.b16 %v6522
    %v6593 = vunpack.c.l.b16 %v6523
    %v6594 = vunpack.c.h.b16 %v6523
    %v6595 = vunpack.c.l.b16 %v6524
    %v6596 = vunpack.c.h.b16 %v6524
    %v6597 = vunpack.c.l.b16 %v6525
    %v6598 = vunpack.c.h.b16 %v6525
    %v6599 = vunpack.c.l.b16 %v6526
    %v6600 = vunpack.c.h.b16 %v6526
    %v6601 = vunpack.c.l.b16 %v6527
    %v6602 = vunpack.c.h.b16 %v6527
    %v6603 = vunpack.c.l.b16 %v6528
    %v6604 = vunpack.c.h.b16 %v6528
    %v6605 = vunpack.c.l.b16 %v6529
    %v6606 = vunpack.c.h.b16 %v6529
    %v6607 = vunpack.c.l.b16 %v6530
    %v6608 = vunpack.c.h.b16 %v6530
    %v6609 = vunpack.c.l.b16 %v6531
    %v6610 = vunpack.c.h.b16 %v6531
    %v6611 = vunpack.c.l.b16 %v6532
    %v6612 = vunpack.c.h.b16 %v6532
    %v6613 = vunpack.c.l.b16 %v6533
    %v6614 = vunpack.c.h.b16 %v6533
    %v6615 = vunpack.c.l.b16 %v6534
    %v6616 = vunpack.c.h.b16 %v6534
    %v6617 = vunpack.c.l.b16 %v6535
    %v6618 = vunpack.c.h.b16 %v6535
    %v6619 = vunpack.c.l.b16 %v6536
    %v6620 = vunpack.c.h.b16 %v6536
    %v6621 = vunpack.c.l.b16 %v6537
    %v6622 = vunpack.c.h.b16 %v6537
    %v6623 = vunpack.c.l.b16 %v6538
    %v6624 = vunpack.c.h.b16 %v6538
    %v6625 = vunpack.c.l.b16 %v6539
    %v6626 = vunpack.c.h.b16 %v6539
    %v6627 = vunpack.c.l.b16 %v6540
    %v6628 = vunpack.c.h.b16 %v6540
    %v6629 = vunpack.c.l.b16 %v6541
    %v6630 = vunpack.c.h.b16 %v6541
    %v6631 = vunpack.c.l.b16 %v6542
    %v6632 = vunpack.c.h.b16 %v6542
    %v6633 = vunpack.c.l.b16 %v6543
    %v6634 = vunpack.c.h.b16 %v6543
    %v6635 = vunpack.c.l.b16 %v6544
    %v6636 = vunpack.c.h.b16 %v6544
    %v6637 = vunpack.c.l.b16 %v6545
    %v6638 = vunpack.c.h.b16 %v6545
    %v6639 = vunpack.c.l.b16 %v6546
    %v6640 = vunpack.c.h.b16 %v6546
    %v6641 = vunpack.c.l.b16 %v6547
    %v6642 = vunpack.c.h.b16 %v6547
    %v6643 = vunpack.c.l.b16 %v6548
    %v6644 = vunpack.c.h.b16 %v6548
    %v6645 = vpack.c.b16 %v6585, %v6581
    %v6646 = vpack.c.b16 %v6586, %v6582
    %v6647 = vpack.c.b16 %v6587, %v6583
    %v6648 = vpack.c.b16 %v6588, %v6584
    %v6649 = vpack.c.b16 %v6593, %v6589
    %v6650 = vpack.c.b16 %v6594, %v6590
    %v6651 = vpack.c.b16 %v6595, %v6591
    %v6652 = vpack.c.b16 %v6596, %v6592
    %v6653 = vpack.c.b16 %v6601, %v6597
    %v6654 = vpack.c.b16 %v6602, %v6598
    %v6655 = vpack.c.b16 %v6603, %v6599
    %v6656 = vpack.c.b16 %v6604, %v6600
    %v6657 = vpack.c.b16 %v6609, %v6605
    %v6658 = vpack.c.b16 %v6610, %v6606
    %v6659 = vpack.c.b16 %v6611, %v6607
    %v6660 = vpack.c.b16 %v6612, %v6608
    %v6661 = vpack.c.b16 %v6617, %v6613
    %v6662 = vpack.c.b16 %v6618, %v6614
    %v6663 = vpack.c.b16 %v6619, %v6615
    %v6664 = vpack.c.b16 %v6620, %v6616
    %v6665 = vpack.c.b16 %v6625, %v6621
    %v6666 = vpack.c.b16 %v6626, %v6622
    %v6667 = vpack.c.b16 %v6627, %v6623
    %v6668 = vpack.c.b16 %v6628, %v6624
    %v6669 = vpack.c.b16 %v6633, %v6629
    %v6670 = vpack.c.b16 %v6634, %v6630
    %v6671 = vpack.c.b16 %v6635, %v6631
    %v6672 = vpack.c.b16 %v6636, %v6632
    %v6673 = vpack.c.b16 %v6641, %v6637
    %v6674 = vpack.c.b16 %v6642, %v6638
    %v6675 = vpack.c.b16 %v6643, %v6639
    %v6676 = vpack.c.b16 %v6644, %v6640
    %6709 = vmatpush.bf16.msra.mxu0 %v6673
    %6710 = vmatpush.bf16.msra.mxu0 %v6669
    %6711 = vmatpush.bf16.msra.mxu0 %v6665
    %6712 = vmatpush.bf16.msra.mxu0 %v6661
    %6713 = vmatpush.bf16.msra.mxu0 %v6657
    %6714 = vmatpush.bf16.msra.mxu0 %v6653
    %6715 = vmatpush.bf16.msra.mxu0 %v6649
    %6716 = vmatpush.bf16.msra.mxu0 %v6645
    %6717 = vmatmul.bf16.gmra.mxu0 %v6515
    %v6718 = vpop.f32.mrf.mxu0
    %v6719 = vadd.f32 0.0, %v6718
    %v6720 = vpop.f32.mrf.mxu0
    %v6721 = vadd.f32 0.0, %v6720
    %6722 = vdwg.mxu0
    %6723 = vmatpush.bf16.msra.mxu0 %v6674
    %6724 = vmatpush.bf16.msra.mxu0 %v6670
    %6725 = vmatpush.bf16.msra.mxu0 %v6666
    %6726 = vmatpush.bf16.msra.mxu0 %v6662
    %6727 = vmatpush.bf16.msra.mxu0 %v6658
    %6728 = vmatpush.bf16.msra.mxu0 %v6654
    %6729 = vmatpush.bf16.msra.mxu0 %v6650
    %6730 = vmatpush.bf16.msra.mxu0 %v6646
    %6731 = vmatmul.bf16.gmra.mxu0 %v6515
    %v6732 = vpop.f32.mrf.mxu0
    %v6733 = vadd.f32 0.0, %v6732
    %v6734 = vpop.f32.mrf.mxu0
    %v6735 = vadd.f32 0.0, %v6734
    %6736 = vdwg.mxu0
    %6737 = vmatpush.bf16.msra.mxu0 %v6675
    %6738 = vmatpush.bf16.msra.mxu0 %v6671
    %6739 = vmatpush.bf16.msra.mxu0 %v6667
    %6740 = vmatpush.bf16.msra.mxu0 %v6663
    %6741 = vmatpush.bf16.msra.mxu0 %v6659
    %6742 = vmatpush.bf16.msra.mxu0 %v6655
    %6743 = vmatpush.bf16.msra.mxu0 %v6651
    %6744 = vmatpush.bf16.msra.mxu0 %v6647
    %6745 = vmatmul.bf16.gmra.mxu0 %v6515
    %v6746 = vpop.f32.mrf.mxu0
    %v6747 = vadd.f32 0.0, %v6746
    %v6748 = vpop.f32.mrf.mxu0
    %v6749 = vadd.f32 0.0, %v6748
    %6750 = vdwg.mxu0
    %6751 = vmatpush.bf16.msra.mxu0 %v6676
    %6752 = vmatpush.bf16.msra.mxu0 %v6672
    %6753 = vmatpush.bf16.msra.mxu0 %v6668
    %6754 = vmatpush.bf16.msra.mxu0 %v6664
    %6755 = vmatpush.bf16.msra.mxu0 %v6660
    %6756 = vmatpush.bf16.msra.mxu0 %v6656
    %6757 = vmatpush.bf16.msra.mxu0 %v6652
    %6758 = vmatpush.bf16.msra.mxu0 %v6648
    %6759 = vmatmul.bf16.gmra.mxu0 %v6515
    %v6760 = vpop.f32.mrf.mxu0
    %v6761 = vadd.f32 0.0, %v6760
    %v6762 = vpop.f32.mrf.mxu0
    %v6763 = vadd.f32 0.0, %v6762
    %6764 = vdwg.mxu0
    %v6765 = vadd.f32 %v6503, %v6719
    %v6766 = vadd.f32 %v6504, %v6733
    %v6767 = vadd.f32 %v6505, %v6747
    %v6768 = vadd.f32 %v6506, %v6761
    %v6769 = vadd.f32 %v6507, %v6721
    %v6770 = vadd.f32 %v6508, %v6735
    %v6771 = vadd.f32 %v6509, %v6749
    %v6772 = vadd.f32 %v6510, %v6763
    %v6773 = vrot.slane %v5482, 5
    %v6774 = vrot.slane %v5483, 5
    %vm6775 = vcmp.lt.s32.totalorder %v136, 3
    %v6776 = vsel %vm6775, %v6773, %v6774
    %v6777 = vsel %vm6775, %v6774, %v6773
    %v6778 = vpack.c.bf16 %v6777, %v6776
    %s6779 = scalar_lea.vmem [#allocation10], 1280
    %v6780 = vld [vmem:[%s6779] sm:$0xff]
    %v6781 = vld [vmem:[%s6779 + $0x8] sm:$0xff]
    %v6782 = vld [vmem:[%s6779 + $0x10] sm:$0xff]
    %v6783 = vld [vmem:[%s6779 + $0x18] sm:$0xff]
    %v6784 = vld [vmem:[%s6779 + $0x20] sm:$0xff]
    %v6785 = vld [vmem:[%s6779 + $0x28] sm:$0xff]
    %v6786 = vld [vmem:[%s6779 + $0x30] sm:$0xff]
    %v6787 = vld [vmem:[%s6779 + $0x38] sm:$0xff]
    %v6788 = vld [vmem:[%s6779 + $0x40] sm:$0xff]
    %v6789 = vld [vmem:[%s6779 + $0x48] sm:$0xff]
    %v6790 = vld [vmem:[%s6779 + $0x50] sm:$0xff]
    %v6791 = vld [vmem:[%s6779 + $0x58] sm:$0xff]
    %v6792 = vld [vmem:[%s6779 + $0x60] sm:$0xff]
    %v6793 = vld [vmem:[%s6779 + $0x68] sm:$0xff]
    %v6794 = vld [vmem:[%s6779 + $0x70] sm:$0xff]
    %v6795 = vld [vmem:[%s6779 + $0x78] sm:$0xff]
    %v6796 = vld [vmem:[%s6779 + $0x80] sm:$0xff]
    %v6797 = vld [vmem:[%s6779 + $0x88] sm:$0xff]
    %v6798 = vld [vmem:[%s6779 + $0x90] sm:$0xff]
    %v6799 = vld [vmem:[%s6779 + $0x98] sm:$0xff]
    %v6800 = vld [vmem:[%s6779 + $0xa0] sm:$0xff]
    %v6801 = vld [vmem:[%s6779 + $0xa8] sm:$0xff]
    %v6802 = vld [vmem:[%s6779 + $0xb0] sm:$0xff]
    %v6803 = vld [vmem:[%s6779 + $0xb8] sm:$0xff]
    %v6804 = vld [vmem:[%s6779 + $0xc0] sm:$0xff]
    %v6805 = vld [vmem:[%s6779 + $0xc8] sm:$0xff]
    %v6806 = vld [vmem:[%s6779 + $0xd0] sm:$0xff]
    %v6807 = vld [vmem:[%s6779 + $0xd8] sm:$0xff]
    %v6808 = vld [vmem:[%s6779 + $0xe0] sm:$0xff]
    %v6809 = vld [vmem:[%s6779 + $0xe8] sm:$0xff]
    %v6810 = vld [vmem:[%s6779 + $0xf0] sm:$0xff]
    %v6811 = vld [vmem:[%s6779 + $0xf8] sm:$0xff]
    %v6844 = vunpack.c.l.b16 %v6780
    %v6845 = vunpack.c.h.b16 %v6780
    %v6846 = vunpack.c.l.b16 %v6781
    %v6847 = vunpack.c.h.b16 %v6781
    %v6848 = vunpack.c.l.b16 %v6782
    %v6849 = vunpack.c.h.b16 %v6782
    %v6850 = vunpack.c.l.b16 %v6783
    %v6851 = vunpack.c.h.b16 %v6783
    %v6852 = vunpack.c.l.b16 %v6784
    %v6853 = vunpack.c.h.b16 %v6784
    %v6854 = vunpack.c.l.b16 %v6785
    %v6855 = vunpack.c.h.b16 %v6785
    %v6856 = vunpack.c.l.b16 %v6786
    %v6857 = vunpack.c.h.b16 %v6786
    %v6858 = vunpack.c.l.b16 %v6787
    %v6859 = vunpack.c.h.b16 %v6787
    %v6860 = vunpack.c.l.b16 %v6788
    %v6861 = vunpack.c.h.b16 %v6788
    %v6862 = vunpack.c.l.b16 %v6789
    %v6863 = vunpack.c.h.b16 %v6789
    %v6864 = vunpack.c.l.b16 %v6790
    %v6865 = vunpack.c.h.b16 %v6790
    %v6866 = vunpack.c.l.b16 %v6791
    %v6867 = vunpack.c.h.b16 %v6791
    %v6868 = vunpack.c.l.b16 %v6792
    %v6869 = vunpack.c.h.b16 %v6792
    %v6870 = vunpack.c.l.b16 %v6793
    %v6871 = vunpack.c.h.b16 %v6793
    %v6872 = vunpack.c.l.b16 %v6794
    %v6873 = vunpack.c.h.b16 %v6794
    %v6874 = vunpack.c.l.b16 %v6795
    %v6875 = vunpack.c.h.b16 %v6795
    %v6876 = vunpack.c.l.b16 %v6796
    %v6877 = vunpack.c.h.b16 %v6796
    %v6878 = vunpack.c.l.b16 %v6797
    %v6879 = vunpack.c.h.b16 %v6797
    %v6880 = vunpack.c.l.b16 %v6798
    %v6881 = vunpack.c.h.b16 %v6798
    %v6882 = vunpack.c.l.b16 %v6799
    %v6883 = vunpack.c.h.b16 %v6799
    %v6884 = vunpack.c.l.b16 %v6800
    %v6885 = vunpack.c.h.b16 %v6800
    %v6886 = vunpack.c.l.b16 %v6801
    %v6887 = vunpack.c.h.b16 %v6801
    %v6888 = vunpack.c.l.b16 %v6802
    %v6889 = vunpack.c.h.b16 %v6802
    %v6890 = vunpack.c.l.b16 %v6803
    %v6891 = vunpack.c.h.b16 %v6803
    %v6892 = vunpack.c.l.b16 %v6804
    %v6893 = vunpack.c.h.b16 %v6804
    %v6894 = vunpack.c.l.b16 %v6805
    %v6895 = vunpack.c.h.b16 %v6805
    %v6896 = vunpack.c.l.b16 %v6806
    %v6897 = vunpack.c.h.b16 %v6806
    %v6898 = vunpack.c.l.b16 %v6807
    %v6899 = vunpack.c.h.b16 %v6807
    %v6900 = vunpack.c.l.b16 %v6808
    %v6901 = vunpack.c.h.b16 %v6808
    %v6902 = vunpack.c.l.b16 %v6809
    %v6903 = vunpack.c.h.b16 %v6809
    %v6904 = vunpack.c.l.b16 %v6810
    %v6905 = vunpack.c.h.b16 %v6810
    %v6906 = vunpack.c.l.b16 %v6811
    %v6907 = vunpack.c.h.b16 %v6811
    %v6908 = vpack.c.b16 %v6848, %v6844
    %v6909 = vpack.c.b16 %v6849, %v6845
    %v6910 = vpack.c.b16 %v6850, %v6846
    %v6911 = vpack.c.b16 %v6851, %v6847
    %v6912 = vpack.c.b16 %v6856, %v6852
    %v6913 = vpack.c.b16 %v6857, %v6853
    %v6914 = vpack.c.b16 %v6858, %v6854
    %v6915 = vpack.c.b16 %v6859, %v6855
    %v6916 = vpack.c.b16 %v6864, %v6860
    %v6917 = vpack.c.b16 %v6865, %v6861
    %v6918 = vpack.c.b16 %v6866, %v6862
    %v6919 = vpack.c.b16 %v6867, %v6863
    %v6920 = vpack.c.b16 %v6872, %v6868
    %v6921 = vpack.c.b16 %v6873, %v6869
    %v6922 = vpack.c.b16 %v6874, %v6870
    %v6923 = vpack.c.b16 %v6875, %v6871
    %v6924 = vpack.c.b16 %v6880, %v6876
    %v6925 = vpack.c.b16 %v6881, %v6877
    %v6926 = vpack.c.b16 %v6882, %v6878
    %v6927 = vpack.c.b16 %v6883, %v6879
    %v6928 = vpack.c.b16 %v6888, %v6884
    %v6929 = vpack.c.b16 %v6889, %v6885
    %v6930 = vpack.c.b16 %v6890, %v6886
    %v6931 = vpack.c.b16 %v6891, %v6887
    %v6932 = vpack.c.b16 %v6896, %v6892
    %v6933 = vpack.c.b16 %v6897, %v6893
    %v6934 = vpack.c.b16 %v6898, %v6894
    %v6935 = vpack.c.b16 %v6899, %v6895
    %v6936 = vpack.c.b16 %v6904, %v6900
    %v6937 = vpack.c.b16 %v6905, %v6901
    %v6938 = vpack.c.b16 %v6906, %v6902
    %v6939 = vpack.c.b16 %v6907, %v6903
    %6972 = vmatpush.bf16.msra.mxu0 %v6936
    %6973 = vmatpush.bf16.msra.mxu0 %v6932
    %6974 = vmatpush.bf16.msra.mxu0 %v6928
    %6975 = vmatpush.bf16.msra.mxu0 %v6924
    %6976 = vmatpush.bf16.msra.mxu0 %v6920
    %6977 = vmatpush.bf16.msra.mxu0 %v6916
    %6978 = vmatpush.bf16.msra.mxu0 %v6912
    %6979 = vmatpush.bf16.msra.mxu0 %v6908
    %6980 = vmatmul.bf16.gmra.mxu0 %v6778
    %v6981 = vpop.f32.mrf.mxu0
    %v6982 = vadd.f32 0.0, %v6981
    %v6983 = vpop.f32.mrf.mxu0
    %v6984 = vadd.f32 0.0, %v6983
    %6985 = vdwg.mxu0
    %6986 = vmatpush.bf16.msra.mxu0 %v6937
    %6987 = vmatpush.bf16.msra.mxu0 %v6933
    %6988 = vmatpush.bf16.msra.mxu0 %v6929
    %6989 = vmatpush.bf16.msra.mxu0 %v6925
    %6990 = vmatpush.bf16.msra.mxu0 %v6921
    %6991 = vmatpush.bf16.msra.mxu0 %v6917
    %6992 = vmatpush.bf16.msra.mxu0 %v6913
    %6993 = vmatpush.bf16.msra.mxu0 %v6909
    %6994 = vmatmul.bf16.gmra.mxu0 %v6778
    %v6995 = vpop.f32.mrf.mxu0
    %v6996 = vadd.f32 0.0, %v6995
    %v6997 = vpop.f32.mrf.mxu0
    %v6998 = vadd.f32 0.0, %v6997
    %6999 = vdwg.mxu0
    %7000 = vmatpush.bf16.msra.mxu0 %v6938
    %7001 = vmatpush.bf16.msra.mxu0 %v6934
    %7002 = vmatpush.bf16.msra.mxu0 %v6930
    %7003 = vmatpush.bf16.msra.mxu0 %v6926
    %7004 = vmatpush.bf16.msra.mxu0 %v6922
    %7005 = vmatpush.bf16.msra.mxu0 %v6918
    %7006 = vmatpush.bf16.msra.mxu0 %v6914
    %7007 = vmatpush.bf16.msra.mxu0 %v6910
    %7008 = vmatmul.bf16.gmra.mxu0 %v6778
    %v7009 = vpop.f32.mrf.mxu0
    %v7010 = vadd.f32 0.0, %v7009
    %v7011 = vpop.f32.mrf.mxu0
    %v7012 = vadd.f32 0.0, %v7011
    %7013 = vdwg.mxu0
    %7014 = vmatpush.bf16.msra.mxu0 %v6939
    %7015 = vmatpush.bf16.msra.mxu0 %v6935
    %7016 = vmatpush.bf16.msra.mxu0 %v6931
    %7017 = vmatpush.bf16.msra.mxu0 %v6927
    %7018 = vmatpush.bf16.msra.mxu0 %v6923
    %7019 = vmatpush.bf16.msra.mxu0 %v6919
    %7020 = vmatpush.bf16.msra.mxu0 %v6915
    %7021 = vmatpush.bf16.msra.mxu0 %v6911
    %7022 = vmatmul.bf16.gmra.mxu0 %v6778
    %v7023 = vpop.f32.mrf.mxu0
    %v7024 = vadd.f32 0.0, %v7023
    %v7025 = vpop.f32.mrf.mxu0
    %v7026 = vadd.f32 0.0, %v7025
    %7027 = vdwg.mxu0
    %v7028 = vadd.f32 %v6765, %v6982
    %v7029 = vadd.f32 %v6766, %v6996
    %v7030 = vadd.f32 %v6767, %v7010
    %v7031 = vadd.f32 %v6768, %v7024
    %v7032 = vadd.f32 %v6769, %v6984
    %v7033 = vadd.f32 %v6770, %v6998
    %v7034 = vadd.f32 %v6771, %v7012
    %v7035 = vadd.f32 %v6772, %v7026
    %v7036 = vrot.slane %v5482, 6
    %v7037 = vrot.slane %v5483, 6
    %vm7038 = vcmp.lt.s32.totalorder %v136, 2
    %v7039 = vsel %vm7038, %v7036, %v7037
    %v7040 = vsel %vm7038, %v7037, %v7036
    %v7041 = vpack.c.bf16 %v7040, %v7039
    %s7042 = scalar_lea.vmem [#allocation10], 1536
    %v7043 = vld [vmem:[%s7042] sm:$0xff]
    %v7044 = vld [vmem:[%s7042 + $0x8] sm:$0xff]
    %v7045 = vld [vmem:[%s7042 + $0x10] sm:$0xff]
    %v7046 = vld [vmem:[%s7042 + $0x18] sm:$0xff]
    %v7047 = vld [vmem:[%s7042 + $0x20] sm:$0xff]
    %v7048 = vld [vmem:[%s7042 + $0x28] sm:$0xff]
    %v7049 = vld [vmem:[%s7042 + $0x30] sm:$0xff]
    %v7050 = vld [vmem:[%s7042 + $0x38] sm:$0xff]
    %v7051 = vld [vmem:[%s7042 + $0x40] sm:$0xff]
    %v7052 = vld [vmem:[%s7042 + $0x48] sm:$0xff]
    %v7053 = vld [vmem:[%s7042 + $0x50] sm:$0xff]
    %v7054 = vld [vmem:[%s7042 + $0x58] sm:$0xff]
    %v7055 = vld [vmem:[%s7042 + $0x60] sm:$0xff]
    %v7056 = vld [vmem:[%s7042 + $0x68] sm:$0xff]
    %v7057 = vld [vmem:[%s7042 + $0x70] sm:$0xff]
    %v7058 = vld [vmem:[%s7042 + $0x78] sm:$0xff]
    %v7059 = vld [vmem:[%s7042 + $0x80] sm:$0xff]
    %v7060 = vld [vmem:[%s7042 + $0x88] sm:$0xff]
    %v7061 = vld [vmem:[%s7042 + $0x90] sm:$0xff]
    %v7062 = vld [vmem:[%s7042 + $0x98] sm:$0xff]
    %v7063 = vld [vmem:[%s7042 + $0xa0] sm:$0xff]
    %v7064 = vld [vmem:[%s7042 + $0xa8] sm:$0xff]
    %v7065 = vld [vmem:[%s7042 + $0xb0] sm:$0xff]
    %v7066 = vld [vmem:[%s7042 + $0xb8] sm:$0xff]
    %v7067 = vld [vmem:[%s7042 + $0xc0] sm:$0xff]
    %v7068 = vld [vmem:[%s7042 + $0xc8] sm:$0xff]
    %v7069 = vld [vmem:[%s7042 + $0xd0] sm:$0xff]
    %v7070 = vld [vmem:[%s7042 + $0xd8] sm:$0xff]
    %v7071 = vld [vmem:[%s7042 + $0xe0] sm:$0xff]
    %v7072 = vld [vmem:[%s7042 + $0xe8] sm:$0xff]
    %v7073 = vld [vmem:[%s7042 + $0xf0] sm:$0xff]
    %v7074 = vld [vmem:[%s7042 + $0xf8] sm:$0xff]
    %v7107 = vunpack.c.l.b16 %v7043
    %v7108 = vunpack.c.h.b16 %v7043
    %v7109 = vunpack.c.l.b16 %v7044
    %v7110 = vunpack.c.h.b16 %v7044
    %v7111 = vunpack.c.l.b16 %v7045
    %v7112 = vunpack.c.h.b16 %v7045
    %v7113 = vunpack.c.l.b16 %v7046
    %v7114 = vunpack.c.h.b16 %v7046
    %v7115 = vunpack.c.l.b16 %v7047
    %v7116 = vunpack.c.h.b16 %v7047
    %v7117 = vunpack.c.l.b16 %v7048
    %v7118 = vunpack.c.h.b16 %v7048
    %v7119 = vunpack.c.l.b16 %v7049
    %v7120 = vunpack.c.h.b16 %v7049
    %v7121 = vunpack.c.l.b16 %v7050
    %v7122 = vunpack.c.h.b16 %v7050
    %v7123 = vunpack.c.l.b16 %v7051
    %v7124 = vunpack.c.h.b16 %v7051
    %v7125 = vunpack.c.l.b16 %v7052
    %v7126 = vunpack.c.h.b16 %v7052
    %v7127 = vunpack.c.l.b16 %v7053
    %v7128 = vunpack.c.h.b16 %v7053
    %v7129 = vunpack.c.l.b16 %v7054
    %v7130 = vunpack.c.h.b16 %v7054
    %v7131 = vunpack.c.l.b16 %v7055
    %v7132 = vunpack.c.h.b16 %v7055
    %v7133 = vunpack.c.l.b16 %v7056
    %v7134 = vunpack.c.h.b16 %v7056
    %v7135 = vunpack.c.l.b16 %v7057
    %v7136 = vunpack.c.h.b16 %v7057
    %v7137 = vunpack.c.l.b16 %v7058
    %v7138 = vunpack.c.h.b16 %v7058
    %v7139 = vunpack.c.l.b16 %v7059
    %v7140 = vunpack.c.h.b16 %v7059
    %v7141 = vunpack.c.l.b16 %v7060
    %v7142 = vunpack.c.h.b16 %v7060
    %v7143 = vunpack.c.l.b16 %v7061
    %v7144 = vunpack.c.h.b16 %v7061
    %v7145 = vunpack.c.l.b16 %v7062
    %v7146 = vunpack.c.h.b16 %v7062
    %v7147 = vunpack.c.l.b16 %v7063
    %v7148 = vunpack.c.h.b16 %v7063
    %v7149 = vunpack.c.l.b16 %v7064
    %v7150 = vunpack.c.h.b16 %v7064
    %v7151 = vunpack.c.l.b16 %v7065
    %v7152 = vunpack.c.h.b16 %v7065
    %v7153 = vunpack.c.l.b16 %v7066
    %v7154 = vunpack.c.h.b16 %v7066
    %v7155 = vunpack.c.l.b16 %v7067
    %v7156 = vunpack.c.h.b16 %v7067
    %v7157 = vunpack.c.l.b16 %v7068
    %v7158 = vunpack.c.h.b16 %v7068
    %v7159 = vunpack.c.l.b16 %v7069
    %v7160 = vunpack.c.h.b16 %v7069
    %v7161 = vunpack.c.l.b16 %v7070
    %v7162 = vunpack.c.h.b16 %v7070
    %v7163 = vunpack.c.l.b16 %v7071
    %v7164 = vunpack.c.h.b16 %v7071
    %v7165 = vunpack.c.l.b16 %v7072
    %v7166 = vunpack.c.h.b16 %v7072
    %v7167 = vunpack.c.l.b16 %v7073
    %v7168 = vunpack.c.h.b16 %v7073
    %v7169 = vunpack.c.l.b16 %v7074
    %v7170 = vunpack.c.h.b16 %v7074
    %v7171 = vpack.c.b16 %v7111, %v7107
    %v7172 = vpack.c.b16 %v7112, %v7108
    %v7173 = vpack.c.b16 %v7113, %v7109
    %v7174 = vpack.c.b16 %v7114, %v7110
    %v7175 = vpack.c.b16 %v7119, %v7115
    %v7176 = vpack.c.b16 %v7120, %v7116
    %v7177 = vpack.c.b16 %v7121, %v7117
    %v7178 = vpack.c.b16 %v7122, %v7118
    %v7179 = vpack.c.b16 %v7127, %v7123
    %v7180 = vpack.c.b16 %v7128, %v7124
    %v7181 = vpack.c.b16 %v7129, %v7125
    %v7182 = vpack.c.b16 %v7130, %v7126
    %v7183 = vpack.c.b16 %v7135, %v7131
    %v7184 = vpack.c.b16 %v7136, %v7132
    %v7185 = vpack.c.b16 %v7137, %v7133
    %v7186 = vpack.c.b16 %v7138, %v7134
    %v7187 = vpack.c.b16 %v7143, %v7139
    %v7188 = vpack.c.b16 %v7144, %v7140
    %v7189 = vpack.c.b16 %v7145, %v7141
    %v7190 = vpack.c.b16 %v7146, %v7142
    %v7191 = vpack.c.b16 %v7151, %v7147
    %v7192 = vpack.c.b16 %v7152, %v7148
    %v7193 = vpack.c.b16 %v7153, %v7149
    %v7194 = vpack.c.b16 %v7154, %v7150
    %v7195 = vpack.c.b16 %v7159, %v7155
    %v7196 = vpack.c.b16 %v7160, %v7156
    %v7197 = vpack.c.b16 %v7161, %v7157
    %v7198 = vpack.c.b16 %v7162, %v7158
    %v7199 = vpack.c.b16 %v7167, %v7163
    %v7200 = vpack.c.b16 %v7168, %v7164
    %v7201 = vpack.c.b16 %v7169, %v7165
    %v7202 = vpack.c.b16 %v7170, %v7166
    %7235 = vmatpush.bf16.msra.mxu0 %v7199
    %7236 = vmatpush.bf16.msra.mxu0 %v7195
    %7237 = vmatpush.bf16.msra.mxu0 %v7191
    %7238 = vmatpush.bf16.msra.mxu0 %v7187
    %7239 = vmatpush.bf16.msra.mxu0 %v7183
    %7240 = vmatpush.bf16.msra.mxu0 %v7179
    %7241 = vmatpush.bf16.msra.mxu0 %v7175
    %7242 = vmatpush.bf16.msra.mxu0 %v7171
    %7243 = vmatmul.bf16.gmra.mxu0 %v7041
    %v7244 = vpop.f32.mrf.mxu0
    %v7245 = vadd.f32 0.0, %v7244
    %v7246 = vpop.f32.mrf.mxu0
    %v7247 = vadd.f32 0.0, %v7246
    %7248 = vdwg.mxu0
    %7249 = vmatpush.bf16.msra.mxu0 %v7200
    %7250 = vmatpush.bf16.msra.mxu0 %v7196
    %7251 = vmatpush.bf16.msra.mxu0 %v7192
    %7252 = vmatpush.bf16.msra.mxu0 %v7188
    %7253 = vmatpush.bf16.msra.mxu0 %v7184
    %7254 = vmatpush.bf16.msra.mxu0 %v7180
    %7255 = vmatpush.bf16.msra.mxu0 %v7176
    %7256 = vmatpush.bf16.msra.mxu0 %v7172
    %7257 = vmatmul.bf16.gmra.mxu0 %v7041
    %v7258 = vpop.f32.mrf.mxu0
    %v7259 = vadd.f32 0.0, %v7258
    %v7260 = vpop.f32.mrf.mxu0
    %v7261 = vadd.f32 0.0, %v7260
    %7262 = vdwg.mxu0
    %7263 = vmatpush.bf16.msra.mxu0 %v7201
    %7264 = vmatpush.bf16.msra.mxu0 %v7197
    %7265 = vmatpush.bf16.msra.mxu0 %v7193
    %7266 = vmatpush.bf16.msra.mxu0 %v7189
    %7267 = vmatpush.bf16.msra.mxu0 %v7185
    %7268 = vmatpush.bf16.msra.mxu0 %v7181
    %7269 = vmatpush.bf16.msra.mxu0 %v7177
    %7270 = vmatpush.bf16.msra.mxu0 %v7173
    %7271 = vmatmul.bf16.gmra.mxu0 %v7041
    %v7272 = vpop.f32.mrf.mxu0
    %v7273 = vadd.f32 0.0, %v7272
    %v7274 = vpop.f32.mrf.mxu0
    %v7275 = vadd.f32 0.0, %v7274
    %7276 = vdwg.mxu0
    %7277 = vmatpush.bf16.msra.mxu0 %v7202
    %7278 = vmatpush.bf16.msra.mxu0 %v7198
    %7279 = vmatpush.bf16.msra.mxu0 %v7194
    %7280 = vmatpush.bf16.msra.mxu0 %v7190
    %7281 = vmatpush.bf16.msra.mxu0 %v7186
    %7282 = vmatpush.bf16.msra.mxu0 %v7182
    %7283 = vmatpush.bf16.msra.mxu0 %v7178
    %7284 = vmatpush.bf16.msra.mxu0 %v7174
    %7285 = vmatmul.bf16.gmra.mxu0 %v7041
    %v7286 = vpop.f32.mrf.mxu0
    %v7287 = vadd.f32 0.0, %v7286
    %v7288 = vpop.f32.mrf.mxu0
    %v7289 = vadd.f32 0.0, %v7288
    %7290 = vdwg.mxu0
    %v7291 = vadd.f32 %v7028, %v7245
    %v7292 = vadd.f32 %v7029, %v7259
    %v7293 = vadd.f32 %v7030, %v7273
    %v7294 = vadd.f32 %v7031, %v7287
    %v7295 = vadd.f32 %v7032, %v7247
    %v7296 = vadd.f32 %v7033, %v7261
    %v7297 = vadd.f32 %v7034, %v7275
    %v7298 = vadd.f32 %v7035, %v7289
    %v7299 = vrot.slane %v5482, 7
    %v7300 = vrot.slane %v5483, 7
    %vm7301 = vcmp.lt.s32.totalorder %v136, 1
    %v7302 = vsel %vm7301, %v7299, %v7300
    %v7303 = vsel %vm7301, %v7300, %v7299
    %v7304 = vpack.c.bf16 %v7303, %v7302
    %s7305 = scalar_lea.vmem [#allocation10], 1792
    %v7306 = vld [vmem:[%s7305] sm:$0xff]
    %v7307 = vld [vmem:[%s7305 + $0x8] sm:$0xff]
    %v7308 = vld [vmem:[%s7305 + $0x10] sm:$0xff]
    %v7309 = vld [vmem:[%s7305 + $0x18] sm:$0xff]
    %v7310 = vld [vmem:[%s7305 + $0x20] sm:$0xff]
    %v7311 = vld [vmem:[%s7305 + $0x28] sm:$0xff]
    %v7312 = vld [vmem:[%s7305 + $0x30] sm:$0xff]
    %v7313 = vld [vmem:[%s7305 + $0x38] sm:$0xff]
    %v7314 = vld [vmem:[%s7305 + $0x40] sm:$0xff]
    %v7315 = vld [vmem:[%s7305 + $0x48] sm:$0xff]
    %v7316 = vld [vmem:[%s7305 + $0x50] sm:$0xff]
    %v7317 = vld [vmem:[%s7305 + $0x58] sm:$0xff]
    %v7318 = vld [vmem:[%s7305 + $0x60] sm:$0xff]
    %v7319 = vld [vmem:[%s7305 + $0x68] sm:$0xff]
    %v7320 = vld [vmem:[%s7305 + $0x70] sm:$0xff]
    %v7321 = vld [vmem:[%s7305 + $0x78] sm:$0xff]
    %v7322 = vld [vmem:[%s7305 + $0x80] sm:$0xff]
    %v7323 = vld [vmem:[%s7305 + $0x88] sm:$0xff]
    %v7324 = vld [vmem:[%s7305 + $0x90] sm:$0xff]
    %v7325 = vld [vmem:[%s7305 + $0x98] sm:$0xff]
    %v7326 = vld [vmem:[%s7305 + $0xa0] sm:$0xff]
    %v7327 = vld [vmem:[%s7305 + $0xa8] sm:$0xff]
    %v7328 = vld [vmem:[%s7305 + $0xb0] sm:$0xff]
    %v7329 = vld [vmem:[%s7305 + $0xb8] sm:$0xff]
    %v7330 = vld [vmem:[%s7305 + $0xc0] sm:$0xff]
    %v7331 = vld [vmem:[%s7305 + $0xc8] sm:$0xff]
    %v7332 = vld [vmem:[%s7305 + $0xd0] sm:$0xff]
    %v7333 = vld [vmem:[%s7305 + $0xd8] sm:$0xff]
    %v7334 = vld [vmem:[%s7305 + $0xe0] sm:$0xff]
    %v7335 = vld [vmem:[%s7305 + $0xe8] sm:$0xff]
    %v7336 = vld [vmem:[%s7305 + $0xf0] sm:$0xff]
    %v7337 = vld [vmem:[%s7305 + $0xf8] sm:$0xff]
    %v7370 = vunpack.c.l.b16 %v7306
    %v7371 = vunpack.c.h.b16 %v7306
    %v7372 = vunpack.c.l.b16 %v7307
    %v7373 = vunpack.c.h.b16 %v7307
    %v7374 = vunpack.c.l.b16 %v7308
    %v7375 = vunpack.c.h.b16 %v7308
    %v7376 = vunpack.c.l.b16 %v7309
    %v7377 = vunpack.c.h.b16 %v7309
    %v7378 = vunpack.c.l.b16 %v7310
    %v7379 = vunpack.c.h.b16 %v7310
    %v7380 = vunpack.c.l.b16 %v7311
    %v7381 = vunpack.c.h.b16 %v7311
    %v7382 = vunpack.c.l.b16 %v7312
    %v7383 = vunpack.c.h.b16 %v7312
    %v7384 = vunpack.c.l.b16 %v7313
    %v7385 = vunpack.c.h.b16 %v7313
    %v7386 = vunpack.c.l.b16 %v7314
    %v7387 = vunpack.c.h.b16 %v7314
    %v7388 = vunpack.c.l.b16 %v7315
    %v7389 = vunpack.c.h.b16 %v7315
    %v7390 = vunpack.c.l.b16 %v7316
    %v7391 = vunpack.c.h.b16 %v7316
    %v7392 = vunpack.c.l.b16 %v7317
    %v7393 = vunpack.c.h.b16 %v7317
    %v7394 = vunpack.c.l.b16 %v7318
    %v7395 = vunpack.c.h.b16 %v7318
    %v7396 = vunpack.c.l.b16 %v7319
    %v7397 = vunpack.c.h.b16 %v7319
    %v7398 = vunpack.c.l.b16 %v7320
    %v7399 = vunpack.c.h.b16 %v7320
    %v7400 = vunpack.c.l.b16 %v7321
    %v7401 = vunpack.c.h.b16 %v7321
    %v7402 = vunpack.c.l.b16 %v7322
    %v7403 = vunpack.c.h.b16 %v7322
    %v7404 = vunpack.c.l.b16 %v7323
    %v7405 = vunpack.c.h.b16 %v7323
    %v7406 = vunpack.c.l.b16 %v7324
    %v7407 = vunpack.c.h.b16 %v7324
    %v7408 = vunpack.c.l.b16 %v7325
    %v7409 = vunpack.c.h.b16 %v7325
    %v7410 = vunpack.c.l.b16 %v7326
    %v7411 = vunpack.c.h.b16 %v7326
    %v7412 = vunpack.c.l.b16 %v7327
    %v7413 = vunpack.c.h.b16 %v7327
    %v7414 = vunpack.c.l.b16 %v7328
    %v7415 = vunpack.c.h.b16 %v7328
    %v7416 = vunpack.c.l.b16 %v7329
    %v7417 = vunpack.c.h.b16 %v7329
    %v7418 = vunpack.c.l.b16 %v7330
    %v7419 = vunpack.c.h.b16 %v7330
    %v7420 = vunpack.c.l.b16 %v7331
    %v7421 = vunpack.c.h.b16 %v7331
    %v7422 = vunpack.c.l.b16 %v7332
    %v7423 = vunpack.c.h.b16 %v7332
    %v7424 = vunpack.c.l.b16 %v7333
    %v7425 = vunpack.c.h.b16 %v7333
    %v7426 = vunpack.c.l.b16 %v7334
    %v7427 = vunpack.c.h.b16 %v7334
    %v7428 = vunpack.c.l.b16 %v7335
    %v7429 = vunpack.c.h.b16 %v7335
    %v7430 = vunpack.c.l.b16 %v7336
    %v7431 = vunpack.c.h.b16 %v7336
    %v7432 = vunpack.c.l.b16 %v7337
    %v7433 = vunpack.c.h.b16 %v7337
    %v7434 = vpack.c.b16 %v7374, %v7370
    %v7435 = vpack.c.b16 %v7375, %v7371
    %v7436 = vpack.c.b16 %v7376, %v7372
    %v7437 = vpack.c.b16 %v7377, %v7373
    %v7438 = vpack.c.b16 %v7382, %v7378
    %v7439 = vpack.c.b16 %v7383, %v7379
    %v7440 = vpack.c.b16 %v7384, %v7380
    %v7441 = vpack.c.b16 %v7385, %v7381
    %v7442 = vpack.c.b16 %v7390, %v7386
    %v7443 = vpack.c.b16 %v7391, %v7387
    %v7444 = vpack.c.b16 %v7392, %v7388
    %v7445 = vpack.c.b16 %v7393, %v7389
    %v7446 = vpack.c.b16 %v7398, %v7394
    %v7447 = vpack.c.b16 %v7399, %v7395
    %v7448 = vpack.c.b16 %v7400, %v7396
    %v7449 = vpack.c.b16 %v7401, %v7397
    %v7450 = vpack.c.b16 %v7406, %v7402
    %v7451 = vpack.c.b16 %v7407, %v7403
    %v7452 = vpack.c.b16 %v7408, %v7404
    %v7453 = vpack.c.b16 %v7409, %v7405
    %v7454 = vpack.c.b16 %v7414, %v7410
    %v7455 = vpack.c.b16 %v7415, %v7411
    %v7456 = vpack.c.b16 %v7416, %v7412
    %v7457 = vpack.c.b16 %v7417, %v7413
    %v7458 = vpack.c.b16 %v7422, %v7418
    %v7459 = vpack.c.b16 %v7423, %v7419
    %v7460 = vpack.c.b16 %v7424, %v7420
    %v7461 = vpack.c.b16 %v7425, %v7421
    %v7462 = vpack.c.b16 %v7430, %v7426
    %v7463 = vpack.c.b16 %v7431, %v7427
    %v7464 = vpack.c.b16 %v7432, %v7428
    %v7465 = vpack.c.b16 %v7433, %v7429
    %7498 = vmatpush.bf16.msra.mxu0 %v7462
    %7499 = vmatpush.bf16.msra.mxu0 %v7458
    %7500 = vmatpush.bf16.msra.mxu0 %v7454
    %7501 = vmatpush.bf16.msra.mxu0 %v7450
    %7502 = vmatpush.bf16.msra.mxu0 %v7446
    %7503 = vmatpush.bf16.msra.mxu0 %v7442
    %7504 = vmatpush.bf16.msra.mxu0 %v7438
    %7505 = vmatpush.bf16.msra.mxu0 %v7434
    %7506 = vmatmul.bf16.gmra.mxu0 %v7304
    %v7507 = vpop.f32.mrf.mxu0
    %v7508 = vadd.f32 0.0, %v7507
    %v7509 = vpop.f32.mrf.mxu0
    %v7510 = vadd.f32 0.0, %v7509
    %7511 = vdwg.mxu0
    %7512 = vmatpush.bf16.msra.mxu0 %v7463
    %7513 = vmatpush.bf16.msra.mxu0 %v7459
    %7514 = vmatpush.bf16.msra.mxu0 %v7455
    %7515 = vmatpush.bf16.msra.mxu0 %v7451
    %7516 = vmatpush.bf16.msra.mxu0 %v7447
    %7517 = vmatpush.bf16.msra.mxu0 %v7443
    %7518 = vmatpush.bf16.msra.mxu0 %v7439
    %7519 = vmatpush.bf16.msra.mxu0 %v7435
    %7520 = vmatmul.bf16.gmra.mxu0 %v7304
    %v7521 = vpop.f32.mrf.mxu0
    %v7522 = vadd.f32 0.0, %v7521
    %v7523 = vpop.f32.mrf.mxu0
    %v7524 = vadd.f32 0.0, %v7523
    %7525 = vdwg.mxu0
    %7526 = vmatpush.bf16.msra.mxu0 %v7464
    %7527 = vmatpush.bf16.msra.mxu0 %v7460
    %7528 = vmatpush.bf16.msra.mxu0 %v7456
    %7529 = vmatpush.bf16.msra.mxu0 %v7452
    %7530 = vmatpush.bf16.msra.mxu0 %v7448
    %7531 = vmatpush.bf16.msra.mxu0 %v7444
    %7532 = vmatpush.bf16.msra.mxu0 %v7440
    %7533 = vmatpush.bf16.msra.mxu0 %v7436
    %7534 = vmatmul.bf16.gmra.mxu0 %v7304
    %v7535 = vpop.f32.mrf.mxu0
    %v7536 = vadd.f32 0.0, %v7535
    %v7537 = vpop.f32.mrf.mxu0
    %v7538 = vadd.f32 0.0, %v7537
    %7539 = vdwg.mxu0
    %7540 = vmatpush.bf16.msra.mxu0 %v7465
    %7541 = vmatpush.bf16.msra.mxu0 %v7461
    %7542 = vmatpush.bf16.msra.mxu0 %v7457
    %7543 = vmatpush.bf16.msra.mxu0 %v7453
    %7544 = vmatpush.bf16.msra.mxu0 %v7449
    %7545 = vmatpush.bf16.msra.mxu0 %v7445
    %7546 = vmatpush.bf16.msra.mxu0 %v7441
    %7547 = vmatpush.bf16.msra.mxu0 %v7437
    %7548 = vmatmul.bf16.gmra.mxu0 %v7304
    %v7549 = vpop.f32.mrf.mxu0
    %v7550 = vadd.f32 0.0, %v7549
    %v7551 = vpop.f32.mrf.mxu0
    %v7552 = vadd.f32 0.0, %v7551
    %7553 = vdwg.mxu0
    %v7554 = vadd.f32 %v7291, %v7508
    %v7555 = vadd.f32 %v7292, %v7522
    %v7556 = vadd.f32 %v7293, %v7536
    %v7557 = vadd.f32 %v7294, %v7550
    %v7558 = vadd.f32 %v7295, %v7510
    %v7559 = vadd.f32 %v7296, %v7524
    %v7560 = vadd.f32 %v7297, %v7538
    %v7561 = vadd.f32 %v7298, %v7552
    %v7566 = vrot.slane %v7558, 7
    %v7567 = vrot.slane %v7559, 7
    %v7568 = vrot.slane %v7560, 7
    %v7569 = vrot.slane %v7561, 7
    %v7574 = vsel %vm741, %v7554, %v7566
    %v7575 = vsel %vm741, %v7555, %v7567
    %v7576 = vsel %vm741, %v7556, %v7568
    %v7577 = vsel %vm741, %v7557, %v7569
    %v7578 = vld [vmem:[#allocation13] ss:$4 sm:$0xf]
    %v7580 = vperm.slane %v7578, 0
    %v7581 = vperm.slane %v7578, 1
    %v7582 = vperm.slane %v7578, 2
    %v7583 = vperm.slane %v7578, 3
    %v7588 = vadd.f32 %v7574, %v7580
    %v7589 = vadd.f32 %v7575, %v7581
    %v7590 = vadd.f32 %v7576, %v7582
    %v7591 = vadd.f32 %v7577, %v7583
    %v7592 = vmax.f32 %v7588, 0.0
    %v7593 = vmax.f32 %v7589, 0.0
    %v7594 = vmax.f32 %v7590, 0.0
    %v7595 = vmax.f32 %v7591, 0.0
    %v7596 = vpack.c.bf16 %v7592, %v7592
    %v7597 = vpack.c.bf16 %v7593, %v7593
    %v7598 = vpack.c.bf16 %v7594, %v7594
    %v7599 = vpack.c.bf16 %v7595, %v7595
    %v7600 = vld [vmem:[#allocation11] sm:$0xff]
    %v7601 = vld [vmem:[#allocation11 + $0x8] sm:$0xff]
    %v7602 = vld [vmem:[#allocation11 + $0x10] sm:$0xff]
    %v7603 = vld [vmem:[#allocation11 + $0x18] sm:$0xff]
    %v7604 = vld [vmem:[#allocation11 + $0x20] sm:$0xff]
    %v7605 = vld [vmem:[#allocation11 + $0x28] sm:$0xff]
    %v7606 = vld [vmem:[#allocation11 + $0x30] sm:$0xff]
    %v7607 = vld [vmem:[#allocation11 + $0x38] sm:$0xff]
    %v7608 = vld [vmem:[#allocation11 + $0x40] sm:$0xff]
    %v7609 = vld [vmem:[#allocation11 + $0x48] sm:$0xff]
    %v7610 = vld [vmem:[#allocation11 + $0x50] sm:$0xff]
    %v7611 = vld [vmem:[#allocation11 + $0x58] sm:$0xff]
    %v7612 = vld [vmem:[#allocation11 + $0x60] sm:$0xff]
    %v7613 = vld [vmem:[#allocation11 + $0x68] sm:$0xff]
    %v7614 = vld [vmem:[#allocation11 + $0x70] sm:$0xff]
    %v7615 = vld [vmem:[#allocation11 + $0x78] sm:$0xff]
    %v7616 = vld [vmem:[#allocation11 + $0x80] sm:$0xff]
    %v7617 = vld [vmem:[#allocation11 + $0x88] sm:$0xff]
    %v7618 = vld [vmem:[#allocation11 + $0x90] sm:$0xff]
    %v7619 = vld [vmem:[#allocation11 + $0x98] sm:$0xff]
    %v7620 = vld [vmem:[#allocation11 + $0xa0] sm:$0xff]
    %v7621 = vld [vmem:[#allocation11 + $0xa8] sm:$0xff]
    %v7622 = vld [vmem:[#allocation11 + $0xb0] sm:$0xff]
    %v7623 = vld [vmem:[#allocation11 + $0xb8] sm:$0xff]
    %v7624 = vld [vmem:[#allocation11 + $0xc0] sm:$0xff]
    %v7625 = vld [vmem:[#allocation11 + $0xc8] sm:$0xff]
    %v7626 = vld [vmem:[#allocation11 + $0xd0] sm:$0xff]
    %v7627 = vld [vmem:[#allocation11 + $0xd8] sm:$0xff]
    %v7628 = vld [vmem:[#allocation11 + $0xe0] sm:$0xff]
    %v7629 = vld [vmem:[#allocation11 + $0xe8] sm:$0xff]
    %v7630 = vld [vmem:[#allocation11 + $0xf0] sm:$0xff]
    %v7631 = vld [vmem:[#allocation11 + $0xf8] sm:$0xff]
    %v7632 = vld [vmem:[#allocation11 + $0x100] sm:$0xff]
    %v7633 = vld [vmem:[#allocation11 + $0x108] sm:$0xff]
    %v7634 = vld [vmem:[#allocation11 + $0x110] sm:$0xff]
    %v7635 = vld [vmem:[#allocation11 + $0x118] sm:$0xff]
    %v7636 = vld [vmem:[#allocation11 + $0x120] sm:$0xff]
    %v7637 = vld [vmem:[#allocation11 + $0x128] sm:$0xff]
    %v7638 = vld [vmem:[#allocation11 + $0x130] sm:$0xff]
    %v7639 = vld [vmem:[#allocation11 + $0x138] sm:$0xff]
    %v7640 = vld [vmem:[#allocation11 + $0x140] sm:$0xff]
    %v7641 = vld [vmem:[#allocation11 + $0x148] sm:$0xff]
    %v7642 = vld [vmem:[#allocation11 + $0x150] sm:$0xff]
    %v7643 = vld [vmem:[#allocation11 + $0x158] sm:$0xff]
    %v7644 = vld [vmem:[#allocation11 + $0x160] sm:$0xff]
    %v7645 = vld [vmem:[#allocation11 + $0x168] sm:$0xff]
    %v7646 = vld [vmem:[#allocation11 + $0x170] sm:$0xff]
    %v7647 = vld [vmem:[#allocation11 + $0x178] sm:$0xff]
    %v7648 = vld [vmem:[#allocation11 + $0x180] sm:$0xff]
    %v7649 = vld [vmem:[#allocation11 + $0x188] sm:$0xff]
    %v7650 = vld [vmem:[#allocation11 + $0x190] sm:$0xff]
    %v7651 = vld [vmem:[#allocation11 + $0x198] sm:$0xff]
    %v7652 = vld [vmem:[#allocation11 + $0x1a0] sm:$0xff]
    %v7653 = vld [vmem:[#allocation11 + $0x1a8] sm:$0xff]
    %v7654 = vld [vmem:[#allocation11 + $0x1b0] sm:$0xff]
    %v7655 = vld [vmem:[#allocation11 + $0x1b8] sm:$0xff]
    %v7656 = vld [vmem:[#allocation11 + $0x1c0] sm:$0xff]
    %v7657 = vld [vmem:[#allocation11 + $0x1c8] sm:$0xff]
    %v7658 = vld [vmem:[#allocation11 + $0x1d0] sm:$0xff]
    %v7659 = vld [vmem:[#allocation11 + $0x1d8] sm:$0xff]
    %v7660 = vld [vmem:[#allocation11 + $0x1e0] sm:$0xff]
    %v7661 = vld [vmem:[#allocation11 + $0x1e8] sm:$0xff]
    %v7662 = vld [vmem:[#allocation11 + $0x1f0] sm:$0xff]
    %v7663 = vld [vmem:[#allocation11 + $0x1f8] sm:$0xff]
    %s7664 = scalar_lea.vmem [#allocation13], 1
    %v7665 = vld [vmem:[%s7664] ss:$4 sm:$0x3]
    %v7667 = vperm.slane %v7665, 0
    %v7668 = vperm.slane %v7665, 1
    %v7735 = vunpack.c.l.b16 %v7600
    %v7736 = vunpack.c.h.b16 %v7600
    %v7737 = vunpack.c.l.b16 %v7601
    %v7738 = vunpack.c.h.b16 %v7601
    %v7739 = vunpack.c.l.b16 %v7602
    %v7740 = vunpack.c.h.b16 %v7602
    %v7741 = vunpack.c.l.b16 %v7603
    %v7742 = vunpack.c.h.b16 %v7603
    %v7743 = vunpack.c.l.b16 %v7604
    %v7744 = vunpack.c.h.b16 %v7604
    %v7745 = vunpack.c.l.b16 %v7605
    %v7746 = vunpack.c.h.b16 %v7605
    %v7747 = vunpack.c.l.b16 %v7606
    %v7748 = vunpack.c.h.b16 %v7606
    %v7749 = vunpack.c.l.b16 %v7607
    %v7750 = vunpack.c.h.b16 %v7607
    %v7751 = vunpack.c.l.b16 %v7608
    %v7752 = vunpack.c.h.b16 %v7608
    %v7753 = vunpack.c.l.b16 %v7609
    %v7754 = vunpack.c.h.b16 %v7609
    %v7755 = vunpack.c.l.b16 %v7610
    %v7756 = vunpack.c.h.b16 %v7610
    %v7757 = vunpack.c.l.b16 %v7611
    %v7758 = vunpack.c.h.b16 %v7611
    %v7759 = vunpack.c.l.b16 %v7612
    %v7760 = vunpack.c.h.b16 %v7612
    %v7761 = vunpack.c.l.b16 %v7613
    %v7762 = vunpack.c.h.b16 %v7613
    %v7763 = vunpack.c.l.b16 %v7614
    %v7764 = vunpack.c.h.b16 %v7614
    %v7765 = vunpack.c.l.b16 %v7615
    %v7766 = vunpack.c.h.b16 %v7615
    %v7767 = vunpack.c.l.b16 %v7616
    %v7768 = vunpack.c.h.b16 %v7616
    %v7769 = vunpack.c.l.b16 %v7617
    %v7770 = vunpack.c.h.b16 %v7617
    %v7771 = vunpack.c.l.b16 %v7618
    %v7772 = vunpack.c.h.b16 %v7618
    %v7773 = vunpack.c.l.b16 %v7619
    %v7774 = vunpack.c.h.b16 %v7619
    %v7775 = vunpack.c.l.b16 %v7620
    %v7776 = vunpack.c.h.b16 %v7620
    %v7777 = vunpack.c.l.b16 %v7621
    %v7778 = vunpack.c.h.b16 %v7621
    %v7779 = vunpack.c.l.b16 %v7622
    %v7780 = vunpack.c.h.b16 %v7622
    %v7781 = vunpack.c.l.b16 %v7623
    %v7782 = vunpack.c.h.b16 %v7623
    %v7783 = vunpack.c.l.b16 %v7624
    %v7784 = vunpack.c.h.b16 %v7624
    %v7785 = vunpack.c.l.b16 %v7625
    %v7786 = vunpack.c.h.b16 %v7625
    %v7787 = vunpack.c.l.b16 %v7626
    %v7788 = vunpack.c.h.b16 %v7626
    %v7789 = vunpack.c.l.b16 %v7627
    %v7790 = vunpack.c.h.b16 %v7627
    %v7791 = vunpack.c.l.b16 %v7628
    %v7792 = vunpack.c.h.b16 %v7628
    %v7793 = vunpack.c.l.b16 %v7629
    %v7794 = vunpack.c.h.b16 %v7629
    %v7795 = vunpack.c.l.b16 %v7630
    %v7796 = vunpack.c.h.b16 %v7630
    %v7797 = vunpack.c.l.b16 %v7631
    %v7798 = vunpack.c.h.b16 %v7631
    %v7799 = vunpack.c.l.b16 %v7632
    %v7800 = vunpack.c.h.b16 %v7632
    %v7801 = vunpack.c.l.b16 %v7633
    %v7802 = vunpack.c.h.b16 %v7633
    %v7803 = vunpack.c.l.b16 %v7634
    %v7804 = vunpack.c.h.b16 %v7634
    %v7805 = vunpack.c.l.b16 %v7635
    %v7806 = vunpack.c.h.b16 %v7635
    %v7807 = vunpack.c.l.b16 %v7636
    %v7808 = vunpack.c.h.b16 %v7636
    %v7809 = vunpack.c.l.b16 %v7637
    %v7810 = vunpack.c.h.b16 %v7637
    %v7811 = vunpack.c.l.b16 %v7638
    %v7812 = vunpack.c.h.b16 %v7638
    %v7813 = vunpack.c.l.b16 %v7639
    %v7814 = vunpack.c.h.b16 %v7639
    %v7815 = vunpack.c.l.b16 %v7640
    %v7816 = vunpack.c.h.b16 %v7640
    %v7817 = vunpack.c.l.b16 %v7641
    %v7818 = vunpack.c.h.b16 %v7641
    %v7819 = vunpack.c.l.b16 %v7642
    %v7820 = vunpack.c.h.b16 %v7642
    %v7821 = vunpack.c.l.b16 %v7643
    %v7822 = vunpack.c.h.b16 %v7643
    %v7823 = vunpack.c.l.b16 %v7644
    %v7824 = vunpack.c.h.b16 %v7644
    %v7825 = vunpack.c.l.b16 %v7645
    %v7826 = vunpack.c.h.b16 %v7645
    %v7827 = vunpack.c.l.b16 %v7646
    %v7828 = vunpack.c.h.b16 %v7646
    %v7829 = vunpack.c.l.b16 %v7647
    %v7830 = vunpack.c.h.b16 %v7647
    %v7831 = vunpack.c.l.b16 %v7648
    %v7832 = vunpack.c.h.b16 %v7648
    %v7833 = vunpack.c.l.b16 %v7649
    %v7834 = vunpack.c.h.b16 %v7649
    %v7835 = vunpack.c.l.b16 %v7650
    %v7836 = vunpack.c.h.b16 %v7650
    %v7837 = vunpack.c.l.b16 %v7651
    %v7838 = vunpack.c.h.b16 %v7651
    %v7839 = vunpack.c.l.b16 %v7652
    %v7840 = vunpack.c.h.b16 %v7652
    %v7841 = vunpack.c.l.b16 %v7653
    %v7842 = vunpack.c.h.b16 %v7653
    %v7843 = vunpack.c.l.b16 %v7654
    %v7844 = vunpack.c.h.b16 %v7654
    %v7845 = vunpack.c.l.b16 %v7655
    %v7846 = vunpack.c.h.b16 %v7655
    %v7847 = vunpack.c.l.b16 %v7656
    %v7848 = vunpack.c.h.b16 %v7656
    %v7849 = vunpack.c.l.b16 %v7657
    %v7850 = vunpack.c.h.b16 %v7657
    %v7851 = vunpack.c.l.b16 %v7658
    %v7852 = vunpack.c.h.b16 %v7658
    %v7853 = vunpack.c.l.b16 %v7659
    %v7854 = vunpack.c.h.b16 %v7659
    %v7855 = vunpack.c.l.b16 %v7660
    %v7856 = vunpack.c.h.b16 %v7660
    %v7857 = vunpack.c.l.b16 %v7661
    %v7858 = vunpack.c.h.b16 %v7661
    %v7859 = vunpack.c.l.b16 %v7662
    %v7860 = vunpack.c.h.b16 %v7662
    %v7861 = vunpack.c.l.b16 %v7663
    %v7862 = vunpack.c.h.b16 %v7663
    %v7863 = vpack.c.b16 %v7737, %v7735
    %v7864 = vpack.c.b16 %v7738, %v7736
    %v7865 = vpack.c.b16 %v7741, %v7739
    %v7866 = vpack.c.b16 %v7742, %v7740
    %v7867 = vpack.c.b16 %v7745, %v7743
    %v7868 = vpack.c.b16 %v7746, %v7744
    %v7869 = vpack.c.b16 %v7749, %v7747
    %v7870 = vpack.c.b16 %v7750, %v7748
    %v7871 = vpack.c.b16 %v7753, %v7751
    %v7872 = vpack.c.b16 %v7754, %v7752
    %v7873 = vpack.c.b16 %v7757, %v7755
    %v7874 = vpack.c.b16 %v7758, %v7756
    %v7875 = vpack.c.b16 %v7761, %v7759
    %v7876 = vpack.c.b16 %v7762, %v7760
    %v7877 = vpack.c.b16 %v7765, %v7763
    %v7878 = vpack.c.b16 %v7766, %v7764
    %v7879 = vpack.c.b16 %v7769, %v7767
    %v7880 = vpack.c.b16 %v7770, %v7768
    %v7881 = vpack.c.b16 %v7773, %v7771
    %v7882 = vpack.c.b16 %v7774, %v7772
    %v7883 = vpack.c.b16 %v7777, %v7775
    %v7884 = vpack.c.b16 %v7778, %v7776
    %v7885 = vpack.c.b16 %v7781, %v7779
    %v7886 = vpack.c.b16 %v7782, %v7780
    %v7887 = vpack.c.b16 %v7785, %v7783
    %v7888 = vpack.c.b16 %v7786, %v7784
    %v7889 = vpack.c.b16 %v7789, %v7787
    %v7890 = vpack.c.b16 %v7790, %v7788
    %v7891 = vpack.c.b16 %v7793, %v7791
    %v7892 = vpack.c.b16 %v7794, %v7792
    %v7893 = vpack.c.b16 %v7797, %v7795
    %v7894 = vpack.c.b16 %v7798, %v7796
    %v7895 = vpack.c.b16 %v7801, %v7799
    %v7896 = vpack.c.b16 %v7802, %v7800
    %v7897 = vpack.c.b16 %v7805, %v7803
    %v7898 = vpack.c.b16 %v7806, %v7804
    %v7899 = vpack.c.b16 %v7809, %v7807
    %v7900 = vpack.c.b16 %v7810, %v7808
    %v7901 = vpack.c.b16 %v7813, %v7811
    %v7902 = vpack.c.b16 %v7814, %v7812
    %v7903 = vpack.c.b16 %v7817, %v7815
    %v7904 = vpack.c.b16 %v7818, %v7816
    %v7905 = vpack.c.b16 %v7821, %v7819
    %v7906 = vpack.c.b16 %v7822, %v7820
    %v7907 = vpack.c.b16 %v7825, %v7823
    %v7908 = vpack.c.b16 %v7826, %v7824
    %v7909 = vpack.c.b16 %v7829, %v7827
    %v7910 = vpack.c.b16 %v7830, %v7828
    %v7911 = vpack.c.b16 %v7833, %v7831
    %v7912 = vpack.c.b16 %v7834, %v7832
    %v7913 = vpack.c.b16 %v7837, %v7835
    %v7914 = vpack.c.b16 %v7838, %v7836
    %v7915 = vpack.c.b16 %v7841, %v7839
    %v7916 = vpack.c.b16 %v7842, %v7840
    %v7917 = vpack.c.b16 %v7845, %v7843
    %v7918 = vpack.c.b16 %v7846, %v7844
    %v7919 = vpack.c.b16 %v7849, %v7847
    %v7920 = vpack.c.b16 %v7850, %v7848
    %v7921 = vpack.c.b16 %v7853, %v7851
    %v7922 = vpack.c.b16 %v7854, %v7852
    %v7923 = vpack.c.b16 %v7857, %v7855
    %v7924 = vpack.c.b16 %v7858, %v7856
    %v7925 = vpack.c.b16 %v7861, %v7859
    %v7926 = vpack.c.b16 %v7862, %v7860
    %7991 = vmatpush.bf16.msra.mxu0 %v7877
    %7992 = vmatpush.bf16.msra.mxu0 %v7875
    %7993 = vmatpush.bf16.msra.mxu0 %v7873
    %7994 = vmatpush.bf16.msra.mxu0 %v7871
    %7995 = vmatpush.bf16.msra.mxu0 %v7869
    %7996 = vmatpush.bf16.msra.mxu0 %v7867
    %7997 = vmatpush.bf16.msra.mxu0 %v7865
    %7998 = vmatpush.bf16.msra.mxu0 %v7863
    %7999 = vmatmul.bf16.gmra.mxu0 %v7596
    %v8000 = vpop.f32.mrf.mxu0
    %v8001 = vadd.f32 %v7667, %v8000
    %v8002 = vpop.f32.mrf.mxu0
    %8003 = vdwg.mxu0
    %8004 = vmatpush.bf16.msra.mxu0 %v7893
    %8005 = vmatpush.bf16.msra.mxu0 %v7891
    %8006 = vmatpush.bf16.msra.mxu0 %v7889
    %8007 = vmatpush.bf16.msra.mxu0 %v7887
    %8008 = vmatpush.bf16.msra.mxu0 %v7885
    %8009 = vmatpush.bf16.msra.mxu0 %v7883
    %8010 = vmatpush.bf16.msra.mxu0 %v7881
    %8011 = vmatpush.bf16.msra.mxu0 %v7879
    %8012 = vmatmul.bf16.gmra.mxu0 %v7597
    %v8013 = vpop.f32.mrf.mxu0
    %v8014 = vadd.f32 %v8001, %v8013
    %v8015 = vpop.f32.mrf.mxu0
    %8016 = vdwg.mxu0
    %8017 = vmatpush.bf16.msra.mxu0 %v7909
    %8018 = vmatpush.bf16.msra.mxu0 %v7907
    %8019 = vmatpush.bf16.msra.mxu0 %v7905
    %8020 = vmatpush.bf16.msra.mxu0 %v7903
    %8021 = vmatpush.bf16.msra.mxu0 %v7901
    %8022 = vmatpush.bf16.msra.mxu0 %v7899
    %8023 = vmatpush.bf16.msra.mxu0 %v7897
    %8024 = vmatpush.bf16.msra.mxu0 %v7895
    %8025 = vmatmul.bf16.gmra.mxu0 %v7598
    %v8026 = vpop.f32.mrf.mxu0
    %v8027 = vadd.f32 %v8014, %v8026
    %v8028 = vpop.f32.mrf.mxu0
    %8029 = vdwg.mxu0
    %8030 = vmatpush.bf16.msra.mxu0 %v7925
    %8031 = vmatpush.bf16.msra.mxu0 %v7923
    %8032 = vmatpush.bf16.msra.mxu0 %v7921
    %8033 = vmatpush.bf16.msra.mxu0 %v7919
    %8034 = vmatpush.bf16.msra.mxu0 %v7917
    %8035 = vmatpush.bf16.msra.mxu0 %v7915
    %8036 = vmatpush.bf16.msra.mxu0 %v7913
    %8037 = vmatpush.bf16.msra.mxu0 %v7911
    %8038 = vmatmul.bf16.gmra.mxu0 %v7599
    %v8039 = vpop.f32.mrf.mxu0
    %v8040 = vadd.f32 %v8027, %v8039
    %v8041 = vpop.f32.mrf.mxu0
    %8042 = vdwg.mxu0
    %8043 = vmatpush.bf16.msra.mxu0 %v7878
    %8044 = vmatpush.bf16.msra.mxu0 %v7876
    %8045 = vmatpush.bf16.msra.mxu0 %v7874
    %8046 = vmatpush.bf16.msra.mxu0 %v7872
    %8047 = vmatpush.bf16.msra.mxu0 %v7870
    %8048 = vmatpush.bf16.msra.mxu0 %v7868
    %8049 = vmatpush.bf16.msra.mxu0 %v7866
    %8050 = vmatpush.bf16.msra.mxu0 %v7864
    %8051 = vmatmul.bf16.gmra.mxu0 %v7596
    %v8052 = vpop.f32.mrf.mxu0
    %v8053 = vadd.f32 %v7668, %v8052
    %v8054 = vpop.f32.mrf.mxu0
    %8055 = vdwg.mxu0
    %8056 = vmatpush.bf16.msra.mxu0 %v7894
    %8057 = vmatpush.bf16.msra.mxu0 %v7892
    %8058 = vmatpush.bf16.msra.mxu0 %v7890
    %8059 = vmatpush.bf16.msra.mxu0 %v7888
    %8060 = vmatpush.bf16.msra.mxu0 %v7886
    %8061 = vmatpush.bf16.msra.mxu0 %v7884
    %8062 = vmatpush.bf16.msra.mxu0 %v7882
    %8063 = vmatpush.bf16.msra.mxu0 %v7880
    %8064 = vmatmul.bf16.gmra.mxu0 %v7597
    %v8065 = vpop.f32.mrf.mxu0
    %v8066 = vadd.f32 %v8053, %v8065
    %v8067 = vpop.f32.mrf.mxu0
    %8068 = vdwg.mxu0
    %8069 = vmatpush.bf16.msra.mxu0 %v7910
    %8070 = vmatpush.bf16.msra.mxu0 %v7908
    %8071 = vmatpush.bf16.msra.mxu0 %v7906
    %8072 = vmatpush.bf16.msra.mxu0 %v7904
    %8073 = vmatpush.bf16.msra.mxu0 %v7902
    %8074 = vmatpush.bf16.msra.mxu0 %v7900
    %8075 = vmatpush.bf16.msra.mxu0 %v7898
    %8076 = vmatpush.bf16.msra.mxu0 %v7896
    %8077 = vmatmul.bf16.gmra.mxu0 %v7598
    %v8078 = vpop.f32.mrf.mxu0
    %v8079 = vadd.f32 %v8066, %v8078
    %v8080 = vpop.f32.mrf.mxu0
    %8081 = vdwg.mxu0
    %8082 = vmatpush.bf16.msra.mxu0 %v7926
    %8083 = vmatpush.bf16.msra.mxu0 %v7924
    %8084 = vmatpush.bf16.msra.mxu0 %v7922
    %8085 = vmatpush.bf16.msra.mxu0 %v7920
    %8086 = vmatpush.bf16.msra.mxu0 %v7918
    %8087 = vmatpush.bf16.msra.mxu0 %v7916
    %8088 = vmatpush.bf16.msra.mxu0 %v7914
    %8089 = vmatpush.bf16.msra.mxu0 %v7912
    %8090 = vmatmul.bf16.gmra.mxu0 %v7599
    %v8091 = vpop.f32.mrf.mxu0
    %v8092 = vadd.f32 %v8079, %v8091
    %v8093 = vpop.f32.mrf.mxu0
    %8094 = vdwg.mxu0
    %v8095 = vmax.f32 %v8040, 0.0
    %v8096 = vmax.f32 %v8092, 0.0
    %v8097 = vpack.c.bf16 %v8095, %v8095
    %v8098 = vpack.c.bf16 %v8096, %v8096
    %s8099 = scalar_lea.vmem [#allocation11], 512
    %v8100 = vld [vmem:[%s8099] sm:$0xf]
    %v8101 = vld [vmem:[%s8099 + $0x8] sm:$0xf]
    %v8102 = vld [vmem:[%s8099 + $0x10] sm:$0xf]
    %v8103 = vld [vmem:[%s8099 + $0x18] sm:$0xf]
    %v8104 = vld [vmem:[%s8099 + $0x20] sm:$0xf]
    %v8105 = vld [vmem:[%s8099 + $0x28] sm:$0xf]
    %v8106 = vld [vmem:[%s8099 + $0x30] sm:$0xf]
    %v8107 = vld [vmem:[%s8099 + $0x38] sm:$0xf]
    %v8108 = vld [vmem:[%s8099 + $0x40] sm:$0xf]
    %v8109 = vld [vmem:[%s8099 + $0x48] sm:$0xf]
    %v8110 = vld [vmem:[%s8099 + $0x50] sm:$0xf]
    %v8111 = vld [vmem:[%s8099 + $0x58] sm:$0xf]
    %v8112 = vld [vmem:[%s8099 + $0x60] sm:$0xf]
    %v8113 = vld [vmem:[%s8099 + $0x68] sm:$0xf]
    %v8114 = vld [vmem:[%s8099 + $0x70] sm:$0xf]
    %v8115 = vld [vmem:[%s8099 + $0x78] sm:$0xf]
    %v8116 = vld [vmem:[%s8099 + $0x80] sm:$0xf]
    %v8117 = vld [vmem:[%s8099 + $0x88] sm:$0xf]
    %v8118 = vld [vmem:[%s8099 + $0x90] sm:$0xf]
    %v8119 = vld [vmem:[%s8099 + $0x98] sm:$0xf]
    %v8120 = vld [vmem:[%s8099 + $0xa0] sm:$0xf]
    %v8121 = vld [vmem:[%s8099 + $0xa8] sm:$0xf]
    %v8122 = vld [vmem:[%s8099 + $0xb0] sm:$0xf]
    %v8123 = vld [vmem:[%s8099 + $0xb8] sm:$0xf]
    %v8124 = vld [vmem:[%s8099 + $0xc0] sm:$0xf]
    %v8125 = vld [vmem:[%s8099 + $0xc8] sm:$0xf]
    %v8126 = vld [vmem:[%s8099 + $0xd0] sm:$0xf]
    %v8127 = vld [vmem:[%s8099 + $0xd8] sm:$0xf]
    %v8128 = vld [vmem:[%s8099 + $0xe0] sm:$0xf]
    %v8129 = vld [vmem:[%s8099 + $0xe8] sm:$0xf]
    %v8130 = vld [vmem:[%s8099 + $0xf0] sm:$0xf]
    %v8131 = vld [vmem:[%s8099 + $0xf8] sm:$0xf]
    %v8132 = vld [vmem:[#allocation13 + $0x2] sm:$0x1]
    %v8133 = vperm.slane %v8132, 0
    %v8166 = vunpack.c.l.b16 %v8100
    %v8167 = vunpack.c.l.b16 %v8101
    %v8168 = vunpack.c.l.b16 %v8102
    %v8169 = vunpack.c.l.b16 %v8103
    %v8170 = vunpack.c.l.b16 %v8104
    %v8171 = vunpack.c.l.b16 %v8105
    %v8172 = vunpack.c.l.b16 %v8106
    %v8173 = vunpack.c.l.b16 %v8107
    %v8174 = vunpack.c.l.b16 %v8108
    %v8175 = vunpack.c.l.b16 %v8109
    %v8176 = vunpack.c.l.b16 %v8110
    %v8177 = vunpack.c.l.b16 %v8111
    %v8178 = vunpack.c.l.b16 %v8112
    %v8179 = vunpack.c.l.b16 %v8113
    %v8180 = vunpack.c.l.b16 %v8114
    %v8181 = vunpack.c.l.b16 %v8115
    %v8182 = vunpack.c.l.b16 %v8116
    %v8183 = vunpack.c.l.b16 %v8117
    %v8184 = vunpack.c.l.b16 %v8118
    %v8185 = vunpack.c.l.b16 %v8119
    %v8186 = vunpack.c.l.b16 %v8120
    %v8187 = vunpack.c.l.b16 %v8121
    %v8188 = vunpack.c.l.b16 %v8122
    %v8189 = vunpack.c.l.b16 %v8123
    %v8190 = vunpack.c.l.b16 %v8124
    %v8191 = vunpack.c.l.b16 %v8125
    %v8192 = vunpack.c.l.b16 %v8126
    %v8193 = vunpack.c.l.b16 %v8127
    %v8194 = vunpack.c.l.b16 %v8128
    %v8195 = vunpack.c.l.b16 %v8129
    %v8196 = vunpack.c.l.b16 %v8130
    %v8197 = vunpack.c.l.b16 %v8131
    %v8198 = vpack.c.b16 %v8167, %v8166
    %v8199 = vpack.c.b16 %v8169, %v8168
    %v8200 = vpack.c.b16 %v8171, %v8170
    %v8201 = vpack.c.b16 %v8173, %v8172
    %v8202 = vpack.c.b16 %v8175, %v8174
    %v8203 = vpack.c.b16 %v8177, %v8176
    %v8204 = vpack.c.b16 %v8179, %v8178
    %v8205 = vpack.c.b16 %v8181, %v8180
    %v8206 = vpack.c.b16 %v8183, %v8182
    %v8207 = vpack.c.b16 %v8185, %v8184
    %v8208 = vpack.c.b16 %v8187, %v8186
    %v8209 = vpack.c.b16 %v8189, %v8188
    %v8210 = vpack.c.b16 %v8191, %v8190
    %v8211 = vpack.c.b16 %v8193, %v8192
    %v8212 = vpack.c.b16 %v8195, %v8194
    %v8213 = vpack.c.b16 %v8197, %v8196
    %8230 = vmatpush.bf16.msra.mxu0 %v8205
    %8231 = vmatpush.bf16.msra.mxu0 %v8204
    %8232 = vmatpush.bf16.msra.mxu0 %v8203
    %8233 = vmatpush.bf16.msra.mxu0 %v8202
    %8234 = vmatpush.bf16.msra.mxu0 %v8201
    %8235 = vmatpush.bf16.msra.mxu0 %v8200
    %8236 = vmatpush.bf16.msra.mxu0 %v8199
    %8237 = vmatpush.bf16.msra.mxu0 %v8198
    %8238 = vmatmul.bf16.gmra.mxu0 %v8097
    %v8239 = vpop.f32.mrf.mxu0
    %v8240 = vadd.f32 %v8133, %v8239
    %v8241 = vpop.f32.mrf.mxu0
    %8242 = vdwg.mxu0
    %8243 = vmatpush.bf16.msra.mxu0 %v8213
    %8244 = vmatpush.bf16.msra.mxu0 %v8212
    %8245 = vmatpush.bf16.msra.mxu0 %v8211
    %8246 = vmatpush.bf16.msra.mxu0 %v8210
    %8247 = vmatpush.bf16.msra.mxu0 %v8209
    %8248 = vmatpush.bf16.msra.mxu0 %v8208
    %8249 = vmatpush.bf16.msra.mxu0 %v8207
    %8250 = vmatpush.bf16.msra.mxu0 %v8206
    %8251 = vmatmul.bf16.gmra.mxu0 %v8098
    %v8252 = vpop.f32.mrf.mxu0
    %v8253 = vadd.f32 %v8240, %v8252
    %v8254 = vpop.f32.mrf.mxu0
    %8255 = vdwg.mxu0
    %v8256 = vmax.f32 %v8253, 0.0
    %v8257 = vpack.c.bf16 %v8256, %v8256
    %s8258 = scalar_lea.vmem [#allocation11], 1024
    %v8259 = vld [vmem:[%s8258] sm:$0xf]
    %v8260 = vld [vmem:[%s8258 + $0x8] sm:$0xf]
    %v8261 = vld [vmem:[%s8258 + $0x10] sm:$0xf]
    %v8262 = vld [vmem:[%s8258 + $0x18] sm:$0xf]
    %v8263 = vld [vmem:[%s8258 + $0x20] sm:$0xf]
    %v8264 = vld [vmem:[%s8258 + $0x28] sm:$0xf]
    %v8265 = vld [vmem:[%s8258 + $0x30] sm:$0xf]
    %v8266 = vld [vmem:[%s8258 + $0x38] sm:$0xf]
    %v8267 = vld [vmem:[#allocation13 + $0x3] sm:$0x1]
    %v8268 = vperm.slane %v8267, 0
    %v8277 = vunpack.c.l.b16 %v8259
    %v8278 = vunpack.c.l.b16 %v8260
    %v8279 = vunpack.c.l.b16 %v8261
    %v8280 = vunpack.c.l.b16 %v8262
    %v8281 = vunpack.c.l.b16 %v8263
    %v8282 = vunpack.c.l.b16 %v8264
    %v8283 = vunpack.c.l.b16 %v8265
    %v8284 = vunpack.c.l.b16 %v8266
    %v8285 = vpack.c.b16 %v8278, %v8277
    %v8286 = vpack.c.b16 %v8280, %v8279
    %v8287 = vpack.c.b16 %v8282, %v8281
    %v8288 = vpack.c.b16 %v8284, %v8283
    %vm8293 = vcmask 523264
    %v8295 = vsel %vm8293, %v8257, 0
    %8297 = vmatpush.bf16.msra.mxu0 0
    %8298 = vmatpush.bf16.msra.mxu0 0
    %8299 = vmatpush.bf16.msra.mxu0 0
    %8300 = vmatpush.bf16.msra.mxu0 0
    %8301 = vmatpush.bf16.msra.mxu0 %v8288
    %8302 = vmatpush.bf16.msra.mxu0 %v8287
    %8303 = vmatpush.bf16.msra.mxu0 %v8286
    %8304 = vmatpush.bf16.msra.mxu0 %v8285
    %8305 = vmatmul.bf16.gmra.mxu0 %v8295
    %v8306 = vpop.f32.mrf.mxu0
    %v8307 = vadd.f32 %v8268, %v8306
    %v8308 = vpop.f32.mrf.mxu0
    %8309 = vdwg.mxu0
    %vm8310 = vcmask 123904
    %8311 = vst.msk [vmem:[#allocation14] sm:$0x3] %vm8310, %v8307
    // Predicated region
    $region58: #{net_forward.1} parent=1 // pred_check
      _
    $region59: #{net_forward.1} parent=1 // pred_check_branch
      %8313 = sbr.rel (0) target = $region61
    $region60: #{net_forward.1} parent=1 // pred_region
      %8315 = vsyncadd [#allocation4], 0
      %s8317 = sshll.u32 [#allocation14], 4
      %s8318 = int_to_ptr.vmem [resolvable:$true] %s8317
      %s8319 = sshll.u32 %s7, 4
      %s8320 = int_to_ptr.hbm [resolvable:$true] %s8319
      %8322 = dma.vmem_to_hbm [thread:$0]  %s8318, 32, %s8320, [#allocation4]
    $region61: #{net_forward.1} parent=1 // pred_fallthru
      _
    // Predicated region
    $region62: #{net_forward.1} parent=1 // pred_check
      _
    $region63: #{net_forward.1} parent=1 // pred_check_branch
      %8324 = sbr.rel (0) target = $region65
    $region64: #{net_forward.1} parent=1 // pred_region
      %8326 = dma.done [#allocation4], 32
    $region65: #{net_forward.1} parent=1 // pred_fallthru
      _
    %8327 = vsyncpa [#allocation3], 1
    %8328 = vsyncpa [#allocation6], 1
    %8329 = vsyncpa [#allocation9], 1
    %8330 = vsyncpa [#allocation12], 1
    %8331 = vsyncpa [#allocation4], 1

</llo_original>
